<compile_context>
chip_gen: v7x
topology: tpu7x:2x2x1
jax: 0.10.0
libtpu: 0.0.40
codegen_flags: <defaults>
</compile_context>

<pallas_src>
import jax
import jax.numpy as jnp
from jax import lax
from jax.experimental import pallas as pl
from jax.experimental.pallas import tpu as pltpu

NUM_LAYERS = 5  # layers actually used by StockAgent.forward


def stock_agent_kernel(x_ref, wih0_ref, b0_ref, whh_ref, wfold_ref, bfold_ref,
                       wd5_ref, bd5_ref, out_ref, g_ref):
    T, B, L = x_ref.shape

    # Layer-0 x-side gate projection, hoisted out of the recurrence.
    # (g-gate columns of wih0/whh/b0 are pre-scaled by 2 in prepare_params.)
    x2 = x_ref[...].reshape(T * B, L)
    g_ref[...] = (jnp.dot(x2, wih0_ref[...], preferred_element_type=jnp.float32)
                  + b0_ref[...]).reshape(T, B, 4 * L)

    # h / c live in vregs as loop carries (no VMEM round-trip on the serial path)
    # and are threaded across layers, matching `x, h = self.lstmN(x, h)`.
    h = jnp.zeros((B, L), jnp.float32)
    c = jnp.zeros((B, L), jnp.float32)

    for layer in range(NUM_LAYERS):
        whh = whh_ref[layer]                      # (L, 4L), [i | f | g | o]
        last = layer == NUM_LAYERS - 1
        if last:
            w_out = wd5_ref[...]                  # real dense5
            b_out = bd5_ref[...]
        else:
            w_out = wfold_ref[layer]              # dense_l folded into wih_{l+1}
            b_out = bfold_ref[layer]

        def step(t, carry, whh=whh, w_out=w_out, b_out=b_out, last=last):
            h, c = carry
            # Only the recurrent matmul is on the per-step critical path.
            gates = g_ref[t] + jnp.dot(h, whh, preferred_element_type=jnp.float32)
            s = jax.nn.sigmoid(gates)             # one EUP push, full 128 lanes
            i = s[:, 0 * L:1 * L]
            f = s[:, 1 * L:2 * L]
            g = 2.0 * s[:, 2 * L:3 * L] - 1.0     # tanh(x) = 2*sigmoid(2x) - 1
            o = s[:, 3 * L:4 * L]
            c = f * c + i * g
            h = o * jnp.tanh(c)
            if last:
                # tanh + dense5 -> final output row t.
                out_ref[t] = (jnp.dot(jnp.tanh(h), w_out,
                                      preferred_element_type=jnp.float32) + b_out)
            else:
                # ReLU + (dense_l ∘ wih_{l+1}) fused: next layer's gate precompute
                # for timestep t, interleaved with this layer's recurrence.
                # g_ref[t] was already consumed above, so in-place overwrite is safe.
                g_ref[t] = (jnp.dot(jnp.maximum(h, 0.0), w_out,
                                    preferred_element_type=jnp.float32) + b_out)
            return (h, c)

        h, c = lax.fori_loop(0, T, step, (h, c), unroll=True)


def prepare_params(wih, whh, b, wd, bd):
    """One-time weight preprocessing (hoisted out of the per-call path).

    * g-gate (cell-candidate) columns of wih/whh/b are pre-scaled by 2 so a
      single lane-dense sigmoid inside the kernel recovers all four gates.
    * dense1..dense4 are folded into the next layer's input projection:
        W_fold[l] = wd[l] @ wih_s[l+1],  b_fold[l] = bd[l] @ wih_s[l+1] + b_s[l+1]
      (exact in real arithmetic; only f32 re-association changes).
    """
    L = wih.shape[1]
    scale = jnp.concatenate([jnp.ones((2 * L,), jnp.float32),
                             jnp.full((L,), 2.0, jnp.float32),
                             jnp.ones((L,), jnp.float32)])
    wih_s = wih * scale
    whh_s = whh * scale
    b_s = b * scale

    wfold = jnp.einsum('lij,ljk->lik', wd[:NUM_LAYERS - 1], wih_s[1:NUM_LAYERS])
    bfold = (jnp.einsum('lij,ljk->lik', bd[:NUM_LAYERS - 1], wih_s[1:NUM_LAYERS])
             + b_s[1:NUM_LAYERS])

    return dict(wih0=wih_s[0], b0=b_s[0], whh=whh_s,
                wfold=wfold, bfold=bfold,
                wd5=wd[NUM_LAYERS - 1], bd5=bd[NUM_LAYERS - 1])


def stock_agent_forward(x, params):
    T, B, L = x.shape

    # Advisory cost estimate: recurrent + layer-0 + folded-boundary + dense5
    # matmuls; sigmoid/tanh transcendentals.
    flops = (NUM_LAYERS * T * B * L * 4 * L * 2        # h @ whh per step
             + T * B * L * 4 * L * 2                   # layer-0 x projection
             + (NUM_LAYERS - 1) * T * B * L * 4 * L * 2  # folded boundaries
             + T * B * L * L * 2)                      # dense5
    transcendentals = NUM_LAYERS * T * B * 5 * L + T * B * L
    bytes_accessed = 4 * (x.size + sum(int(v.size) for v in params.values())
                          + T * B * L)

    vmem = pl.BlockSpec(memory_space=pltpu.MemorySpace.VMEM)
    return pl.pallas_call(
        stock_agent_kernel,
        out_shape=jax.ShapeDtypeStruct((T, B, L), jnp.float32),
        in_specs=[vmem] * 8,
        out_specs=vmem,
        scratch_shapes=[
            pltpu.VMEM((T, B, 4 * L), jnp.float32),   # per-layer x-side gate rows
        ],
        cost_estimate=pl.CostEstimate(
            flops=flops,
            transcendentals=transcendentals,
            bytes_accessed=bytes_accessed),
    )(x, params['wih0'], params['b0'], params['whh'],
      params['wfold'], params['bfold'], params['wd5'], params['bd5'])


def stock_agent_reference(x, wih, whh, b, wd, bd):
    """Pure-JAX reference with identical (unfused) semantics."""
    T, B, L = x.shape
    h = jnp.zeros((B, L), jnp.float32)
    c = jnp.zeros((B, L), jnp.float32)
    xf = x.astype(jnp.float32)
    for layer in range(NUM_LAYERS):
        def step(carry, xt, layer=layer):
            h, c = carry
            gates = xt @ wih[layer] + h @ whh[layer] + b[layer]
            i = jax.nn.sigmoid(gates[:, :L])
            f = jax.nn.sigmoid(gates[:, L:2 * L])
            g = jnp.tanh(gates[:, 2 * L:3 * L])
            o = jax.nn.sigmoid(gates[:, 3 * L:])
            c = f * c + i * g
            h = o * jnp.tanh(c)
            return (h, c), h
        (h, c), xf = lax.scan(step, (h, c), xf)
        xf = jnp.tanh(xf) if layer == NUM_LAYERS - 1 else jax.nn.relu(xf)
        xf = xf @ wd[layer] + bd[layer]
    return xf


def init_params(key, L):
    """Deterministic synthetic params, PyTorch-style U(-1/sqrt(L), 1/sqrt(L))."""
    k = 1.0 / jnp.sqrt(jnp.float32(L))
    keys = jax.random.split(key, 6)
    wih = jax.random.uniform(keys[0], (NUM_LAYERS, L, 4 * L), jnp.float32, -k, k)
    whh = jax.random.uniform(keys[1], (NUM_LAYERS, L, 4 * L), jnp.float32, -k, k)
    b_ih = jax.random.uniform(keys[2], (NUM_LAYERS, 1, 4 * L), jnp.float32, -k, k)
    b_hh = jax.random.uniform(keys[3], (NUM_LAYERS, 1, 4 * L), jnp.float32, -k, k)
    b = b_ih + b_hh
    wd = jax.random.uniform(keys[4], (NUM_LAYERS, L, L), jnp.float32, -k, k)
    bd = jax.random.uniform(keys[5], (NUM_LAYERS, 1, L), jnp.float32, -k, k)
    return wih, whh, b, wd, bd


if __name__ == "__main__":
    T, B, L = 8, 2, 32   # window length = 32 ("length"), seq len 8, batch 2
    key = jax.random.PRNGKey(0)
    kx, kp = jax.random.split(key)
    x = jax.random.normal(kx, (T, B, L), jnp.float32)
    wih, whh, b, wd, bd = init_params(kp, L)

    # One-time weight preprocessing (would be cached alongside the weights).
    params = prepare_params(wih, whh, b, wd, bd)
    params = jax.tree_util.tree_map(jax.block_until_ready, params)

    out = stock_agent_forward(x, params)
    out = jax.block_until_ready(out)

    ref = stock_agent_reference(x, wih, whh, b, wd, bd)
    assert out.shape == (T, B, L)
    # Tolerance covers the (mathematically exact) 2*sigmoid(2x)-1 rewrite and
    # f32 re-association from folding dense_l into wih_{l+1}.
    assert jnp.allclose(out, ref, atol=1e-4, rtol=1e-4), (
        f"max abs err {jnp.max(jnp.abs(out - ref))}")

    print("KERNEL_OK")
</pallas_src>

<mosaic_0001>
module attributes {stable_mosaic.version = 11 : i64} {
  func.func @stock_agent_kernel(%arg0: memref<8x2x32xf32, #tpu.memory_space<vmem>>, %arg1: memref<32x128xf32, #tpu.memory_space<vmem>>, %arg2: memref<1x128xf32, #tpu.memory_space<vmem>>, %arg3: memref<5x32x128xf32, #tpu.memory_space<vmem>>, %arg4: memref<4x32x128xf32, #tpu.memory_space<vmem>>, %arg5: memref<4x1x128xf32, #tpu.memory_space<vmem>>, %arg6: memref<32x32xf32, #tpu.memory_space<vmem>>, %arg7: memref<1x32xf32, #tpu.memory_space<vmem>>, %arg8: memref<8x2x32xf32, #tpu.memory_space<vmem>>, %arg9: memref<8x2x128xf32, #tpu.memory_space<vmem>>) attributes {dimension_semantics = [], scalar_prefetch = 0 : i64, scratch_operands = 1 : i64, tpu.core_type = #tpu.core_type<tc>} {
    %c0 = arith.constant 0 : index
    %c0_0 = arith.constant 0 : index
    %c0_1 = arith.constant 0 : index
    %0 = vector.load %arg0[%c0, %c0_0, %c0_1] : memref<8x2x32xf32, #tpu.memory_space<vmem>>, vector<8x2x32xf32>
    %1 = vector.shape_cast %0 : vector<8x2x32xf32> to vector<16x32xf32>
    %c0_2 = arith.constant 0 : index
    %c0_3 = arith.constant 0 : index
    %2 = vector.load %arg1[%c0_2, %c0_3] : memref<32x128xf32, #tpu.memory_space<vmem>>, vector<32x128xf32>
    %cst = arith.constant dense<0.000000e+00> : vector<16x128xf32>
    %3 = tpu.matmul %1, %2, %cst {dimension_numbers = #tpu.dot_dimension_numbers<[1], [0], [0], [1], [0, 0, 1, 1], [], []>} : vector<16x32xf32>, vector<32x128xf32>, vector<16x128xf32> -> vector<16x128xf32>
    %c0_4 = arith.constant 0 : index
    %c0_5 = arith.constant 0 : index
    %4 = vector.load %arg2[%c0_4, %c0_5] : memref<1x128xf32, #tpu.memory_space<vmem>>, vector<1x128xf32>
    %5 = vector.broadcast %4 : vector<1x128xf32> to vector<16x128xf32>
    %6 = arith.addf %3, %5 : vector<16x128xf32>
    %7 = vector.shape_cast %6 : vector<16x128xf32> to vector<8x2x128xf32>
    %c0_6 = arith.constant 0 : index
    %c0_7 = arith.constant 0 : index
    %c0_8 = arith.constant 0 : index
    %8 = vector.load %arg9[%c0_6, %c0_7, %c0_8] : memref<8x2x128xf32, #tpu.memory_space<vmem>>, vector<8x2x128xf32>
    tpu.vector_store %arg9[%c0_6, %c0_7, %c0_8], %7 {strides = array<i32>} : memref<8x2x128xf32, #tpu.memory_space<vmem>>, vector<8x2x128xf32>,
    %cst_9 = arith.constant 0.000000e+00 : f32
    %9 = vector.broadcast %cst_9 : f32 to vector<2x32xf32>
    %cst_10 = arith.constant 0.000000e+00 : f32
    %10 = vector.broadcast %cst_10 : f32 to vector<2x32xf32>
    %c0_11 = arith.constant 0 : index
    %c0_12 = arith.constant 0 : index
    %c0_13 = arith.constant 0 : index
    %11 = vector.load %arg3[%c0_11, %c0_12, %c0_13] : memref<5x32x128xf32, #tpu.memory_space<vmem>>, vector<1x32x128xf32>
    %12 = vector.shape_cast %11 : vector<1x32x128xf32> to vector<32x128xf32>
    %c0_14 = arith.constant 0 : index
    %c0_15 = arith.constant 0 : index
    %c0_16 = arith.constant 0 : index
    %13 = vector.load %arg4[%c0_14, %c0_15, %c0_16] : memref<4x32x128xf32, #tpu.memory_space<vmem>>, vector<1x32x128xf32>
    %14 = vector.shape_cast %13 : vector<1x32x128xf32> to vector<32x128xf32>
    %c0_17 = arith.constant 0 : index
    %c0_18 = arith.constant 0 : index
    %c0_19 = arith.constant 0 : index
    %15 = vector.load %arg5[%c0_17, %c0_18, %c0_19] : memref<4x1x128xf32, #tpu.memory_space<vmem>>, vector<1x1x128xf32>
    %16 = vector.shape_cast %15 : vector<1x1x128xf32> to vector<1x128xf32>
    %c0_i32 = arith.constant 0 : i32
    %17 = arith.index_cast %c0_i32 : i32 to index
    %c0_20 = arith.constant 0 : index
    %c0_21 = arith.constant 0 : index
    %18 = vector.load %arg9[%17, %c0_20, %c0_21] : memref<8x2x128xf32, #tpu.memory_space<vmem>>, vector<1x2x128xf32>
    %19 = vector.shape_cast %18 : vector<1x2x128xf32> to vector<2x128xf32>
    %cst_22 = arith.constant dense<0.000000e+00> : vector<2x128xf32>
    %20 = tpu.matmul %9, %12, %cst_22 {dimension_numbers = #tpu.dot_dimension_numbers<[1], [0], [0], [1], [0, 0, 1, 1], [], []>} : vector<2x32xf32>, vector<32x128xf32>, vector<2x128xf32> -> vector<2x128xf32>
    %21 = arith.addf %19, %20 : vector<2x128xf32>
    %22 = arith.negf %21 : vector<2x128xf32>
    %23 = math.exp %22 : vector<2x128xf32>
    %cst_23 = arith.constant 1.000000e+00 : f32
    %24 = vector.broadcast %cst_23 : f32 to vector<2x128xf32>
    %25 = arith.addf %24, %23 : vector<2x128xf32>
    %26 = arith.divf %24, %25 : vector<2x128xf32>
    %27 = vector.extract_strided_slice %26 {offsets = [0, 0], sizes = [2, 32], strides = [1, 1]} : vector<2x128xf32> to vector<2x32xf32>
    %28 = vector.extract_strided_slice %26 {offsets = [0, 32], sizes = [2, 32], strides = [1, 1]} : vector<2x128xf32> to vector<2x32xf32>
    %29 = vector.extract_strided_slice %26 {offsets = [0, 64], sizes = [2, 32], strides = [1, 1]} : vector<2x128xf32> to vector<2x32xf32>
    %cst_24 = arith.constant 2.000000e+00 : f32
    %30 = vector.broadcast %cst_24 : f32 to vector<2x32xf32>
    %31 = arith.mulf %30, %29 : vector<2x32xf32>
    %cst_25 = arith.constant 1.000000e+00 : f32
    %32 = vector.broadcast %cst_25 : f32 to vector<2x32xf32>
    %33 = arith.subf %31, %32 : vector<2x32xf32>
    %34 = vector.extract_strided_slice %26 {offsets = [0, 96], sizes = [2, 32], strides = [1, 1]} : vector<2x128xf32> to vector<2x32xf32>
    %35 = arith.mulf %28, %10 : vector<2x32xf32>
    %36 = arith.mulf %27, %33 : vector<2x32xf32>
    %37 = arith.addf %35, %36 : vector<2x32xf32>
    %38 = math.tanh %37 : vector<2x32xf32>
    %39 = arith.mulf %34, %38 : vector<2x32xf32>
    %cst_26 = arith.constant 0.000000e+00 : f32
    %40 = vector.broadcast %cst_26 : f32 to vector<2x32xf32>
    %41 = arith.maximumf %39, %40 : vector<2x32xf32>
    %cst_27 = arith.constant dense<0.000000e+00> : vector<2x128xf32>
    %42 = tpu.matmul %41, %14, %cst_27 {dimension_numbers = #tpu.dot_dimension_numbers<[1], [0], [0], [1], [0, 0, 1, 1], [], []>} : vector<2x32xf32>, vector<32x128xf32>, vector<2x128xf32> -> vector<2x128xf32>
    %43 = vector.broadcast %16 : vector<1x128xf32> to vector<2x128xf32>
    %44 = arith.addf %42, %43 : vector<2x128xf32>
    %45 = arith.index_cast %c0_i32 : i32 to index
    %c0_28 = arith.constant 0 : index
    %c0_29 = arith.constant 0 : index
    %46 = vector.load %arg9[%45, %c0_28, %c0_29] : memref<8x2x128xf32, #tpu.memory_space<vmem>>, vector<1x2x128xf32>
    %47 = vector.shape_cast %46 : vector<1x2x128xf32> to vector<2x128xf32>
    %48 = vector.shape_cast %44 : vector<2x128xf32> to vector<1x2x128xf32>
    tpu.vector_store %arg9[%45, %c0_28, %c0_29], %48 {strides = array<i32>} : memref<8x2x128xf32, #tpu.memory_space<vmem>>, vector<1x2x128xf32>,
    %c1_i32 = arith.constant 1 : i32
    %49 = arith.index_cast %c1_i32 : i32 to index
    %c0_30 = arith.constant 0 : index
    %c0_31 = arith.constant 0 : index
    %50 = vector.load %arg9[%49, %c0_30, %c0_31] : memref<8x2x128xf32, #tpu.memory_space<vmem>>, vector<1x2x128xf32>
    %51 = vector.shape_cast %50 : vector<1x2x128xf32> to vector<2x128xf32>
    %cst_32 = arith.constant dense<0.000000e+00> : vector<2x128xf32>
    %52 = tpu.matmul %39, %12, %cst_32 {dimension_numbers = #tpu.dot_dimension_numbers<[1], [0], [0], [1], [0, 0, 1, 1], [], []>} : vector<2x32xf32>, vector<32x128xf32>, vector<2x128xf32> -> vector<2x128xf32>
    %53 = arith.addf %51, %52 : vector<2x128xf32>
    %54 = arith.negf %53 : vector<2x128xf32>
    %55 = math.exp %54 : vector<2x128xf32>
    %cst_33 = arith.constant 1.000000e+00 : f32
    %56 = vector.broadcast %cst_33 : f32 to vector<2x128xf32>
    %57 = arith.addf %56, %55 : vector<2x128xf32>
    %58 = arith.divf %56, %57 : vector<2x128xf32>
    %59 = vector.extract_strided_slice %58 {offsets = [0, 0], sizes = [2, 32], strides = [1, 1]} : vector<2x128xf32> to vector<2x32xf32>
    %60 = vector.extract_strided_slice %58 {offsets = [0, 32], sizes = [2, 32], strides = [1, 1]} : vector<2x128xf32> to vector<2x32xf32>
    %61 = vector.extract_strided_slice %58 {offsets = [0, 64], sizes = [2, 32], strides = [1, 1]} : vector<2x128xf32> to vector<2x32xf32>
    %cst_34 = arith.constant 2.000000e+00 : f32
    %62 = vector.broadcast %cst_34 : f32 to vector<2x32xf32>
    %63 = arith.mulf %62, %61 : vector<2x32xf32>
    %cst_35 = arith.constant 1.000000e+00 : f32
    %64 = vector.broadcast %cst_35 : f32 to vector<2x32xf32>
    %65 = arith.subf %63, %64 : vector<2x32xf32>
    %66 = vector.extract_strided_slice %58 {offsets = [0, 96], sizes = [2, 32], strides = [1, 1]} : vector<2x128xf32> to vector<2x32xf32>
    %67 = arith.mulf %60, %37 : vector<2x32xf32>
    %68 = arith.mulf %59, %65 : vector<2x32xf32>
    %69 = arith.addf %67, %68 : vector<2x32xf32>
    %70 = math.tanh %69 : vector<2x32xf32>
    %71 = arith.mulf %66, %70 : vector<2x32xf32>
    %cst_36 = arith.constant 0.000000e+00 : f32
    %72 = vector.broadcast %cst_36 : f32 to vector<2x32xf32>
    %73 = arith.maximumf %71, %72 : vector<2x32xf32>
    %cst_37 = arith.constant dense<0.000000e+00> : vector<2x128xf32>
    %74 = tpu.matmul %73, %14, %cst_37 {dimension_numbers = #tpu.dot_dimension_numbers<[1], [0], [0], [1], [0, 0, 1, 1], [], []>} : vector<2x32xf32>, vector<32x128xf32>, vector<2x128xf32> -> vector<2x128xf32>
    %75 = vector.broadcast %16 : vector<1x128xf32> to vector<2x128xf32>
    %76 = arith.addf %74, %75 : vector<2x128xf32>
    %77 = arith.index_cast %c1_i32 : i32 to index
    %c0_38 = arith.constant 0 : index
    %c0_39 = arith.constant 0 : index
    %78 = vector.load %arg9[%77, %c0_38, %c0_39] : memref<8x2x128xf32, #tpu.memory_space<vmem>>, vector<1x2x128xf32>
    %79 = vector.shape_cast %78 : vector<1x2x128xf32> to vector<2x128xf32>
    %80 = vector.shape_cast %76 : vector<2x128xf32> to vector<1x2x128xf32>
    tpu.vector_store %arg9[%77, %c0_38, %c0_39], %80 {strides = array<i32>} : memref<8x2x128xf32, #tpu.memory_space<vmem>>, vector<1x2x128xf32>,
    %c2_i32 = arith.constant 2 : i32
    %81 = arith.index_cast %c2_i32 : i32 to index
    %c0_40 = arith.constant 0 : index
    %c0_41 = arith.constant 0 : index
    %82 = vector.load %arg9[%81, %c0_40, %c0_41] : memref<8x2x128xf32, #tpu.memory_space<vmem>>, vector<1x2x128xf32>
    %83 = vector.shape_cast %82 : vector<1x2x128xf32> to vector<2x128xf32>
    %cst_42 = arith.constant dense<0.000000e+00> : vector<2x128xf32>
    %84 = tpu.matmul %71, %12, %cst_42 {dimension_numbers = #tpu.dot_dimension_numbers<[1], [0], [0], [1], [0, 0, 1, 1], [], []>} : vector<2x32xf32>, vector<32x128xf32>, vector<2x128xf32> -> vector<2x128xf32>
    %85 = arith.addf %83, %84 : vector<2x128xf32>
    %86 = arith.negf %85 : vector<2x128xf32>
    %87 = math.exp %86 : vector<2x128xf32>
    %cst_43 = arith.constant 1.000000e+00 : f32
    %88 = vector.broadcast %cst_43 : f32 to vector<2x128xf32>
    %89 = arith.addf %88, %87 : vector<2x128xf32>
    %90 = arith.divf %88, %89 : vector<2x128xf32>
    %91 = vector.extract_strided_slice %90 {offsets = [0, 0], sizes = [2, 32], strides = [1, 1]} : vector<2x128xf32> to vector<2x32xf32>
    %92 = vector.extract_strided_slice %90 {offsets = [0, 32], sizes = [2, 32], strides = [1, 1]} : vector<2x128xf32> to vector<2x32xf32>
    %93 = vector.extract_strided_slice %90 {offsets = [0, 64], sizes = [2, 32], strides = [1, 1]} : vector<2x128xf32> to vector<2x32xf32>
    %cst_44 = arith.constant 2.000000e+00 : f32
    %94 = vector.broadcast %cst_44 : f32 to vector<2x32xf32>
    %95 = arith.mulf %94, %93 : vector<2x32xf32>
    %cst_45 = arith.constant 1.000000e+00 : f32
    %96 = vector.broadcast %cst_45 : f32 to vector<2x32xf32>
    %97 = arith.subf %95, %96 : vector<2x32xf32>
    %98 = vector.extract_strided_slice %90 {offsets = [0, 96], sizes = [2, 32], strides = [1, 1]} : vector<2x128xf32> to vector<2x32xf32>
    %99 = arith.mulf %92, %69 : vector<2x32xf32>
    %100 = arith.mulf %91, %97 : vector<2x32xf32>
    %101 = arith.addf %99, %100 : vector<2x32xf32>
    %102 = math.tanh %101 : vector<2x32xf32>
    %103 = arith.mulf %98, %102 : vector<2x32xf32>
    %cst_46 = arith.constant 0.000000e+00 : f32
    %104 = vector.broadcast %cst_46 : f32 to vector<2x32xf32>
    %105 = arith.maximumf %103, %104 : vector<2x32xf32>
    %cst_47 = arith.constant dense<0.000000e+00> : vector<2x128xf32>
    %106 = tpu.matmul %105, %14, %cst_47 {dimension_numbers = #tpu.dot_dimension_numbers<[1], [0], [0], [1], [0, 0, 1, 1], [], []>} : vector<2x32xf32>, vector<32x128xf32>, vector<2x128xf32> -> vector<2x128xf32>
    %107 = vector.broadcast %16 : vector<1x128xf32> to vector<2x128xf32>
    %108 = arith.addf %106, %107 : vector<2x128xf32>
    %109 = arith.index_cast %c2_i32 : i32 to index
    %c0_48 = arith.constant 0 : index
    %c0_49 = arith.constant 0 : index
    %110 = vector.load %arg9[%109, %c0_48, %c0_49] : memref<8x2x128xf32, #tpu.memory_space<vmem>>, vector<1x2x128xf32>
    %111 = vector.shape_cast %110 : vector<1x2x128xf32> to vector<2x128xf32>
    %112 = vector.shape_cast %108 : vector<2x128xf32> to vector<1x2x128xf32>
    tpu.vector_store %arg9[%109, %c0_48, %c0_49], %112 {strides = array<i32>} : memref<8x2x128xf32, #tpu.memory_space<vmem>>, vector<1x2x128xf32>,
    %c3_i32 = arith.constant 3 : i32
    %113 = arith.index_cast %c3_i32 : i32 to index
    %c0_50 = arith.constant 0 : index
    %c0_51 = arith.constant 0 : index
    %114 = vector.load %arg9[%113, %c0_50, %c0_51] : memref<8x2x128xf32, #tpu.memory_space<vmem>>, vector<1x2x128xf32>
    %115 = vector.shape_cast %114 : vector<1x2x128xf32> to vector<2x128xf32>
    %cst_52 = arith.constant dense<0.000000e+00> : vector<2x128xf32>
    %116 = tpu.matmul %103, %12, %cst_52 {dimension_numbers = #tpu.dot_dimension_numbers<[1], [0], [0], [1], [0, 0, 1, 1], [], []>} : vector<2x32xf32>, vector<32x128xf32>, vector<2x128xf32> -> vector<2x128xf32>
    %117 = arith.addf %115, %116 : vector<2x128xf32>
    %118 = arith.negf %117 : vector<2x128xf32>
    %119 = math.exp %118 : vector<2x128xf32>
    %cst_53 = arith.constant 1.000000e+00 : f32
    %120 = vector.broadcast %cst_53 : f32 to vector<2x128xf32>
    %121 = arith.addf %120, %119 : vector<2x128xf32>
    %122 = arith.divf %120, %121 : vector<2x128xf32>
    %123 = vector.extract_strided_slice %122 {offsets = [0, 0], sizes = [2, 32], strides = [1, 1]} : vector<2x128xf32> to vector<2x32xf32>
    %124 = vector.extract_strided_slice %122 {offsets = [0, 32], sizes = [2, 32], strides = [1, 1]} : vector<2x128xf32> to vector<2x32xf32>
    %125 = vector.extract_strided_slice %122 {offsets = [0, 64], sizes = [2, 32], strides = [1, 1]} : vector<2x128xf32> to vector<2x32xf32>
    %cst_54 = arith.constant 2.000000e+00 : f32
    %126 = vector.broadcast %cst_54 : f32 to vector<2x32xf32>
    %127 = arith.mulf %126, %125 : vector<2x32xf32>
    %cst_55 = arith.constant 1.000000e+00 : f32
    %128 = vector.broadcast %cst_55 : f32 to vector<2x32xf32>
    %129 = arith.subf %127, %128 : vector<2x32xf32>
    %130 = vector.extract_strided_slice %122 {offsets = [0, 96], sizes = [2, 32], strides = [1, 1]} : vector<2x128xf32> to vector<2x32xf32>
    %131 = arith.mulf %124, %101 : vector<2x32xf32>
    %132 = arith.mulf %123, %129 : vector<2x32xf32>
    %133 = arith.addf %131, %132 : vector<2x32xf32>
    %134 = math.tanh %133 : vector<2x32xf32>
    %135 = arith.mulf %130, %134 : vector<2x32xf32>
    %cst_56 = arith.constant 0.000000e+00 : f32
    %136 = vector.broadcast %cst_56 : f32 to vector<2x32xf32>
    %137 = arith.maximumf %135, %136 : vector<2x32xf32>
    %cst_57 = arith.constant dense<0.000000e+00> : vector<2x128xf32>
    %138 = tpu.matmul %137, %14, %cst_57 {dimension_numbers = #tpu.dot_dimension_numbers<[1], [0], [0], [1], [0, 0, 1, 1], [], []>} : vector<2x32xf32>, vector<32x128xf32>, vector<2x128xf32> -> vector<2x128xf32>
    %139 = vector.broadcast %16 : vector<1x128xf32> to vector<2x128xf32>
    %140 = arith.addf %138, %139 : vector<2x128xf32>
    %141 = arith.index_cast %c3_i32 : i32 to index
    %c0_58 = arith.constant 0 : index
    %c0_59 = arith.constant 0 : index
    %142 = vector.load %arg9[%141, %c0_58, %c0_59] : memref<8x2x128xf32, #tpu.memory_space<vmem>>, vector<1x2x128xf32>
    %143 = vector.shape_cast %142 : vector<1x2x128xf32> to vector<2x128xf32>
    %144 = vector.shape_cast %140 : vector<2x128xf32> to vector<1x2x128xf32>
    tpu.vector_store %arg9[%141, %c0_58, %c0_59], %144 {strides = array<i32>} : memref<8x2x128xf32, #tpu.memory_space<vmem>>, vector<1x2x128xf32>,
    %c4_i32 = arith.constant 4 : i32
    %145 = arith.index_cast %c4_i32 : i32 to index
    %c0_60 = arith.constant 0 : index
    %c0_61 = arith.constant 0 : index
    %146 = vector.load %arg9[%145, %c0_60, %c0_61] : memref<8x2x128xf32, #tpu.memory_space<vmem>>, vector<1x2x128xf32>
    %147 = vector.shape_cast %146 : vector<1x2x128xf32> to vector<2x128xf32>
    %cst_62 = arith.constant dense<0.000000e+00> : vector<2x128xf32>
    %148 = tpu.matmul %135, %12, %cst_62 {dimension_numbers = #tpu.dot_dimension_numbers<[1], [0], [0], [1], [0, 0, 1, 1], [], []>} : vector<2x32xf32>, vector<32x128xf32>, vector<2x128xf32> -> vector<2x128xf32>
    %149 = arith.addf %147, %148 : vector<2x128xf32>
    %150 = arith.negf %149 : vector<2x128xf32>
    %151 = math.exp %150 : vector<2x128xf32>
    %cst_63 = arith.constant 1.000000e+00 : f32
    %152 = vector.broadcast %cst_63 : f32 to vector<2x128xf32>
    %153 = arith.addf %152, %151 : vector<2x128xf32>
    %154 = arith.divf %152, %153 : vector<2x128xf32>
    %155 = vector.extract_strided_slice %154 {offsets = [0, 0], sizes = [2, 32], strides = [1, 1]} : vector<2x128xf32> to vector<2x32xf32>
    %156 = vector.extract_strided_slice %154 {offsets = [0, 32], sizes = [2, 32], strides = [1, 1]} : vector<2x128xf32> to vector<2x32xf32>
    %157 = vector.extract_strided_slice %154 {offsets = [0, 64], sizes = [2, 32], strides = [1, 1]} : vector<2x128xf32> to vector<2x32xf32>
    %cst_64 = arith.constant 2.000000e+00 : f32
    %158 = vector.broadcast %cst_64 : f32 to vector<2x32xf32>
    %159 = arith.mulf %158, %157 : vector<2x32xf32>
    %cst_65 = arith.constant 1.000000e+00 : f32
    %160 = vector.broadcast %cst_65 : f32 to vector<2x32xf32>
    %161 = arith.subf %159, %160 : vector<2x32xf32>
    %162 = vector.extract_strided_slice %154 {offsets = [0, 96], sizes = [2, 32], strides = [1, 1]} : vector<2x128xf32> to vector<2x32xf32>
    %163 = arith.mulf %156, %133 : vector<2x32xf32>
    %164 = arith.mulf %155, %161 : vector<2x32xf32>
    %165 = arith.addf %163, %164 : vector<2x32xf32>
    %166 = math.tanh %165 : vector<2x32xf32>
    %167 = arith.mulf %162, %166 : vector<2x32xf32>
    %cst_66 = arith.constant 0.000000e+00 : f32
    %168 = vector.broadcast %cst_66 : f32 to vector<2x32xf32>
    %169 = arith.maximumf %167, %168 : vector<2x32xf32>
    %cst_67 = arith.constant dense<0.000000e+00> : vector<2x128xf32>
    %170 = tpu.matmul %169, %14, %cst_67 {dimension_numbers = #tpu.dot_dimension_numbers<[1], [0], [0], [1], [0, 0, 1, 1], [], []>} : vector<2x32xf32>, vector<32x128xf32>, vector<2x128xf32> -> vector<2x128xf32>
    %171 = vector.broadcast %16 : vector<1x128xf32> to vector<2x128xf32>
    %172 = arith.addf %170, %171 : vector<2x128xf32>
    %173 = arith.index_cast %c4_i32 : i32 to index
    %c0_68 = arith.constant 0 : index
    %c0_69 = arith.constant 0 : index
    %174 = vector.load %arg9[%173, %c0_68, %c0_69] : memref<8x2x128xf32, #tpu.memory_space<vmem>>, vector<1x2x128xf32>
    %175 = vector.shape_cast %174 : vector<1x2x128xf32> to vector<2x128xf32>
    %176 = vector.shape_cast %172 : vector<2x128xf32> to vector<1x2x128xf32>
    tpu.vector_store %arg9[%173, %c0_68, %c0_69], %176 {strides = array<i32>} : memref<8x2x128xf32, #tpu.memory_space<vmem>>, vector<1x2x128xf32>,
    %c5_i32 = arith.constant 5 : i32
    %177 = arith.index_cast %c5_i32 : i32 to index
    %c0_70 = arith.constant 0 : index
    %c0_71 = arith.constant 0 : index
    %178 = vector.load %arg9[%177, %c0_70, %c0_71] : memref<8x2x128xf32, #tpu.memory_space<vmem>>, vector<1x2x128xf32>
    %179 = vector.shape_cast %178 : vector<1x2x128xf32> to vector<2x128xf32>
    %cst_72 = arith.constant dense<0.000000e+00> : vector<2x128xf32>
    %180 = tpu.matmul %167, %12, %cst_72 {dimension_numbers = #tpu.dot_dimension_numbers<[1], [0], [0], [1], [0, 0, 1, 1], [], []>} : vector<2x32xf32>, vector<32x128xf32>, vector<2x128xf32> -> vector<2x128xf32>
    %181 = arith.addf %179, %180 : vector<2x128xf32>
    %182 = arith.negf %181 : vector<2x128xf32>
    %183 = math.exp %182 : vector<2x128xf32>
    %cst_73 = arith.constant 1.000000e+00 : f32
    %184 = vector.broadcast %cst_73 : f32 to vector<2x128xf32>
    %185 = arith.addf %184, %183 : vector<2x128xf32>
    %186 = arith.divf %184, %185 : vector<2x128xf32>
    %187 = vector.extract_strided_slice %186 {offsets = [0, 0], sizes = [2, 32], strides = [1, 1]} : vector<2x128xf32> to vector<2x32xf32>
    %188 = vector.extract_strided_slice %186 {offsets = [0, 32], sizes = [2, 32], strides = [1, 1]} : vector<2x128xf32> to vector<2x32xf32>
    %189 = vector.extract_strided_slice %186 {offsets = [0, 64], sizes = [2, 32], strides = [1, 1]} : vector<2x128xf32> to vector<2x32xf32>
    %cst_74 = arith.constant 2.000000e+00 : f32
    %190 = vector.broadcast %cst_74 : f32 to vector<2x32xf32>
    %191 = arith.mulf %190, %189 : vector<2x32xf32>
    %cst_75 = arith.constant 1.000000e+00 : f32
    %192 = vector.broadcast %cst_75 : f32 to vector<2x32xf32>
    %193 = arith.subf %191, %192 : vector<2x32xf32>
    %194 = vector.extract_strided_slice %186 {offsets = [0, 96], sizes = [2, 32], strides = [1, 1]} : vector<2x128xf32> to vector<2x32xf32>
    %195 = arith.mulf %188, %165 : vector<2x32xf32>
    %196 = arith.mulf %187, %193 : vector<2x32xf32>
    %197 = arith.addf %195, %196 : vector<2x32xf32>
    %198 = math.tanh %197 : vector<2x32xf32>
    %199 = arith.mulf %194, %198 : vector<2x32xf32>
    %cst_76 = arith.constant 0.000000e+00 : f32
    %200 = vector.broadcast %cst_76 : f32 to vector<2x32xf32>
    %201 = arith.maximumf %199, %200 : vector<2x32xf32>
    %cst_77 = arith.constant dense<0.000000e+00> : vector<2x128xf32>
    %202 = tpu.matmul %201, %14, %cst_77 {dimension_numbers = #tpu.dot_dimension_numbers<[1], [0], [0], [1], [0, 0, 1, 1], [], []>} : vector<2x32xf32>, vector<32x128xf32>, vector<2x128xf32> -> vector<2x128xf32>
    %203 = vector.broadcast %16 : vector<1x128xf32> to vector<2x128xf32>
    %204 = arith.addf %202, %203 : vector<2x128xf32>
    %205 = arith.index_cast %c5_i32 : i32 to index
    %c0_78 = arith.constant 0 : index
    %c0_79 = arith.constant 0 : index
    %206 = vector.load %arg9[%205, %c0_78, %c0_79] : memref<8x2x128xf32, #tpu.memory_space<vmem>>, vector<1x2x128xf32>
    %207 = vector.shape_cast %206 : vector<1x2x128xf32> to vector<2x128xf32>
    %208 = vector.shape_cast %204 : vector<2x128xf32> to vector<1x2x128xf32>
    tpu.vector_store %arg9[%205, %c0_78, %c0_79], %208 {strides = array<i32>} : memref<8x2x128xf32, #tpu.memory_space<vmem>>, vector<1x2x128xf32>,
    %c6_i32 = arith.constant 6 : i32
    %209 = arith.index_cast %c6_i32 : i32 to index
    %c0_80 = arith.constant 0 : index
    %c0_81 = arith.constant 0 : index
    %210 = vector.load %arg9[%209, %c0_80, %c0_81] : memref<8x2x128xf32, #tpu.memory_space<vmem>>, vector<1x2x128xf32>
    %211 = vector.shape_cast %210 : vector<1x2x128xf32> to vector<2x128xf32>
    %cst_82 = arith.constant dense<0.000000e+00> : vector<2x128xf32>
    %212 = tpu.matmul %199, %12, %cst_82 {dimension_numbers = #tpu.dot_dimension_numbers<[1], [0], [0], [1], [0, 0, 1, 1], [], []>} : vector<2x32xf32>, vector<32x128xf32>, vector<2x128xf32> -> vector<2x128xf32>
    %213 = arith.addf %211, %212 : vector<2x128xf32>
    %214 = arith.negf %213 : vector<2x128xf32>
    %215 = math.exp %214 : vector<2x128xf32>
    %cst_83 = arith.constant 1.000000e+00 : f32
    %216 = vector.broadcast %cst_83 : f32 to vector<2x128xf32>
    %217 = arith.addf %216, %215 : vector<2x128xf32>
    %218 = arith.divf %216, %217 : vector<2x128xf32>
    %219 = vector.extract_strided_slice %218 {offsets = [0, 0], sizes = [2, 32], strides = [1, 1]} : vector<2x128xf32> to vector<2x32xf32>
    %220 = vector.extract_strided_slice %218 {offsets = [0, 32], sizes = [2, 32], strides = [1, 1]} : vector<2x128xf32> to vector<2x32xf32>
    %221 = vector.extract_strided_slice %218 {offsets = [0, 64], sizes = [2, 32], strides = [1, 1]} : vector<2x128xf32> to vector<2x32xf32>
    %cst_84 = arith.constant 2.000000e+00 : f32
    %222 = vector.broadcast %cst_84 : f32 to vector<2x32xf32>
    %223 = arith.mulf %222, %221 : vector<2x32xf32>
    %cst_85 = arith.constant 1.000000e+00 : f32
    %224 = vector.broadcast %cst_85 : f32 to vector<2x32xf32>
    %225 = arith.subf %223, %224 : vector<2x32xf32>
    %226 = vector.extract_strided_slice %218 {offsets = [0, 96], sizes = [2, 32], strides = [1, 1]} : vector<2x128xf32> to vector<2x32xf32>
    %227 = arith.mulf %220, %197 : vector<2x32xf32>
    %228 = arith.mulf %219, %225 : vector<2x32xf32>
    %229 = arith.addf %227, %228 : vector<2x32xf32>
    %230 = math.tanh %229 : vector<2x32xf32>
    %231 = arith.mulf %226, %230 : vector<2x32xf32>
    %cst_86 = arith.constant 0.000000e+00 : f32
    %232 = vector.broadcast %cst_86 : f32 to vector<2x32xf32>
    %233 = arith.maximumf %231, %232 : vector<2x32xf32>
    %cst_87 = arith.constant dense<0.000000e+00> : vector<2x128xf32>
    %234 = tpu.matmul %233, %14, %cst_87 {dimension_numbers = #tpu.dot_dimension_numbers<[1], [0], [0], [1], [0, 0, 1, 1], [], []>} : vector<2x32xf32>, vector<32x128xf32>, vector<2x128xf32> -> vector<2x128xf32>
    %235 = vector.broadcast %16 : vector<1x128xf32> to vector<2x128xf32>
    %236 = arith.addf %234, %235 : vector<2x128xf32>
    %237 = arith.index_cast %c6_i32 : i32 to index
    %c0_88 = arith.constant 0 : index
    %c0_89 = arith.constant 0 : index
    %238 = vector.load %arg9[%237, %c0_88, %c0_89] : memref<8x2x128xf32, #tpu.memory_space<vmem>>, vector<1x2x128xf32>
    %239 = vector.shape_cast %238 : vector<1x2x128xf32> to vector<2x128xf32>
    %240 = vector.shape_cast %236 : vector<2x128xf32> to vector<1x2x128xf32>
    tpu.vector_store %arg9[%237, %c0_88, %c0_89], %240 {strides = array<i32>} : memref<8x2x128xf32, #tpu.memory_space<vmem>>, vector<1x2x128xf32>,
    %c7_i32 = arith.constant 7 : i32
    %241 = arith.index_cast %c7_i32 : i32 to index
    %c0_90 = arith.constant 0 : index
    %c0_91 = arith.constant 0 : index
    %242 = vector.load %arg9[%241, %c0_90, %c0_91] : memref<8x2x128xf32, #tpu.memory_space<vmem>>, vector<1x2x128xf32>
    %243 = vector.shape_cast %242 : vector<1x2x128xf32> to vector<2x128xf32>
    %cst_92 = arith.constant dense<0.000000e+00> : vector<2x128xf32>
    %244 = tpu.matmul %231, %12, %cst_92 {dimension_numbers = #tpu.dot_dimension_numbers<[1], [0], [0], [1], [0, 0, 1, 1], [], []>} : vector<2x32xf32>, vector<32x128xf32>, vector<2x128xf32> -> vector<2x128xf32>
    %245 = arith.addf %243, %244 : vector<2x128xf32>
    %246 = arith.negf %245 : vector<2x128xf32>
    %247 = math.exp %246 : vector<2x128xf32>
    %cst_93 = arith.constant 1.000000e+00 : f32
    %248 = vector.broadcast %cst_93 : f32 to vector<2x128xf32>
    %249 = arith.addf %248, %247 : vector<2x128xf32>
    %250 = arith.divf %248, %249 : vector<2x128xf32>
    %251 = vector.extract_strided_slice %250 {offsets = [0, 0], sizes = [2, 32], strides = [1, 1]} : vector<2x128xf32> to vector<2x32xf32>
    %252 = vector.extract_strided_slice %250 {offsets = [0, 32], sizes = [2, 32], strides = [1, 1]} : vector<2x128xf32> to vector<2x32xf32>
    %253 = vector.extract_strided_slice %250 {offsets = [0, 64], sizes = [2, 32], strides = [1, 1]} : vector<2x128xf32> to vector<2x32xf32>
    %cst_94 = arith.constant 2.000000e+00 : f32
    %254 = vector.broadcast %cst_94 : f32 to vector<2x32xf32>
    %255 = arith.mulf %254, %253 : vector<2x32xf32>
    %cst_95 = arith.constant 1.000000e+00 : f32
    %256 = vector.broadcast %cst_95 : f32 to vector<2x32xf32>
    %257 = arith.subf %255, %256 : vector<2x32xf32>
    %258 = vector.extract_strided_slice %250 {offsets = [0, 96], sizes = [2, 32], strides = [1, 1]} : vector<2x128xf32> to vector<2x32xf32>
    %259 = arith.mulf %252, %229 : vector<2x32xf32>
    %260 = arith.mulf %251, %257 : vector<2x32xf32>
    %261 = arith.addf %259, %260 : vector<2x32xf32>
    %262 = math.tanh %261 : vector<2x32xf32>
    %263 = arith.mulf %258, %262 : vector<2x32xf32>
    %cst_96 = arith.constant 0.000000e+00 : f32
    %264 = vector.broadcast %cst_96 : f32 to vector<2x32xf32>
    %265 = arith.maximumf %263, %264 : vector<2x32xf32>
    %cst_97 = arith.constant dense<0.000000e+00> : vector<2x128xf32>
    %266 = tpu.matmul %265, %14, %cst_97 {dimension_numbers = #tpu.dot_dimension_numbers<[1], [0], [0], [1], [0, 0, 1, 1], [], []>} : vector<2x32xf32>, vector<32x128xf32>, vector<2x128xf32> -> vector<2x128xf32>
    %267 = vector.broadcast %16 : vector<1x128xf32> to vector<2x128xf32>
    %268 = arith.addf %266, %267 : vector<2x128xf32>
    %269 = arith.index_cast %c7_i32 : i32 to index
    %c0_98 = arith.constant 0 : index
    %c0_99 = arith.constant 0 : index
    %270 = vector.load %arg9[%269, %c0_98, %c0_99] : memref<8x2x128xf32, #tpu.memory_space<vmem>>, vector<1x2x128xf32>
    %271 = vector.shape_cast %270 : vector<1x2x128xf32> to vector<2x128xf32>
    %272 = vector.shape_cast %268 : vector<2x128xf32> to vector<1x2x128xf32>
    tpu.vector_store %arg9[%269, %c0_98, %c0_99], %272 {strides = array<i32>} : memref<8x2x128xf32, #tpu.memory_space<vmem>>, vector<1x2x128xf32>,
    %c8_i32 = arith.constant 8 : i32
    %c1 = arith.constant 1 : index
    %c0_100 = arith.constant 0 : index
    %c0_101 = arith.constant 0 : index
    %273 = vector.load %arg3[%c1, %c0_100, %c0_101] : memref<5x32x128xf32, #tpu.memory_space<vmem>>, vector<1x32x128xf32>
    %274 = vector.shape_cast %273 : vector<1x32x128xf32> to vector<32x128xf32>
    %c1_102 = arith.constant 1 : index
    %c0_103 = arith.constant 0 : index
    %c0_104 = arith.constant 0 : index
    %275 = vector.load %arg4[%c1_102, %c0_103, %c0_104] : memref<4x32x128xf32, #tpu.memory_space<vmem>>, vector<1x32x128xf32>
    %276 = vector.shape_cast %275 : vector<1x32x128xf32> to vector<32x128xf32>
    %c1_105 = arith.constant 1 : index
    %c0_106 = arith.constant 0 : index
    %c0_107 = arith.constant 0 : index
    %277 = vector.load %arg5[%c1_105, %c0_106, %c0_107] : memref<4x1x128xf32, #tpu.memory_space<vmem>>, vector<1x1x128xf32>
    %278 = vector.shape_cast %277 : vector<1x1x128xf32> to vector<1x128xf32>
    %c0_i32_108 = arith.constant 0 : i32
    %279 = arith.index_cast %c0_i32_108 : i32 to index
    %c0_109 = arith.constant 0 : index
    %c0_110 = arith.constant 0 : index
    %280 = vector.load %arg9[%279, %c0_109, %c0_110] : memref<8x2x128xf32, #tpu.memory_space<vmem>>, vector<1x2x128xf32>
    %281 = vector.shape_cast %280 : vector<1x2x128xf32> to vector<2x128xf32>
    %cst_111 = arith.constant dense<0.000000e+00> : vector<2x128xf32>
    %282 = tpu.matmul %263, %274, %cst_111 {dimension_numbers = #tpu.dot_dimension_numbers<[1], [0], [0], [1], [0, 0, 1, 1], [], []>} : vector<2x32xf32>, vector<32x128xf32>, vector<2x128xf32> -> vector<2x128xf32>
    %283 = arith.addf %281, %282 : vector<2x128xf32>
    %284 = arith.negf %283 : vector<2x128xf32>
    %285 = math.exp %284 : vector<2x128xf32>
    %cst_112 = arith.constant 1.000000e+00 : f32
    %286 = vector.broadcast %cst_112 : f32 to vector<2x128xf32>
    %287 = arith.addf %286, %285 : vector<2x128xf32>
    %288 = arith.divf %286, %287 : vector<2x128xf32>
    %289 = vector.extract_strided_slice %288 {offsets = [0, 0], sizes = [2, 32], strides = [1, 1]} : vector<2x128xf32> to vector<2x32xf32>
    %290 = vector.extract_strided_slice %288 {offsets = [0, 32], sizes = [2, 32], strides = [1, 1]} : vector<2x128xf32> to vector<2x32xf32>
    %291 = vector.extract_strided_slice %288 {offsets = [0, 64], sizes = [2, 32], strides = [1, 1]} : vector<2x128xf32> to vector<2x32xf32>
    %cst_113 = arith.constant 2.000000e+00 : f32
    %292 = vector.broadcast %cst_113 : f32 to vector<2x32xf32>
    %293 = arith.mulf %292, %291 : vector<2x32xf32>
    %cst_114 = arith.constant 1.000000e+00 : f32
    %294 = vector.broadcast %cst_114 : f32 to vector<2x32xf32>
    %295 = arith.subf %293, %294 : vector<2x32xf32>
    %296 = vector.extract_strided_slice %288 {offsets = [0, 96], sizes = [2, 32], strides = [1, 1]} : vector<2x128xf32> to vector<2x32xf32>
    %297 = arith.mulf %290, %261 : vector<2x32xf32>
    %298 = arith.mulf %289, %295 : vector<2x32xf32>
    %299 = arith.addf %297, %298 : vector<2x32xf32>
    %300 = math.tanh %299 : vector<2x32xf32>
    %301 = arith.mulf %296, %300 : vector<2x32xf32>
    %cst_115 = arith.constant 0.000000e+00 : f32
    %302 = vector.broadcast %cst_115 : f32 to vector<2x32xf32>
    %303 = arith.maximumf %301, %302 : vector<2x32xf32>
    %cst_116 = arith.constant dense<0.000000e+00> : vector<2x128xf32>
    %304 = tpu.matmul %303, %276, %cst_116 {dimension_numbers = #tpu.dot_dimension_numbers<[1], [0], [0], [1], [0, 0, 1, 1], [], []>} : vector<2x32xf32>, vector<32x128xf32>, vector<2x128xf32> -> vector<2x128xf32>
    %305 = vector.broadcast %278 : vector<1x128xf32> to vector<2x128xf32>
    %306 = arith.addf %304, %305 : vector<2x128xf32>
    %307 = arith.index_cast %c0_i32_108 : i32 to index
    %c0_117 = arith.constant 0 : index
    %c0_118 = arith.constant 0 : index
    %308 = vector.load %arg9[%307, %c0_117, %c0_118] : memref<8x2x128xf32, #tpu.memory_space<vmem>>, vector<1x2x128xf32>
    %309 = vector.shape_cast %308 : vector<1x2x128xf32> to vector<2x128xf32>
    %310 = vector.shape_cast %306 : vector<2x128xf32> to vector<1x2x128xf32>
    tpu.vector_store %arg9[%307, %c0_117, %c0_118], %310 {strides = array<i32>} : memref<8x2x128xf32, #tpu.memory_space<vmem>>, vector<1x2x128xf32>,
    %c1_i32_119 = arith.constant 1 : i32
    %311 = arith.index_cast %c1_i32_119 : i32 to index
    %c0_120 = arith.constant 0 : index
    %c0_121 = arith.constant 0 : index
    %312 = vector.load %arg9[%311, %c0_120, %c0_121] : memref<8x2x128xf32, #tpu.memory_space<vmem>>, vector<1x2x128xf32>
    %313 = vector.shape_cast %312 : vector<1x2x128xf32> to vector<2x128xf32>
    %cst_122 = arith.constant dense<0.000000e+00> : vector<2x128xf32>
    %314 = tpu.matmul %301, %274, %cst_122 {dimension_numbers = #tpu.dot_dimension_numbers<[1], [0], [0], [1], [0, 0, 1, 1], [], []>} : vector<2x32xf32>, vector<32x128xf32>, vector<2x128xf32> -> vector<2x128xf32>
    %315 = arith.addf %313, %314 : vector<2x128xf32>
    %316 = arith.negf %315 : vector<2x128xf32>
    %317 = math.exp %316 : vector<2x128xf32>
    %cst_123 = arith.constant 1.000000e+00 : f32
    %318 = vector.broadcast %cst_123 : f32 to vector<2x128xf32>
    %319 = arith.addf %318, %317 : vector<2x128xf32>
    %320 = arith.divf %318, %319 : vector<2x128xf32>
    %321 = vector.extract_strided_slice %320 {offsets = [0, 0], sizes = [2, 32], strides = [1, 1]} : vector<2x128xf32> to vector<2x32xf32>
    %322 = vector.extract_strided_slice %320 {offsets = [0, 32], sizes = [2, 32], strides = [1, 1]} : vector<2x128xf32> to vector<2x32xf32>
    %323 = vector.extract_strided_slice %320 {offsets = [0, 64], sizes = [2, 32], strides = [1, 1]} : vector<2x128xf32> to vector<2x32xf32>
    %cst_124 = arith.constant 2.000000e+00 : f32
    %324 = vector.broadcast %cst_124 : f32 to vector<2x32xf32>
    %325 = arith.mulf %324, %323 : vector<2x32xf32>
    %cst_125 = arith.constant 1.000000e+00 : f32
    %326 = vector.broadcast %cst_125 : f32 to vector<2x32xf32>
    %327 = arith.subf %325, %326 : vector<2x32xf32>
    %328 = vector.extract_strided_slice %320 {offsets = [0, 96], sizes = [2, 32], strides = [1, 1]} : vector<2x128xf32> to vector<2x32xf32>
    %329 = arith.mulf %322, %299 : vector<2x32xf32>
    %330 = arith.mulf %321, %327 : vector<2x32xf32>
    %331 = arith.addf %329, %330 : vector<2x32xf32>
    %332 = math.tanh %331 : vector<2x32xf32>
    %333 = arith.mulf %328, %332 : vector<2x32xf32>
    %cst_126 = arith.constant 0.000000e+00 : f32
    %334 = vector.broadcast %cst_126 : f32 to vector<2x32xf32>
    %335 = arith.maximumf %333, %334 : vector<2x32xf32>
    %cst_127 = arith.constant dense<0.000000e+00> : vector<2x128xf32>
    %336 = tpu.matmul %335, %276, %cst_127 {dimension_numbers = #tpu.dot_dimension_numbers<[1], [0], [0], [1], [0, 0, 1, 1], [], []>} : vector<2x32xf32>, vector<32x128xf32>, vector<2x128xf32> -> vector<2x128xf32>
    %337 = vector.broadcast %278 : vector<1x128xf32> to vector<2x128xf32>
    %338 = arith.addf %336, %337 : vector<2x128xf32>
    %339 = arith.index_cast %c1_i32_119 : i32 to index
    %c0_128 = arith.constant 0 : index
    %c0_129 = arith.constant 0 : index
    %340 = vector.load %arg9[%339, %c0_128, %c0_129] : memref<8x2x128xf32, #tpu.memory_space<vmem>>, vector<1x2x128xf32>
    %341 = vector.shape_cast %340 : vector<1x2x128xf32> to vector<2x128xf32>
    %342 = vector.shape_cast %338 : vector<2x128xf32> to vector<1x2x128xf32>
    tpu.vector_store %arg9[%339, %c0_128, %c0_129], %342 {strides = array<i32>} : memref<8x2x128xf32, #tpu.memory_space<vmem>>, vector<1x2x128xf32>,
    %c2_i32_130 = arith.constant 2 : i32
    %343 = arith.index_cast %c2_i32_130 : i32 to index
    %c0_131 = arith.constant 0 : index
    %c0_132 = arith.constant 0 : index
    %344 = vector.load %arg9[%343, %c0_131, %c0_132] : memref<8x2x128xf32, #tpu.memory_space<vmem>>, vector<1x2x128xf32>
    %345 = vector.shape_cast %344 : vector<1x2x128xf32> to vector<2x128xf32>
    %cst_133 = arith.constant dense<0.000000e+00> : vector<2x128xf32>
    %346 = tpu.matmul %333, %274, %cst_133 {dimension_numbers = #tpu.dot_dimension_numbers<[1], [0], [0], [1], [0, 0, 1, 1], [], []>} : vector<2x32xf32>, vector<32x128xf32>, vector<2x128xf32> -> vector<2x128xf32>
    %347 = arith.addf %345, %346 : vector<2x128xf32>
    %348 = arith.negf %347 : vector<2x128xf32>
    %349 = math.exp %348 : vector<2x128xf32>
    %cst_134 = arith.constant 1.000000e+00 : f32
    %350 = vector.broadcast %cst_134 : f32 to vector<2x128xf32>
    %351 = arith.addf %350, %349 : vector<2x128xf32>
    %352 = arith.divf %350, %351 : vector<2x128xf32>
    %353 = vector.extract_strided_slice %352 {offsets = [0, 0], sizes = [2, 32], strides = [1, 1]} : vector<2x128xf32> to vector<2x32xf32>
    %354 = vector.extract_strided_slice %352 {offsets = [0, 32], sizes = [2, 32], strides = [1, 1]} : vector<2x128xf32> to vector<2x32xf32>
    %355 = vector.extract_strided_slice %352 {offsets = [0, 64], sizes = [2, 32], strides = [1, 1]} : vector<2x128xf32> to vector<2x32xf32>
    %cst_135 = arith.constant 2.000000e+00 : f32
    %356 = vector.broadcast %cst_135 : f32 to vector<2x32xf32>
    %357 = arith.mulf %356, %355 : vector<2x32xf32>
    %cst_136 = arith.constant 1.000000e+00 : f32
    %358 = vector.broadcast %cst_136 : f32 to vector<2x32xf32>
    %359 = arith.subf %357, %358 : vector<2x32xf32>
    %360 = vector.extract_strided_slice %352 {offsets = [0, 96], sizes = [2, 32], strides = [1, 1]} : vector<2x128xf32> to vector<2x32xf32>
    %361 = arith.mulf %354, %331 : vector<2x32xf32>
    %362 = arith.mulf %353, %359 : vector<2x32xf32>
    %363 = arith.addf %361, %362 : vector<2x32xf32>
    %364 = math.tanh %363 : vector<2x32xf32>
    %365 = arith.mulf %360, %364 : vector<2x32xf32>
    %cst_137 = arith.constant 0.000000e+00 : f32
    %366 = vector.broadcast %cst_137 : f32 to vector<2x32xf32>
    %367 = arith.maximumf %365, %366 : vector<2x32xf32>
    %cst_138 = arith.constant dense<0.000000e+00> : vector<2x128xf32>
    %368 = tpu.matmul %367, %276, %cst_138 {dimension_numbers = #tpu.dot_dimension_numbers<[1], [0], [0], [1], [0, 0, 1, 1], [], []>} : vector<2x32xf32>, vector<32x128xf32>, vector<2x128xf32> -> vector<2x128xf32>
    %369 = vector.broadcast %278 : vector<1x128xf32> to vector<2x128xf32>
    %370 = arith.addf %368, %369 : vector<2x128xf32>
    %371 = arith.index_cast %c2_i32_130 : i32 to index
    %c0_139 = arith.constant 0 : index
    %c0_140 = arith.constant 0 : index
    %372 = vector.load %arg9[%371, %c0_139, %c0_140] : memref<8x2x128xf32, #tpu.memory_space<vmem>>, vector<1x2x128xf32>
    %373 = vector.shape_cast %372 : vector<1x2x128xf32> to vector<2x128xf32>
    %374 = vector.shape_cast %370 : vector<2x128xf32> to vector<1x2x128xf32>
    tpu.vector_store %arg9[%371, %c0_139, %c0_140], %374 {strides = array<i32>} : memref<8x2x128xf32, #tpu.memory_space<vmem>>, vector<1x2x128xf32>,
    %c3_i32_141 = arith.constant 3 : i32
    %375 = arith.index_cast %c3_i32_141 : i32 to index
    %c0_142 = arith.constant 0 : index
    %c0_143 = arith.constant 0 : index
    %376 = vector.load %arg9[%375, %c0_142, %c0_143] : memref<8x2x128xf32, #tpu.memory_space<vmem>>, vector<1x2x128xf32>
    %377 = vector.shape_cast %376 : vector<1x2x128xf32> to vector<2x128xf32>
    %cst_144 = arith.constant dense<0.000000e+00> : vector<2x128xf32>
    %378 = tpu.matmul %365, %274, %cst_144 {dimension_numbers = #tpu.dot_dimension_numbers<[1], [0], [0], [1], [0, 0, 1, 1], [], []>} : vector<2x32xf32>, vector<32x128xf32>, vector<2x128xf32> -> vector<2x128xf32>
    %379 = arith.addf %377, %378 : vector<2x128xf32>
    %380 = arith.negf %379 : vector<2x128xf32>
    %381 = math.exp %380 : vector<2x128xf32>
    %cst_145 = arith.constant 1.000000e+00 : f32
    %382 = vector.broadcast %cst_145 : f32 to vector<2x128xf32>
    %383 = arith.addf %382, %381 : vector<2x128xf32>
    %384 = arith.divf %382, %383 : vector<2x128xf32>
    %385 = vector.extract_strided_slice %384 {offsets = [0, 0], sizes = [2, 32], strides = [1, 1]} : vector<2x128xf32> to vector<2x32xf32>
    %386 = vector.extract_strided_slice %384 {offsets = [0, 32], sizes = [2, 32], strides = [1, 1]} : vector<2x128xf32> to vector<2x32xf32>
    %387 = vector.extract_strided_slice %384 {offsets = [0, 64], sizes = [2, 32], strides = [1, 1]} : vector<2x128xf32> to vector<2x32xf32>
    %cst_146 = arith.constant 2.000000e+00 : f32
    %388 = vector.broadcast %cst_146 : f32 to vector<2x32xf32>
    %389 = arith.mulf %388, %387 : vector<2x32xf32>
    %cst_147 = arith.constant 1.000000e+00 : f32
    %390 = vector.broadcast %cst_147 : f32 to vector<2x32xf32>
    %391 = arith.subf %389, %390 : vector<2x32xf32>
    %392 = vector.extract_strided_slice %384 {offsets = [0, 96], sizes = [2, 32], strides = [1, 1]} : vector<2x128xf32> to vector<2x32xf32>
    %393 = arith.mulf %386, %363 : vector<2x32xf32>
    %394 = arith.mulf %385, %391 : vector<2x32xf32>
    %395 = arith.addf %393, %394 : vector<2x32xf32>
    %396 = math.tanh %395 : vector<2x32xf32>
    %397 = arith.mulf %392, %396 : vector<2x32xf32>
    %cst_148 = arith.constant 0.000000e+00 : f32
    %398 = vector.broadcast %cst_148 : f32 to vector<2x32xf32>
    %399 = arith.maximumf %397, %398 : vector<2x32xf32>
    %cst_149 = arith.constant dense<0.000000e+00> : vector<2x128xf32>
    %400 = tpu.matmul %399, %276, %cst_149 {dimension_numbers = #tpu.dot_dimension_numbers<[1], [0], [0], [1], [0, 0, 1, 1], [], []>} : vector<2x32xf32>, vector<32x128xf32>, vector<2x128xf32> -> vector<2x128xf32>
    %401 = vector.broadcast %278 : vector<1x128xf32> to vector<2x128xf32>
    %402 = arith.addf %400, %401 : vector<2x128xf32>
    %403 = arith.index_cast %c3_i32_141 : i32 to index
    %c0_150 = arith.constant 0 : index
    %c0_151 = arith.constant 0 : index
    %404 = vector.load %arg9[%403, %c0_150, %c0_151] : memref<8x2x128xf32, #tpu.memory_space<vmem>>, vector<1x2x128xf32>
    %405 = vector.shape_cast %404 : vector<1x2x128xf32> to vector<2x128xf32>
    %406 = vector.shape_cast %402 : vector<2x128xf32> to vector<1x2x128xf32>
    tpu.vector_store %arg9[%403, %c0_150, %c0_151], %406 {strides = array<i32>} : memref<8x2x128xf32, #tpu.memory_space<vmem>>, vector<1x2x128xf32>,
    %c4_i32_152 = arith.constant 4 : i32
    %407 = arith.index_cast %c4_i32_152 : i32 to index
    %c0_153 = arith.constant 0 : index
    %c0_154 = arith.constant 0 : index
    %408 = vector.load %arg9[%407, %c0_153, %c0_154] : memref<8x2x128xf32, #tpu.memory_space<vmem>>, vector<1x2x128xf32>
    %409 = vector.shape_cast %408 : vector<1x2x128xf32> to vector<2x128xf32>
    %cst_155 = arith.constant dense<0.000000e+00> : vector<2x128xf32>
    %410 = tpu.matmul %397, %274, %cst_155 {dimension_numbers = #tpu.dot_dimension_numbers<[1], [0], [0], [1], [0, 0, 1, 1], [], []>} : vector<2x32xf32>, vector<32x128xf32>, vector<2x128xf32> -> vector<2x128xf32>
    %411 = arith.addf %409, %410 : vector<2x128xf32>
    %412 = arith.negf %411 : vector<2x128xf32>
    %413 = math.exp %412 : vector<2x128xf32>
    %cst_156 = arith.constant 1.000000e+00 : f32
    %414 = vector.broadcast %cst_156 : f32 to vector<2x128xf32>
    %415 = arith.addf %414, %413 : vector<2x128xf32>
    %416 = arith.divf %414, %415 : vector<2x128xf32>
    %417 = vector.extract_strided_slice %416 {offsets = [0, 0], sizes = [2, 32], strides = [1, 1]} : vector<2x128xf32> to vector<2x32xf32>
    %418 = vector.extract_strided_slice %416 {offsets = [0, 32], sizes = [2, 32], strides = [1, 1]} : vector<2x128xf32> to vector<2x32xf32>
    %419 = vector.extract_strided_slice %416 {offsets = [0, 64], sizes = [2, 32], strides = [1, 1]} : vector<2x128xf32> to vector<2x32xf32>
    %cst_157 = arith.constant 2.000000e+00 : f32
    %420 = vector.broadcast %cst_157 : f32 to vector<2x32xf32>
    %421 = arith.mulf %420, %419 : vector<2x32xf32>
    %cst_158 = arith.constant 1.000000e+00 : f32
    %422 = vector.broadcast %cst_158 : f32 to vector<2x32xf32>
    %423 = arith.subf %421, %422 : vector<2x32xf32>
    %424 = vector.extract_strided_slice %416 {offsets = [0, 96], sizes = [2, 32], strides = [1, 1]} : vector<2x128xf32> to vector<2x32xf32>
    %425 = arith.mulf %418, %395 : vector<2x32xf32>
    %426 = arith.mulf %417, %423 : vector<2x32xf32>
    %427 = arith.addf %425, %426 : vector<2x32xf32>
    %428 = math.tanh %427 : vector<2x32xf32>
    %429 = arith.mulf %424, %428 : vector<2x32xf32>
    %cst_159 = arith.constant 0.000000e+00 : f32
    %430 = vector.broadcast %cst_159 : f32 to vector<2x32xf32>
    %431 = arith.maximumf %429, %430 : vector<2x32xf32>
    %cst_160 = arith.constant dense<0.000000e+00> : vector<2x128xf32>
    %432 = tpu.matmul %431, %276, %cst_160 {dimension_numbers = #tpu.dot_dimension_numbers<[1], [0], [0], [1], [0, 0, 1, 1], [], []>} : vector<2x32xf32>, vector<32x128xf32>, vector<2x128xf32> -> vector<2x128xf32>
    %433 = vector.broadcast %278 : vector<1x128xf32> to vector<2x128xf32>
    %434 = arith.addf %432, %433 : vector<2x128xf32>
    %435 = arith.index_cast %c4_i32_152 : i32 to index
    %c0_161 = arith.constant 0 : index
    %c0_162 = arith.constant 0 : index
    %436 = vector.load %arg9[%435, %c0_161, %c0_162] : memref<8x2x128xf32, #tpu.memory_space<vmem>>, vector<1x2x128xf32>
    %437 = vector.shape_cast %436 : vector<1x2x128xf32> to vector<2x128xf32>
    %438 = vector.shape_cast %434 : vector<2x128xf32> to vector<1x2x128xf32>
    tpu.vector_store %arg9[%435, %c0_161, %c0_162], %438 {strides = array<i32>} : memref<8x2x128xf32, #tpu.memory_space<vmem>>, vector<1x2x128xf32>,
    %c5_i32_163 = arith.constant 5 : i32
    %439 = arith.index_cast %c5_i32_163 : i32 to index
    %c0_164 = arith.constant 0 : index
    %c0_165 = arith.constant 0 : index
    %440 = vector.load %arg9[%439, %c0_164, %c0_165] : memref<8x2x128xf32, #tpu.memory_space<vmem>>, vector<1x2x128xf32>
    %441 = vector.shape_cast %440 : vector<1x2x128xf32> to vector<2x128xf32>
    %cst_166 = arith.constant dense<0.000000e+00> : vector<2x128xf32>
    %442 = tpu.matmul %429, %274, %cst_166 {dimension_numbers = #tpu.dot_dimension_numbers<[1], [0], [0], [1], [0, 0, 1, 1], [], []>} : vector<2x32xf32>, vector<32x128xf32>, vector<2x128xf32> -> vector<2x128xf32>
    %443 = arith.addf %441, %442 : vector<2x128xf32>
    %444 = arith.negf %443 : vector<2x128xf32>
    %445 = math.exp %444 : vector<2x128xf32>
    %cst_167 = arith.constant 1.000000e+00 : f32
    %446 = vector.broadcast %cst_167 : f32 to vector<2x128xf32>
    %447 = arith.addf %446, %445 : vector<2x128xf32>
    %448 = arith.divf %446, %447 : vector<2x128xf32>
    %449 = vector.extract_strided_slice %448 {offsets = [0, 0], sizes = [2, 32], strides = [1, 1]} : vector<2x128xf32> to vector<2x32xf32>
    %450 = vector.extract_strided_slice %448 {offsets = [0, 32], sizes = [2, 32], strides = [1, 1]} : vector<2x128xf32> to vector<2x32xf32>
    %451 = vector.extract_strided_slice %448 {offsets = [0, 64], sizes = [2, 32], strides = [1, 1]} : vector<2x128xf32> to vector<2x32xf32>
    %cst_168 = arith.constant 2.000000e+00 : f32
    %452 = vector.broadcast %cst_168 : f32 to vector<2x32xf32>
    %453 = arith.mulf %452, %451 : vector<2x32xf32>
    %cst_169 = arith.constant 1.000000e+00 : f32
    %454 = vector.broadcast %cst_169 : f32 to vector<2x32xf32>
    %455 = arith.subf %453, %454 : vector<2x32xf32>
    %456 = vector.extract_strided_slice %448 {offsets = [0, 96], sizes = [2, 32], strides = [1, 1]} : vector<2x128xf32> to vector<2x32xf32>
    %457 = arith.mulf %450, %427 : vector<2x32xf32>
    %458 = arith.mulf %449, %455 : vector<2x32xf32>
    %459 = arith.addf %457, %458 : vector<2x32xf32>
    %460 = math.tanh %459 : vector<2x32xf32>
    %461 = arith.mulf %456, %460 : vector<2x32xf32>
    %cst_170 = arith.constant 0.000000e+00 : f32
    %462 = vector.broadcast %cst_170 : f32 to vector<2x32xf32>
    %463 = arith.maximumf %461, %462 : vector<2x32xf32>
    %cst_171 = arith.constant dense<0.000000e+00> : vector<2x128xf32>
    %464 = tpu.matmul %463, %276, %cst_171 {dimension_numbers = #tpu.dot_dimension_numbers<[1], [0], [0], [1], [0, 0, 1, 1], [], []>} : vector<2x32xf32>, vector<32x128xf32>, vector<2x128xf32> -> vector<2x128xf32>
    %465 = vector.broadcast %278 : vector<1x128xf32> to vector<2x128xf32>
    %466 = arith.addf %464, %465 : vector<2x128xf32>
    %467 = arith.index_cast %c5_i32_163 : i32 to index
    %c0_172 = arith.constant 0 : index
    %c0_173 = arith.constant 0 : index
    %468 = vector.load %arg9[%467, %c0_172, %c0_173] : memref<8x2x128xf32, #tpu.memory_space<vmem>>, vector<1x2x128xf32>
    %469 = vector.shape_cast %468 : vector<1x2x128xf32> to vector<2x128xf32>
    %470 = vector.shape_cast %466 : vector<2x128xf32> to vector<1x2x128xf32>
    tpu.vector_store %arg9[%467, %c0_172, %c0_173], %470 {strides = array<i32>} : memref<8x2x128xf32, #tpu.memory_space<vmem>>, vector<1x2x128xf32>,
    %c6_i32_174 = arith.constant 6 : i32
    %471 = arith.index_cast %c6_i32_174 : i32 to index
    %c0_175 = arith.constant 0 : index
    %c0_176 = arith.constant 0 : index
    %472 = vector.load %arg9[%471, %c0_175, %c0_176] : memref<8x2x128xf32, #tpu.memory_space<vmem>>, vector<1x2x128xf32>
    %473 = vector.shape_cast %472 : vector<1x2x128xf32> to vector<2x128xf32>
    %cst_177 = arith.constant dense<0.000000e+00> : vector<2x128xf32>
    %474 = tpu.matmul %461, %274, %cst_177 {dimension_numbers = #tpu.dot_dimension_numbers<[1], [0], [0], [1], [0, 0, 1, 1], [], []>} : vector<2x32xf32>, vector<32x128xf32>, vector<2x128xf32> -> vector<2x128xf32>
    %475 = arith.addf %473, %474 : vector<2x128xf32>
    %476 = arith.negf %475 : vector<2x128xf32>
    %477 = math.exp %476 : vector<2x128xf32>
    %cst_178 = arith.constant 1.000000e+00 : f32
    %478 = vector.broadcast %cst_178 : f32 to vector<2x128xf32>
    %479 = arith.addf %478, %477 : vector<2x128xf32>
    %480 = arith.divf %478, %479 : vector<2x128xf32>
    %481 = vector.extract_strided_slice %480 {offsets = [0, 0], sizes = [2, 32], strides = [1, 1]} : vector<2x128xf32> to vector<2x32xf32>
    %482 = vector.extract_strided_slice %480 {offsets = [0, 32], sizes = [2, 32], strides = [1, 1]} : vector<2x128xf32> to vector<2x32xf32>
    %483 = vector.extract_strided_slice %480 {offsets = [0, 64], sizes = [2, 32], strides = [1, 1]} : vector<2x128xf32> to vector<2x32xf32>
    %cst_179 = arith.constant 2.000000e+00 : f32
    %484 = vector.broadcast %cst_179 : f32 to vector<2x32xf32>
    %485 = arith.mulf %484, %483 : vector<2x32xf32>
    %cst_180 = arith.constant 1.000000e+00 : f32
    %486 = vector.broadcast %cst_180 : f32 to vector<2x32xf32>
    %487 = arith.subf %485, %486 : vector<2x32xf32>
    %488 = vector.extract_strided_slice %480 {offsets = [0, 96], sizes = [2, 32], strides = [1, 1]} : vector<2x128xf32> to vector<2x32xf32>
    %489 = arith.mulf %482, %459 : vector<2x32xf32>
    %490 = arith.mulf %481, %487 : vector<2x32xf32>
    %491 = arith.addf %489, %490 : vector<2x32xf32>
    %492 = math.tanh %491 : vector<2x32xf32>
    %493 = arith.mulf %488, %492 : vector<2x32xf32>
    %cst_181 = arith.constant 0.000000e+00 : f32
    %494 = vector.broadcast %cst_181 : f32 to vector<2x32xf32>
    %495 = arith.maximumf %493, %494 : vector<2x32xf32>
    %cst_182 = arith.constant dense<0.000000e+00> : vector<2x128xf32>
    %496 = tpu.matmul %495, %276, %cst_182 {dimension_numbers = #tpu.dot_dimension_numbers<[1], [0], [0], [1], [0, 0, 1, 1], [], []>} : vector<2x32xf32>, vector<32x128xf32>, vector<2x128xf32> -> vector<2x128xf32>
    %497 = vector.broadcast %278 : vector<1x128xf32> to vector<2x128xf32>
    %498 = arith.addf %496, %497 : vector<2x128xf32>
    %499 = arith.index_cast %c6_i32_174 : i32 to index
    %c0_183 = arith.constant 0 : index
    %c0_184 = arith.constant 0 : index
    %500 = vector.load %arg9[%499, %c0_183, %c0_184] : memref<8x2x128xf32, #tpu.memory_space<vmem>>, vector<1x2x128xf32>
    %501 = vector.shape_cast %500 : vector<1x2x128xf32> to vector<2x128xf32>
    %502 = vector.shape_cast %498 : vector<2x128xf32> to vector<1x2x128xf32>
    tpu.vector_store %arg9[%499, %c0_183, %c0_184], %502 {strides = array<i32>} : memref<8x2x128xf32, #tpu.memory_space<vmem>>, vector<1x2x128xf32>,
    %c7_i32_185 = arith.constant 7 : i32
    %503 = arith.index_cast %c7_i32_185 : i32 to index
    %c0_186 = arith.constant 0 : index
    %c0_187 = arith.constant 0 : index
    %504 = vector.load %arg9[%503, %c0_186, %c0_187] : memref<8x2x128xf32, #tpu.memory_space<vmem>>, vector<1x2x128xf32>
    %505 = vector.shape_cast %504 : vector<1x2x128xf32> to vector<2x128xf32>
    %cst_188 = arith.constant dense<0.000000e+00> : vector<2x128xf32>
    %506 = tpu.matmul %493, %274, %cst_188 {dimension_numbers = #tpu.dot_dimension_numbers<[1], [0], [0], [1], [0, 0, 1, 1], [], []>} : vector<2x32xf32>, vector<32x128xf32>, vector<2x128xf32> -> vector<2x128xf32>
    %507 = arith.addf %505, %506 : vector<2x128xf32>
    %508 = arith.negf %507 : vector<2x128xf32>
    %509 = math.exp %508 : vector<2x128xf32>
    %cst_189 = arith.constant 1.000000e+00 : f32
    %510 = vector.broadcast %cst_189 : f32 to vector<2x128xf32>
    %511 = arith.addf %510, %509 : vector<2x128xf32>
    %512 = arith.divf %510, %511 : vector<2x128xf32>
    %513 = vector.extract_strided_slice %512 {offsets = [0, 0], sizes = [2, 32], strides = [1, 1]} : vector<2x128xf32> to vector<2x32xf32>
    %514 = vector.extract_strided_slice %512 {offsets = [0, 32], sizes = [2, 32], strides = [1, 1]} : vector<2x128xf32> to vector<2x32xf32>
    %515 = vector.extract_strided_slice %512 {offsets = [0, 64], sizes = [2, 32], strides = [1, 1]} : vector<2x128xf32> to vector<2x32xf32>
    %cst_190 = arith.constant 2.000000e+00 : f32
    %516 = vector.broadcast %cst_190 : f32 to vector<2x32xf32>
    %517 = arith.mulf %516, %515 : vector<2x32xf32>
    %cst_191 = arith.constant 1.000000e+00 : f32
    %518 = vector.broadcast %cst_191 : f32 to vector<2x32xf32>
    %519 = arith.subf %517, %518 : vector<2x32xf32>
    %520 = vector.extract_strided_slice %512 {offsets = [0, 96], sizes = [2, 32], strides = [1, 1]} : vector<2x128xf32> to vector<2x32xf32>
    %521 = arith.mulf %514, %491 : vector<2x32xf32>
    %522 = arith.mulf %513, %519 : vector<2x32xf32>
    %523 = arith.addf %521, %522 : vector<2x32xf32>
    %524 = math.tanh %523 : vector<2x32xf32>
    %525 = arith.mulf %520, %524 : vector<2x32xf32>
    %cst_192 = arith.constant 0.000000e+00 : f32
    %526 = vector.broadcast %cst_192 : f32 to vector<2x32xf32>
    %527 = arith.maximumf %525, %526 : vector<2x32xf32>
    %cst_193 = arith.constant dense<0.000000e+00> : vector<2x128xf32>
    %528 = tpu.matmul %527, %276, %cst_193 {dimension_numbers = #tpu.dot_dimension_numbers<[1], [0], [0], [1], [0, 0, 1, 1], [], []>} : vector<2x32xf32>, vector<32x128xf32>, vector<2x128xf32> -> vector<2x128xf32>
    %529 = vector.broadcast %278 : vector<1x128xf32> to vector<2x128xf32>
    %530 = arith.addf %528, %529 : vector<2x128xf32>
    %531 = arith.index_cast %c7_i32_185 : i32 to index
    %c0_194 = arith.constant 0 : index
    %c0_195 = arith.constant 0 : index
    %532 = vector.load %arg9[%531, %c0_194, %c0_195] : memref<8x2x128xf32, #tpu.memory_space<vmem>>, vector<1x2x128xf32>
    %533 = vector.shape_cast %532 : vector<1x2x128xf32> to vector<2x128xf32>
    %534 = vector.shape_cast %530 : vector<2x128xf32> to vector<1x2x128xf32>
    tpu.vector_store %arg9[%531, %c0_194, %c0_195], %534 {strides = array<i32>} : memref<8x2x128xf32, #tpu.memory_space<vmem>>, vector<1x2x128xf32>,
    %c8_i32_196 = arith.constant 8 : i32
    %c2 = arith.constant 2 : index
    %c0_197 = arith.constant 0 : index
    %c0_198 = arith.constant 0 : index
    %535 = vector.load %arg3[%c2, %c0_197, %c0_198] : memref<5x32x128xf32, #tpu.memory_space<vmem>>, vector<1x32x128xf32>
    %536 = vector.shape_cast %535 : vector<1x32x128xf32> to vector<32x128xf32>
    %c2_199 = arith.constant 2 : index
    %c0_200 = arith.constant 0 : index
    %c0_201 = arith.constant 0 : index
    %537 = vector.load %arg4[%c2_199, %c0_200, %c0_201] : memref<4x32x128xf32, #tpu.memory_space<vmem>>, vector<1x32x128xf32>
    %538 = vector.shape_cast %537 : vector<1x32x128xf32> to vector<32x128xf32>
    %c2_202 = arith.constant 2 : index
    %c0_203 = arith.constant 0 : index
    %c0_204 = arith.constant 0 : index
    %539 = vector.load %arg5[%c2_202, %c0_203, %c0_204] : memref<4x1x128xf32, #tpu.memory_space<vmem>>, vector<1x1x128xf32>
    %540 = vector.shape_cast %539 : vector<1x1x128xf32> to vector<1x128xf32>
    %c0_i32_205 = arith.constant 0 : i32
    %541 = arith.index_cast %c0_i32_205 : i32 to index
    %c0_206 = arith.constant 0 : index
    %c0_207 = arith.constant 0 : index
    %542 = vector.load %arg9[%541, %c0_206, %c0_207] : memref<8x2x128xf32, #tpu.memory_space<vmem>>, vector<1x2x128xf32>
    %543 = vector.shape_cast %542 : vector<1x2x128xf32> to vector<2x128xf32>
    %cst_208 = arith.constant dense<0.000000e+00> : vector<2x128xf32>
    %544 = tpu.matmul %525, %536, %cst_208 {dimension_numbers = #tpu.dot_dimension_numbers<[1], [0], [0], [1], [0, 0, 1, 1], [], []>} : vector<2x32xf32>, vector<32x128xf32>, vector<2x128xf32> -> vector<2x128xf32>
    %545 = arith.addf %543, %544 : vector<2x128xf32>
    %546 = arith.negf %545 : vector<2x128xf32>
    %547 = math.exp %546 : vector<2x128xf32>
    %cst_209 = arith.constant 1.000000e+00 : f32
    %548 = vector.broadcast %cst_209 : f32 to vector<2x128xf32>
    %549 = arith.addf %548, %547 : vector<2x128xf32>
    %550 = arith.divf %548, %549 : vector<2x128xf32>
    %551 = vector.extract_strided_slice %550 {offsets = [0, 0], sizes = [2, 32], strides = [1, 1]} : vector<2x128xf32> to vector<2x32xf32>
    %552 = vector.extract_strided_slice %550 {offsets = [0, 32], sizes = [2, 32], strides = [1, 1]} : vector<2x128xf32> to vector<2x32xf32>
    %553 = vector.extract_strided_slice %550 {offsets = [0, 64], sizes = [2, 32], strides = [1, 1]} : vector<2x128xf32> to vector<2x32xf32>
    %cst_210 = arith.constant 2.000000e+00 : f32
    %554 = vector.broadcast %cst_210 : f32 to vector<2x32xf32>
    %555 = arith.mulf %554, %553 : vector<2x32xf32>
    %cst_211 = arith.constant 1.000000e+00 : f32
    %556 = vector.broadcast %cst_211 : f32 to vector<2x32xf32>
    %557 = arith.subf %555, %556 : vector<2x32xf32>
    %558 = vector.extract_strided_slice %550 {offsets = [0, 96], sizes = [2, 32], strides = [1, 1]} : vector<2x128xf32> to vector<2x32xf32>
    %559 = arith.mulf %552, %523 : vector<2x32xf32>
    %560 = arith.mulf %551, %557 : vector<2x32xf32>
    %561 = arith.addf %559, %560 : vector<2x32xf32>
    %562 = math.tanh %561 : vector<2x32xf32>
    %563 = arith.mulf %558, %562 : vector<2x32xf32>
    %cst_212 = arith.constant 0.000000e+00 : f32
    %564 = vector.broadcast %cst_212 : f32 to vector<2x32xf32>
    %565 = arith.maximumf %563, %564 : vector<2x32xf32>
    %cst_213 = arith.constant dense<0.000000e+00> : vector<2x128xf32>
    %566 = tpu.matmul %565, %538, %cst_213 {dimension_numbers = #tpu.dot_dimension_numbers<[1], [0], [0], [1], [0, 0, 1, 1], [], []>} : vector<2x32xf32>, vector<32x128xf32>, vector<2x128xf32> -> vector<2x128xf32>
    %567 = vector.broadcast %540 : vector<1x128xf32> to vector<2x128xf32>
    %568 = arith.addf %566, %567 : vector<2x128xf32>
    %569 = arith.index_cast %c0_i32_205 : i32 to index
    %c0_214 = arith.constant 0 : index
    %c0_215 = arith.constant 0 : index
    %570 = vector.load %arg9[%569, %c0_214, %c0_215] : memref<8x2x128xf32, #tpu.memory_space<vmem>>, vector<1x2x128xf32>
    %571 = vector.shape_cast %570 : vector<1x2x128xf32> to vector<2x128xf32>
    %572 = vector.shape_cast %568 : vector<2x128xf32> to vector<1x2x128xf32>
    tpu.vector_store %arg9[%569, %c0_214, %c0_215], %572 {strides = array<i32>} : memref<8x2x128xf32, #tpu.memory_space<vmem>>, vector<1x2x128xf32>,
    %c1_i32_216 = arith.constant 1 : i32
    %573 = arith.index_cast %c1_i32_216 : i32 to index
    %c0_217 = arith.constant 0 : index
    %c0_218 = arith.constant 0 : index
    %574 = vector.load %arg9[%573, %c0_217, %c0_218] : memref<8x2x128xf32, #tpu.memory_space<vmem>>, vector<1x2x128xf32>
    %575 = vector.shape_cast %574 : vector<1x2x128xf32> to vector<2x128xf32>
    %cst_219 = arith.constant dense<0.000000e+00> : vector<2x128xf32>
    %576 = tpu.matmul %563, %536, %cst_219 {dimension_numbers = #tpu.dot_dimension_numbers<[1], [0], [0], [1], [0, 0, 1, 1], [], []>} : vector<2x32xf32>, vector<32x128xf32>, vector<2x128xf32> -> vector<2x128xf32>
    %577 = arith.addf %575, %576 : vector<2x128xf32>
    %578 = arith.negf %577 : vector<2x128xf32>
    %579 = math.exp %578 : vector<2x128xf32>
    %cst_220 = arith.constant 1.000000e+00 : f32
    %580 = vector.broadcast %cst_220 : f32 to vector<2x128xf32>
    %581 = arith.addf %580, %579 : vector<2x128xf32>
    %582 = arith.divf %580, %581 : vector<2x128xf32>
    %583 = vector.extract_strided_slice %582 {offsets = [0, 0], sizes = [2, 32], strides = [1, 1]} : vector<2x128xf32> to vector<2x32xf32>
    %584 = vector.extract_strided_slice %582 {offsets = [0, 32], sizes = [2, 32], strides = [1, 1]} : vector<2x128xf32> to vector<2x32xf32>
    %585 = vector.extract_strided_slice %582 {offsets = [0, 64], sizes = [2, 32], strides = [1, 1]} : vector<2x128xf32> to vector<2x32xf32>
    %cst_221 = arith.constant 2.000000e+00 : f32
    %586 = vector.broadcast %cst_221 : f32 to vector<2x32xf32>
    %587 = arith.mulf %586, %585 : vector<2x32xf32>
    %cst_222 = arith.constant 1.000000e+00 : f32
    %588 = vector.broadcast %cst_222 : f32 to vector<2x32xf32>
    %589 = arith.subf %587, %588 : vector<2x32xf32>
    %590 = vector.extract_strided_slice %582 {offsets = [0, 96], sizes = [2, 32], strides = [1, 1]} : vector<2x128xf32> to vector<2x32xf32>
    %591 = arith.mulf %584, %561 : vector<2x32xf32>
    %592 = arith.mulf %583, %589 : vector<2x32xf32>
    %593 = arith.addf %591, %592 : vector<2x32xf32>
    %594 = math.tanh %593 : vector<2x32xf32>
    %595 = arith.mulf %590, %594 : vector<2x32xf32>
    %cst_223 = arith.constant 0.000000e+00 : f32
    %596 = vector.broadcast %cst_223 : f32 to vector<2x32xf32>
    %597 = arith.maximumf %595, %596 : vector<2x32xf32>
    %cst_224 = arith.constant dense<0.000000e+00> : vector<2x128xf32>
    %598 = tpu.matmul %597, %538, %cst_224 {dimension_numbers = #tpu.dot_dimension_numbers<[1], [0], [0], [1], [0, 0, 1, 1], [], []>} : vector<2x32xf32>, vector<32x128xf32>, vector<2x128xf32> -> vector<2x128xf32>
    %599 = vector.broadcast %540 : vector<1x128xf32> to vector<2x128xf32>
    %600 = arith.addf %598, %599 : vector<2x128xf32>
    %601 = arith.index_cast %c1_i32_216 : i32 to index
    %c0_225 = arith.constant 0 : index
    %c0_226 = arith.constant 0 : index
    %602 = vector.load %arg9[%601, %c0_225, %c0_226] : memref<8x2x128xf32, #tpu.memory_space<vmem>>, vector<1x2x128xf32>
    %603 = vector.shape_cast %602 : vector<1x2x128xf32> to vector<2x128xf32>
    %604 = vector.shape_cast %600 : vector<2x128xf32> to vector<1x2x128xf32>
    tpu.vector_store %arg9[%601, %c0_225, %c0_226], %604 {strides = array<i32>} : memref<8x2x128xf32, #tpu.memory_space<vmem>>, vector<1x2x128xf32>,
    %c2_i32_227 = arith.constant 2 : i32
    %605 = arith.index_cast %c2_i32_227 : i32 to index
    %c0_228 = arith.constant 0 : index
    %c0_229 = arith.constant 0 : index
    %606 = vector.load %arg9[%605, %c0_228, %c0_229] : memref<8x2x128xf32, #tpu.memory_space<vmem>>, vector<1x2x128xf32>
    %607 = vector.shape_cast %606 : vector<1x2x128xf32> to vector<2x128xf32>
    %cst_230 = arith.constant dense<0.000000e+00> : vector<2x128xf32>
    %608 = tpu.matmul %595, %536, %cst_230 {dimension_numbers = #tpu.dot_dimension_numbers<[1], [0], [0], [1], [0, 0, 1, 1], [], []>} : vector<2x32xf32>, vector<32x128xf32>, vector<2x128xf32> -> vector<2x128xf32>
    %609 = arith.addf %607, %608 : vector<2x128xf32>
    %610 = arith.negf %609 : vector<2x128xf32>
    %611 = math.exp %610 : vector<2x128xf32>
    %cst_231 = arith.constant 1.000000e+00 : f32
    %612 = vector.broadcast %cst_231 : f32 to vector<2x128xf32>
    %613 = arith.addf %612, %611 : vector<2x128xf32>
    %614 = arith.divf %612, %613 : vector<2x128xf32>
    %615 = vector.extract_strided_slice %614 {offsets = [0, 0], sizes = [2, 32], strides = [1, 1]} : vector<2x128xf32> to vector<2x32xf32>
    %616 = vector.extract_strided_slice %614 {offsets = [0, 32], sizes = [2, 32], strides = [1, 1]} : vector<2x128xf32> to vector<2x32xf32>
    %617 = vector.extract_strided_slice %614 {offsets = [0, 64], sizes = [2, 32], strides = [1, 1]} : vector<2x128xf32> to vector<2x32xf32>
    %cst_232 = arith.constant 2.000000e+00 : f32
    %618 = vector.broadcast %cst_232 : f32 to vector<2x32xf32>
    %619 = arith.mulf %618, %617 : vector<2x32xf32>
    %cst_233 = arith.constant 1.000000e+00 : f32
    %620 = vector.broadcast %cst_233 : f32 to vector<2x32xf32>
    %621 = arith.subf %619, %620 : vector<2x32xf32>
    %622 = vector.extract_strided_slice %614 {offsets = [0, 96], sizes = [2, 32], strides = [1, 1]} : vector<2x128xf32> to vector<2x32xf32>
    %623 = arith.mulf %616, %593 : vector<2x32xf32>
    %624 = arith.mulf %615, %621 : vector<2x32xf32>
    %625 = arith.addf %623, %624 : vector<2x32xf32>
    %626 = math.tanh %625 : vector<2x32xf32>
    %627 = arith.mulf %622, %626 : vector<2x32xf32>
    %cst_234 = arith.constant 0.000000e+00 : f32
    %628 = vector.broadcast %cst_234 : f32 to vector<2x32xf32>
    %629 = arith.maximumf %627, %628 : vector<2x32xf32>
    %cst_235 = arith.constant dense<0.000000e+00> : vector<2x128xf32>
    %630 = tpu.matmul %629, %538, %cst_235 {dimension_numbers = #tpu.dot_dimension_numbers<[1], [0], [0], [1], [0, 0, 1, 1], [], []>} : vector<2x32xf32>, vector<32x128xf32>, vector<2x128xf32> -> vector<2x128xf32>
    %631 = vector.broadcast %540 : vector<1x128xf32> to vector<2x128xf32>
    %632 = arith.addf %630, %631 : vector<2x128xf32>
    %633 = arith.index_cast %c2_i32_227 : i32 to index
    %c0_236 = arith.constant 0 : index
    %c0_237 = arith.constant 0 : index
    %634 = vector.load %arg9[%633, %c0_236, %c0_237] : memref<8x2x128xf32, #tpu.memory_space<vmem>>, vector<1x2x128xf32>
    %635 = vector.shape_cast %634 : vector<1x2x128xf32> to vector<2x128xf32>
    %636 = vector.shape_cast %632 : vector<2x128xf32> to vector<1x2x128xf32>
    tpu.vector_store %arg9[%633, %c0_236, %c0_237], %636 {strides = array<i32>} : memref<8x2x128xf32, #tpu.memory_space<vmem>>, vector<1x2x128xf32>,
    %c3_i32_238 = arith.constant 3 : i32
    %637 = arith.index_cast %c3_i32_238 : i32 to index
    %c0_239 = arith.constant 0 : index
    %c0_240 = arith.constant 0 : index
    %638 = vector.load %arg9[%637, %c0_239, %c0_240] : memref<8x2x128xf32, #tpu.memory_space<vmem>>, vector<1x2x128xf32>
    %639 = vector.shape_cast %638 : vector<1x2x128xf32> to vector<2x128xf32>
    %cst_241 = arith.constant dense<0.000000e+00> : vector<2x128xf32>
    %640 = tpu.matmul %627, %536, %cst_241 {dimension_numbers = #tpu.dot_dimension_numbers<[1], [0], [0], [1], [0, 0, 1, 1], [], []>} : vector<2x32xf32>, vector<32x128xf32>, vector<2x128xf32> -> vector<2x128xf32>
    %641 = arith.addf %639, %640 : vector<2x128xf32>
    %642 = arith.negf %641 : vector<2x128xf32>
    %643 = math.exp %642 : vector<2x128xf32>
    %cst_242 = arith.constant 1.000000e+00 : f32
    %644 = vector.broadcast %cst_242 : f32 to vector<2x128xf32>
    %645 = arith.addf %644, %643 : vector<2x128xf32>
    %646 = arith.divf %644, %645 : vector<2x128xf32>
    %647 = vector.extract_strided_slice %646 {offsets = [0, 0], sizes = [2, 32], strides = [1, 1]} : vector<2x128xf32> to vector<2x32xf32>
    %648 = vector.extract_strided_slice %646 {offsets = [0, 32], sizes = [2, 32], strides = [1, 1]} : vector<2x128xf32> to vector<2x32xf32>
    %649 = vector.extract_strided_slice %646 {offsets = [0, 64], sizes = [2, 32], strides = [1, 1]} : vector<2x128xf32> to vector<2x32xf32>
    %cst_243 = arith.constant 2.000000e+00 : f32
    %650 = vector.broadcast %cst_243 : f32 to vector<2x32xf32>
    %651 = arith.mulf %650, %649 : vector<2x32xf32>
    %cst_244 = arith.constant 1.000000e+00 : f32
    %652 = vector.broadcast %cst_244 : f32 to vector<2x32xf32>
    %653 = arith.subf %651, %652 : vector<2x32xf32>
    %654 = vector.extract_strided_slice %646 {offsets = [0, 96], sizes = [2, 32], strides = [1, 1]} : vector<2x128xf32> to vector<2x32xf32>
    %655 = arith.mulf %648, %625 : vector<2x32xf32>
    %656 = arith.mulf %647, %653 : vector<2x32xf32>
    %657 = arith.addf %655, %656 : vector<2x32xf32>
    %658 = math.tanh %657 : vector<2x32xf32>
    %659 = arith.mulf %654, %658 : vector<2x32xf32>
    %cst_245 = arith.constant 0.000000e+00 : f32
    %660 = vector.broadcast %cst_245 : f32 to vector<2x32xf32>
    %661 = arith.maximumf %659, %660 : vector<2x32xf32>
    %cst_246 = arith.constant dense<0.000000e+00> : vector<2x128xf32>
    %662 = tpu.matmul %661, %538, %cst_246 {dimension_numbers = #tpu.dot_dimension_numbers<[1], [0], [0], [1], [0, 0, 1, 1], [], []>} : vector<2x32xf32>, vector<32x128xf32>, vector<2x128xf32> -> vector<2x128xf32>
    %663 = vector.broadcast %540 : vector<1x128xf32> to vector<2x128xf32>
    %664 = arith.addf %662, %663 : vector<2x128xf32>
    %665 = arith.index_cast %c3_i32_238 : i32 to index
    %c0_247 = arith.constant 0 : index
    %c0_248 = arith.constant 0 : index
    %666 = vector.load %arg9[%665, %c0_247, %c0_248] : memref<8x2x128xf32, #tpu.memory_space<vmem>>, vector<1x2x128xf32>
    %667 = vector.shape_cast %666 : vector<1x2x128xf32> to vector<2x128xf32>
    %668 = vector.shape_cast %664 : vector<2x128xf32> to vector<1x2x128xf32>
    tpu.vector_store %arg9[%665, %c0_247, %c0_248], %668 {strides = array<i32>} : memref<8x2x128xf32, #tpu.memory_space<vmem>>, vector<1x2x128xf32>,
    %c4_i32_249 = arith.constant 4 : i32
    %669 = arith.index_cast %c4_i32_249 : i32 to index
    %c0_250 = arith.constant 0 : index
    %c0_251 = arith.constant 0 : index
    %670 = vector.load %arg9[%669, %c0_250, %c0_251] : memref<8x2x128xf32, #tpu.memory_space<vmem>>, vector<1x2x128xf32>
    %671 = vector.shape_cast %670 : vector<1x2x128xf32> to vector<2x128xf32>
    %cst_252 = arith.constant dense<0.000000e+00> : vector<2x128xf32>
    %672 = tpu.matmul %659, %536, %cst_252 {dimension_numbers = #tpu.dot_dimension_numbers<[1], [0], [0], [1], [0, 0, 1, 1], [], []>} : vector<2x32xf32>, vector<32x128xf32>, vector<2x128xf32> -> vector<2x128xf32>
    %673 = arith.addf %671, %672 : vector<2x128xf32>
    %674 = arith.negf %673 : vector<2x128xf32>
    %675 = math.exp %674 : vector<2x128xf32>
    %cst_253 = arith.constant 1.000000e+00 : f32
    %676 = vector.broadcast %cst_253 : f32 to vector<2x128xf32>
    %677 = arith.addf %676, %675 : vector<2x128xf32>
    %678 = arith.divf %676, %677 : vector<2x128xf32>
    %679 = vector.extract_strided_slice %678 {offsets = [0, 0], sizes = [2, 32], strides = [1, 1]} : vector<2x128xf32> to vector<2x32xf32>
    %680 = vector.extract_strided_slice %678 {offsets = [0, 32], sizes = [2, 32], strides = [1, 1]} : vector<2x128xf32> to vector<2x32xf32>
    %681 = vector.extract_strided_slice %678 {offsets = [0, 64], sizes = [2, 32], strides = [1, 1]} : vector<2x128xf32> to vector<2x32xf32>
    %cst_254 = arith.constant 2.000000e+00 : f32
    %682 = vector.broadcast %cst_254 : f32 to vector<2x32xf32>
    %683 = arith.mulf %682, %681 : vector<2x32xf32>
    %cst_255 = arith.constant 1.000000e+00 : f32
    %684 = vector.broadcast %cst_255 : f32 to vector<2x32xf32>
    %685 = arith.subf %683, %684 : vector<2x32xf32>
    %686 = vector.extract_strided_slice %678 {offsets = [0, 96], sizes = [2, 32], strides = [1, 1]} : vector<2x128xf32> to vector<2x32xf32>
    %687 = arith.mulf %680, %657 : vector<2x32xf32>
    %688 = arith.mulf %679, %685 : vector<2x32xf32>
    %689 = arith.addf %687, %688 : vector<2x32xf32>
    %690 = math.tanh %689 : vector<2x32xf32>
    %691 = arith.mulf %686, %690 : vector<2x32xf32>
    %cst_256 = arith.constant 0.000000e+00 : f32
    %692 = vector.broadcast %cst_256 : f32 to vector<2x32xf32>
    %693 = arith.maximumf %691, %692 : vector<2x32xf32>
    %cst_257 = arith.constant dense<0.000000e+00> : vector<2x128xf32>
    %694 = tpu.matmul %693, %538, %cst_257 {dimension_numbers = #tpu.dot_dimension_numbers<[1], [0], [0], [1], [0, 0, 1, 1], [], []>} : vector<2x32xf32>, vector<32x128xf32>, vector<2x128xf32> -> vector<2x128xf32>
    %695 = vector.broadcast %540 : vector<1x128xf32> to vector<2x128xf32>
    %696 = arith.addf %694, %695 : vector<2x128xf32>
    %697 = arith.index_cast %c4_i32_249 : i32 to index
    %c0_258 = arith.constant 0 : index
    %c0_259 = arith.constant 0 : index
    %698 = vector.load %arg9[%697, %c0_258, %c0_259] : memref<8x2x128xf32, #tpu.memory_space<vmem>>, vector<1x2x128xf32>
    %699 = vector.shape_cast %698 : vector<1x2x128xf32> to vector<2x128xf32>
    %700 = vector.shape_cast %696 : vector<2x128xf32> to vector<1x2x128xf32>
    tpu.vector_store %arg9[%697, %c0_258, %c0_259], %700 {strides = array<i32>} : memref<8x2x128xf32, #tpu.memory_space<vmem>>, vector<1x2x128xf32>,
    %c5_i32_260 = arith.constant 5 : i32
    %701 = arith.index_cast %c5_i32_260 : i32 to index
    %c0_261 = arith.constant 0 : index
    %c0_262 = arith.constant 0 : index
    %702 = vector.load %arg9[%701, %c0_261, %c0_262] : memref<8x2x128xf32, #tpu.memory_space<vmem>>, vector<1x2x128xf32>
    %703 = vector.shape_cast %702 : vector<1x2x128xf32> to vector<2x128xf32>
    %cst_263 = arith.constant dense<0.000000e+00> : vector<2x128xf32>
    %704 = tpu.matmul %691, %536, %cst_263 {dimension_numbers = #tpu.dot_dimension_numbers<[1], [0], [0], [1], [0, 0, 1, 1], [], []>} : vector<2x32xf32>, vector<32x128xf32>, vector<2x128xf32> -> vector<2x128xf32>
    %705 = arith.addf %703, %704 : vector<2x128xf32>
    %706 = arith.negf %705 : vector<2x128xf32>
    %707 = math.exp %706 : vector<2x128xf32>
    %cst_264 = arith.constant 1.000000e+00 : f32
    %708 = vector.broadcast %cst_264 : f32 to vector<2x128xf32>
    %709 = arith.addf %708, %707 : vector<2x128xf32>
    %710 = arith.divf %708, %709 : vector<2x128xf32>
    %711 = vector.extract_strided_slice %710 {offsets = [0, 0], sizes = [2, 32], strides = [1, 1]} : vector<2x128xf32> to vector<2x32xf32>
    %712 = vector.extract_strided_slice %710 {offsets = [0, 32], sizes = [2, 32], strides = [1, 1]} : vector<2x128xf32> to vector<2x32xf32>
    %713 = vector.extract_strided_slice %710 {offsets = [0, 64], sizes = [2, 32], strides = [1, 1]} : vector<2x128xf32> to vector<2x32xf32>
    %cst_265 = arith.constant 2.000000e+00 : f32
    %714 = vector.broadcast %cst_265 : f32 to vector<2x32xf32>
    %715 = arith.mulf %714, %713 : vector<2x32xf32>
    %cst_266 = arith.constant 1.000000e+00 : f32
    %716 = vector.broadcast %cst_266 : f32 to vector<2x32xf32>
    %717 = arith.subf %715, %716 : vector<2x32xf32>
    %718 = vector.extract_strided_slice %710 {offsets = [0, 96], sizes = [2, 32], strides = [1, 1]} : vector<2x128xf32> to vector<2x32xf32>
    %719 = arith.mulf %712, %689 : vector<2x32xf32>
    %720 = arith.mulf %711, %717 : vector<2x32xf32>
    %721 = arith.addf %719, %720 : vector<2x32xf32>
    %722 = math.tanh %721 : vector<2x32xf32>
    %723 = arith.mulf %718, %722 : vector<2x32xf32>
    %cst_267 = arith.constant 0.000000e+00 : f32
    %724 = vector.broadcast %cst_267 : f32 to vector<2x32xf32>
    %725 = arith.maximumf %723, %724 : vector<2x32xf32>
    %cst_268 = arith.constant dense<0.000000e+00> : vector<2x128xf32>
    %726 = tpu.matmul %725, %538, %cst_268 {dimension_numbers = #tpu.dot_dimension_numbers<[1], [0], [0], [1], [0, 0, 1, 1], [], []>} : vector<2x32xf32>, vector<32x128xf32>, vector<2x128xf32> -> vector<2x128xf32>
    %727 = vector.broadcast %540 : vector<1x128xf32> to vector<2x128xf32>
    %728 = arith.addf %726, %727 : vector<2x128xf32>
    %729 = arith.index_cast %c5_i32_260 : i32 to index
    %c0_269 = arith.constant 0 : index
    %c0_270 = arith.constant 0 : index
    %730 = vector.load %arg9[%729, %c0_269, %c0_270] : memref<8x2x128xf32, #tpu.memory_space<vmem>>, vector<1x2x128xf32>
    %731 = vector.shape_cast %730 : vector<1x2x128xf32> to vector<2x128xf32>
    %732 = vector.shape_cast %728 : vector<2x128xf32> to vector<1x2x128xf32>
    tpu.vector_store %arg9[%729, %c0_269, %c0_270], %732 {strides = array<i32>} : memref<8x2x128xf32, #tpu.memory_space<vmem>>, vector<1x2x128xf32>,
    %c6_i32_271 = arith.constant 6 : i32
    %733 = arith.index_cast %c6_i32_271 : i32 to index
    %c0_272 = arith.constant 0 : index
    %c0_273 = arith.constant 0 : index
    %734 = vector.load %arg9[%733, %c0_272, %c0_273] : memref<8x2x128xf32, #tpu.memory_space<vmem>>, vector<1x2x128xf32>
    %735 = vector.shape_cast %734 : vector<1x2x128xf32> to vector<2x128xf32>
    %cst_274 = arith.constant dense<0.000000e+00> : vector<2x128xf32>
    %736 = tpu.matmul %723, %536, %cst_274 {dimension_numbers = #tpu.dot_dimension_numbers<[1], [0], [0], [1], [0, 0, 1, 1], [], []>} : vector<2x32xf32>, vector<32x128xf32>, vector<2x128xf32> -> vector<2x128xf32>
    %737 = arith.addf %735, %736 : vector<2x128xf32>
    %738 = arith.negf %737 : vector<2x128xf32>
    %739 = math.exp %738 : vector<2x128xf32>
    %cst_275 = arith.constant 1.000000e+00 : f32
    %740 = vector.broadcast %cst_275 : f32 to vector<2x128xf32>
    %741 = arith.addf %740, %739 : vector<2x128xf32>
    %742 = arith.divf %740, %741 : vector<2x128xf32>
    %743 = vector.extract_strided_slice %742 {offsets = [0, 0], sizes = [2, 32], strides = [1, 1]} : vector<2x128xf32> to vector<2x32xf32>
    %744 = vector.extract_strided_slice %742 {offsets = [0, 32], sizes = [2, 32], strides = [1, 1]} : vector<2x128xf32> to vector<2x32xf32>
    %745 = vector.extract_strided_slice %742 {offsets = [0, 64], sizes = [2, 32], strides = [1, 1]} : vector<2x128xf32> to vector<2x32xf32>
    %cst_276 = arith.constant 2.000000e+00 : f32
    %746 = vector.broadcast %cst_276 : f32 to vector<2x32xf32>
    %747 = arith.mulf %746, %745 : vector<2x32xf32>
    %cst_277 = arith.constant 1.000000e+00 : f32
    %748 = vector.broadcast %cst_277 : f32 to vector<2x32xf32>
    %749 = arith.subf %747, %748 : vector<2x32xf32>
    %750 = vector.extract_strided_slice %742 {offsets = [0, 96], sizes = [2, 32], strides = [1, 1]} : vector<2x128xf32> to vector<2x32xf32>
    %751 = arith.mulf %744, %721 : vector<2x32xf32>
    %752 = arith.mulf %743, %749 : vector<2x32xf32>
    %753 = arith.addf %751, %752 : vector<2x32xf32>
    %754 = math.tanh %753 : vector<2x32xf32>
    %755 = arith.mulf %750, %754 : vector<2x32xf32>
    %cst_278 = arith.constant 0.000000e+00 : f32
    %756 = vector.broadcast %cst_278 : f32 to vector<2x32xf32>
    %757 = arith.maximumf %755, %756 : vector<2x32xf32>
    %cst_279 = arith.constant dense<0.000000e+00> : vector<2x128xf32>
    %758 = tpu.matmul %757, %538, %cst_279 {dimension_numbers = #tpu.dot_dimension_numbers<[1], [0], [0], [1], [0, 0, 1, 1], [], []>} : vector<2x32xf32>, vector<32x128xf32>, vector<2x128xf32> -> vector<2x128xf32>
    %759 = vector.broadcast %540 : vector<1x128xf32> to vector<2x128xf32>
    %760 = arith.addf %758, %759 : vector<2x128xf32>
    %761 = arith.index_cast %c6_i32_271 : i32 to index
    %c0_280 = arith.constant 0 : index
    %c0_281 = arith.constant 0 : index
    %762 = vector.load %arg9[%761, %c0_280, %c0_281] : memref<8x2x128xf32, #tpu.memory_space<vmem>>, vector<1x2x128xf32>
    %763 = vector.shape_cast %762 : vector<1x2x128xf32> to vector<2x128xf32>
    %764 = vector.shape_cast %760 : vector<2x128xf32> to vector<1x2x128xf32>
    tpu.vector_store %arg9[%761, %c0_280, %c0_281], %764 {strides = array<i32>} : memref<8x2x128xf32, #tpu.memory_space<vmem>>, vector<1x2x128xf32>,
    %c7_i32_282 = arith.constant 7 : i32
    %765 = arith.index_cast %c7_i32_282 : i32 to index
    %c0_283 = arith.constant 0 : index
    %c0_284 = arith.constant 0 : index
    %766 = vector.load %arg9[%765, %c0_283, %c0_284] : memref<8x2x128xf32, #tpu.memory_space<vmem>>, vector<1x2x128xf32>
    %767 = vector.shape_cast %766 : vector<1x2x128xf32> to vector<2x128xf32>
    %cst_285 = arith.constant dense<0.000000e+00> : vector<2x128xf32>
    %768 = tpu.matmul %755, %536, %cst_285 {dimension_numbers = #tpu.dot_dimension_numbers<[1], [0], [0], [1], [0, 0, 1, 1], [], []>} : vector<2x32xf32>, vector<32x128xf32>, vector<2x128xf32> -> vector<2x128xf32>
    %769 = arith.addf %767, %768 : vector<2x128xf32>
    %770 = arith.negf %769 : vector<2x128xf32>
    %771 = math.exp %770 : vector<2x128xf32>
    %cst_286 = arith.constant 1.000000e+00 : f32
    %772 = vector.broadcast %cst_286 : f32 to vector<2x128xf32>
    %773 = arith.addf %772, %771 : vector<2x128xf32>
    %774 = arith.divf %772, %773 : vector<2x128xf32>
    %775 = vector.extract_strided_slice %774 {offsets = [0, 0], sizes = [2, 32], strides = [1, 1]} : vector<2x128xf32> to vector<2x32xf32>
    %776 = vector.extract_strided_slice %774 {offsets = [0, 32], sizes = [2, 32], strides = [1, 1]} : vector<2x128xf32> to vector<2x32xf32>
    %777 = vector.extract_strided_slice %774 {offsets = [0, 64], sizes = [2, 32], strides = [1, 1]} : vector<2x128xf32> to vector<2x32xf32>
    %cst_287 = arith.constant 2.000000e+00 : f32
    %778 = vector.broadcast %cst_287 : f32 to vector<2x32xf32>
    %779 = arith.mulf %778, %777 : vector<2x32xf32>
    %cst_288 = arith.constant 1.000000e+00 : f32
    %780 = vector.broadcast %cst_288 : f32 to vector<2x32xf32>
    %781 = arith.subf %779, %780 : vector<2x32xf32>
    %782 = vector.extract_strided_slice %774 {offsets = [0, 96], sizes = [2, 32], strides = [1, 1]} : vector<2x128xf32> to vector<2x32xf32>
    %783 = arith.mulf %776, %753 : vector<2x32xf32>
    %784 = arith.mulf %775, %781 : vector<2x32xf32>
    %785 = arith.addf %783, %784 : vector<2x32xf32>
    %786 = math.tanh %785 : vector<2x32xf32>
    %787 = arith.mulf %782, %786 : vector<2x32xf32>
    %cst_289 = arith.constant 0.000000e+00 : f32
    %788 = vector.broadcast %cst_289 : f32 to vector<2x32xf32>
    %789 = arith.maximumf %787, %788 : vector<2x32xf32>
    %cst_290 = arith.constant dense<0.000000e+00> : vector<2x128xf32>
    %790 = tpu.matmul %789, %538, %cst_290 {dimension_numbers = #tpu.dot_dimension_numbers<[1], [0], [0], [1], [0, 0, 1, 1], [], []>} : vector<2x32xf32>, vector<32x128xf32>, vector<2x128xf32> -> vector<2x128xf32>
    %791 = vector.broadcast %540 : vector<1x128xf32> to vector<2x128xf32>
    %792 = arith.addf %790, %791 : vector<2x128xf32>
    %793 = arith.index_cast %c7_i32_282 : i32 to index
    %c0_291 = arith.constant 0 : index
    %c0_292 = arith.constant 0 : index
    %794 = vector.load %arg9[%793, %c0_291, %c0_292] : memref<8x2x128xf32, #tpu.memory_space<vmem>>, vector<1x2x128xf32>
    %795 = vector.shape_cast %794 : vector<1x2x128xf32> to vector<2x128xf32>
    %796 = vector.shape_cast %792 : vector<2x128xf32> to vector<1x2x128xf32>
    tpu.vector_store %arg9[%793, %c0_291, %c0_292], %796 {strides = array<i32>} : memref<8x2x128xf32, #tpu.memory_space<vmem>>, vector<1x2x128xf32>,
    %c8_i32_293 = arith.constant 8 : i32
    %c3 = arith.constant 3 : index
    %c0_294 = arith.constant 0 : index
    %c0_295 = arith.constant 0 : index
    %797 = vector.load %arg3[%c3, %c0_294, %c0_295] : memref<5x32x128xf32, #tpu.memory_space<vmem>>, vector<1x32x128xf32>
    %798 = vector.shape_cast %797 : vector<1x32x128xf32> to vector<32x128xf32>
    %c3_296 = arith.constant 3 : index
    %c0_297 = arith.constant 0 : index
    %c0_298 = arith.constant 0 : index
    %799 = vector.load %arg4[%c3_296, %c0_297, %c0_298] : memref<4x32x128xf32, #tpu.memory_space<vmem>>, vector<1x32x128xf32>
    %800 = vector.shape_cast %799 : vector<1x32x128xf32> to vector<32x128xf32>
    %c3_299 = arith.constant 3 : index
    %c0_300 = arith.constant 0 : index
    %c0_301 = arith.constant 0 : index
    %801 = vector.load %arg5[%c3_299, %c0_300, %c0_301] : memref<4x1x128xf32, #tpu.memory_space<vmem>>, vector<1x1x128xf32>
    %802 = vector.shape_cast %801 : vector<1x1x128xf32> to vector<1x128xf32>
    %c0_i32_302 = arith.constant 0 : i32
    %803 = arith.index_cast %c0_i32_302 : i32 to index
    %c0_303 = arith.constant 0 : index
    %c0_304 = arith.constant 0 : index
    %804 = vector.load %arg9[%803, %c0_303, %c0_304] : memref<8x2x128xf32, #tpu.memory_space<vmem>>, vector<1x2x128xf32>
    %805 = vector.shape_cast %804 : vector<1x2x128xf32> to vector<2x128xf32>
    %cst_305 = arith.constant dense<0.000000e+00> : vector<2x128xf32>
    %806 = tpu.matmul %787, %798, %cst_305 {dimension_numbers = #tpu.dot_dimension_numbers<[1], [0], [0], [1], [0, 0, 1, 1], [], []>} : vector<2x32xf32>, vector<32x128xf32>, vector<2x128xf32> -> vector<2x128xf32>
    %807 = arith.addf %805, %806 : vector<2x128xf32>
    %808 = arith.negf %807 : vector<2x128xf32>
    %809 = math.exp %808 : vector<2x128xf32>
    %cst_306 = arith.constant 1.000000e+00 : f32
    %810 = vector.broadcast %cst_306 : f32 to vector<2x128xf32>
    %811 = arith.addf %810, %809 : vector<2x128xf32>
    %812 = arith.divf %810, %811 : vector<2x128xf32>
    %813 = vector.extract_strided_slice %812 {offsets = [0, 0], sizes = [2, 32], strides = [1, 1]} : vector<2x128xf32> to vector<2x32xf32>
    %814 = vector.extract_strided_slice %812 {offsets = [0, 32], sizes = [2, 32], strides = [1, 1]} : vector<2x128xf32> to vector<2x32xf32>
    %815 = vector.extract_strided_slice %812 {offsets = [0, 64], sizes = [2, 32], strides = [1, 1]} : vector<2x128xf32> to vector<2x32xf32>
    %cst_307 = arith.constant 2.000000e+00 : f32
    %816 = vector.broadcast %cst_307 : f32 to vector<2x32xf32>
    %817 = arith.mulf %816, %815 : vector<2x32xf32>
    %cst_308 = arith.constant 1.000000e+00 : f32
    %818 = vector.broadcast %cst_308 : f32 to vector<2x32xf32>
    %819 = arith.subf %817, %818 : vector<2x32xf32>
    %820 = vector.extract_strided_slice %812 {offsets = [0, 96], sizes = [2, 32], strides = [1, 1]} : vector<2x128xf32> to vector<2x32xf32>
    %821 = arith.mulf %814, %785 : vector<2x32xf32>
    %822 = arith.mulf %813, %819 : vector<2x32xf32>
    %823 = arith.addf %821, %822 : vector<2x32xf32>
    %824 = math.tanh %823 : vector<2x32xf32>
    %825 = arith.mulf %820, %824 : vector<2x32xf32>
    %cst_309 = arith.constant 0.000000e+00 : f32
    %826 = vector.broadcast %cst_309 : f32 to vector<2x32xf32>
    %827 = arith.maximumf %825, %826 : vector<2x32xf32>
    %cst_310 = arith.constant dense<0.000000e+00> : vector<2x128xf32>
    %828 = tpu.matmul %827, %800, %cst_310 {dimension_numbers = #tpu.dot_dimension_numbers<[1], [0], [0], [1], [0, 0, 1, 1], [], []>} : vector<2x32xf32>, vector<32x128xf32>, vector<2x128xf32> -> vector<2x128xf32>
    %829 = vector.broadcast %802 : vector<1x128xf32> to vector<2x128xf32>
    %830 = arith.addf %828, %829 : vector<2x128xf32>
    %831 = arith.index_cast %c0_i32_302 : i32 to index
    %c0_311 = arith.constant 0 : index
    %c0_312 = arith.constant 0 : index
    %832 = vector.load %arg9[%831, %c0_311, %c0_312] : memref<8x2x128xf32, #tpu.memory_space<vmem>>, vector<1x2x128xf32>
    %833 = vector.shape_cast %832 : vector<1x2x128xf32> to vector<2x128xf32>
    %834 = vector.shape_cast %830 : vector<2x128xf32> to vector<1x2x128xf32>
    tpu.vector_store %arg9[%831, %c0_311, %c0_312], %834 {strides = array<i32>} : memref<8x2x128xf32, #tpu.memory_space<vmem>>, vector<1x2x128xf32>,
    %c1_i32_313 = arith.constant 1 : i32
    %835 = arith.index_cast %c1_i32_313 : i32 to index
    %c0_314 = arith.constant 0 : index
    %c0_315 = arith.constant 0 : index
    %836 = vector.load %arg9[%835, %c0_314, %c0_315] : memref<8x2x128xf32, #tpu.memory_space<vmem>>, vector<1x2x128xf32>
    %837 = vector.shape_cast %836 : vector<1x2x128xf32> to vector<2x128xf32>
    %cst_316 = arith.constant dense<0.000000e+00> : vector<2x128xf32>
    %838 = tpu.matmul %825, %798, %cst_316 {dimension_numbers = #tpu.dot_dimension_numbers<[1], [0], [0], [1], [0, 0, 1, 1], [], []>} : vector<2x32xf32>, vector<32x128xf32>, vector<2x128xf32> -> vector<2x128xf32>
    %839 = arith.addf %837, %838 : vector<2x128xf32>
    %840 = arith.negf %839 : vector<2x128xf32>
    %841 = math.exp %840 : vector<2x128xf32>
    %cst_317 = arith.constant 1.000000e+00 : f32
    %842 = vector.broadcast %cst_317 : f32 to vector<2x128xf32>
    %843 = arith.addf %842, %841 : vector<2x128xf32>
    %844 = arith.divf %842, %843 : vector<2x128xf32>
    %845 = vector.extract_strided_slice %844 {offsets = [0, 0], sizes = [2, 32], strides = [1, 1]} : vector<2x128xf32> to vector<2x32xf32>
    %846 = vector.extract_strided_slice %844 {offsets = [0, 32], sizes = [2, 32], strides = [1, 1]} : vector<2x128xf32> to vector<2x32xf32>
    %847 = vector.extract_strided_slice %844 {offsets = [0, 64], sizes = [2, 32], strides = [1, 1]} : vector<2x128xf32> to vector<2x32xf32>
    %cst_318 = arith.constant 2.000000e+00 : f32
    %848 = vector.broadcast %cst_318 : f32 to vector<2x32xf32>
    %849 = arith.mulf %848, %847 : vector<2x32xf32>
    %cst_319 = arith.constant 1.000000e+00 : f32
    %850 = vector.broadcast %cst_319 : f32 to vector<2x32xf32>
    %851 = arith.subf %849, %850 : vector<2x32xf32>
    %852 = vector.extract_strided_slice %844 {offsets = [0, 96], sizes = [2, 32], strides = [1, 1]} : vector<2x128xf32> to vector<2x32xf32>
    %853 = arith.mulf %846, %823 : vector<2x32xf32>
    %854 = arith.mulf %845, %851 : vector<2x32xf32>
    %855 = arith.addf %853, %854 : vector<2x32xf32>
    %856 = math.tanh %855 : vector<2x32xf32>
    %857 = arith.mulf %852, %856 : vector<2x32xf32>
    %cst_320 = arith.constant 0.000000e+00 : f32
    %858 = vector.broadcast %cst_320 : f32 to vector<2x32xf32>
    %859 = arith.maximumf %857, %858 : vector<2x32xf32>
    %cst_321 = arith.constant dense<0.000000e+00> : vector<2x128xf32>
    %860 = tpu.matmul %859, %800, %cst_321 {dimension_numbers = #tpu.dot_dimension_numbers<[1], [0], [0], [1], [0, 0, 1, 1], [], []>} : vector<2x32xf32>, vector<32x128xf32>, vector<2x128xf32> -> vector<2x128xf32>
    %861 = vector.broadcast %802 : vector<1x128xf32> to vector<2x128xf32>
    %862 = arith.addf %860, %861 : vector<2x128xf32>
    %863 = arith.index_cast %c1_i32_313 : i32 to index
    %c0_322 = arith.constant 0 : index
    %c0_323 = arith.constant 0 : index
    %864 = vector.load %arg9[%863, %c0_322, %c0_323] : memref<8x2x128xf32, #tpu.memory_space<vmem>>, vector<1x2x128xf32>
    %865 = vector.shape_cast %864 : vector<1x2x128xf32> to vector<2x128xf32>
    %866 = vector.shape_cast %862 : vector<2x128xf32> to vector<1x2x128xf32>
    tpu.vector_store %arg9[%863, %c0_322, %c0_323], %866 {strides = array<i32>} : memref<8x2x128xf32, #tpu.memory_space<vmem>>, vector<1x2x128xf32>,
    %c2_i32_324 = arith.constant 2 : i32
    %867 = arith.index_cast %c2_i32_324 : i32 to index
    %c0_325 = arith.constant 0 : index
    %c0_326 = arith.constant 0 : index
    %868 = vector.load %arg9[%867, %c0_325, %c0_326] : memref<8x2x128xf32, #tpu.memory_space<vmem>>, vector<1x2x128xf32>
    %869 = vector.shape_cast %868 : vector<1x2x128xf32> to vector<2x128xf32>
    %cst_327 = arith.constant dense<0.000000e+00> : vector<2x128xf32>
    %870 = tpu.matmul %857, %798, %cst_327 {dimension_numbers = #tpu.dot_dimension_numbers<[1], [0], [0], [1], [0, 0, 1, 1], [], []>} : vector<2x32xf32>, vector<32x128xf32>, vector<2x128xf32> -> vector<2x128xf32>
    %871 = arith.addf %869, %870 : vector<2x128xf32>
    %872 = arith.negf %871 : vector<2x128xf32>
    %873 = math.exp %872 : vector<2x128xf32>
    %cst_328 = arith.constant 1.000000e+00 : f32
    %874 = vector.broadcast %cst_328 : f32 to vector<2x128xf32>
    %875 = arith.addf %874, %873 : vector<2x128xf32>
    %876 = arith.divf %874, %875 : vector<2x128xf32>
    %877 = vector.extract_strided_slice %876 {offsets = [0, 0], sizes = [2, 32], strides = [1, 1]} : vector<2x128xf32> to vector<2x32xf32>
    %878 = vector.extract_strided_slice %876 {offsets = [0, 32], sizes = [2, 32], strides = [1, 1]} : vector<2x128xf32> to vector<2x32xf32>
    %879 = vector.extract_strided_slice %876 {offsets = [0, 64], sizes = [2, 32], strides = [1, 1]} : vector<2x128xf32> to vector<2x32xf32>
    %cst_329 = arith.constant 2.000000e+00 : f32
    %880 = vector.broadcast %cst_329 : f32 to vector<2x32xf32>
    %881 = arith.mulf %880, %879 : vector<2x32xf32>
    %cst_330 = arith.constant 1.000000e+00 : f32
    %882 = vector.broadcast %cst_330 : f32 to vector<2x32xf32>
    %883 = arith.subf %881, %882 : vector<2x32xf32>
    %884 = vector.extract_strided_slice %876 {offsets = [0, 96], sizes = [2, 32], strides = [1, 1]} : vector<2x128xf32> to vector<2x32xf32>
    %885 = arith.mulf %878, %855 : vector<2x32xf32>
    %886 = arith.mulf %877, %883 : vector<2x32xf32>
    %887 = arith.addf %885, %886 : vector<2x32xf32>
    %888 = math.tanh %887 : vector<2x32xf32>
    %889 = arith.mulf %884, %888 : vector<2x32xf32>
    %cst_331 = arith.constant 0.000000e+00 : f32
    %890 = vector.broadcast %cst_331 : f32 to vector<2x32xf32>
    %891 = arith.maximumf %889, %890 : vector<2x32xf32>
    %cst_332 = arith.constant dense<0.000000e+00> : vector<2x128xf32>
    %892 = tpu.matmul %891, %800, %cst_332 {dimension_numbers = #tpu.dot_dimension_numbers<[1], [0], [0], [1], [0, 0, 1, 1], [], []>} : vector<2x32xf32>, vector<32x128xf32>, vector<2x128xf32> -> vector<2x128xf32>
    %893 = vector.broadcast %802 : vector<1x128xf32> to vector<2x128xf32>
    %894 = arith.addf %892, %893 : vector<2x128xf32>
    %895 = arith.index_cast %c2_i32_324 : i32 to index
    %c0_333 = arith.constant 0 : index
    %c0_334 = arith.constant 0 : index
    %896 = vector.load %arg9[%895, %c0_333, %c0_334] : memref<8x2x128xf32, #tpu.memory_space<vmem>>, vector<1x2x128xf32>
    %897 = vector.shape_cast %896 : vector<1x2x128xf32> to vector<2x128xf32>
    %898 = vector.shape_cast %894 : vector<2x128xf32> to vector<1x2x128xf32>
    tpu.vector_store %arg9[%895, %c0_333, %c0_334], %898 {strides = array<i32>} : memref<8x2x128xf32, #tpu.memory_space<vmem>>, vector<1x2x128xf32>,
    %c3_i32_335 = arith.constant 3 : i32
    %899 = arith.index_cast %c3_i32_335 : i32 to index
    %c0_336 = arith.constant 0 : index
    %c0_337 = arith.constant 0 : index
    %900 = vector.load %arg9[%899, %c0_336, %c0_337] : memref<8x2x128xf32, #tpu.memory_space<vmem>>, vector<1x2x128xf32>
    %901 = vector.shape_cast %900 : vector<1x2x128xf32> to vector<2x128xf32>
    %cst_338 = arith.constant dense<0.000000e+00> : vector<2x128xf32>
    %902 = tpu.matmul %889, %798, %cst_338 {dimension_numbers = #tpu.dot_dimension_numbers<[1], [0], [0], [1], [0, 0, 1, 1], [], []>} : vector<2x32xf32>, vector<32x128xf32>, vector<2x128xf32> -> vector<2x128xf32>
    %903 = arith.addf %901, %902 : vector<2x128xf32>
    %904 = arith.negf %903 : vector<2x128xf32>
    %905 = math.exp %904 : vector<2x128xf32>
    %cst_339 = arith.constant 1.000000e+00 : f32
    %906 = vector.broadcast %cst_339 : f32 to vector<2x128xf32>
    %907 = arith.addf %906, %905 : vector<2x128xf32>
    %908 = arith.divf %906, %907 : vector<2x128xf32>
    %909 = vector.extract_strided_slice %908 {offsets = [0, 0], sizes = [2, 32], strides = [1, 1]} : vector<2x128xf32> to vector<2x32xf32>
    %910 = vector.extract_strided_slice %908 {offsets = [0, 32], sizes = [2, 32], strides = [1, 1]} : vector<2x128xf32> to vector<2x32xf32>
    %911 = vector.extract_strided_slice %908 {offsets = [0, 64], sizes = [2, 32], strides = [1, 1]} : vector<2x128xf32> to vector<2x32xf32>
    %cst_340 = arith.constant 2.000000e+00 : f32
    %912 = vector.broadcast %cst_340 : f32 to vector<2x32xf32>
    %913 = arith.mulf %912, %911 : vector<2x32xf32>
    %cst_341 = arith.constant 1.000000e+00 : f32
    %914 = vector.broadcast %cst_341 : f32 to vector<2x32xf32>
    %915 = arith.subf %913, %914 : vector<2x32xf32>
    %916 = vector.extract_strided_slice %908 {offsets = [0, 96], sizes = [2, 32], strides = [1, 1]} : vector<2x128xf32> to vector<2x32xf32>
    %917 = arith.mulf %910, %887 : vector<2x32xf32>
    %918 = arith.mulf %909, %915 : vector<2x32xf32>
    %919 = arith.addf %917, %918 : vector<2x32xf32>
    %920 = math.tanh %919 : vector<2x32xf32>
    %921 = arith.mulf %916, %920 : vector<2x32xf32>
    %cst_342 = arith.constant 0.000000e+00 : f32
    %922 = vector.broadcast %cst_342 : f32 to vector<2x32xf32>
    %923 = arith.maximumf %921, %922 : vector<2x32xf32>
    %cst_343 = arith.constant dense<0.000000e+00> : vector<2x128xf32>
    %924 = tpu.matmul %923, %800, %cst_343 {dimension_numbers = #tpu.dot_dimension_numbers<[1], [0], [0], [1], [0, 0, 1, 1], [], []>} : vector<2x32xf32>, vector<32x128xf32>, vector<2x128xf32> -> vector<2x128xf32>
    %925 = vector.broadcast %802 : vector<1x128xf32> to vector<2x128xf32>
    %926 = arith.addf %924, %925 : vector<2x128xf32>
    %927 = arith.index_cast %c3_i32_335 : i32 to index
    %c0_344 = arith.constant 0 : index
    %c0_345 = arith.constant 0 : index
    %928 = vector.load %arg9[%927, %c0_344, %c0_345] : memref<8x2x128xf32, #tpu.memory_space<vmem>>, vector<1x2x128xf32>
    %929 = vector.shape_cast %928 : vector<1x2x128xf32> to vector<2x128xf32>
    %930 = vector.shape_cast %926 : vector<2x128xf32> to vector<1x2x128xf32>
    tpu.vector_store %arg9[%927, %c0_344, %c0_345], %930 {strides = array<i32>} : memref<8x2x128xf32, #tpu.memory_space<vmem>>, vector<1x2x128xf32>,
    %c4_i32_346 = arith.constant 4 : i32
    %931 = arith.index_cast %c4_i32_346 : i32 to index
    %c0_347 = arith.constant 0 : index
    %c0_348 = arith.constant 0 : index
    %932 = vector.load %arg9[%931, %c0_347, %c0_348] : memref<8x2x128xf32, #tpu.memory_space<vmem>>, vector<1x2x128xf32>
    %933 = vector.shape_cast %932 : vector<1x2x128xf32> to vector<2x128xf32>
    %cst_349 = arith.constant dense<0.000000e+00> : vector<2x128xf32>
    %934 = tpu.matmul %921, %798, %cst_349 {dimension_numbers = #tpu.dot_dimension_numbers<[1], [0], [0], [1], [0, 0, 1, 1], [], []>} : vector<2x32xf32>, vector<32x128xf32>, vector<2x128xf32> -> vector<2x128xf32>
    %935 = arith.addf %933, %934 : vector<2x128xf32>
    %936 = arith.negf %935 : vector<2x128xf32>
    %937 = math.exp %936 : vector<2x128xf32>
    %cst_350 = arith.constant 1.000000e+00 : f32
    %938 = vector.broadcast %cst_350 : f32 to vector<2x128xf32>
    %939 = arith.addf %938, %937 : vector<2x128xf32>
    %940 = arith.divf %938, %939 : vector<2x128xf32>
    %941 = vector.extract_strided_slice %940 {offsets = [0, 0], sizes = [2, 32], strides = [1, 1]} : vector<2x128xf32> to vector<2x32xf32>
    %942 = vector.extract_strided_slice %940 {offsets = [0, 32], sizes = [2, 32], strides = [1, 1]} : vector<2x128xf32> to vector<2x32xf32>
    %943 = vector.extract_strided_slice %940 {offsets = [0, 64], sizes = [2, 32], strides = [1, 1]} : vector<2x128xf32> to vector<2x32xf32>
    %cst_351 = arith.constant 2.000000e+00 : f32
    %944 = vector.broadcast %cst_351 : f32 to vector<2x32xf32>
    %945 = arith.mulf %944, %943 : vector<2x32xf32>
    %cst_352 = arith.constant 1.000000e+00 : f32
    %946 = vector.broadcast %cst_352 : f32 to vector<2x32xf32>
    %947 = arith.subf %945, %946 : vector<2x32xf32>
    %948 = vector.extract_strided_slice %940 {offsets = [0, 96], sizes = [2, 32], strides = [1, 1]} : vector<2x128xf32> to vector<2x32xf32>
    %949 = arith.mulf %942, %919 : vector<2x32xf32>
    %950 = arith.mulf %941, %947 : vector<2x32xf32>
    %951 = arith.addf %949, %950 : vector<2x32xf32>
    %952 = math.tanh %951 : vector<2x32xf32>
    %953 = arith.mulf %948, %952 : vector<2x32xf32>
    %cst_353 = arith.constant 0.000000e+00 : f32
    %954 = vector.broadcast %cst_353 : f32 to vector<2x32xf32>
    %955 = arith.maximumf %953, %954 : vector<2x32xf32>
    %cst_354 = arith.constant dense<0.000000e+00> : vector<2x128xf32>
    %956 = tpu.matmul %955, %800, %cst_354 {dimension_numbers = #tpu.dot_dimension_numbers<[1], [0], [0], [1], [0, 0, 1, 1], [], []>} : vector<2x32xf32>, vector<32x128xf32>, vector<2x128xf32> -> vector<2x128xf32>
    %957 = vector.broadcast %802 : vector<1x128xf32> to vector<2x128xf32>
    %958 = arith.addf %956, %957 : vector<2x128xf32>
    %959 = arith.index_cast %c4_i32_346 : i32 to index
    %c0_355 = arith.constant 0 : index
    %c0_356 = arith.constant 0 : index
    %960 = vector.load %arg9[%959, %c0_355, %c0_356] : memref<8x2x128xf32, #tpu.memory_space<vmem>>, vector<1x2x128xf32>
    %961 = vector.shape_cast %960 : vector<1x2x128xf32> to vector<2x128xf32>
    %962 = vector.shape_cast %958 : vector<2x128xf32> to vector<1x2x128xf32>
    tpu.vector_store %arg9[%959, %c0_355, %c0_356], %962 {strides = array<i32>} : memref<8x2x128xf32, #tpu.memory_space<vmem>>, vector<1x2x128xf32>,
    %c5_i32_357 = arith.constant 5 : i32
    %963 = arith.index_cast %c5_i32_357 : i32 to index
    %c0_358 = arith.constant 0 : index
    %c0_359 = arith.constant 0 : index
    %964 = vector.load %arg9[%963, %c0_358, %c0_359] : memref<8x2x128xf32, #tpu.memory_space<vmem>>, vector<1x2x128xf32>
    %965 = vector.shape_cast %964 : vector<1x2x128xf32> to vector<2x128xf32>
    %cst_360 = arith.constant dense<0.000000e+00> : vector<2x128xf32>
    %966 = tpu.matmul %953, %798, %cst_360 {dimension_numbers = #tpu.dot_dimension_numbers<[1], [0], [0], [1], [0, 0, 1, 1], [], []>} : vector<2x32xf32>, vector<32x128xf32>, vector<2x128xf32> -> vector<2x128xf32>
    %967 = arith.addf %965, %966 : vector<2x128xf32>
    %968 = arith.negf %967 : vector<2x128xf32>
    %969 = math.exp %968 : vector<2x128xf32>
    %cst_361 = arith.constant 1.000000e+00 : f32
    %970 = vector.broadcast %cst_361 : f32 to vector<2x128xf32>
    %971 = arith.addf %970, %969 : vector<2x128xf32>
    %972 = arith.divf %970, %971 : vector<2x128xf32>
    %973 = vector.extract_strided_slice %972 {offsets = [0, 0], sizes = [2, 32], strides = [1, 1]} : vector<2x128xf32> to vector<2x32xf32>
    %974 = vector.extract_strided_slice %972 {offsets = [0, 32], sizes = [2, 32], strides = [1, 1]} : vector<2x128xf32> to vector<2x32xf32>
    %975 = vector.extract_strided_slice %972 {offsets = [0, 64], sizes = [2, 32], strides = [1, 1]} : vector<2x128xf32> to vector<2x32xf32>
    %cst_362 = arith.constant 2.000000e+00 : f32
    %976 = vector.broadcast %cst_362 : f32 to vector<2x32xf32>
    %977 = arith.mulf %976, %975 : vector<2x32xf32>
    %cst_363 = arith.constant 1.000000e+00 : f32
    %978 = vector.broadcast %cst_363 : f32 to vector<2x32xf32>
    %979 = arith.subf %977, %978 : vector<2x32xf32>
    %980 = vector.extract_strided_slice %972 {offsets = [0, 96], sizes = [2, 32], strides = [1, 1]} : vector<2x128xf32> to vector<2x32xf32>
    %981 = arith.mulf %974, %951 : vector<2x32xf32>
    %982 = arith.mulf %973, %979 : vector<2x32xf32>
    %983 = arith.addf %981, %982 : vector<2x32xf32>
    %984 = math.tanh %983 : vector<2x32xf32>
    %985 = arith.mulf %980, %984 : vector<2x32xf32>
    %cst_364 = arith.constant 0.000000e+00 : f32
    %986 = vector.broadcast %cst_364 : f32 to vector<2x32xf32>
    %987 = arith.maximumf %985, %986 : vector<2x32xf32>
    %cst_365 = arith.constant dense<0.000000e+00> : vector<2x128xf32>
    %988 = tpu.matmul %987, %800, %cst_365 {dimension_numbers = #tpu.dot_dimension_numbers<[1], [0], [0], [1], [0, 0, 1, 1], [], []>} : vector<2x32xf32>, vector<32x128xf32>, vector<2x128xf32> -> vector<2x128xf32>
    %989 = vector.broadcast %802 : vector<1x128xf32> to vector<2x128xf32>
    %990 = arith.addf %988, %989 : vector<2x128xf32>
    %991 = arith.index_cast %c5_i32_357 : i32 to index
    %c0_366 = arith.constant 0 : index
    %c0_367 = arith.constant 0 : index
    %992 = vector.load %arg9[%991, %c0_366, %c0_367] : memref<8x2x128xf32, #tpu.memory_space<vmem>>, vector<1x2x128xf32>
    %993 = vector.shape_cast %992 : vector<1x2x128xf32> to vector<2x128xf32>
    %994 = vector.shape_cast %990 : vector<2x128xf32> to vector<1x2x128xf32>
    tpu.vector_store %arg9[%991, %c0_366, %c0_367], %994 {strides = array<i32>} : memref<8x2x128xf32, #tpu.memory_space<vmem>>, vector<1x2x128xf32>,
    %c6_i32_368 = arith.constant 6 : i32
    %995 = arith.index_cast %c6_i32_368 : i32 to index
    %c0_369 = arith.constant 0 : index
    %c0_370 = arith.constant 0 : index
    %996 = vector.load %arg9[%995, %c0_369, %c0_370] : memref<8x2x128xf32, #tpu.memory_space<vmem>>, vector<1x2x128xf32>
    %997 = vector.shape_cast %996 : vector<1x2x128xf32> to vector<2x128xf32>
    %cst_371 = arith.constant dense<0.000000e+00> : vector<2x128xf32>
    %998 = tpu.matmul %985, %798, %cst_371 {dimension_numbers = #tpu.dot_dimension_numbers<[1], [0], [0], [1], [0, 0, 1, 1], [], []>} : vector<2x32xf32>, vector<32x128xf32>, vector<2x128xf32> -> vector<2x128xf32>
    %999 = arith.addf %997, %998 : vector<2x128xf32>
    %1000 = arith.negf %999 : vector<2x128xf32>
    %1001 = math.exp %1000 : vector<2x128xf32>
    %cst_372 = arith.constant 1.000000e+00 : f32
    %1002 = vector.broadcast %cst_372 : f32 to vector<2x128xf32>
    %1003 = arith.addf %1002, %1001 : vector<2x128xf32>
    %1004 = arith.divf %1002, %1003 : vector<2x128xf32>
    %1005 = vector.extract_strided_slice %1004 {offsets = [0, 0], sizes = [2, 32], strides = [1, 1]} : vector<2x128xf32> to vector<2x32xf32>
    %1006 = vector.extract_strided_slice %1004 {offsets = [0, 32], sizes = [2, 32], strides = [1, 1]} : vector<2x128xf32> to vector<2x32xf32>
    %1007 = vector.extract_strided_slice %1004 {offsets = [0, 64], sizes = [2, 32], strides = [1, 1]} : vector<2x128xf32> to vector<2x32xf32>
    %cst_373 = arith.constant 2.000000e+00 : f32
    %1008 = vector.broadcast %cst_373 : f32 to vector<2x32xf32>
    %1009 = arith.mulf %1008, %1007 : vector<2x32xf32>
    %cst_374 = arith.constant 1.000000e+00 : f32
    %1010 = vector.broadcast %cst_374 : f32 to vector<2x32xf32>
    %1011 = arith.subf %1009, %1010 : vector<2x32xf32>
    %1012 = vector.extract_strided_slice %1004 {offsets = [0, 96], sizes = [2, 32], strides = [1, 1]} : vector<2x128xf32> to vector<2x32xf32>
    %1013 = arith.mulf %1006, %983 : vector<2x32xf32>
    %1014 = arith.mulf %1005, %1011 : vector<2x32xf32>
    %1015 = arith.addf %1013, %1014 : vector<2x32xf32>
    %1016 = math.tanh %1015 : vector<2x32xf32>
    %1017 = arith.mulf %1012, %1016 : vector<2x32xf32>
    %cst_375 = arith.constant 0.000000e+00 : f32
    %1018 = vector.broadcast %cst_375 : f32 to vector<2x32xf32>
    %1019 = arith.maximumf %1017, %1018 : vector<2x32xf32>
    %cst_376 = arith.constant dense<0.000000e+00> : vector<2x128xf32>
    %1020 = tpu.matmul %1019, %800, %cst_376 {dimension_numbers = #tpu.dot_dimension_numbers<[1], [0], [0], [1], [0, 0, 1, 1], [], []>} : vector<2x32xf32>, vector<32x128xf32>, vector<2x128xf32> -> vector<2x128xf32>
    %1021 = vector.broadcast %802 : vector<1x128xf32> to vector<2x128xf32>
    %1022 = arith.addf %1020, %1021 : vector<2x128xf32>
    %1023 = arith.index_cast %c6_i32_368 : i32 to index
    %c0_377 = arith.constant 0 : index
    %c0_378 = arith.constant 0 : index
    %1024 = vector.load %arg9[%1023, %c0_377, %c0_378] : memref<8x2x128xf32, #tpu.memory_space<vmem>>, vector<1x2x128xf32>
    %1025 = vector.shape_cast %1024 : vector<1x2x128xf32> to vector<2x128xf32>
    %1026 = vector.shape_cast %1022 : vector<2x128xf32> to vector<1x2x128xf32>
    tpu.vector_store %arg9[%1023, %c0_377, %c0_378], %1026 {strides = array<i32>} : memref<8x2x128xf32, #tpu.memory_space<vmem>>, vector<1x2x128xf32>,
    %c7_i32_379 = arith.constant 7 : i32
    %1027 = arith.index_cast %c7_i32_379 : i32 to index
    %c0_380 = arith.constant 0 : index
    %c0_381 = arith.constant 0 : index
    %1028 = vector.load %arg9[%1027, %c0_380, %c0_381] : memref<8x2x128xf32, #tpu.memory_space<vmem>>, vector<1x2x128xf32>
    %1029 = vector.shape_cast %1028 : vector<1x2x128xf32> to vector<2x128xf32>
    %cst_382 = arith.constant dense<0.000000e+00> : vector<2x128xf32>
    %1030 = tpu.matmul %1017, %798, %cst_382 {dimension_numbers = #tpu.dot_dimension_numbers<[1], [0], [0], [1], [0, 0, 1, 1], [], []>} : vector<2x32xf32>, vector<32x128xf32>, vector<2x128xf32> -> vector<2x128xf32>
    %1031 = arith.addf %1029, %1030 : vector<2x128xf32>
    %1032 = arith.negf %1031 : vector<2x128xf32>
    %1033 = math.exp %1032 : vector<2x128xf32>
    %cst_383 = arith.constant 1.000000e+00 : f32
    %1034 = vector.broadcast %cst_383 : f32 to vector<2x128xf32>
    %1035 = arith.addf %1034, %1033 : vector<2x128xf32>
    %1036 = arith.divf %1034, %1035 : vector<2x128xf32>
    %1037 = vector.extract_strided_slice %1036 {offsets = [0, 0], sizes = [2, 32], strides = [1, 1]} : vector<2x128xf32> to vector<2x32xf32>
    %1038 = vector.extract_strided_slice %1036 {offsets = [0, 32], sizes = [2, 32], strides = [1, 1]} : vector<2x128xf32> to vector<2x32xf32>
    %1039 = vector.extract_strided_slice %1036 {offsets = [0, 64], sizes = [2, 32], strides = [1, 1]} : vector<2x128xf32> to vector<2x32xf32>
    %cst_384 = arith.constant 2.000000e+00 : f32
    %1040 = vector.broadcast %cst_384 : f32 to vector<2x32xf32>
    %1041 = arith.mulf %1040, %1039 : vector<2x32xf32>
    %cst_385 = arith.constant 1.000000e+00 : f32
    %1042 = vector.broadcast %cst_385 : f32 to vector<2x32xf32>
    %1043 = arith.subf %1041, %1042 : vector<2x32xf32>
    %1044 = vector.extract_strided_slice %1036 {offsets = [0, 96], sizes = [2, 32], strides = [1, 1]} : vector<2x128xf32> to vector<2x32xf32>
    %1045 = arith.mulf %1038, %1015 : vector<2x32xf32>
    %1046 = arith.mulf %1037, %1043 : vector<2x32xf32>
    %1047 = arith.addf %1045, %1046 : vector<2x32xf32>
    %1048 = math.tanh %1047 : vector<2x32xf32>
    %1049 = arith.mulf %1044, %1048 : vector<2x32xf32>
    %cst_386 = arith.constant 0.000000e+00 : f32
    %1050 = vector.broadcast %cst_386 : f32 to vector<2x32xf32>
    %1051 = arith.maximumf %1049, %1050 : vector<2x32xf32>
    %cst_387 = arith.constant dense<0.000000e+00> : vector<2x128xf32>
    %1052 = tpu.matmul %1051, %800, %cst_387 {dimension_numbers = #tpu.dot_dimension_numbers<[1], [0], [0], [1], [0, 0, 1, 1], [], []>} : vector<2x32xf32>, vector<32x128xf32>, vector<2x128xf32> -> vector<2x128xf32>
    %1053 = vector.broadcast %802 : vector<1x128xf32> to vector<2x128xf32>
    %1054 = arith.addf %1052, %1053 : vector<2x128xf32>
    %1055 = arith.index_cast %c7_i32_379 : i32 to index
    %c0_388 = arith.constant 0 : index
    %c0_389 = arith.constant 0 : index
    %1056 = vector.load %arg9[%1055, %c0_388, %c0_389] : memref<8x2x128xf32, #tpu.memory_space<vmem>>, vector<1x2x128xf32>
    %1057 = vector.shape_cast %1056 : vector<1x2x128xf32> to vector<2x128xf32>
    %1058 = vector.shape_cast %1054 : vector<2x128xf32> to vector<1x2x128xf32>
    tpu.vector_store %arg9[%1055, %c0_388, %c0_389], %1058 {strides = array<i32>} : memref<8x2x128xf32, #tpu.memory_space<vmem>>, vector<1x2x128xf32>,
    %c8_i32_390 = arith.constant 8 : i32
    %c4 = arith.constant 4 : index
    %c0_391 = arith.constant 0 : index
    %c0_392 = arith.constant 0 : index
    %1059 = vector.load %arg3[%c4, %c0_391, %c0_392] : memref<5x32x128xf32, #tpu.memory_space<vmem>>, vector<1x32x128xf32>
    %1060 = vector.shape_cast %1059 : vector<1x32x128xf32> to vector<32x128xf32>
    %c0_393 = arith.constant 0 : index
    %c0_394 = arith.constant 0 : index
    %1061 = vector.load %arg6[%c0_393, %c0_394] : memref<32x32xf32, #tpu.memory_space<vmem>>, vector<32x32xf32>
    %c0_395 = arith.constant 0 : index
    %c0_396 = arith.constant 0 : index
    %1062 = vector.load %arg7[%c0_395, %c0_396] : memref<1x32xf32, #tpu.memory_space<vmem>>, vector<1x32xf32>
    %c0_i32_397 = arith.constant 0 : i32
    %1063 = arith.index_cast %c0_i32_397 : i32 to index
    %c0_398 = arith.constant 0 : index
    %c0_399 = arith.constant 0 : index
    %1064 = vector.load %arg9[%1063, %c0_398, %c0_399] : memref<8x2x128xf32, #tpu.memory_space<vmem>>, vector<1x2x128xf32>
    %1065 = vector.shape_cast %1064 : vector<1x2x128xf32> to vector<2x128xf32>
    %cst_400 = arith.constant dense<0.000000e+00> : vector<2x128xf32>
    %1066 = tpu.matmul %1049, %1060, %cst_400 {dimension_numbers = #tpu.dot_dimension_numbers<[1], [0], [0], [1], [0, 0, 1, 1], [], []>} : vector<2x32xf32>, vector<32x128xf32>, vector<2x128xf32> -> vector<2x128xf32>
    %1067 = arith.addf %1065, %1066 : vector<2x128xf32>
    %1068 = arith.negf %1067 : vector<2x128xf32>
    %1069 = math.exp %1068 : vector<2x128xf32>
    %cst_401 = arith.constant 1.000000e+00 : f32
    %1070 = vector.broadcast %cst_401 : f32 to vector<2x128xf32>
    %1071 = arith.addf %1070, %1069 : vector<2x128xf32>
    %1072 = arith.divf %1070, %1071 : vector<2x128xf32>
    %1073 = vector.extract_strided_slice %1072 {offsets = [0, 0], sizes = [2, 32], strides = [1, 1]} : vector<2x128xf32> to vector<2x32xf32>
    %1074 = vector.extract_strided_slice %1072 {offsets = [0, 32], sizes = [2, 32], strides = [1, 1]} : vector<2x128xf32> to vector<2x32xf32>
    %1075 = vector.extract_strided_slice %1072 {offsets = [0, 64], sizes = [2, 32], strides = [1, 1]} : vector<2x128xf32> to vector<2x32xf32>
    %cst_402 = arith.constant 2.000000e+00 : f32
    %1076 = vector.broadcast %cst_402 : f32 to vector<2x32xf32>
    %1077 = arith.mulf %1076, %1075 : vector<2x32xf32>
    %cst_403 = arith.constant 1.000000e+00 : f32
    %1078 = vector.broadcast %cst_403 : f32 to vector<2x32xf32>
    %1079 = arith.subf %1077, %1078 : vector<2x32xf32>
    %1080 = vector.extract_strided_slice %1072 {offsets = [0, 96], sizes = [2, 32], strides = [1, 1]} : vector<2x128xf32> to vector<2x32xf32>
    %1081 = arith.mulf %1074, %1047 : vector<2x32xf32>
    %1082 = arith.mulf %1073, %1079 : vector<2x32xf32>
    %1083 = arith.addf %1081, %1082 : vector<2x32xf32>
    %1084 = math.tanh %1083 : vector<2x32xf32>
    %1085 = arith.mulf %1080, %1084 : vector<2x32xf32>
    %1086 = math.tanh %1085 : vector<2x32xf32>
    %cst_404 = arith.constant dense<0.000000e+00> : vector<2x32xf32>
    %1087 = tpu.matmul %1086, %1061, %cst_404 {dimension_numbers = #tpu.dot_dimension_numbers<[1], [0], [0], [1], [0, 0, 1, 1], [], []>} : vector<2x32xf32>, vector<32x32xf32>, vector<2x32xf32> -> vector<2x32xf32>
    %1088 = vector.broadcast %1062 : vector<1x32xf32> to vector<2x32xf32>
    %1089 = arith.addf %1087, %1088 : vector<2x32xf32>
    %1090 = arith.index_cast %c0_i32_397 : i32 to index
    %c0_405 = arith.constant 0 : index
    %c0_406 = arith.constant 0 : index
    %1091 = vector.load %arg8[%1090, %c0_405, %c0_406] : memref<8x2x32xf32, #tpu.memory_space<vmem>>, vector<1x2x32xf32>
    %1092 = vector.shape_cast %1091 : vector<1x2x32xf32> to vector<2x32xf32>
    %1093 = vector.shape_cast %1089 : vector<2x32xf32> to vector<1x2x32xf32>
    tpu.vector_store %arg8[%1090, %c0_405, %c0_406], %1093 {strides = array<i32>} : memref<8x2x32xf32, #tpu.memory_space<vmem>>, vector<1x2x32xf32>,
    %c1_i32_407 = arith.constant 1 : i32
    %1094 = arith.index_cast %c1_i32_407 : i32 to index
    %c0_408 = arith.constant 0 : index
    %c0_409 = arith.constant 0 : index
    %1095 = vector.load %arg9[%1094, %c0_408, %c0_409] : memref<8x2x128xf32, #tpu.memory_space<vmem>>, vector<1x2x128xf32>
    %1096 = vector.shape_cast %1095 : vector<1x2x128xf32> to vector<2x128xf32>
    %cst_410 = arith.constant dense<0.000000e+00> : vector<2x128xf32>
    %1097 = tpu.matmul %1085, %1060, %cst_410 {dimension_numbers = #tpu.dot_dimension_numbers<[1], [0], [0], [1], [0, 0, 1, 1], [], []>} : vector<2x32xf32>, vector<32x128xf32>, vector<2x128xf32> -> vector<2x128xf32>
    %1098 = arith.addf %1096, %1097 : vector<2x128xf32>
    %1099 = arith.negf %1098 : vector<2x128xf32>
    %1100 = math.exp %1099 : vector<2x128xf32>
    %cst_411 = arith.constant 1.000000e+00 : f32
    %1101 = vector.broadcast %cst_411 : f32 to vector<2x128xf32>
    %1102 = arith.addf %1101, %1100 : vector<2x128xf32>
    %1103 = arith.divf %1101, %1102 : vector<2x128xf32>
    %1104 = vector.extract_strided_slice %1103 {offsets = [0, 0], sizes = [2, 32], strides = [1, 1]} : vector<2x128xf32> to vector<2x32xf32>
    %1105 = vector.extract_strided_slice %1103 {offsets = [0, 32], sizes = [2, 32], strides = [1, 1]} : vector<2x128xf32> to vector<2x32xf32>
    %1106 = vector.extract_strided_slice %1103 {offsets = [0, 64], sizes = [2, 32], strides = [1, 1]} : vector<2x128xf32> to vector<2x32xf32>
    %cst_412 = arith.constant 2.000000e+00 : f32
    %1107 = vector.broadcast %cst_412 : f32 to vector<2x32xf32>
    %1108 = arith.mulf %1107, %1106 : vector<2x32xf32>
    %cst_413 = arith.constant 1.000000e+00 : f32
    %1109 = vector.broadcast %cst_413 : f32 to vector<2x32xf32>
    %1110 = arith.subf %1108, %1109 : vector<2x32xf32>
    %1111 = vector.extract_strided_slice %1103 {offsets = [0, 96], sizes = [2, 32], strides = [1, 1]} : vector<2x128xf32> to vector<2x32xf32>
    %1112 = arith.mulf %1105, %1083 : vector<2x32xf32>
    %1113 = arith.mulf %1104, %1110 : vector<2x32xf32>
    %1114 = arith.addf %1112, %1113 : vector<2x32xf32>
    %1115 = math.tanh %1114 : vector<2x32xf32>
    %1116 = arith.mulf %1111, %1115 : vector<2x32xf32>
    %1117 = math.tanh %1116 : vector<2x32xf32>
    %cst_414 = arith.constant dense<0.000000e+00> : vector<2x32xf32>
    %1118 = tpu.matmul %1117, %1061, %cst_414 {dimension_numbers = #tpu.dot_dimension_numbers<[1], [0], [0], [1], [0, 0, 1, 1], [], []>} : vector<2x32xf32>, vector<32x32xf32>, vector<2x32xf32> -> vector<2x32xf32>
    %1119 = vector.broadcast %1062 : vector<1x32xf32> to vector<2x32xf32>
    %1120 = arith.addf %1118, %1119 : vector<2x32xf32>
    %1121 = arith.index_cast %c1_i32_407 : i32 to index
    %c0_415 = arith.constant 0 : index
    %c0_416 = arith.constant 0 : index
    %1122 = vector.load %arg8[%1121, %c0_415, %c0_416] : memref<8x2x32xf32, #tpu.memory_space<vmem>>, vector<1x2x32xf32>
    %1123 = vector.shape_cast %1122 : vector<1x2x32xf32> to vector<2x32xf32>
    %1124 = vector.shape_cast %1120 : vector<2x32xf32> to vector<1x2x32xf32>
    tpu.vector_store %arg8[%1121, %c0_415, %c0_416], %1124 {strides = array<i32>} : memref<8x2x32xf32, #tpu.memory_space<vmem>>, vector<1x2x32xf32>,
    %c2_i32_417 = arith.constant 2 : i32
    %1125 = arith.index_cast %c2_i32_417 : i32 to index
    %c0_418 = arith.constant 0 : index
    %c0_419 = arith.constant 0 : index
    %1126 = vector.load %arg9[%1125, %c0_418, %c0_419] : memref<8x2x128xf32, #tpu.memory_space<vmem>>, vector<1x2x128xf32>
    %1127 = vector.shape_cast %1126 : vector<1x2x128xf32> to vector<2x128xf32>
    %cst_420 = arith.constant dense<0.000000e+00> : vector<2x128xf32>
    %1128 = tpu.matmul %1116, %1060, %cst_420 {dimension_numbers = #tpu.dot_dimension_numbers<[1], [0], [0], [1], [0, 0, 1, 1], [], []>} : vector<2x32xf32>, vector<32x128xf32>, vector<2x128xf32> -> vector<2x128xf32>
    %1129 = arith.addf %1127, %1128 : vector<2x128xf32>
    %1130 = arith.negf %1129 : vector<2x128xf32>
    %1131 = math.exp %1130 : vector<2x128xf32>
    %cst_421 = arith.constant 1.000000e+00 : f32
    %1132 = vector.broadcast %cst_421 : f32 to vector<2x128xf32>
    %1133 = arith.addf %1132, %1131 : vector<2x128xf32>
    %1134 = arith.divf %1132, %1133 : vector<2x128xf32>
    %1135 = vector.extract_strided_slice %1134 {offsets = [0, 0], sizes = [2, 32], strides = [1, 1]} : vector<2x128xf32> to vector<2x32xf32>
    %1136 = vector.extract_strided_slice %1134 {offsets = [0, 32], sizes = [2, 32], strides = [1, 1]} : vector<2x128xf32> to vector<2x32xf32>
    %1137 = vector.extract_strided_slice %1134 {offsets = [0, 64], sizes = [2, 32], strides = [1, 1]} : vector<2x128xf32> to vector<2x32xf32>
    %cst_422 = arith.constant 2.000000e+00 : f32
    %1138 = vector.broadcast %cst_422 : f32 to vector<2x32xf32>
    %1139 = arith.mulf %1138, %1137 : vector<2x32xf32>
    %cst_423 = arith.constant 1.000000e+00 : f32
    %1140 = vector.broadcast %cst_423 : f32 to vector<2x32xf32>
    %1141 = arith.subf %1139, %1140 : vector<2x32xf32>
    %1142 = vector.extract_strided_slice %1134 {offsets = [0, 96], sizes = [2, 32], strides = [1, 1]} : vector<2x128xf32> to vector<2x32xf32>
    %1143 = arith.mulf %1136, %1114 : vector<2x32xf32>
    %1144 = arith.mulf %1135, %1141 : vector<2x32xf32>
    %1145 = arith.addf %1143, %1144 : vector<2x32xf32>
    %1146 = math.tanh %1145 : vector<2x32xf32>
    %1147 = arith.mulf %1142, %1146 : vector<2x32xf32>
    %1148 = math.tanh %1147 : vector<2x32xf32>
    %cst_424 = arith.constant dense<0.000000e+00> : vector<2x32xf32>
    %1149 = tpu.matmul %1148, %1061, %cst_424 {dimension_numbers = #tpu.dot_dimension_numbers<[1], [0], [0], [1], [0, 0, 1, 1], [], []>} : vector<2x32xf32>, vector<32x32xf32>, vector<2x32xf32> -> vector<2x32xf32>
    %1150 = vector.broadcast %1062 : vector<1x32xf32> to vector<2x32xf32>
    %1151 = arith.addf %1149, %1150 : vector<2x32xf32>
    %1152 = arith.index_cast %c2_i32_417 : i32 to index
    %c0_425 = arith.constant 0 : index
    %c0_426 = arith.constant 0 : index
    %1153 = vector.load %arg8[%1152, %c0_425, %c0_426] : memref<8x2x32xf32, #tpu.memory_space<vmem>>, vector<1x2x32xf32>
    %1154 = vector.shape_cast %1153 : vector<1x2x32xf32> to vector<2x32xf32>
    %1155 = vector.shape_cast %1151 : vector<2x32xf32> to vector<1x2x32xf32>
    tpu.vector_store %arg8[%1152, %c0_425, %c0_426], %1155 {strides = array<i32>} : memref<8x2x32xf32, #tpu.memory_space<vmem>>, vector<1x2x32xf32>,
    %c3_i32_427 = arith.constant 3 : i32
    %1156 = arith.index_cast %c3_i32_427 : i32 to index
    %c0_428 = arith.constant 0 : index
    %c0_429 = arith.constant 0 : index
    %1157 = vector.load %arg9[%1156, %c0_428, %c0_429] : memref<8x2x128xf32, #tpu.memory_space<vmem>>, vector<1x2x128xf32>
    %1158 = vector.shape_cast %1157 : vector<1x2x128xf32> to vector<2x128xf32>
    %cst_430 = arith.constant dense<0.000000e+00> : vector<2x128xf32>
    %1159 = tpu.matmul %1147, %1060, %cst_430 {dimension_numbers = #tpu.dot_dimension_numbers<[1], [0], [0], [1], [0, 0, 1, 1], [], []>} : vector<2x32xf32>, vector<32x128xf32>, vector<2x128xf32> -> vector<2x128xf32>
    %1160 = arith.addf %1158, %1159 : vector<2x128xf32>
    %1161 = arith.negf %1160 : vector<2x128xf32>
    %1162 = math.exp %1161 : vector<2x128xf32>
    %cst_431 = arith.constant 1.000000e+00 : f32
    %1163 = vector.broadcast %cst_431 : f32 to vector<2x128xf32>
    %1164 = arith.addf %1163, %1162 : vector<2x128xf32>
    %1165 = arith.divf %1163, %1164 : vector<2x128xf32>
    %1166 = vector.extract_strided_slice %1165 {offsets = [0, 0], sizes = [2, 32], strides = [1, 1]} : vector<2x128xf32> to vector<2x32xf32>
    %1167 = vector.extract_strided_slice %1165 {offsets = [0, 32], sizes = [2, 32], strides = [1, 1]} : vector<2x128xf32> to vector<2x32xf32>
    %1168 = vector.extract_strided_slice %1165 {offsets = [0, 64], sizes = [2, 32], strides = [1, 1]} : vector<2x128xf32> to vector<2x32xf32>
    %cst_432 = arith.constant 2.000000e+00 : f32
    %1169 = vector.broadcast %cst_432 : f32 to vector<2x32xf32>
    %1170 = arith.mulf %1169, %1168 : vector<2x32xf32>
    %cst_433 = arith.constant 1.000000e+00 : f32
    %1171 = vector.broadcast %cst_433 : f32 to vector<2x32xf32>
    %1172 = arith.subf %1170, %1171 : vector<2x32xf32>
    %1173 = vector.extract_strided_slice %1165 {offsets = [0, 96], sizes = [2, 32], strides = [1, 1]} : vector<2x128xf32> to vector<2x32xf32>
    %1174 = arith.mulf %1167, %1145 : vector<2x32xf32>
    %1175 = arith.mulf %1166, %1172 : vector<2x32xf32>
    %1176 = arith.addf %1174, %1175 : vector<2x32xf32>
    %1177 = math.tanh %1176 : vector<2x32xf32>
    %1178 = arith.mulf %1173, %1177 : vector<2x32xf32>
    %1179 = math.tanh %1178 : vector<2x32xf32>
    %cst_434 = arith.constant dense<0.000000e+00> : vector<2x32xf32>
    %1180 = tpu.matmul %1179, %1061, %cst_434 {dimension_numbers = #tpu.dot_dimension_numbers<[1], [0], [0], [1], [0, 0, 1, 1], [], []>} : vector<2x32xf32>, vector<32x32xf32>, vector<2x32xf32> -> vector<2x32xf32>
    %1181 = vector.broadcast %1062 : vector<1x32xf32> to vector<2x32xf32>
    %1182 = arith.addf %1180, %1181 : vector<2x32xf32>
    %1183 = arith.index_cast %c3_i32_427 : i32 to index
    %c0_435 = arith.constant 0 : index
    %c0_436 = arith.constant 0 : index
    %1184 = vector.load %arg8[%1183, %c0_435, %c0_436] : memref<8x2x32xf32, #tpu.memory_space<vmem>>, vector<1x2x32xf32>
    %1185 = vector.shape_cast %1184 : vector<1x2x32xf32> to vector<2x32xf32>
    %1186 = vector.shape_cast %1182 : vector<2x32xf32> to vector<1x2x32xf32>
    tpu.vector_store %arg8[%1183, %c0_435, %c0_436], %1186 {strides = array<i32>} : memref<8x2x32xf32, #tpu.memory_space<vmem>>, vector<1x2x32xf32>,
    %c4_i32_437 = arith.constant 4 : i32
    %1187 = arith.index_cast %c4_i32_437 : i32 to index
    %c0_438 = arith.constant 0 : index
    %c0_439 = arith.constant 0 : index
    %1188 = vector.load %arg9[%1187, %c0_438, %c0_439] : memref<8x2x128xf32, #tpu.memory_space<vmem>>, vector<1x2x128xf32>
    %1189 = vector.shape_cast %1188 : vector<1x2x128xf32> to vector<2x128xf32>
    %cst_440 = arith.constant dense<0.000000e+00> : vector<2x128xf32>
    %1190 = tpu.matmul %1178, %1060, %cst_440 {dimension_numbers = #tpu.dot_dimension_numbers<[1], [0], [0], [1], [0, 0, 1, 1], [], []>} : vector<2x32xf32>, vector<32x128xf32>, vector<2x128xf32> -> vector<2x128xf32>
    %1191 = arith.addf %1189, %1190 : vector<2x128xf32>
    %1192 = arith.negf %1191 : vector<2x128xf32>
    %1193 = math.exp %1192 : vector<2x128xf32>
    %cst_441 = arith.constant 1.000000e+00 : f32
    %1194 = vector.broadcast %cst_441 : f32 to vector<2x128xf32>
    %1195 = arith.addf %1194, %1193 : vector<2x128xf32>
    %1196 = arith.divf %1194, %1195 : vector<2x128xf32>
    %1197 = vector.extract_strided_slice %1196 {offsets = [0, 0], sizes = [2, 32], strides = [1, 1]} : vector<2x128xf32> to vector<2x32xf32>
    %1198 = vector.extract_strided_slice %1196 {offsets = [0, 32], sizes = [2, 32], strides = [1, 1]} : vector<2x128xf32> to vector<2x32xf32>
    %1199 = vector.extract_strided_slice %1196 {offsets = [0, 64], sizes = [2, 32], strides = [1, 1]} : vector<2x128xf32> to vector<2x32xf32>
    %cst_442 = arith.constant 2.000000e+00 : f32
    %1200 = vector.broadcast %cst_442 : f32 to vector<2x32xf32>
    %1201 = arith.mulf %1200, %1199 : vector<2x32xf32>
    %cst_443 = arith.constant 1.000000e+00 : f32
    %1202 = vector.broadcast %cst_443 : f32 to vector<2x32xf32>
    %1203 = arith.subf %1201, %1202 : vector<2x32xf32>
    %1204 = vector.extract_strided_slice %1196 {offsets = [0, 96], sizes = [2, 32], strides = [1, 1]} : vector<2x128xf32> to vector<2x32xf32>
    %1205 = arith.mulf %1198, %1176 : vector<2x32xf32>
    %1206 = arith.mulf %1197, %1203 : vector<2x32xf32>
    %1207 = arith.addf %1205, %1206 : vector<2x32xf32>
    %1208 = math.tanh %1207 : vector<2x32xf32>
    %1209 = arith.mulf %1204, %1208 : vector<2x32xf32>
    %1210 = math.tanh %1209 : vector<2x32xf32>
    %cst_444 = arith.constant dense<0.000000e+00> : vector<2x32xf32>
    %1211 = tpu.matmul %1210, %1061, %cst_444 {dimension_numbers = #tpu.dot_dimension_numbers<[1], [0], [0], [1], [0, 0, 1, 1], [], []>} : vector<2x32xf32>, vector<32x32xf32>, vector<2x32xf32> -> vector<2x32xf32>
    %1212 = vector.broadcast %1062 : vector<1x32xf32> to vector<2x32xf32>
    %1213 = arith.addf %1211, %1212 : vector<2x32xf32>
    %1214 = arith.index_cast %c4_i32_437 : i32 to index
    %c0_445 = arith.constant 0 : index
    %c0_446 = arith.constant 0 : index
    %1215 = vector.load %arg8[%1214, %c0_445, %c0_446] : memref<8x2x32xf32, #tpu.memory_space<vmem>>, vector<1x2x32xf32>
    %1216 = vector.shape_cast %1215 : vector<1x2x32xf32> to vector<2x32xf32>
    %1217 = vector.shape_cast %1213 : vector<2x32xf32> to vector<1x2x32xf32>
    tpu.vector_store %arg8[%1214, %c0_445, %c0_446], %1217 {strides = array<i32>} : memref<8x2x32xf32, #tpu.memory_space<vmem>>, vector<1x2x32xf32>,
    %c5_i32_447 = arith.constant 5 : i32
    %1218 = arith.index_cast %c5_i32_447 : i32 to index
    %c0_448 = arith.constant 0 : index
    %c0_449 = arith.constant 0 : index
    %1219 = vector.load %arg9[%1218, %c0_448, %c0_449] : memref<8x2x128xf32, #tpu.memory_space<vmem>>, vector<1x2x128xf32>
    %1220 = vector.shape_cast %1219 : vector<1x2x128xf32> to vector<2x128xf32>
    %cst_450 = arith.constant dense<0.000000e+00> : vector<2x128xf32>
    %1221 = tpu.matmul %1209, %1060, %cst_450 {dimension_numbers = #tpu.dot_dimension_numbers<[1], [0], [0], [1], [0, 0, 1, 1], [], []>} : vector<2x32xf32>, vector<32x128xf32>, vector<2x128xf32> -> vector<2x128xf32>
    %1222 = arith.addf %1220, %1221 : vector<2x128xf32>
    %1223 = arith.negf %1222 : vector<2x128xf32>
    %1224 = math.exp %1223 : vector<2x128xf32>
    %cst_451 = arith.constant 1.000000e+00 : f32
    %1225 = vector.broadcast %cst_451 : f32 to vector<2x128xf32>
    %1226 = arith.addf %1225, %1224 : vector<2x128xf32>
    %1227 = arith.divf %1225, %1226 : vector<2x128xf32>
    %1228 = vector.extract_strided_slice %1227 {offsets = [0, 0], sizes = [2, 32], strides = [1, 1]} : vector<2x128xf32> to vector<2x32xf32>
    %1229 = vector.extract_strided_slice %1227 {offsets = [0, 32], sizes = [2, 32], strides = [1, 1]} : vector<2x128xf32> to vector<2x32xf32>
    %1230 = vector.extract_strided_slice %1227 {offsets = [0, 64], sizes = [2, 32], strides = [1, 1]} : vector<2x128xf32> to vector<2x32xf32>
    %cst_452 = arith.constant 2.000000e+00 : f32
    %1231 = vector.broadcast %cst_452 : f32 to vector<2x32xf32>
    %1232 = arith.mulf %1231, %1230 : vector<2x32xf32>
    %cst_453 = arith.constant 1.000000e+00 : f32
    %1233 = vector.broadcast %cst_453 : f32 to vector<2x32xf32>
    %1234 = arith.subf %1232, %1233 : vector<2x32xf32>
    %1235 = vector.extract_strided_slice %1227 {offsets = [0, 96], sizes = [2, 32], strides = [1, 1]} : vector<2x128xf32> to vector<2x32xf32>
    %1236 = arith.mulf %1229, %1207 : vector<2x32xf32>
    %1237 = arith.mulf %1228, %1234 : vector<2x32xf32>
    %1238 = arith.addf %1236, %1237 : vector<2x32xf32>
    %1239 = math.tanh %1238 : vector<2x32xf32>
    %1240 = arith.mulf %1235, %1239 : vector<2x32xf32>
    %1241 = math.tanh %1240 : vector<2x32xf32>
    %cst_454 = arith.constant dense<0.000000e+00> : vector<2x32xf32>
    %1242 = tpu.matmul %1241, %1061, %cst_454 {dimension_numbers = #tpu.dot_dimension_numbers<[1], [0], [0], [1], [0, 0, 1, 1], [], []>} : vector<2x32xf32>, vector<32x32xf32>, vector<2x32xf32> -> vector<2x32xf32>
    %1243 = vector.broadcast %1062 : vector<1x32xf32> to vector<2x32xf32>
    %1244 = arith.addf %1242, %1243 : vector<2x32xf32>
    %1245 = arith.index_cast %c5_i32_447 : i32 to index
    %c0_455 = arith.constant 0 : index
    %c0_456 = arith.constant 0 : index
    %1246 = vector.load %arg8[%1245, %c0_455, %c0_456] : memref<8x2x32xf32, #tpu.memory_space<vmem>>, vector<1x2x32xf32>
    %1247 = vector.shape_cast %1246 : vector<1x2x32xf32> to vector<2x32xf32>
    %1248 = vector.shape_cast %1244 : vector<2x32xf32> to vector<1x2x32xf32>
    tpu.vector_store %arg8[%1245, %c0_455, %c0_456], %1248 {strides = array<i32>} : memref<8x2x32xf32, #tpu.memory_space<vmem>>, vector<1x2x32xf32>,
    %c6_i32_457 = arith.constant 6 : i32
    %1249 = arith.index_cast %c6_i32_457 : i32 to index
    %c0_458 = arith.constant 0 : index
    %c0_459 = arith.constant 0 : index
    %1250 = vector.load %arg9[%1249, %c0_458, %c0_459] : memref<8x2x128xf32, #tpu.memory_space<vmem>>, vector<1x2x128xf32>
    %1251 = vector.shape_cast %1250 : vector<1x2x128xf32> to vector<2x128xf32>
    %cst_460 = arith.constant dense<0.000000e+00> : vector<2x128xf32>
    %1252 = tpu.matmul %1240, %1060, %cst_460 {dimension_numbers = #tpu.dot_dimension_numbers<[1], [0], [0], [1], [0, 0, 1, 1], [], []>} : vector<2x32xf32>, vector<32x128xf32>, vector<2x128xf32> -> vector<2x128xf32>
    %1253 = arith.addf %1251, %1252 : vector<2x128xf32>
    %1254 = arith.negf %1253 : vector<2x128xf32>
    %1255 = math.exp %1254 : vector<2x128xf32>
    %cst_461 = arith.constant 1.000000e+00 : f32
    %1256 = vector.broadcast %cst_461 : f32 to vector<2x128xf32>
    %1257 = arith.addf %1256, %1255 : vector<2x128xf32>
    %1258 = arith.divf %1256, %1257 : vector<2x128xf32>
    %1259 = vector.extract_strided_slice %1258 {offsets = [0, 0], sizes = [2, 32], strides = [1, 1]} : vector<2x128xf32> to vector<2x32xf32>
    %1260 = vector.extract_strided_slice %1258 {offsets = [0, 32], sizes = [2, 32], strides = [1, 1]} : vector<2x128xf32> to vector<2x32xf32>
    %1261 = vector.extract_strided_slice %1258 {offsets = [0, 64], sizes = [2, 32], strides = [1, 1]} : vector<2x128xf32> to vector<2x32xf32>
    %cst_462 = arith.constant 2.000000e+00 : f32
    %1262 = vector.broadcast %cst_462 : f32 to vector<2x32xf32>
    %1263 = arith.mulf %1262, %1261 : vector<2x32xf32>
    %cst_463 = arith.constant 1.000000e+00 : f32
    %1264 = vector.broadcast %cst_463 : f32 to vector<2x32xf32>
    %1265 = arith.subf %1263, %1264 : vector<2x32xf32>
    %1266 = vector.extract_strided_slice %1258 {offsets = [0, 96], sizes = [2, 32], strides = [1, 1]} : vector<2x128xf32> to vector<2x32xf32>
    %1267 = arith.mulf %1260, %1238 : vector<2x32xf32>
    %1268 = arith.mulf %1259, %1265 : vector<2x32xf32>
    %1269 = arith.addf %1267, %1268 : vector<2x32xf32>
    %1270 = math.tanh %1269 : vector<2x32xf32>
    %1271 = arith.mulf %1266, %1270 : vector<2x32xf32>
    %1272 = math.tanh %1271 : vector<2x32xf32>
    %cst_464 = arith.constant dense<0.000000e+00> : vector<2x32xf32>
    %1273 = tpu.matmul %1272, %1061, %cst_464 {dimension_numbers = #tpu.dot_dimension_numbers<[1], [0], [0], [1], [0, 0, 1, 1], [], []>} : vector<2x32xf32>, vector<32x32xf32>, vector<2x32xf32> -> vector<2x32xf32>
    %1274 = vector.broadcast %1062 : vector<1x32xf32> to vector<2x32xf32>
    %1275 = arith.addf %1273, %1274 : vector<2x32xf32>
    %1276 = arith.index_cast %c6_i32_457 : i32 to index
    %c0_465 = arith.constant 0 : index
    %c0_466 = arith.constant 0 : index
    %1277 = vector.load %arg8[%1276, %c0_465, %c0_466] : memref<8x2x32xf32, #tpu.memory_space<vmem>>, vector<1x2x32xf32>
    %1278 = vector.shape_cast %1277 : vector<1x2x32xf32> to vector<2x32xf32>
    %1279 = vector.shape_cast %1275 : vector<2x32xf32> to vector<1x2x32xf32>
    tpu.vector_store %arg8[%1276, %c0_465, %c0_466], %1279 {strides = array<i32>} : memref<8x2x32xf32, #tpu.memory_space<vmem>>, vector<1x2x32xf32>,
    %c7_i32_467 = arith.constant 7 : i32
    %1280 = arith.index_cast %c7_i32_467 : i32 to index
    %c0_468 = arith.constant 0 : index
    %c0_469 = arith.constant 0 : index
    %1281 = vector.load %arg9[%1280, %c0_468, %c0_469] : memref<8x2x128xf32, #tpu.memory_space<vmem>>, vector<1x2x128xf32>
    %1282 = vector.shape_cast %1281 : vector<1x2x128xf32> to vector<2x128xf32>
    %cst_470 = arith.constant dense<0.000000e+00> : vector<2x128xf32>
    %1283 = tpu.matmul %1271, %1060, %cst_470 {dimension_numbers = #tpu.dot_dimension_numbers<[1], [0], [0], [1], [0, 0, 1, 1], [], []>} : vector<2x32xf32>, vector<32x128xf32>, vector<2x128xf32> -> vector<2x128xf32>
    %1284 = arith.addf %1282, %1283 : vector<2x128xf32>
    %1285 = arith.negf %1284 : vector<2x128xf32>
    %1286 = math.exp %1285 : vector<2x128xf32>
    %cst_471 = arith.constant 1.000000e+00 : f32
    %1287 = vector.broadcast %cst_471 : f32 to vector<2x128xf32>
    %1288 = arith.addf %1287, %1286 : vector<2x128xf32>
    %1289 = arith.divf %1287, %1288 : vector<2x128xf32>
    %1290 = vector.extract_strided_slice %1289 {offsets = [0, 0], sizes = [2, 32], strides = [1, 1]} : vector<2x128xf32> to vector<2x32xf32>
    %1291 = vector.extract_strided_slice %1289 {offsets = [0, 32], sizes = [2, 32], strides = [1, 1]} : vector<2x128xf32> to vector<2x32xf32>
    %1292 = vector.extract_strided_slice %1289 {offsets = [0, 64], sizes = [2, 32], strides = [1, 1]} : vector<2x128xf32> to vector<2x32xf32>
    %cst_472 = arith.constant 2.000000e+00 : f32
    %1293 = vector.broadcast %cst_472 : f32 to vector<2x32xf32>
    %1294 = arith.mulf %1293, %1292 : vector<2x32xf32>
    %cst_473 = arith.constant 1.000000e+00 : f32
    %1295 = vector.broadcast %cst_473 : f32 to vector<2x32xf32>
    %1296 = arith.subf %1294, %1295 : vector<2x32xf32>
    %1297 = vector.extract_strided_slice %1289 {offsets = [0, 96], sizes = [2, 32], strides = [1, 1]} : vector<2x128xf32> to vector<2x32xf32>
    %1298 = arith.mulf %1291, %1269 : vector<2x32xf32>
    %1299 = arith.mulf %1290, %1296 : vector<2x32xf32>
    %1300 = arith.addf %1298, %1299 : vector<2x32xf32>
    %1301 = math.tanh %1300 : vector<2x32xf32>
    %1302 = arith.mulf %1297, %1301 : vector<2x32xf32>
    %1303 = math.tanh %1302 : vector<2x32xf32>
    %cst_474 = arith.constant dense<0.000000e+00> : vector<2x32xf32>
    %1304 = tpu.matmul %1303, %1061, %cst_474 {dimension_numbers = #tpu.dot_dimension_numbers<[1], [0], [0], [1], [0, 0, 1, 1], [], []>} : vector<2x32xf32>, vector<32x32xf32>, vector<2x32xf32> -> vector<2x32xf32>
    %1305 = vector.broadcast %1062 : vector<1x32xf32> to vector<2x32xf32>
    %1306 = arith.addf %1304, %1305 : vector<2x32xf32>
    %1307 = arith.index_cast %c7_i32_467 : i32 to index
    %c0_475 = arith.constant 0 : index
    %c0_476 = arith.constant 0 : index
    %1308 = vector.load %arg8[%1307, %c0_475, %c0_476] : memref<8x2x32xf32, #tpu.memory_space<vmem>>, vector<1x2x32xf32>
    %1309 = vector.shape_cast %1308 : vector<1x2x32xf32> to vector<2x32xf32>
    %1310 = vector.shape_cast %1306 : vector<2x32xf32> to vector<1x2x32xf32>
    tpu.vector_store %arg8[%1307, %c0_475, %c0_476], %1310 {strides = array<i32>} : memref<8x2x32xf32, #tpu.memory_space<vmem>>, vector<1x2x32xf32>,
    %c8_i32_477 = arith.constant 8 : i32
    return
  }
}

</mosaic_0001>

<llo_original>
// kernel: tpu_custom_call.1
$region0: #{tpu_custom_call.1}
  #allocation0 [shape = 'u32[]', space=smem, size = 0x4, offset = 0x4, fixed_abs, tag = 'smem constant byte address 0x4 - core index']
  #allocation1 [shape = 'u32[144,128]{1,0:T(1,128)}', space=vmem, size = 0x12000, scoped, tag = 'internal scratch']
  #allocation2 [shape = 'f32[8,2,128]{2,1,0:T(2,128)}', space=vmem, size = 0x2000, scoped, tag = 'scratch operand']
  %s0 = inlined_call_operand.hbm [shape: f32[8,2,32], index: 0, kind: input, shape index: {}]
  %s1 = inlined_call_operand.hbm [shape: f32[32,128], index: 1, kind: input, shape index: {}]
  %s2 = inlined_call_operand.vmem [shape: f32[1,128], index: 2, kind: input, shape index: {}]
  %s3 = inlined_call_operand.hbm [shape: f32[5,32,128], index: 3, kind: input, shape index: {}]
  %s4 = inlined_call_operand.hbm [shape: f32[4,32,128], index: 4, kind: input, shape index: {}]
  %s5 = inlined_call_operand.vmem [shape: f32[4,1,128], index: 5, kind: input, shape index: {}]
  %s6 = inlined_call_operand.hbm [shape: f32[32,32], index: 6, kind: input, shape index: {}]
  %s7 = inlined_call_operand.vmem [shape: f32[1,32], index: 7, kind: input, shape index: {}]
  %s8 = inlined_call_operand.hbm [shape: f32[8,2,32], index: 8, kind: output, shape index: {}]
  %s9 = sld [smem:[#allocation0]]
  $region62: #{tpu_custom_call.1} parent=0
    _
  %s11 = ssub.s32 1, %s9
  %s12 = scalar_select 0, %s11, %s9
  $region1: #{tpu_custom_call.1} parent=0
    #allocation3 [shape = 'u8[8192]{0}', space=vmem, size = 0x2000, scoped, tag = 'input window, operand 0, single buffered']
    #allocation4 [shape = 's32[1]{0}', space=sflag, size = 0x4, scoped, tag = 'scoped memory for tpu_custom_call.1']
    #allocation5 [shape = 's32[1]{0}', space=sflag, size = 0x4, scoped, tag = 'scoped memory for tpu_custom_call.1']
    #allocation6 [shape = 'u8[16384]{0}', space=vmem, size = 0x4000, scoped, tag = 'input window, operand 1, single buffered']
    #allocation7 [shape = 's32[1]{0}', space=sflag, size = 0x4, scoped, tag = 'scoped memory for tpu_custom_call.1']
    #allocation8 [shape = 'u8[81920]{0}', space=vmem, size = 0x14000, scoped, tag = 'input window, operand 3, single buffered']
    #allocation9 [shape = 'u8[65536]{0}', space=vmem, size = 0x10000, scoped, tag = 'input window, operand 4, single buffered']
    #allocation10 [shape = 's32[1]{0}', space=sflag, size = 0x4, scoped, tag = 'scoped memory for tpu_custom_call.1']
    #allocation11 [shape = 'u8[16384]{0}', space=vmem, size = 0x4000, scoped, tag = 'input window, operand 6, single buffered']
    #allocation12 [shape = 'u8[8192]{0}', space=vmem, size = 0x2000, scoped, tag = 'output window, operand 0, single buffered']
    %13 = vsyncpa [#allocation4], 0
    %14 = vsyncpa [#allocation7], 0
    %15 = vsyncpa [#allocation10], 0
    %16 = vsyncpa [#allocation5], 0
    // Predicated region
    $region2: #{tpu_custom_call.1} parent=1 // pred_check
      _
    $region3: #{tpu_custom_call.1} parent=1 // pred_check_branch
      %18 = sbr.rel (0) target = $region5
    $region4: #{tpu_custom_call.1} parent=1 // pred_region
      %s20 = ssub.s32 256, 256
      %21 = vsyncadd [#allocation4], %s20
      %s22 = sshll.u32 [#allocation3], 4
      %s23 = int_to_ptr.vmem [resolvable:$true] %s22
      %28 = dma.hbm_to_vmem [thread:$0]  %s0, 256, %s23, [#allocation4], 32, 32, 2
    $region5: #{tpu_custom_call.1} parent=1 // pred_fallthru
      _
    // Predicated region
    $region6: #{tpu_custom_call.1} parent=1 // pred_check
      _
    $region7: #{tpu_custom_call.1} parent=1 // pred_check_branch
      %30 = sbr.rel (0) target = $region9
    $region8: #{tpu_custom_call.1} parent=1 // pred_region
      %s32 = ssub.s32 512, 512
      %33 = vsyncadd [#allocation7], %s32
      %s34 = sshll.u32 [#allocation6], 4
      %s35 = int_to_ptr.vmem [resolvable:$true] %s34
      %40 = dma.hbm_to_vmem [thread:$0]  %s1, 512, %s35, [#allocation7], 128, 128, 8
    $region9: #{tpu_custom_call.1} parent=1 // pred_fallthru
      _
    // Predicated region
    $region10: #{tpu_custom_call.1} parent=1 // pred_check
      _
    $region11: #{tpu_custom_call.1} parent=1 // pred_check_branch
      %42 = sbr.rel (0) target = $region13
    $region12: #{tpu_custom_call.1} parent=1 // pred_region
      _
    $region13: #{tpu_custom_call.1} parent=1 // pred_fallthru
      _
    // Predicated region
    $region14: #{tpu_custom_call.1} parent=1 // pred_check
      _
    $region15: #{tpu_custom_call.1} parent=1 // pred_check_branch
      %44 = sbr.rel (0) target = $region17
    $region16: #{tpu_custom_call.1} parent=1 // pred_region
      %s46 = ssub.s32 2560, 2560
      %47 = vsyncadd [#allocation7], %s46
      %s48 = sshll.u32 [#allocation8], 4
      %s49 = int_to_ptr.vmem [resolvable:$true] %s48
      %54 = dma.hbm_to_vmem [thread:$0]  %s3, 2560, %s49, [#allocation7], 128, 128, 8
    $region17: #{tpu_custom_call.1} parent=1 // pred_fallthru
      _
    // Predicated region
    $region18: #{tpu_custom_call.1} parent=1 // pred_check
      _
    $region19: #{tpu_custom_call.1} parent=1 // pred_check_branch
      %56 = sbr.rel (0) target = $region21
    $region20: #{tpu_custom_call.1} parent=1 // pred_region
      %s58 = ssub.s32 2048, 2048
      %59 = vsyncadd [#allocation10], %s58
      %s60 = sshll.u32 [#allocation9], 4
      %s61 = int_to_ptr.vmem [resolvable:$true] %s60
      %66 = dma.hbm_to_vmem [thread:$0]  %s4, 2048, %s61, [#allocation10], 128, 128, 8
    $region21: #{tpu_custom_call.1} parent=1 // pred_fallthru
      _
    // Predicated region
    $region22: #{tpu_custom_call.1} parent=1 // pred_check
      _
    $region23: #{tpu_custom_call.1} parent=1 // pred_check_branch
      %68 = sbr.rel (0) target = $region25
    $region24: #{tpu_custom_call.1} parent=1 // pred_region
      _
    $region25: #{tpu_custom_call.1} parent=1 // pred_fallthru
      _
    // Predicated region
    $region26: #{tpu_custom_call.1} parent=1 // pred_check
      _
    $region27: #{tpu_custom_call.1} parent=1 // pred_check_branch
      %70 = sbr.rel (0) target = $region29
    $region28: #{tpu_custom_call.1} parent=1 // pred_region
      %s72 = ssub.s32 512, 512
      %73 = vsyncadd [#allocation10], %s72
      %s74 = sshll.u32 [#allocation11], 4
      %s75 = int_to_ptr.vmem [resolvable:$true] %s74
      %80 = dma.hbm_to_vmem [thread:$0]  %s6, 512, %s75, [#allocation10], 128, 128, 8
    $region29: #{tpu_custom_call.1} parent=1 // pred_fallthru
      _
    // Predicated region
    $region30: #{tpu_custom_call.1} parent=1 // pred_check
      _
    $region31: #{tpu_custom_call.1} parent=1 // pred_check_branch
      %82 = sbr.rel (0) target = $region33
    $region32: #{tpu_custom_call.1} parent=1 // pred_region
      _
    $region33: #{tpu_custom_call.1} parent=1 // pred_fallthru
      _
    // Predicated region
    $region34: #{tpu_custom_call.1} parent=1 // pred_check
      _
    $region35: #{tpu_custom_call.1} parent=1 // pred_check_branch
      %84 = sbr.rel (0) target = $region37
    $region36: #{tpu_custom_call.1} parent=1 // pred_region
      %85 = dma.done [#allocation4], 256
    $region37: #{tpu_custom_call.1} parent=1 // pred_fallthru
      _
    // Predicated region
    $region38: #{tpu_custom_call.1} parent=1 // pred_check
      _
    $region39: #{tpu_custom_call.1} parent=1 // pred_check_branch
      %87 = sbr.rel (0) target = $region41
    $region40: #{tpu_custom_call.1} parent=1 // pred_region
      %88 = dma.done [#allocation7], 512
    $region41: #{tpu_custom_call.1} parent=1 // pred_fallthru
      _
    // Predicated region
    $region42: #{tpu_custom_call.1} parent=1 // pred_check
      _
    $region43: #{tpu_custom_call.1} parent=1 // pred_check_branch
      %90 = sbr.rel (0) target = $region45
    $region44: #{tpu_custom_call.1} parent=1 // pred_region
      %91 = dma.done [#allocation7], 2560
    $region45: #{tpu_custom_call.1} parent=1 // pred_fallthru
      _
    // Predicated region
    $region46: #{tpu_custom_call.1} parent=1 // pred_check
      _
    $region47: #{tpu_custom_call.1} parent=1 // pred_check_branch
      %93 = sbr.rel (0) target = $region49
    $region48: #{tpu_custom_call.1} parent=1 // pred_region
      %94 = dma.done [#allocation10], 2048
    $region49: #{tpu_custom_call.1} parent=1 // pred_fallthru
      _
    // Predicated region
    $region50: #{tpu_custom_call.1} parent=1 // pred_check
      _
    $region51: #{tpu_custom_call.1} parent=1 // pred_check_branch
      %96 = sbr.rel (0) target = $region53
    $region52: #{tpu_custom_call.1} parent=1 // pred_region
      %97 = dma.done [#allocation10], 512
    $region53: #{tpu_custom_call.1} parent=1 // pred_fallthru
      _
    %v98 = vld [vmem:[#allocation3] sm:$0x3]
    %v99 = vld [vmem:[#allocation3 + $0x2] sm:$0x3]
    %v100 = vld [vmem:[#allocation3 + $0x4] sm:$0x3]
    %v101 = vld [vmem:[#allocation3 + $0x6] sm:$0x3]
    %v102 = vld [vmem:[#allocation3 + $0x8] sm:$0x3]
    %v103 = vld [vmem:[#allocation3 + $0xa] sm:$0x3]
    %v104 = vld [vmem:[#allocation3 + $0xc] sm:$0x3]
    %v105 = vld [vmem:[#allocation3 + $0xe] sm:$0x3]
    %v106 = vld [vmem:[#allocation6] sm:$0xff]
    %v107 = vld [vmem:[#allocation6 + $0x8] sm:$0xff]
    %v108 = vld [vmem:[#allocation6 + $0x10] sm:$0xff]
    %v109 = vld [vmem:[#allocation6 + $0x18] sm:$0xff]
    %v110 = vld [vmem:[%s2] sm:$0x1]
    %v112 = vlaneseq
    %v113 = vshrl.u32 %v112, 7
    %v114 = vsub.s32 0, %v113
    %v115 = vrot.slane %v110, %v114
    %v125 = vcombine.low %v98, %v99
    %v126 = vcombine.low %v100, %v101
    %v128 = vunpack.c.l.s4 1983009808
    %v129 = vunpack.c.0.s8 %v128
    %v130 = vlaneseq
    %v131 = vshrl.u32 %v130, 7
    %v132 = vsub.s32 %v129, %v131
    %v133 = vrot.slane %v125, %v132
    %v135 = vunpack.c.l.s4 1983009808
    %v136 = vunpack.c.0.s8 %v135
    %v137 = vlaneseq
    %v138 = vshrl.u32 %v137, 7
    %v139 = vsub.s32 %v136, %v138
    %v140 = vrot.slane %v126, %v139
    %v141 = vcombine.low %v133, %v140
    %v142 = vcombine.low %v102, %v103
    %v143 = vcombine.low %v104, %v105
    %v145 = vunpack.c.l.s4 1983009808
    %v146 = vunpack.c.0.s8 %v145
    %v147 = vlaneseq
    %v148 = vshrl.u32 %v147, 7
    %v149 = vsub.s32 %v146, %v148
    %v150 = vrot.slane %v142, %v149
    %v152 = vunpack.c.l.s4 1983009808
    %v153 = vunpack.c.0.s8 %v152
    %v154 = vlaneseq
    %v155 = vshrl.u32 %v154, 7
    %v156 = vsub.s32 %v153, %v155
    %v157 = vrot.slane %v143, %v156
    %v158 = vcombine.low %v150, %v157
    %vm159 = vcmask 261120
    %v160 = vsel %vm159, %v141, 0
    %v162 = vsel %vm159, %v158, 0
    %164 = vmatprep.subr.mxu0 0.0
    %165 = vmatpush1.msra.mxu0 %v106
    %166 = vmatprep.subr.mxu0 0.0
    %167 = vmatpush1.msra.mxu0 %v107
    %168 = vmatprep.subr.mxu0 0.0
    %169 = vmatpush1.msra.mxu0 %v108
    %170 = vmatprep.subr.mxu0 0.0
    %171 = vmatpush1.msra.mxu0 %v109
    %172 = vmatprep.subr.mxu0 0.0
    %173 = vmatpush1.msra.mxu0 0.0
    %174 = vmatprep.subr.mxu0 0.0
    %175 = vmatpush1.msra.mxu0 0.0
    %176 = vmatprep.subr.mxu0 0.0
    %177 = vmatpush1.msra.mxu0 0.0
    %178 = vmatprep.subr.mxu0 0.0
    %179 = vmatpush1.msra.mxu0 0.0
    %180 = vmatprep.subr.mxu0 0.0
    %181 = vmatpush1.msra.mxu0 0.0
    %182 = vmatprep.subr.mxu0 0.0
    %183 = vmatpush1.msra.mxu0 0.0
    %184 = vmatprep.subr.mxu0 0.0
    %185 = vmatpush1.msra.mxu0 0.0
    %186 = vmatprep.subr.mxu0 0.0
    %187 = vmatpush1.msra.mxu0 0.0
    %188 = vmatprep.subr.mxu0 0.0
    %189 = vmatpush1.msra.mxu0 0.0
    %190 = vmatprep.subr.mxu0 0.0
    %191 = vmatpush1.msra.mxu0 0.0
    %192 = vmatprep.subr.mxu0 0.0
    %193 = vmatpush1.msra.mxu0 0.0
    %194 = vmatprep.subr.mxu0 0.0
    %195 = vmatpush1.msra.mxu0 0.0
    %196 = vmatprep.subr.mxu0 0.0
    %197 = vmatpush1.msra.mxu0 0.0
    %198 = vmatprep.subr.mxu0 0.0
    %199 = vmatpush1.msra.mxu0 0.0
    %200 = vmatprep.subr.mxu0 0.0
    %201 = vmatpush1.msra.mxu0 0.0
    %202 = vmatprep.subr.mxu0 0.0
    %203 = vmatpush1.msra.mxu0 0.0
    %204 = vmatprep.subr.mxu0 0.0
    %205 = vmatpush1.msra.mxu0 0.0
    %206 = vmatprep.subr.mxu0 0.0
    %207 = vmatpush1.msra.mxu0 0.0
    %208 = vmatprep.subr.mxu0 0.0
    %209 = vmatpush1.msra.mxu0 0.0
    %210 = vmatprep.subr.mxu0 0.0
    %211 = vmatpush1.msra.mxu0 0.0
    %212 = vmatprep.subr.mxu0 0.0
    %213 = vmatpush1.msra.mxu0 0.0
    %214 = vmatprep.subr.mxu0 0.0
    %215 = vmatpush1.msra.mxu0 0.0
    %216 = vmatprep.subr.mxu0 0.0
    %217 = vmatpush1.msra.mxu0 0.0
    %218 = vmatprep.subr.mxu0 0.0
    %219 = vmatpush1.msra.mxu0 0.0
    %220 = vmatprep.subr.mxu0 0.0
    %221 = vmatpush1.msra.mxu0 0.0
    %222 = vmatprep.subr.mxu0 0.0
    %223 = vmatpush1.msra.mxu0 0.0
    %224 = vmatprep.subr.mxu0 0.0
    %225 = vmatpush1.msra.mxu0 0.0
    %226 = vmatprep.subr.mxu0 0.0
    %227 = vmatpush1.msra.mxu0 0.0
    %228 = vmatprep.mubr.f32.mxu0 0.0
    %229 = vmatmul.mubr.f32.gmra.mrb[0].mxu0 %v160
    %v230 = vpop.f32.mrb[0].mxu0
    %v231 = vadd.f32 %v115, %v230
    %v232 = vpop.f32.mrb[0].mxu0
    %233 = vmatprep.mubr.f32.mxu0 0.0
    %234 = vmatmul.mubr.f32.gmra.mrb[0].mxu0 %v162
    %v235 = vpop.f32.mrb[0].mxu0
    %v236 = vadd.f32 %v115, %v235
    %v237 = vpop.f32.mrb[0].mxu0
    %238 = vdwg.mxu0
    %v241 = vcombine.high %v231, %v231
    %v243 = vunpack.c.l.s4 1983009808
    %v244 = vunpack.c.0.s8 %v243
    %v245 = vlaneseq
    %v246 = vshrl.u32 %v245, 7
    %v247 = vsub.s32 %v244, %v246
    %v248 = vrot.slane %v231, %v247
    %v250 = vunpack.c.l.s4 1983009808
    %v251 = vunpack.c.0.s8 %v250
    %v252 = vlaneseq
    %v253 = vshrl.u32 %v252, 7
    %v254 = vsub.s32 %v251, %v253
    %v255 = vrot.slane %v241, %v254
    %v256 = vcombine.high %v248, %v248
    %v257 = vcombine.high %v255, %v255
    %v258 = vcombine.high %v236, %v236
    %v260 = vunpack.c.l.s4 1983009808
    %v261 = vunpack.c.0.s8 %v260
    %v262 = vlaneseq
    %v263 = vshrl.u32 %v262, 7
    %v264 = vsub.s32 %v261, %v263
    %v265 = vrot.slane %v236, %v264
    %v267 = vunpack.c.l.s4 1983009808
    %v268 = vunpack.c.0.s8 %v267
    %v269 = vlaneseq
    %v270 = vshrl.u32 %v269, 7
    %v271 = vsub.s32 %v268, %v270
    %v272 = vrot.slane %v258, %v271
    %v273 = vcombine.high %v265, %v265
    %v274 = vcombine.high %v272, %v272
    %283 = vst [vmem:[#allocation2] sm:$0x3] %v248
    %284 = vst [vmem:[#allocation2 + $0x2] sm:$0x3] %v256
    %285 = vst [vmem:[#allocation2 + $0x4] sm:$0x3] %v255
    %286 = vst [vmem:[#allocation2 + $0x6] sm:$0x3] %v257
    %287 = vst [vmem:[#allocation2 + $0x8] sm:$0x3] %v265
    %288 = vst [vmem:[#allocation2 + $0xa] sm:$0x3] %v273
    %289 = vst [vmem:[#allocation2 + $0xc] sm:$0x3] %v272
    %290 = vst [vmem:[#allocation2 + $0xe] sm:$0x3] %v274
    %v291 = vld [vmem:[#allocation8] sm:$0xff]
    %v292 = vld [vmem:[#allocation8 + $0x8] sm:$0xff]
    %v293 = vld [vmem:[#allocation8 + $0x10] sm:$0xff]
    %v294 = vld [vmem:[#allocation8 + $0x18] sm:$0xff]
    %v295 = vld [vmem:[#allocation9] sm:$0xff]
    %v296 = vld [vmem:[#allocation9 + $0x8] sm:$0xff]
    %v297 = vld [vmem:[#allocation9 + $0x10] sm:$0xff]
    %v298 = vld [vmem:[#allocation9 + $0x18] sm:$0xff]
    %v299 = vld [vmem:[%s5] sm:$0x1]
    %v300 = vld [vmem:[#allocation2] sm:$0x3]
    %v302 = vsel %vm159, 0.0, 0
    %304 = vmatprep.subr.mxu0 0.0
    %305 = vmatpush1.msra.mxu0 %v291
    %306 = vmatprep.subr.mxu0 0.0
    %307 = vmatpush1.msra.mxu0 %v292
    %308 = vmatprep.subr.mxu0 0.0
    %309 = vmatpush1.msra.mxu0 %v293
    %310 = vmatprep.subr.mxu0 0.0
    %311 = vmatpush1.msra.mxu0 %v294
    %312 = vmatprep.subr.mxu0 0.0
    %313 = vmatpush1.msra.mxu0 0.0
    %314 = vmatprep.subr.mxu0 0.0
    %315 = vmatpush1.msra.mxu0 0.0
    %316 = vmatprep.subr.mxu0 0.0
    %317 = vmatpush1.msra.mxu0 0.0
    %318 = vmatprep.subr.mxu0 0.0
    %319 = vmatpush1.msra.mxu0 0.0
    %320 = vmatprep.subr.mxu0 0.0
    %321 = vmatpush1.msra.mxu0 0.0
    %322 = vmatprep.subr.mxu0 0.0
    %323 = vmatpush1.msra.mxu0 0.0
    %324 = vmatprep.subr.mxu0 0.0
    %325 = vmatpush1.msra.mxu0 0.0
    %326 = vmatprep.subr.mxu0 0.0
    %327 = vmatpush1.msra.mxu0 0.0
    %328 = vmatprep.subr.mxu0 0.0
    %329 = vmatpush1.msra.mxu0 0.0
    %330 = vmatprep.subr.mxu0 0.0
    %331 = vmatpush1.msra.mxu0 0.0
    %332 = vmatprep.subr.mxu0 0.0
    %333 = vmatpush1.msra.mxu0 0.0
    %334 = vmatprep.subr.mxu0 0.0
    %335 = vmatpush1.msra.mxu0 0.0
    %336 = vmatprep.subr.mxu0 0.0
    %337 = vmatpush1.msra.mxu0 0.0
    %338 = vmatprep.subr.mxu0 0.0
    %339 = vmatpush1.msra.mxu0 0.0
    %340 = vmatprep.subr.mxu0 0.0
    %341 = vmatpush1.msra.mxu0 0.0
    %342 = vmatprep.subr.mxu0 0.0
    %343 = vmatpush1.msra.mxu0 0.0
    %344 = vmatprep.subr.mxu0 0.0
    %345 = vmatpush1.msra.mxu0 0.0
    %346 = vmatprep.subr.mxu0 0.0
    %347 = vmatpush1.msra.mxu0 0.0
    %348 = vmatprep.subr.mxu0 0.0
    %349 = vmatpush1.msra.mxu0 0.0
    %350 = vmatprep.subr.mxu0 0.0
    %351 = vmatpush1.msra.mxu0 0.0
    %352 = vmatprep.subr.mxu0 0.0
    %353 = vmatpush1.msra.mxu0 0.0
    %354 = vmatprep.subr.mxu0 0.0
    %355 = vmatpush1.msra.mxu0 0.0
    %356 = vmatprep.subr.mxu0 0.0
    %357 = vmatpush1.msra.mxu0 0.0
    %358 = vmatprep.subr.mxu0 0.0
    %359 = vmatpush1.msra.mxu0 0.0
    %360 = vmatprep.subr.mxu0 0.0
    %361 = vmatpush1.msra.mxu0 0.0
    %362 = vmatprep.subr.mxu0 0.0
    %363 = vmatpush1.msra.mxu0 0.0
    %364 = vmatprep.subr.mxu0 0.0
    %365 = vmatpush1.msra.mxu0 0.0
    %366 = vmatprep.subr.mxu0 0.0
    %367 = vmatpush1.msra.mxu0 0.0
    %368 = vmatprep.mubr.f32.mxu0 0.0
    %369 = vmatmul.mubr.f32.gmra.mrb[0].mxu0 %v302
    %v370 = vpop.f32.mrb[0].mxu0
    %v371 = vadd.f32 0.0, %v370
    %v372 = vpop.f32.mrb[0].mxu0
    %373 = vdwg.mxu0
    %v374 = vadd.f32 %v300, %v371
    %v375 = vxor.u32 %v374, 2147483648
    %v376 = vmul.f32 %v375, 1.442695
    %v377 = vpow.pop %v376
    %v378 = vadd.f32 %v377, 1.0
    %v379 = vrcp.pop %v378
    %v380 = vmul.f32 1.0, %v379
    %v381 = vmul.f32 %v380, 2.0
    %v382 = vsub.f32 %v381, 1.0
    %v383 = vmul.f32 %v380, 0.0
    %385 = vrot.lane.b32.xlu0 %v382, 64
    %v386 = vpop.permute.xlu0 %385
    %v388 = vmul.f32 %v380, %v386
    %390 = vrot.lane.b32.xlu0 %v388, 32
    %v391 = vpop.permute.xlu0 %390
    %v393 = vadd.f32 %v383, %v391
    %v394 = vtanh.pop %v393
    %396 = vrot.lane.b32.xlu0 %v394, 64
    %v397 = vpop.permute.xlu0 %396
    %v399 = vmul.f32 %v380, %v397
    %v400 = vmax.f32 %v399, 0.0
    %v402 = vlaneseq
    %v403 = vshrl.u32 %v402, 7
    %v404 = vsub.s32 0, %v403
    %v405 = vrot.slane %v299, %v404
    %408 = vrot.lane.b32.xlu0 %v400, 32
    %v409 = vpop.permute.xlu0 %408
    %v410 = vsel %vm159, %v409, 0
    %412 = vmatprep.subr.mxu0 0.0
    %413 = vmatpush1.msra.mxu0 %v295
    %414 = vmatprep.subr.mxu0 0.0
    %415 = vmatpush1.msra.mxu0 %v296
    %416 = vmatprep.subr.mxu0 0.0
    %417 = vmatpush1.msra.mxu0 %v297
    %418 = vmatprep.subr.mxu0 0.0
    %419 = vmatpush1.msra.mxu0 %v298
    %420 = vmatprep.subr.mxu0 0.0
    %421 = vmatpush1.msra.mxu0 0.0
    %422 = vmatprep.subr.mxu0 0.0
    %423 = vmatpush1.msra.mxu0 0.0
    %424 = vmatprep.subr.mxu0 0.0
    %425 = vmatpush1.msra.mxu0 0.0
    %426 = vmatprep.subr.mxu0 0.0
    %427 = vmatpush1.msra.mxu0 0.0
    %428 = vmatprep.subr.mxu0 0.0
    %429 = vmatpush1.msra.mxu0 0.0
    %430 = vmatprep.subr.mxu0 0.0
    %431 = vmatpush1.msra.mxu0 0.0
    %432 = vmatprep.subr.mxu0 0.0
    %433 = vmatpush1.msra.mxu0 0.0
    %434 = vmatprep.subr.mxu0 0.0
    %435 = vmatpush1.msra.mxu0 0.0
    %436 = vmatprep.subr.mxu0 0.0
    %437 = vmatpush1.msra.mxu0 0.0
    %438 = vmatprep.subr.mxu0 0.0
    %439 = vmatpush1.msra.mxu0 0.0
    %440 = vmatprep.subr.mxu0 0.0
    %441 = vmatpush1.msra.mxu0 0.0
    %442 = vmatprep.subr.mxu0 0.0
    %443 = vmatpush1.msra.mxu0 0.0
    %444 = vmatprep.subr.mxu0 0.0
    %445 = vmatpush1.msra.mxu0 0.0
    %446 = vmatprep.subr.mxu0 0.0
    %447 = vmatpush1.msra.mxu0 0.0
    %448 = vmatprep.subr.mxu0 0.0
    %449 = vmatpush1.msra.mxu0 0.0
    %450 = vmatprep.subr.mxu0 0.0
    %451 = vmatpush1.msra.mxu0 0.0
    %452 = vmatprep.subr.mxu0 0.0
    %453 = vmatpush1.msra.mxu0 0.0
    %454 = vmatprep.subr.mxu0 0.0
    %455 = vmatpush1.msra.mxu0 0.0
    %456 = vmatprep.subr.mxu0 0.0
    %457 = vmatpush1.msra.mxu0 0.0
    %458 = vmatprep.subr.mxu0 0.0
    %459 = vmatpush1.msra.mxu0 0.0
    %460 = vmatprep.subr.mxu0 0.0
    %461 = vmatpush1.msra.mxu0 0.0
    %462 = vmatprep.subr.mxu0 0.0
    %463 = vmatpush1.msra.mxu0 0.0
    %464 = vmatprep.subr.mxu0 0.0
    %465 = vmatpush1.msra.mxu0 0.0
    %466 = vmatprep.subr.mxu0 0.0
    %467 = vmatpush1.msra.mxu0 0.0
    %468 = vmatprep.subr.mxu0 0.0
    %469 = vmatpush1.msra.mxu0 0.0
    %470 = vmatprep.subr.mxu0 0.0
    %471 = vmatpush1.msra.mxu0 0.0
    %472 = vmatprep.subr.mxu0 0.0
    %473 = vmatpush1.msra.mxu0 0.0
    %474 = vmatprep.subr.mxu0 0.0
    %475 = vmatpush1.msra.mxu0 0.0
    %476 = vmatprep.mubr.f32.mxu0 0.0
    %477 = vmatmul.mubr.f32.gmra.mrb[0].mxu0 %v410
    %v478 = vpop.f32.mrb[0].mxu0
    %v479 = vadd.f32 %v405, %v478
    %v480 = vpop.f32.mrb[0].mxu0
    %481 = vdwg.mxu0
    %482 = vst [vmem:[#allocation2] sm:$0x3] %v479
    %s483 = scalar_lea.vmem [#allocation2], 2
    %v484 = vld [vmem:[%s483] sm:$0x3]
    %486 = vrot.lane.b32.xlu0 %v399, 32
    %v487 = vpop.permute.xlu0 %486
    %v488 = vsel %vm159, %v487, 0
    %490 = vmatprep.subr.mxu0 0.0
    %491 = vmatpush1.msra.mxu0 %v291
    %492 = vmatprep.subr.mxu0 0.0
    %493 = vmatpush1.msra.mxu0 %v292
    %494 = vmatprep.subr.mxu0 0.0
    %495 = vmatpush1.msra.mxu0 %v293
    %496 = vmatprep.subr.mxu0 0.0
    %497 = vmatpush1.msra.mxu0 %v294
    %498 = vmatprep.subr.mxu0 0.0
    %499 = vmatpush1.msra.mxu0 0.0
    %500 = vmatprep.subr.mxu0 0.0
    %501 = vmatpush1.msra.mxu0 0.0
    %502 = vmatprep.subr.mxu0 0.0
    %503 = vmatpush1.msra.mxu0 0.0
    %504 = vmatprep.subr.mxu0 0.0
    %505 = vmatpush1.msra.mxu0 0.0
    %506 = vmatprep.subr.mxu0 0.0
    %507 = vmatpush1.msra.mxu0 0.0
    %508 = vmatprep.subr.mxu0 0.0
    %509 = vmatpush1.msra.mxu0 0.0
    %510 = vmatprep.subr.mxu0 0.0
    %511 = vmatpush1.msra.mxu0 0.0
    %512 = vmatprep.subr.mxu0 0.0
    %513 = vmatpush1.msra.mxu0 0.0
    %514 = vmatprep.subr.mxu0 0.0
    %515 = vmatpush1.msra.mxu0 0.0
    %516 = vmatprep.subr.mxu0 0.0
    %517 = vmatpush1.msra.mxu0 0.0
    %518 = vmatprep.subr.mxu0 0.0
    %519 = vmatpush1.msra.mxu0 0.0
    %520 = vmatprep.subr.mxu0 0.0
    %521 = vmatpush1.msra.mxu0 0.0
    %522 = vmatprep.subr.mxu0 0.0
    %523 = vmatpush1.msra.mxu0 0.0
    %524 = vmatprep.subr.mxu0 0.0
    %525 = vmatpush1.msra.mxu0 0.0
    %526 = vmatprep.subr.mxu0 0.0
    %527 = vmatpush1.msra.mxu0 0.0
    %528 = vmatprep.subr.mxu0 0.0
    %529 = vmatpush1.msra.mxu0 0.0
    %530 = vmatprep.subr.mxu0 0.0
    %531 = vmatpush1.msra.mxu0 0.0
    %532 = vmatprep.subr.mxu0 0.0
    %533 = vmatpush1.msra.mxu0 0.0
    %534 = vmatprep.subr.mxu0 0.0
    %535 = vmatpush1.msra.mxu0 0.0
    %536 = vmatprep.subr.mxu0 0.0
    %537 = vmatpush1.msra.mxu0 0.0
    %538 = vmatprep.subr.mxu0 0.0
    %539 = vmatpush1.msra.mxu0 0.0
    %540 = vmatprep.subr.mxu0 0.0
    %541 = vmatpush1.msra.mxu0 0.0
    %542 = vmatprep.subr.mxu0 0.0
    %543 = vmatpush1.msra.mxu0 0.0
    %544 = vmatprep.subr.mxu0 0.0
    %545 = vmatpush1.msra.mxu0 0.0
    %546 = vmatprep.subr.mxu0 0.0
    %547 = vmatpush1.msra.mxu0 0.0
    %548 = vmatprep.subr.mxu0 0.0
    %549 = vmatpush1.msra.mxu0 0.0
    %550 = vmatprep.subr.mxu0 0.0
    %551 = vmatpush1.msra.mxu0 0.0
    %552 = vmatprep.subr.mxu0 0.0
    %553 = vmatpush1.msra.mxu0 0.0
    %554 = vmatprep.mubr.f32.mxu0 0.0
    %555 = vmatmul.mubr.f32.gmra.mrb[0].mxu0 %v488
    %v556 = vpop.f32.mrb[0].mxu0
    %v557 = vadd.f32 0.0, %v556
    %v558 = vpop.f32.mrb[0].mxu0
    %559 = vdwg.mxu0
    %v560 = vadd.f32 %v484, %v557
    %v561 = vxor.u32 %v560, 2147483648
    %v562 = vmul.f32 %v561, 1.442695
    %v563 = vpow.pop %v562
    %v564 = vadd.f32 %v563, 1.0
    %v565 = vrcp.pop %v564
    %v566 = vmul.f32 1.0, %v565
    %v567 = vmul.f32 %v566, 2.0
    %v568 = vsub.f32 %v567, 1.0
    %v569 = vmul.f32 %v566, %v393
    %571 = vrot.lane.b32.xlu0 %v568, 64
    %v572 = vpop.permute.xlu0 %571
    %v574 = vmul.f32 %v566, %v572
    %576 = vrot.lane.b32.xlu0 %v574, 32
    %v577 = vpop.permute.xlu0 %576
    %v579 = vadd.f32 %v569, %v577
    %v580 = vtanh.pop %v579
    %582 = vrot.lane.b32.xlu0 %v580, 64
    %v583 = vpop.permute.xlu0 %582
    %v585 = vmul.f32 %v566, %v583
    %v586 = vmax.f32 %v585, 0.0
    %588 = vrot.lane.b32.xlu0 %v586, 32
    %v589 = vpop.permute.xlu0 %588
    %v590 = vsel %vm159, %v589, 0
    %592 = vmatprep.subr.mxu0 0.0
    %593 = vmatpush1.msra.mxu0 %v295
    %594 = vmatprep.subr.mxu0 0.0
    %595 = vmatpush1.msra.mxu0 %v296
    %596 = vmatprep.subr.mxu0 0.0
    %597 = vmatpush1.msra.mxu0 %v297
    %598 = vmatprep.subr.mxu0 0.0
    %599 = vmatpush1.msra.mxu0 %v298
    %600 = vmatprep.subr.mxu0 0.0
    %601 = vmatpush1.msra.mxu0 0.0
    %602 = vmatprep.subr.mxu0 0.0
    %603 = vmatpush1.msra.mxu0 0.0
    %604 = vmatprep.subr.mxu0 0.0
    %605 = vmatpush1.msra.mxu0 0.0
    %606 = vmatprep.subr.mxu0 0.0
    %607 = vmatpush1.msra.mxu0 0.0
    %608 = vmatprep.subr.mxu0 0.0
    %609 = vmatpush1.msra.mxu0 0.0
    %610 = vmatprep.subr.mxu0 0.0
    %611 = vmatpush1.msra.mxu0 0.0
    %612 = vmatprep.subr.mxu0 0.0
    %613 = vmatpush1.msra.mxu0 0.0
    %614 = vmatprep.subr.mxu0 0.0
    %615 = vmatpush1.msra.mxu0 0.0
    %616 = vmatprep.subr.mxu0 0.0
    %617 = vmatpush1.msra.mxu0 0.0
    %618 = vmatprep.subr.mxu0 0.0
    %619 = vmatpush1.msra.mxu0 0.0
    %620 = vmatprep.subr.mxu0 0.0
    %621 = vmatpush1.msra.mxu0 0.0
    %622 = vmatprep.subr.mxu0 0.0
    %623 = vmatpush1.msra.mxu0 0.0
    %624 = vmatprep.subr.mxu0 0.0
    %625 = vmatpush1.msra.mxu0 0.0
    %626 = vmatprep.subr.mxu0 0.0
    %627 = vmatpush1.msra.mxu0 0.0
    %628 = vmatprep.subr.mxu0 0.0
    %629 = vmatpush1.msra.mxu0 0.0
    %630 = vmatprep.subr.mxu0 0.0
    %631 = vmatpush1.msra.mxu0 0.0
    %632 = vmatprep.subr.mxu0 0.0
    %633 = vmatpush1.msra.mxu0 0.0
    %634 = vmatprep.subr.mxu0 0.0
    %635 = vmatpush1.msra.mxu0 0.0
    %636 = vmatprep.subr.mxu0 0.0
    %637 = vmatpush1.msra.mxu0 0.0
    %638 = vmatprep.subr.mxu0 0.0
    %639 = vmatpush1.msra.mxu0 0.0
    %640 = vmatprep.subr.mxu0 0.0
    %641 = vmatpush1.msra.mxu0 0.0
    %642 = vmatprep.subr.mxu0 0.0
    %643 = vmatpush1.msra.mxu0 0.0
    %644 = vmatprep.subr.mxu0 0.0
    %645 = vmatpush1.msra.mxu0 0.0
    %646 = vmatprep.subr.mxu0 0.0
    %647 = vmatpush1.msra.mxu0 0.0
    %648 = vmatprep.subr.mxu0 0.0
    %649 = vmatpush1.msra.mxu0 0.0
    %650 = vmatprep.subr.mxu0 0.0
    %651 = vmatpush1.msra.mxu0 0.0
    %652 = vmatprep.subr.mxu0 0.0
    %653 = vmatpush1.msra.mxu0 0.0
    %654 = vmatprep.subr.mxu0 0.0
    %655 = vmatpush1.msra.mxu0 0.0
    %656 = vmatprep.mubr.f32.mxu0 0.0
    %657 = vmatmul.mubr.f32.gmra.mrb[0].mxu0 %v590
    %v658 = vpop.f32.mrb[0].mxu0
    %v659 = vadd.f32 %v405, %v658
    %v660 = vpop.f32.mrb[0].mxu0
    %661 = vdwg.mxu0
    %662 = vst [vmem:[%s483] sm:$0x3] %v659
    %s663 = scalar_lea.vmem [#allocation2], 4
    %v664 = vld [vmem:[%s663] sm:$0x3]
    %666 = vrot.lane.b32.xlu0 %v585, 32
    %v667 = vpop.permute.xlu0 %666
    %v668 = vsel %vm159, %v667, 0
    %670 = vmatprep.subr.mxu0 0.0
    %671 = vmatpush1.msra.mxu0 %v291
    %672 = vmatprep.subr.mxu0 0.0
    %673 = vmatpush1.msra.mxu0 %v292
    %674 = vmatprep.subr.mxu0 0.0
    %675 = vmatpush1.msra.mxu0 %v293
    %676 = vmatprep.subr.mxu0 0.0
    %677 = vmatpush1.msra.mxu0 %v294
    %678 = vmatprep.subr.mxu0 0.0
    %679 = vmatpush1.msra.mxu0 0.0
    %680 = vmatprep.subr.mxu0 0.0
    %681 = vmatpush1.msra.mxu0 0.0
    %682 = vmatprep.subr.mxu0 0.0
    %683 = vmatpush1.msra.mxu0 0.0
    %684 = vmatprep.subr.mxu0 0.0
    %685 = vmatpush1.msra.mxu0 0.0
    %686 = vmatprep.subr.mxu0 0.0
    %687 = vmatpush1.msra.mxu0 0.0
    %688 = vmatprep.subr.mxu0 0.0
    %689 = vmatpush1.msra.mxu0 0.0
    %690 = vmatprep.subr.mxu0 0.0
    %691 = vmatpush1.msra.mxu0 0.0
    %692 = vmatprep.subr.mxu0 0.0
    %693 = vmatpush1.msra.mxu0 0.0
    %694 = vmatprep.subr.mxu0 0.0
    %695 = vmatpush1.msra.mxu0 0.0
    %696 = vmatprep.subr.mxu0 0.0
    %697 = vmatpush1.msra.mxu0 0.0
    %698 = vmatprep.subr.mxu0 0.0
    %699 = vmatpush1.msra.mxu0 0.0
    %700 = vmatprep.subr.mxu0 0.0
    %701 = vmatpush1.msra.mxu0 0.0
    %702 = vmatprep.subr.mxu0 0.0
    %703 = vmatpush1.msra.mxu0 0.0
    %704 = vmatprep.subr.mxu0 0.0
    %705 = vmatpush1.msra.mxu0 0.0
    %706 = vmatprep.subr.mxu0 0.0
    %707 = vmatpush1.msra.mxu0 0.0
    %708 = vmatprep.subr.mxu0 0.0
    %709 = vmatpush1.msra.mxu0 0.0
    %710 = vmatprep.subr.mxu0 0.0
    %711 = vmatpush1.msra.mxu0 0.0
    %712 = vmatprep.subr.mxu0 0.0
    %713 = vmatpush1.msra.mxu0 0.0
    %714 = vmatprep.subr.mxu0 0.0
    %715 = vmatpush1.msra.mxu0 0.0
    %716 = vmatprep.subr.mxu0 0.0
    %717 = vmatpush1.msra.mxu0 0.0
    %718 = vmatprep.subr.mxu0 0.0
    %719 = vmatpush1.msra.mxu0 0.0
    %720 = vmatprep.subr.mxu0 0.0
    %721 = vmatpush1.msra.mxu0 0.0
    %722 = vmatprep.subr.mxu0 0.0
    %723 = vmatpush1.msra.mxu0 0.0
    %724 = vmatprep.subr.mxu0 0.0
    %725 = vmatpush1.msra.mxu0 0.0
    %726 = vmatprep.subr.mxu0 0.0
    %727 = vmatpush1.msra.mxu0 0.0
    %728 = vmatprep.subr.mxu0 0.0
    %729 = vmatpush1.msra.mxu0 0.0
    %730 = vmatprep.subr.mxu0 0.0
    %731 = vmatpush1.msra.mxu0 0.0
    %732 = vmatprep.subr.mxu0 0.0
    %733 = vmatpush1.msra.mxu0 0.0
    %734 = vmatprep.mubr.f32.mxu0 0.0
    %735 = vmatmul.mubr.f32.gmra.mrb[0].mxu0 %v668
    %v736 = vpop.f32.mrb[0].mxu0
    %v737 = vadd.f32 0.0, %v736
    %v738 = vpop.f32.mrb[0].mxu0
    %739 = vdwg.mxu0
    %v740 = vadd.f32 %v664, %v737
    %v741 = vxor.u32 %v740, 2147483648
    %v742 = vmul.f32 %v741, 1.442695
    %v743 = vpow.pop %v742
    %v744 = vadd.f32 %v743, 1.0
    %v745 = vrcp.pop %v744
    %v746 = vmul.f32 1.0, %v745
    %v747 = vmul.f32 %v746, 2.0
    %v748 = vsub.f32 %v747, 1.0
    %v749 = vmul.f32 %v746, %v579
    %751 = vrot.lane.b32.xlu0 %v748, 64
    %v752 = vpop.permute.xlu0 %751
    %v754 = vmul.f32 %v746, %v752
    %756 = vrot.lane.b32.xlu0 %v754, 32
    %v757 = vpop.permute.xlu0 %756
    %v759 = vadd.f32 %v749, %v757
    %v760 = vtanh.pop %v759
    %762 = vrot.lane.b32.xlu0 %v760, 64
    %v763 = vpop.permute.xlu0 %762
    %v765 = vmul.f32 %v746, %v763
    %v766 = vmax.f32 %v765, 0.0
    %768 = vrot.lane.b32.xlu0 %v766, 32
    %v769 = vpop.permute.xlu0 %768
    %v770 = vsel %vm159, %v769, 0
    %772 = vmatprep.subr.mxu0 0.0
    %773 = vmatpush1.msra.mxu0 %v295
    %774 = vmatprep.subr.mxu0 0.0
    %775 = vmatpush1.msra.mxu0 %v296
    %776 = vmatprep.subr.mxu0 0.0
    %777 = vmatpush1.msra.mxu0 %v297
    %778 = vmatprep.subr.mxu0 0.0
    %779 = vmatpush1.msra.mxu0 %v298
    %780 = vmatprep.subr.mxu0 0.0
    %781 = vmatpush1.msra.mxu0 0.0
    %782 = vmatprep.subr.mxu0 0.0
    %783 = vmatpush1.msra.mxu0 0.0
    %784 = vmatprep.subr.mxu0 0.0
    %785 = vmatpush1.msra.mxu0 0.0
    %786 = vmatprep.subr.mxu0 0.0
    %787 = vmatpush1.msra.mxu0 0.0
    %788 = vmatprep.subr.mxu0 0.0
    %789 = vmatpush1.msra.mxu0 0.0
    %790 = vmatprep.subr.mxu0 0.0
    %791 = vmatpush1.msra.mxu0 0.0
    %792 = vmatprep.subr.mxu0 0.0
    %793 = vmatpush1.msra.mxu0 0.0
    %794 = vmatprep.subr.mxu0 0.0
    %795 = vmatpush1.msra.mxu0 0.0
    %796 = vmatprep.subr.mxu0 0.0
    %797 = vmatpush1.msra.mxu0 0.0
    %798 = vmatprep.subr.mxu0 0.0
    %799 = vmatpush1.msra.mxu0 0.0
    %800 = vmatprep.subr.mxu0 0.0
    %801 = vmatpush1.msra.mxu0 0.0
    %802 = vmatprep.subr.mxu0 0.0
    %803 = vmatpush1.msra.mxu0 0.0
    %804 = vmatprep.subr.mxu0 0.0
    %805 = vmatpush1.msra.mxu0 0.0
    %806 = vmatprep.subr.mxu0 0.0
    %807 = vmatpush1.msra.mxu0 0.0
    %808 = vmatprep.subr.mxu0 0.0
    %809 = vmatpush1.msra.mxu0 0.0
    %810 = vmatprep.subr.mxu0 0.0
    %811 = vmatpush1.msra.mxu0 0.0
    %812 = vmatprep.subr.mxu0 0.0
    %813 = vmatpush1.msra.mxu0 0.0
    %814 = vmatprep.subr.mxu0 0.0
    %815 = vmatpush1.msra.mxu0 0.0
    %816 = vmatprep.subr.mxu0 0.0
    %817 = vmatpush1.msra.mxu0 0.0
    %818 = vmatprep.subr.mxu0 0.0
    %819 = vmatpush1.msra.mxu0 0.0
    %820 = vmatprep.subr.mxu0 0.0
    %821 = vmatpush1.msra.mxu0 0.0
    %822 = vmatprep.subr.mxu0 0.0
    %823 = vmatpush1.msra.mxu0 0.0
    %824 = vmatprep.subr.mxu0 0.0
    %825 = vmatpush1.msra.mxu0 0.0
    %826 = vmatprep.subr.mxu0 0.0
    %827 = vmatpush1.msra.mxu0 0.0
    %828 = vmatprep.subr.mxu0 0.0
    %829 = vmatpush1.msra.mxu0 0.0
    %830 = vmatprep.subr.mxu0 0.0
    %831 = vmatpush1.msra.mxu0 0.0
    %832 = vmatprep.subr.mxu0 0.0
    %833 = vmatpush1.msra.mxu0 0.0
    %834 = vmatprep.subr.mxu0 0.0
    %835 = vmatpush1.msra.mxu0 0.0
    %836 = vmatprep.mubr.f32.mxu0 0.0
    %837 = vmatmul.mubr.f32.gmra.mrb[0].mxu0 %v770
    %v838 = vpop.f32.mrb[0].mxu0
    %v839 = vadd.f32 %v405, %v838
    %v840 = vpop.f32.mrb[0].mxu0
    %841 = vdwg.mxu0
    %842 = vst [vmem:[%s663] sm:$0x3] %v839
    %s843 = scalar_lea.vmem [#allocation2], 6
    %v844 = vld [vmem:[%s843] sm:$0x3]
    %846 = vrot.lane.b32.xlu0 %v765, 32
    %v847 = vpop.permute.xlu0 %846
    %v848 = vsel %vm159, %v847, 0
    %850 = vmatprep.subr.mxu0 0.0
    %851 = vmatpush1.msra.mxu0 %v291
    %852 = vmatprep.subr.mxu0 0.0
    %853 = vmatpush1.msra.mxu0 %v292
    %854 = vmatprep.subr.mxu0 0.0
    %855 = vmatpush1.msra.mxu0 %v293
    %856 = vmatprep.subr.mxu0 0.0
    %857 = vmatpush1.msra.mxu0 %v294
    %858 = vmatprep.subr.mxu0 0.0
    %859 = vmatpush1.msra.mxu0 0.0
    %860 = vmatprep.subr.mxu0 0.0
    %861 = vmatpush1.msra.mxu0 0.0
    %862 = vmatprep.subr.mxu0 0.0
    %863 = vmatpush1.msra.mxu0 0.0
    %864 = vmatprep.subr.mxu0 0.0
    %865 = vmatpush1.msra.mxu0 0.0
    %866 = vmatprep.subr.mxu0 0.0
    %867 = vmatpush1.msra.mxu0 0.0
    %868 = vmatprep.subr.mxu0 0.0
    %869 = vmatpush1.msra.mxu0 0.0
    %870 = vmatprep.subr.mxu0 0.0
    %871 = vmatpush1.msra.mxu0 0.0
    %872 = vmatprep.subr.mxu0 0.0
    %873 = vmatpush1.msra.mxu0 0.0
    %874 = vmatprep.subr.mxu0 0.0
    %875 = vmatpush1.msra.mxu0 0.0
    %876 = vmatprep.subr.mxu0 0.0
    %877 = vmatpush1.msra.mxu0 0.0
    %878 = vmatprep.subr.mxu0 0.0
    %879 = vmatpush1.msra.mxu0 0.0
    %880 = vmatprep.subr.mxu0 0.0
    %881 = vmatpush1.msra.mxu0 0.0
    %882 = vmatprep.subr.mxu0 0.0
    %883 = vmatpush1.msra.mxu0 0.0
    %884 = vmatprep.subr.mxu0 0.0
    %885 = vmatpush1.msra.mxu0 0.0
    %886 = vmatprep.subr.mxu0 0.0
    %887 = vmatpush1.msra.mxu0 0.0
    %888 = vmatprep.subr.mxu0 0.0
    %889 = vmatpush1.msra.mxu0 0.0
    %890 = vmatprep.subr.mxu0 0.0
    %891 = vmatpush1.msra.mxu0 0.0
    %892 = vmatprep.subr.mxu0 0.0
    %893 = vmatpush1.msra.mxu0 0.0
    %894 = vmatprep.subr.mxu0 0.0
    %895 = vmatpush1.msra.mxu0 0.0
    %896 = vmatprep.subr.mxu0 0.0
    %897 = vmatpush1.msra.mxu0 0.0
    %898 = vmatprep.subr.mxu0 0.0
    %899 = vmatpush1.msra.mxu0 0.0
    %900 = vmatprep.subr.mxu0 0.0
    %901 = vmatpush1.msra.mxu0 0.0
    %902 = vmatprep.subr.mxu0 0.0
    %903 = vmatpush1.msra.mxu0 0.0
    %904 = vmatprep.subr.mxu0 0.0
    %905 = vmatpush1.msra.mxu0 0.0
    %906 = vmatprep.subr.mxu0 0.0
    %907 = vmatpush1.msra.mxu0 0.0
    %908 = vmatprep.subr.mxu0 0.0
    %909 = vmatpush1.msra.mxu0 0.0
    %910 = vmatprep.subr.mxu0 0.0
    %911 = vmatpush1.msra.mxu0 0.0
    %912 = vmatprep.subr.mxu0 0.0
    %913 = vmatpush1.msra.mxu0 0.0
    %914 = vmatprep.mubr.f32.mxu0 0.0
    %915 = vmatmul.mubr.f32.gmra.mrb[0].mxu0 %v848
    %v916 = vpop.f32.mrb[0].mxu0
    %v917 = vadd.f32 0.0, %v916
    %v918 = vpop.f32.mrb[0].mxu0
    %919 = vdwg.mxu0
    %v920 = vadd.f32 %v844, %v917
    %v921 = vxor.u32 %v920, 2147483648
    %v922 = vmul.f32 %v921, 1.442695
    %v923 = vpow.pop %v922
    %v924 = vadd.f32 %v923, 1.0
    %v925 = vrcp.pop %v924
    %v926 = vmul.f32 1.0, %v925
    %v927 = vmul.f32 %v926, 2.0
    %v928 = vsub.f32 %v927, 1.0
    %v929 = vmul.f32 %v926, %v759
    %931 = vrot.lane.b32.xlu0 %v928, 64
    %v932 = vpop.permute.xlu0 %931
    %v934 = vmul.f32 %v926, %v932
    %936 = vrot.lane.b32.xlu0 %v934, 32
    %v937 = vpop.permute.xlu0 %936
    %v939 = vadd.f32 %v929, %v937
    %v940 = vtanh.pop %v939
    %942 = vrot.lane.b32.xlu0 %v940, 64
    %v943 = vpop.permute.xlu0 %942
    %v945 = vmul.f32 %v926, %v943
    %v946 = vmax.f32 %v945, 0.0
    %948 = vrot.lane.b32.xlu0 %v946, 32
    %v949 = vpop.permute.xlu0 %948
    %v950 = vsel %vm159, %v949, 0
    %952 = vmatprep.subr.mxu0 0.0
    %953 = vmatpush1.msra.mxu0 %v295
    %954 = vmatprep.subr.mxu0 0.0
    %955 = vmatpush1.msra.mxu0 %v296
    %956 = vmatprep.subr.mxu0 0.0
    %957 = vmatpush1.msra.mxu0 %v297
    %958 = vmatprep.subr.mxu0 0.0
    %959 = vmatpush1.msra.mxu0 %v298
    %960 = vmatprep.subr.mxu0 0.0
    %961 = vmatpush1.msra.mxu0 0.0
    %962 = vmatprep.subr.mxu0 0.0
    %963 = vmatpush1.msra.mxu0 0.0
    %964 = vmatprep.subr.mxu0 0.0
    %965 = vmatpush1.msra.mxu0 0.0
    %966 = vmatprep.subr.mxu0 0.0
    %967 = vmatpush1.msra.mxu0 0.0
    %968 = vmatprep.subr.mxu0 0.0
    %969 = vmatpush1.msra.mxu0 0.0
    %970 = vmatprep.subr.mxu0 0.0
    %971 = vmatpush1.msra.mxu0 0.0
    %972 = vmatprep.subr.mxu0 0.0
    %973 = vmatpush1.msra.mxu0 0.0
    %974 = vmatprep.subr.mxu0 0.0
    %975 = vmatpush1.msra.mxu0 0.0
    %976 = vmatprep.subr.mxu0 0.0
    %977 = vmatpush1.msra.mxu0 0.0
    %978 = vmatprep.subr.mxu0 0.0
    %979 = vmatpush1.msra.mxu0 0.0
    %980 = vmatprep.subr.mxu0 0.0
    %981 = vmatpush1.msra.mxu0 0.0
    %982 = vmatprep.subr.mxu0 0.0
    %983 = vmatpush1.msra.mxu0 0.0
    %984 = vmatprep.subr.mxu0 0.0
    %985 = vmatpush1.msra.mxu0 0.0
    %986 = vmatprep.subr.mxu0 0.0
    %987 = vmatpush1.msra.mxu0 0.0
    %988 = vmatprep.subr.mxu0 0.0
    %989 = vmatpush1.msra.mxu0 0.0
    %990 = vmatprep.subr.mxu0 0.0
    %991 = vmatpush1.msra.mxu0 0.0
    %992 = vmatprep.subr.mxu0 0.0
    %993 = vmatpush1.msra.mxu0 0.0
    %994 = vmatprep.subr.mxu0 0.0
    %995 = vmatpush1.msra.mxu0 0.0
    %996 = vmatprep.subr.mxu0 0.0
    %997 = vmatpush1.msra.mxu0 0.0
    %998 = vmatprep.subr.mxu0 0.0
    %999 = vmatpush1.msra.mxu0 0.0
    %1000 = vmatprep.subr.mxu0 0.0
    %1001 = vmatpush1.msra.mxu0 0.0
    %1002 = vmatprep.subr.mxu0 0.0
    %1003 = vmatpush1.msra.mxu0 0.0
    %1004 = vmatprep.subr.mxu0 0.0
    %1005 = vmatpush1.msra.mxu0 0.0
    %1006 = vmatprep.subr.mxu0 0.0
    %1007 = vmatpush1.msra.mxu0 0.0
    %1008 = vmatprep.subr.mxu0 0.0
    %1009 = vmatpush1.msra.mxu0 0.0
    %1010 = vmatprep.subr.mxu0 0.0
    %1011 = vmatpush1.msra.mxu0 0.0
    %1012 = vmatprep.subr.mxu0 0.0
    %1013 = vmatpush1.msra.mxu0 0.0
    %1014 = vmatprep.subr.mxu0 0.0
    %1015 = vmatpush1.msra.mxu0 0.0
    %1016 = vmatprep.mubr.f32.mxu0 0.0
    %1017 = vmatmul.mubr.f32.gmra.mrb[0].mxu0 %v950
    %v1018 = vpop.f32.mrb[0].mxu0
    %v1019 = vadd.f32 %v405, %v1018
    %v1020 = vpop.f32.mrb[0].mxu0
    %1021 = vdwg.mxu0
    %1022 = vst [vmem:[%s843] sm:$0x3] %v1019
    %s1023 = scalar_lea.vmem [#allocation2], 8
    %v1024 = vld [vmem:[%s1023] sm:$0x3]
    %1026 = vrot.lane.b32.xlu0 %v945, 32
    %v1027 = vpop.permute.xlu0 %1026
    %v1028 = vsel %vm159, %v1027, 0
    %1030 = vmatprep.subr.mxu0 0.0
    %1031 = vmatpush1.msra.mxu0 %v291
    %1032 = vmatprep.subr.mxu0 0.0
    %1033 = vmatpush1.msra.mxu0 %v292
    %1034 = vmatprep.subr.mxu0 0.0
    %1035 = vmatpush1.msra.mxu0 %v293
    %1036 = vmatprep.subr.mxu0 0.0
    %1037 = vmatpush1.msra.mxu0 %v294
    %1038 = vmatprep.subr.mxu0 0.0
    %1039 = vmatpush1.msra.mxu0 0.0
    %1040 = vmatprep.subr.mxu0 0.0
    %1041 = vmatpush1.msra.mxu0 0.0
    %1042 = vmatprep.subr.mxu0 0.0
    %1043 = vmatpush1.msra.mxu0 0.0
    %1044 = vmatprep.subr.mxu0 0.0
    %1045 = vmatpush1.msra.mxu0 0.0
    %1046 = vmatprep.subr.mxu0 0.0
    %1047 = vmatpush1.msra.mxu0 0.0
    %1048 = vmatprep.subr.mxu0 0.0
    %1049 = vmatpush1.msra.mxu0 0.0
    %1050 = vmatprep.subr.mxu0 0.0
    %1051 = vmatpush1.msra.mxu0 0.0
    %1052 = vmatprep.subr.mxu0 0.0
    %1053 = vmatpush1.msra.mxu0 0.0
    %1054 = vmatprep.subr.mxu0 0.0
    %1055 = vmatpush1.msra.mxu0 0.0
    %1056 = vmatprep.subr.mxu0 0.0
    %1057 = vmatpush1.msra.mxu0 0.0
    %1058 = vmatprep.subr.mxu0 0.0
    %1059 = vmatpush1.msra.mxu0 0.0
    %1060 = vmatprep.subr.mxu0 0.0
    %1061 = vmatpush1.msra.mxu0 0.0
    %1062 = vmatprep.subr.mxu0 0.0
    %1063 = vmatpush1.msra.mxu0 0.0
    %1064 = vmatprep.subr.mxu0 0.0
    %1065 = vmatpush1.msra.mxu0 0.0
    %1066 = vmatprep.subr.mxu0 0.0
    %1067 = vmatpush1.msra.mxu0 0.0
    %1068 = vmatprep.subr.mxu0 0.0
    %1069 = vmatpush1.msra.mxu0 0.0
    %1070 = vmatprep.subr.mxu0 0.0
    %1071 = vmatpush1.msra.mxu0 0.0
    %1072 = vmatprep.subr.mxu0 0.0
    %1073 = vmatpush1.msra.mxu0 0.0
    %1074 = vmatprep.subr.mxu0 0.0
    %1075 = vmatpush1.msra.mxu0 0.0
    %1076 = vmatprep.subr.mxu0 0.0
    %1077 = vmatpush1.msra.mxu0 0.0
    %1078 = vmatprep.subr.mxu0 0.0
    %1079 = vmatpush1.msra.mxu0 0.0
    %1080 = vmatprep.subr.mxu0 0.0
    %1081 = vmatpush1.msra.mxu0 0.0
    %1082 = vmatprep.subr.mxu0 0.0
    %1083 = vmatpush1.msra.mxu0 0.0
    %1084 = vmatprep.subr.mxu0 0.0
    %1085 = vmatpush1.msra.mxu0 0.0
    %1086 = vmatprep.subr.mxu0 0.0
    %1087 = vmatpush1.msra.mxu0 0.0
    %1088 = vmatprep.subr.mxu0 0.0
    %1089 = vmatpush1.msra.mxu0 0.0
    %1090 = vmatprep.subr.mxu0 0.0
    %1091 = vmatpush1.msra.mxu0 0.0
    %1092 = vmatprep.subr.mxu0 0.0
    %1093 = vmatpush1.msra.mxu0 0.0
    %1094 = vmatprep.mubr.f32.mxu0 0.0
    %1095 = vmatmul.mubr.f32.gmra.mrb[0].mxu0 %v1028
    %v1096 = vpop.f32.mrb[0].mxu0
    %v1097 = vadd.f32 0.0, %v1096
    %v1098 = vpop.f32.mrb[0].mxu0
    %1099 = vdwg.mxu0
    %v1100 = vadd.f32 %v1024, %v1097
    %v1101 = vxor.u32 %v1100, 2147483648
    %v1102 = vmul.f32 %v1101, 1.442695
    %v1103 = vpow.pop %v1102
    %v1104 = vadd.f32 %v1103, 1.0
    %v1105 = vrcp.pop %v1104
    %v1106 = vmul.f32 1.0, %v1105
    %v1107 = vmul.f32 %v1106, 2.0
    %v1108 = vsub.f32 %v1107, 1.0
    %v1109 = vmul.f32 %v1106, %v939
    %1111 = vrot.lane.b32.xlu0 %v1108, 64
    %v1112 = vpop.permute.xlu0 %1111
    %v1114 = vmul.f32 %v1106, %v1112
    %1116 = vrot.lane.b32.xlu0 %v1114, 32
    %v1117 = vpop.permute.xlu0 %1116
    %v1119 = vadd.f32 %v1109, %v1117
    %v1120 = vtanh.pop %v1119
    %1122 = vrot.lane.b32.xlu0 %v1120, 64
    %v1123 = vpop.permute.xlu0 %1122
    %v1125 = vmul.f32 %v1106, %v1123
    %v1126 = vmax.f32 %v1125, 0.0
    %1128 = vrot.lane.b32.xlu0 %v1126, 32
    %v1129 = vpop.permute.xlu0 %1128
    %v1130 = vsel %vm159, %v1129, 0
    %1132 = vmatprep.subr.mxu0 0.0
    %1133 = vmatpush1.msra.mxu0 %v295
    %1134 = vmatprep.subr.mxu0 0.0
    %1135 = vmatpush1.msra.mxu0 %v296
    %1136 = vmatprep.subr.mxu0 0.0
    %1137 = vmatpush1.msra.mxu0 %v297
    %1138 = vmatprep.subr.mxu0 0.0
    %1139 = vmatpush1.msra.mxu0 %v298
    %1140 = vmatprep.subr.mxu0 0.0
    %1141 = vmatpush1.msra.mxu0 0.0
    %1142 = vmatprep.subr.mxu0 0.0
    %1143 = vmatpush1.msra.mxu0 0.0
    %1144 = vmatprep.subr.mxu0 0.0
    %1145 = vmatpush1.msra.mxu0 0.0
    %1146 = vmatprep.subr.mxu0 0.0
    %1147 = vmatpush1.msra.mxu0 0.0
    %1148 = vmatprep.subr.mxu0 0.0
    %1149 = vmatpush1.msra.mxu0 0.0
    %1150 = vmatprep.subr.mxu0 0.0
    %1151 = vmatpush1.msra.mxu0 0.0
    %1152 = vmatprep.subr.mxu0 0.0
    %1153 = vmatpush1.msra.mxu0 0.0
    %1154 = vmatprep.subr.mxu0 0.0
    %1155 = vmatpush1.msra.mxu0 0.0
    %1156 = vmatprep.subr.mxu0 0.0
    %1157 = vmatpush1.msra.mxu0 0.0
    %1158 = vmatprep.subr.mxu0 0.0
    %1159 = vmatpush1.msra.mxu0 0.0
    %1160 = vmatprep.subr.mxu0 0.0
    %1161 = vmatpush1.msra.mxu0 0.0
    %1162 = vmatprep.subr.mxu0 0.0
    %1163 = vmatpush1.msra.mxu0 0.0
    %1164 = vmatprep.subr.mxu0 0.0
    %1165 = vmatpush1.msra.mxu0 0.0
    %1166 = vmatprep.subr.mxu0 0.0
    %1167 = vmatpush1.msra.mxu0 0.0
    %1168 = vmatprep.subr.mxu0 0.0
    %1169 = vmatpush1.msra.mxu0 0.0
    %1170 = vmatprep.subr.mxu0 0.0
    %1171 = vmatpush1.msra.mxu0 0.0
    %1172 = vmatprep.subr.mxu0 0.0
    %1173 = vmatpush1.msra.mxu0 0.0
    %1174 = vmatprep.subr.mxu0 0.0
    %1175 = vmatpush1.msra.mxu0 0.0
    %1176 = vmatprep.subr.mxu0 0.0
    %1177 = vmatpush1.msra.mxu0 0.0
    %1178 = vmatprep.subr.mxu0 0.0
    %1179 = vmatpush1.msra.mxu0 0.0
    %1180 = vmatprep.subr.mxu0 0.0
    %1181 = vmatpush1.msra.mxu0 0.0
    %1182 = vmatprep.subr.mxu0 0.0
    %1183 = vmatpush1.msra.mxu0 0.0
    %1184 = vmatprep.subr.mxu0 0.0
    %1185 = vmatpush1.msra.mxu0 0.0
    %1186 = vmatprep.subr.mxu0 0.0
    %1187 = vmatpush1.msra.mxu0 0.0
    %1188 = vmatprep.subr.mxu0 0.0
    %1189 = vmatpush1.msra.mxu0 0.0
    %1190 = vmatprep.subr.mxu0 0.0
    %1191 = vmatpush1.msra.mxu0 0.0
    %1192 = vmatprep.subr.mxu0 0.0
    %1193 = vmatpush1.msra.mxu0 0.0
    %1194 = vmatprep.subr.mxu0 0.0
    %1195 = vmatpush1.msra.mxu0 0.0
    %1196 = vmatprep.mubr.f32.mxu0 0.0
    %1197 = vmatmul.mubr.f32.gmra.mrb[0].mxu0 %v1130
    %v1198 = vpop.f32.mrb[0].mxu0
    %v1199 = vadd.f32 %v405, %v1198
    %v1200 = vpop.f32.mrb[0].mxu0
    %1201 = vdwg.mxu0
    %1202 = vst [vmem:[%s1023] sm:$0x3] %v1199
    %s1203 = scalar_lea.vmem [#allocation2], 10
    %v1204 = vld [vmem:[%s1203] sm:$0x3]
    %1206 = vrot.lane.b32.xlu0 %v1125, 32
    %v1207 = vpop.permute.xlu0 %1206
    %v1208 = vsel %vm159, %v1207, 0
    %1210 = vmatprep.subr.mxu0 0.0
    %1211 = vmatpush1.msra.mxu0 %v291
    %1212 = vmatprep.subr.mxu0 0.0
    %1213 = vmatpush1.msra.mxu0 %v292
    %1214 = vmatprep.subr.mxu0 0.0
    %1215 = vmatpush1.msra.mxu0 %v293
    %1216 = vmatprep.subr.mxu0 0.0
    %1217 = vmatpush1.msra.mxu0 %v294
    %1218 = vmatprep.subr.mxu0 0.0
    %1219 = vmatpush1.msra.mxu0 0.0
    %1220 = vmatprep.subr.mxu0 0.0
    %1221 = vmatpush1.msra.mxu0 0.0
    %1222 = vmatprep.subr.mxu0 0.0
    %1223 = vmatpush1.msra.mxu0 0.0
    %1224 = vmatprep.subr.mxu0 0.0
    %1225 = vmatpush1.msra.mxu0 0.0
    %1226 = vmatprep.subr.mxu0 0.0
    %1227 = vmatpush1.msra.mxu0 0.0
    %1228 = vmatprep.subr.mxu0 0.0
    %1229 = vmatpush1.msra.mxu0 0.0
    %1230 = vmatprep.subr.mxu0 0.0
    %1231 = vmatpush1.msra.mxu0 0.0
    %1232 = vmatprep.subr.mxu0 0.0
    %1233 = vmatpush1.msra.mxu0 0.0
    %1234 = vmatprep.subr.mxu0 0.0
    %1235 = vmatpush1.msra.mxu0 0.0
    %1236 = vmatprep.subr.mxu0 0.0
    %1237 = vmatpush1.msra.mxu0 0.0
    %1238 = vmatprep.subr.mxu0 0.0
    %1239 = vmatpush1.msra.mxu0 0.0
    %1240 = vmatprep.subr.mxu0 0.0
    %1241 = vmatpush1.msra.mxu0 0.0
    %1242 = vmatprep.subr.mxu0 0.0
    %1243 = vmatpush1.msra.mxu0 0.0
    %1244 = vmatprep.subr.mxu0 0.0
    %1245 = vmatpush1.msra.mxu0 0.0
    %1246 = vmatprep.subr.mxu0 0.0
    %1247 = vmatpush1.msra.mxu0 0.0
    %1248 = vmatprep.subr.mxu0 0.0
    %1249 = vmatpush1.msra.mxu0 0.0
    %1250 = vmatprep.subr.mxu0 0.0
    %1251 = vmatpush1.msra.mxu0 0.0
    %1252 = vmatprep.subr.mxu0 0.0
    %1253 = vmatpush1.msra.mxu0 0.0
    %1254 = vmatprep.subr.mxu0 0.0
    %1255 = vmatpush1.msra.mxu0 0.0
    %1256 = vmatprep.subr.mxu0 0.0
    %1257 = vmatpush1.msra.mxu0 0.0
    %1258 = vmatprep.subr.mxu0 0.0
    %1259 = vmatpush1.msra.mxu0 0.0
    %1260 = vmatprep.subr.mxu0 0.0
    %1261 = vmatpush1.msra.mxu0 0.0
    %1262 = vmatprep.subr.mxu0 0.0
    %1263 = vmatpush1.msra.mxu0 0.0
    %1264 = vmatprep.subr.mxu0 0.0
    %1265 = vmatpush1.msra.mxu0 0.0
    %1266 = vmatprep.subr.mxu0 0.0
    %1267 = vmatpush1.msra.mxu0 0.0
    %1268 = vmatprep.subr.mxu0 0.0
    %1269 = vmatpush1.msra.mxu0 0.0
    %1270 = vmatprep.subr.mxu0 0.0
    %1271 = vmatpush1.msra.mxu0 0.0
    %1272 = vmatprep.subr.mxu0 0.0
    %1273 = vmatpush1.msra.mxu0 0.0
    %1274 = vmatprep.mubr.f32.mxu0 0.0
    %1275 = vmatmul.mubr.f32.gmra.mrb[0].mxu0 %v1208
    %v1276 = vpop.f32.mrb[0].mxu0
    %v1277 = vadd.f32 0.0, %v1276
    %v1278 = vpop.f32.mrb[0].mxu0
    %1279 = vdwg.mxu0
    %v1280 = vadd.f32 %v1204, %v1277
    %v1281 = vxor.u32 %v1280, 2147483648
    %v1282 = vmul.f32 %v1281, 1.442695
    %v1283 = vpow.pop %v1282
    %v1284 = vadd.f32 %v1283, 1.0
    %v1285 = vrcp.pop %v1284
    %v1286 = vmul.f32 1.0, %v1285
    %v1287 = vmul.f32 %v1286, 2.0
    %v1288 = vsub.f32 %v1287, 1.0
    %v1289 = vmul.f32 %v1286, %v1119
    %1291 = vrot.lane.b32.xlu0 %v1288, 64
    %v1292 = vpop.permute.xlu0 %1291
    %v1294 = vmul.f32 %v1286, %v1292
    %1296 = vrot.lane.b32.xlu0 %v1294, 32
    %v1297 = vpop.permute.xlu0 %1296
    %v1299 = vadd.f32 %v1289, %v1297
    %v1300 = vtanh.pop %v1299
    %1302 = vrot.lane.b32.xlu0 %v1300, 64
    %v1303 = vpop.permute.xlu0 %1302
    %v1305 = vmul.f32 %v1286, %v1303
    %v1306 = vmax.f32 %v1305, 0.0
    %1308 = vrot.lane.b32.xlu0 %v1306, 32
    %v1309 = vpop.permute.xlu0 %1308
    %v1310 = vsel %vm159, %v1309, 0
    %1312 = vmatprep.subr.mxu0 0.0
    %1313 = vmatpush1.msra.mxu0 %v295
    %1314 = vmatprep.subr.mxu0 0.0
    %1315 = vmatpush1.msra.mxu0 %v296
    %1316 = vmatprep.subr.mxu0 0.0
    %1317 = vmatpush1.msra.mxu0 %v297
    %1318 = vmatprep.subr.mxu0 0.0
    %1319 = vmatpush1.msra.mxu0 %v298
    %1320 = vmatprep.subr.mxu0 0.0
    %1321 = vmatpush1.msra.mxu0 0.0
    %1322 = vmatprep.subr.mxu0 0.0
    %1323 = vmatpush1.msra.mxu0 0.0
    %1324 = vmatprep.subr.mxu0 0.0
    %1325 = vmatpush1.msra.mxu0 0.0
    %1326 = vmatprep.subr.mxu0 0.0
    %1327 = vmatpush1.msra.mxu0 0.0
    %1328 = vmatprep.subr.mxu0 0.0
    %1329 = vmatpush1.msra.mxu0 0.0
    %1330 = vmatprep.subr.mxu0 0.0
    %1331 = vmatpush1.msra.mxu0 0.0
    %1332 = vmatprep.subr.mxu0 0.0
    %1333 = vmatpush1.msra.mxu0 0.0
    %1334 = vmatprep.subr.mxu0 0.0
    %1335 = vmatpush1.msra.mxu0 0.0
    %1336 = vmatprep.subr.mxu0 0.0
    %1337 = vmatpush1.msra.mxu0 0.0
    %1338 = vmatprep.subr.mxu0 0.0
    %1339 = vmatpush1.msra.mxu0 0.0
    %1340 = vmatprep.subr.mxu0 0.0
    %1341 = vmatpush1.msra.mxu0 0.0
    %1342 = vmatprep.subr.mxu0 0.0
    %1343 = vmatpush1.msra.mxu0 0.0
    %1344 = vmatprep.subr.mxu0 0.0
    %1345 = vmatpush1.msra.mxu0 0.0
    %1346 = vmatprep.subr.mxu0 0.0
    %1347 = vmatpush1.msra.mxu0 0.0
    %1348 = vmatprep.subr.mxu0 0.0
    %1349 = vmatpush1.msra.mxu0 0.0
    %1350 = vmatprep.subr.mxu0 0.0
    %1351 = vmatpush1.msra.mxu0 0.0
    %1352 = vmatprep.subr.mxu0 0.0
    %1353 = vmatpush1.msra.mxu0 0.0
    %1354 = vmatprep.subr.mxu0 0.0
    %1355 = vmatpush1.msra.mxu0 0.0
    %1356 = vmatprep.subr.mxu0 0.0
    %1357 = vmatpush1.msra.mxu0 0.0
    %1358 = vmatprep.subr.mxu0 0.0
    %1359 = vmatpush1.msra.mxu0 0.0
    %1360 = vmatprep.subr.mxu0 0.0
    %1361 = vmatpush1.msra.mxu0 0.0
    %1362 = vmatprep.subr.mxu0 0.0
    %1363 = vmatpush1.msra.mxu0 0.0
    %1364 = vmatprep.subr.mxu0 0.0
    %1365 = vmatpush1.msra.mxu0 0.0
    %1366 = vmatprep.subr.mxu0 0.0
    %1367 = vmatpush1.msra.mxu0 0.0
    %1368 = vmatprep.subr.mxu0 0.0
    %1369 = vmatpush1.msra.mxu0 0.0
    %1370 = vmatprep.subr.mxu0 0.0
    %1371 = vmatpush1.msra.mxu0 0.0
    %1372 = vmatprep.subr.mxu0 0.0
    %1373 = vmatpush1.msra.mxu0 0.0
    %1374 = vmatprep.subr.mxu0 0.0
    %1375 = vmatpush1.msra.mxu0 0.0
    %1376 = vmatprep.mubr.f32.mxu0 0.0
    %1377 = vmatmul.mubr.f32.gmra.mrb[0].mxu0 %v1310
    %v1378 = vpop.f32.mrb[0].mxu0
    %v1379 = vadd.f32 %v405, %v1378
    %v1380 = vpop.f32.mrb[0].mxu0
    %1381 = vdwg.mxu0
    %1382 = vst [vmem:[%s1203] sm:$0x3] %v1379
    %s1383 = scalar_lea.vmem [#allocation2], 12
    %v1384 = vld [vmem:[%s1383] sm:$0x3]
    %1386 = vrot.lane.b32.xlu0 %v1305, 32
    %v1387 = vpop.permute.xlu0 %1386
    %v1388 = vsel %vm159, %v1387, 0
    %1390 = vmatprep.subr.mxu0 0.0
    %1391 = vmatpush1.msra.mxu0 %v291
    %1392 = vmatprep.subr.mxu0 0.0
    %1393 = vmatpush1.msra.mxu0 %v292
    %1394 = vmatprep.subr.mxu0 0.0
    %1395 = vmatpush1.msra.mxu0 %v293
    %1396 = vmatprep.subr.mxu0 0.0
    %1397 = vmatpush1.msra.mxu0 %v294
    %1398 = vmatprep.subr.mxu0 0.0
    %1399 = vmatpush1.msra.mxu0 0.0
    %1400 = vmatprep.subr.mxu0 0.0
    %1401 = vmatpush1.msra.mxu0 0.0
    %1402 = vmatprep.subr.mxu0 0.0
    %1403 = vmatpush1.msra.mxu0 0.0
    %1404 = vmatprep.subr.mxu0 0.0
    %1405 = vmatpush1.msra.mxu0 0.0
    %1406 = vmatprep.subr.mxu0 0.0
    %1407 = vmatpush1.msra.mxu0 0.0
    %1408 = vmatprep.subr.mxu0 0.0
    %1409 = vmatpush1.msra.mxu0 0.0
    %1410 = vmatprep.subr.mxu0 0.0
    %1411 = vmatpush1.msra.mxu0 0.0
    %1412 = vmatprep.subr.mxu0 0.0
    %1413 = vmatpush1.msra.mxu0 0.0
    %1414 = vmatprep.subr.mxu0 0.0
    %1415 = vmatpush1.msra.mxu0 0.0
    %1416 = vmatprep.subr.mxu0 0.0
    %1417 = vmatpush1.msra.mxu0 0.0
    %1418 = vmatprep.subr.mxu0 0.0
    %1419 = vmatpush1.msra.mxu0 0.0
    %1420 = vmatprep.subr.mxu0 0.0
    %1421 = vmatpush1.msra.mxu0 0.0
    %1422 = vmatprep.subr.mxu0 0.0
    %1423 = vmatpush1.msra.mxu0 0.0
    %1424 = vmatprep.subr.mxu0 0.0
    %1425 = vmatpush1.msra.mxu0 0.0
    %1426 = vmatprep.subr.mxu0 0.0
    %1427 = vmatpush1.msra.mxu0 0.0
    %1428 = vmatprep.subr.mxu0 0.0
    %1429 = vmatpush1.msra.mxu0 0.0
    %1430 = vmatprep.subr.mxu0 0.0
    %1431 = vmatpush1.msra.mxu0 0.0
    %1432 = vmatprep.subr.mxu0 0.0
    %1433 = vmatpush1.msra.mxu0 0.0
    %1434 = vmatprep.subr.mxu0 0.0
    %1435 = vmatpush1.msra.mxu0 0.0
    %1436 = vmatprep.subr.mxu0 0.0
    %1437 = vmatpush1.msra.mxu0 0.0
    %1438 = vmatprep.subr.mxu0 0.0
    %1439 = vmatpush1.msra.mxu0 0.0
    %1440 = vmatprep.subr.mxu0 0.0
    %1441 = vmatpush1.msra.mxu0 0.0
    %1442 = vmatprep.subr.mxu0 0.0
    %1443 = vmatpush1.msra.mxu0 0.0
    %1444 = vmatprep.subr.mxu0 0.0
    %1445 = vmatpush1.msra.mxu0 0.0
    %1446 = vmatprep.subr.mxu0 0.0
    %1447 = vmatpush1.msra.mxu0 0.0
    %1448 = vmatprep.subr.mxu0 0.0
    %1449 = vmatpush1.msra.mxu0 0.0
    %1450 = vmatprep.subr.mxu0 0.0
    %1451 = vmatpush1.msra.mxu0 0.0
    %1452 = vmatprep.subr.mxu0 0.0
    %1453 = vmatpush1.msra.mxu0 0.0
    %1454 = vmatprep.mubr.f32.mxu0 0.0
    %1455 = vmatmul.mubr.f32.gmra.mrb[0].mxu0 %v1388
    %v1456 = vpop.f32.mrb[0].mxu0
    %v1457 = vadd.f32 0.0, %v1456
    %v1458 = vpop.f32.mrb[0].mxu0
    %1459 = vdwg.mxu0
    %v1460 = vadd.f32 %v1384, %v1457
    %v1461 = vxor.u32 %v1460, 2147483648
    %v1462 = vmul.f32 %v1461, 1.442695
    %v1463 = vpow.pop %v1462
    %v1464 = vadd.f32 %v1463, 1.0
    %v1465 = vrcp.pop %v1464
    %v1466 = vmul.f32 1.0, %v1465
    %v1467 = vmul.f32 %v1466, 2.0
    %v1468 = vsub.f32 %v1467, 1.0
    %v1469 = vmul.f32 %v1466, %v1299
    %1471 = vrot.lane.b32.xlu0 %v1468, 64
    %v1472 = vpop.permute.xlu0 %1471
    %v1474 = vmul.f32 %v1466, %v1472
    %1476 = vrot.lane.b32.xlu0 %v1474, 32
    %v1477 = vpop.permute.xlu0 %1476
    %v1479 = vadd.f32 %v1469, %v1477
    %v1480 = vtanh.pop %v1479
    %1482 = vrot.lane.b32.xlu0 %v1480, 64
    %v1483 = vpop.permute.xlu0 %1482
    %v1485 = vmul.f32 %v1466, %v1483
    %v1486 = vmax.f32 %v1485, 0.0
    %1488 = vrot.lane.b32.xlu0 %v1486, 32
    %v1489 = vpop.permute.xlu0 %1488
    %v1490 = vsel %vm159, %v1489, 0
    %1492 = vmatprep.subr.mxu0 0.0
    %1493 = vmatpush1.msra.mxu0 %v295
    %1494 = vmatprep.subr.mxu0 0.0
    %1495 = vmatpush1.msra.mxu0 %v296
    %1496 = vmatprep.subr.mxu0 0.0
    %1497 = vmatpush1.msra.mxu0 %v297
    %1498 = vmatprep.subr.mxu0 0.0
    %1499 = vmatpush1.msra.mxu0 %v298
    %1500 = vmatprep.subr.mxu0 0.0
    %1501 = vmatpush1.msra.mxu0 0.0
    %1502 = vmatprep.subr.mxu0 0.0
    %1503 = vmatpush1.msra.mxu0 0.0
    %1504 = vmatprep.subr.mxu0 0.0
    %1505 = vmatpush1.msra.mxu0 0.0
    %1506 = vmatprep.subr.mxu0 0.0
    %1507 = vmatpush1.msra.mxu0 0.0
    %1508 = vmatprep.subr.mxu0 0.0
    %1509 = vmatpush1.msra.mxu0 0.0
    %1510 = vmatprep.subr.mxu0 0.0
    %1511 = vmatpush1.msra.mxu0 0.0
    %1512 = vmatprep.subr.mxu0 0.0
    %1513 = vmatpush1.msra.mxu0 0.0
    %1514 = vmatprep.subr.mxu0 0.0
    %1515 = vmatpush1.msra.mxu0 0.0
    %1516 = vmatprep.subr.mxu0 0.0
    %1517 = vmatpush1.msra.mxu0 0.0
    %1518 = vmatprep.subr.mxu0 0.0
    %1519 = vmatpush1.msra.mxu0 0.0
    %1520 = vmatprep.subr.mxu0 0.0
    %1521 = vmatpush1.msra.mxu0 0.0
    %1522 = vmatprep.subr.mxu0 0.0
    %1523 = vmatpush1.msra.mxu0 0.0
    %1524 = vmatprep.subr.mxu0 0.0
    %1525 = vmatpush1.msra.mxu0 0.0
    %1526 = vmatprep.subr.mxu0 0.0
    %1527 = vmatpush1.msra.mxu0 0.0
    %1528 = vmatprep.subr.mxu0 0.0
    %1529 = vmatpush1.msra.mxu0 0.0
    %1530 = vmatprep.subr.mxu0 0.0
    %1531 = vmatpush1.msra.mxu0 0.0
    %1532 = vmatprep.subr.mxu0 0.0
    %1533 = vmatpush1.msra.mxu0 0.0
    %1534 = vmatprep.subr.mxu0 0.0
    %1535 = vmatpush1.msra.mxu0 0.0
    %1536 = vmatprep.subr.mxu0 0.0
    %1537 = vmatpush1.msra.mxu0 0.0
    %1538 = vmatprep.subr.mxu0 0.0
    %1539 = vmatpush1.msra.mxu0 0.0
    %1540 = vmatprep.subr.mxu0 0.0
    %1541 = vmatpush1.msra.mxu0 0.0
    %1542 = vmatprep.subr.mxu0 0.0
    %1543 = vmatpush1.msra.mxu0 0.0
    %1544 = vmatprep.subr.mxu0 0.0
    %1545 = vmatpush1.msra.mxu0 0.0
    %1546 = vmatprep.subr.mxu0 0.0
    %1547 = vmatpush1.msra.mxu0 0.0
    %1548 = vmatprep.subr.mxu0 0.0
    %1549 = vmatpush1.msra.mxu0 0.0
    %1550 = vmatprep.subr.mxu0 0.0
    %1551 = vmatpush1.msra.mxu0 0.0
    %1552 = vmatprep.subr.mxu0 0.0
    %1553 = vmatpush1.msra.mxu0 0.0
    %1554 = vmatprep.subr.mxu0 0.0
    %1555 = vmatpush1.msra.mxu0 0.0
    %1556 = vmatprep.mubr.f32.mxu0 0.0
    %1557 = vmatmul.mubr.f32.gmra.mrb[0].mxu0 %v1490
    %v1558 = vpop.f32.mrb[0].mxu0
    %v1559 = vadd.f32 %v405, %v1558
    %v1560 = vpop.f32.mrb[0].mxu0
    %1561 = vdwg.mxu0
    %1562 = vst [vmem:[%s1383] sm:$0x3] %v1559
    %s1563 = scalar_lea.vmem [#allocation2], 14
    %v1564 = vld [vmem:[%s1563] sm:$0x3]
    %1566 = vrot.lane.b32.xlu0 %v1485, 32
    %v1567 = vpop.permute.xlu0 %1566
    %v1568 = vsel %vm159, %v1567, 0
    %1570 = vmatprep.subr.mxu0 0.0
    %1571 = vmatpush1.msra.mxu0 %v291
    %1572 = vmatprep.subr.mxu0 0.0
    %1573 = vmatpush1.msra.mxu0 %v292
    %1574 = vmatprep.subr.mxu0 0.0
    %1575 = vmatpush1.msra.mxu0 %v293
    %1576 = vmatprep.subr.mxu0 0.0
    %1577 = vmatpush1.msra.mxu0 %v294
    %1578 = vmatprep.subr.mxu0 0.0
    %1579 = vmatpush1.msra.mxu0 0.0
    %1580 = vmatprep.subr.mxu0 0.0
    %1581 = vmatpush1.msra.mxu0 0.0
    %1582 = vmatprep.subr.mxu0 0.0
    %1583 = vmatpush1.msra.mxu0 0.0
    %1584 = vmatprep.subr.mxu0 0.0
    %1585 = vmatpush1.msra.mxu0 0.0
    %1586 = vmatprep.subr.mxu0 0.0
    %1587 = vmatpush1.msra.mxu0 0.0
    %1588 = vmatprep.subr.mxu0 0.0
    %1589 = vmatpush1.msra.mxu0 0.0
    %1590 = vmatprep.subr.mxu0 0.0
    %1591 = vmatpush1.msra.mxu0 0.0
    %1592 = vmatprep.subr.mxu0 0.0
    %1593 = vmatpush1.msra.mxu0 0.0
    %1594 = vmatprep.subr.mxu0 0.0
    %1595 = vmatpush1.msra.mxu0 0.0
    %1596 = vmatprep.subr.mxu0 0.0
    %1597 = vmatpush1.msra.mxu0 0.0
    %1598 = vmatprep.subr.mxu0 0.0
    %1599 = vmatpush1.msra.mxu0 0.0
    %1600 = vmatprep.subr.mxu0 0.0
    %1601 = vmatpush1.msra.mxu0 0.0
    %1602 = vmatprep.subr.mxu0 0.0
    %1603 = vmatpush1.msra.mxu0 0.0
    %1604 = vmatprep.subr.mxu0 0.0
    %1605 = vmatpush1.msra.mxu0 0.0
    %1606 = vmatprep.subr.mxu0 0.0
    %1607 = vmatpush1.msra.mxu0 0.0
    %1608 = vmatprep.subr.mxu0 0.0
    %1609 = vmatpush1.msra.mxu0 0.0
    %1610 = vmatprep.subr.mxu0 0.0
    %1611 = vmatpush1.msra.mxu0 0.0
    %1612 = vmatprep.subr.mxu0 0.0
    %1613 = vmatpush1.msra.mxu0 0.0
    %1614 = vmatprep.subr.mxu0 0.0
    %1615 = vmatpush1.msra.mxu0 0.0
    %1616 = vmatprep.subr.mxu0 0.0
    %1617 = vmatpush1.msra.mxu0 0.0
    %1618 = vmatprep.subr.mxu0 0.0
    %1619 = vmatpush1.msra.mxu0 0.0
    %1620 = vmatprep.subr.mxu0 0.0
    %1621 = vmatpush1.msra.mxu0 0.0
    %1622 = vmatprep.subr.mxu0 0.0
    %1623 = vmatpush1.msra.mxu0 0.0
    %1624 = vmatprep.subr.mxu0 0.0
    %1625 = vmatpush1.msra.mxu0 0.0
    %1626 = vmatprep.subr.mxu0 0.0
    %1627 = vmatpush1.msra.mxu0 0.0
    %1628 = vmatprep.subr.mxu0 0.0
    %1629 = vmatpush1.msra.mxu0 0.0
    %1630 = vmatprep.subr.mxu0 0.0
    %1631 = vmatpush1.msra.mxu0 0.0
    %1632 = vmatprep.subr.mxu0 0.0
    %1633 = vmatpush1.msra.mxu0 0.0
    %1634 = vmatprep.mubr.f32.mxu0 0.0
    %1635 = vmatmul.mubr.f32.gmra.mrb[0].mxu0 %v1568
    %v1636 = vpop.f32.mrb[0].mxu0
    %v1637 = vadd.f32 0.0, %v1636
    %v1638 = vpop.f32.mrb[0].mxu0
    %1639 = vdwg.mxu0
    %v1640 = vadd.f32 %v1564, %v1637
    %v1641 = vxor.u32 %v1640, 2147483648
    %v1642 = vmul.f32 %v1641, 1.442695
    %v1643 = vpow.pop %v1642
    %v1644 = vadd.f32 %v1643, 1.0
    %v1645 = vrcp.pop %v1644
    %v1646 = vmul.f32 1.0, %v1645
    %v1647 = vmul.f32 %v1646, 2.0
    %v1648 = vsub.f32 %v1647, 1.0
    %v1649 = vmul.f32 %v1646, %v1479
    %1651 = vrot.lane.b32.xlu0 %v1648, 64
    %v1652 = vpop.permute.xlu0 %1651
    %v1654 = vmul.f32 %v1646, %v1652
    %1656 = vrot.lane.b32.xlu0 %v1654, 32
    %v1657 = vpop.permute.xlu0 %1656
    %v1659 = vadd.f32 %v1649, %v1657
    %v1660 = vtanh.pop %v1659
    %1662 = vrot.lane.b32.xlu0 %v1660, 64
    %v1663 = vpop.permute.xlu0 %1662
    %v1665 = vmul.f32 %v1646, %v1663
    %v1666 = vmax.f32 %v1665, 0.0
    %1668 = vrot.lane.b32.xlu0 %v1666, 32
    %v1669 = vpop.permute.xlu0 %1668
    %v1670 = vsel %vm159, %v1669, 0
    %1672 = vmatprep.subr.mxu0 0.0
    %1673 = vmatpush1.msra.mxu0 %v295
    %1674 = vmatprep.subr.mxu0 0.0
    %1675 = vmatpush1.msra.mxu0 %v296
    %1676 = vmatprep.subr.mxu0 0.0
    %1677 = vmatpush1.msra.mxu0 %v297
    %1678 = vmatprep.subr.mxu0 0.0
    %1679 = vmatpush1.msra.mxu0 %v298
    %1680 = vmatprep.subr.mxu0 0.0
    %1681 = vmatpush1.msra.mxu0 0.0
    %1682 = vmatprep.subr.mxu0 0.0
    %1683 = vmatpush1.msra.mxu0 0.0
    %1684 = vmatprep.subr.mxu0 0.0
    %1685 = vmatpush1.msra.mxu0 0.0
    %1686 = vmatprep.subr.mxu0 0.0
    %1687 = vmatpush1.msra.mxu0 0.0
    %1688 = vmatprep.subr.mxu0 0.0
    %1689 = vmatpush1.msra.mxu0 0.0
    %1690 = vmatprep.subr.mxu0 0.0
    %1691 = vmatpush1.msra.mxu0 0.0
    %1692 = vmatprep.subr.mxu0 0.0
    %1693 = vmatpush1.msra.mxu0 0.0
    %1694 = vmatprep.subr.mxu0 0.0
    %1695 = vmatpush1.msra.mxu0 0.0
    %1696 = vmatprep.subr.mxu0 0.0
    %1697 = vmatpush1.msra.mxu0 0.0
    %1698 = vmatprep.subr.mxu0 0.0
    %1699 = vmatpush1.msra.mxu0 0.0
    %1700 = vmatprep.subr.mxu0 0.0
    %1701 = vmatpush1.msra.mxu0 0.0
    %1702 = vmatprep.subr.mxu0 0.0
    %1703 = vmatpush1.msra.mxu0 0.0
    %1704 = vmatprep.subr.mxu0 0.0
    %1705 = vmatpush1.msra.mxu0 0.0
    %1706 = vmatprep.subr.mxu0 0.0
    %1707 = vmatpush1.msra.mxu0 0.0
    %1708 = vmatprep.subr.mxu0 0.0
    %1709 = vmatpush1.msra.mxu0 0.0
    %1710 = vmatprep.subr.mxu0 0.0
    %1711 = vmatpush1.msra.mxu0 0.0
    %1712 = vmatprep.subr.mxu0 0.0
    %1713 = vmatpush1.msra.mxu0 0.0
    %1714 = vmatprep.subr.mxu0 0.0
    %1715 = vmatpush1.msra.mxu0 0.0
    %1716 = vmatprep.subr.mxu0 0.0
    %1717 = vmatpush1.msra.mxu0 0.0
    %1718 = vmatprep.subr.mxu0 0.0
    %1719 = vmatpush1.msra.mxu0 0.0
    %1720 = vmatprep.subr.mxu0 0.0
    %1721 = vmatpush1.msra.mxu0 0.0
    %1722 = vmatprep.subr.mxu0 0.0
    %1723 = vmatpush1.msra.mxu0 0.0
    %1724 = vmatprep.subr.mxu0 0.0
    %1725 = vmatpush1.msra.mxu0 0.0
    %1726 = vmatprep.subr.mxu0 0.0
    %1727 = vmatpush1.msra.mxu0 0.0
    %1728 = vmatprep.subr.mxu0 0.0
    %1729 = vmatpush1.msra.mxu0 0.0
    %1730 = vmatprep.subr.mxu0 0.0
    %1731 = vmatpush1.msra.mxu0 0.0
    %1732 = vmatprep.subr.mxu0 0.0
    %1733 = vmatpush1.msra.mxu0 0.0
    %1734 = vmatprep.subr.mxu0 0.0
    %1735 = vmatpush1.msra.mxu0 0.0
    %1736 = vmatprep.mubr.f32.mxu0 0.0
    %1737 = vmatmul.mubr.f32.gmra.mrb[0].mxu0 %v1670
    %v1738 = vpop.f32.mrb[0].mxu0
    %v1739 = vadd.f32 %v405, %v1738
    %v1740 = vpop.f32.mrb[0].mxu0
    %1741 = vdwg.mxu0
    %1742 = vst [vmem:[%s1563] sm:$0x3] %v1739
    %s1743 = scalar_lea.vmem [#allocation8], 32
    %v1744 = vld [vmem:[%s1743] sm:$0xff]
    %v1745 = vld [vmem:[%s1743 + $0x8] sm:$0xff]
    %v1746 = vld [vmem:[%s1743 + $0x10] sm:$0xff]
    %v1747 = vld [vmem:[%s1743 + $0x18] sm:$0xff]
    %s1748 = scalar_lea.vmem [#allocation9], 32
    %v1749 = vld [vmem:[%s1748] sm:$0xff]
    %v1750 = vld [vmem:[%s1748 + $0x8] sm:$0xff]
    %v1751 = vld [vmem:[%s1748 + $0x10] sm:$0xff]
    %v1752 = vld [vmem:[%s1748 + $0x18] sm:$0xff]
    %s1753 = scalar_lea.vmem %s5, 1
    %v1754 = vld [vmem:[%s1753] sm:$0x1]
    %v1755 = vld [vmem:[#allocation2] sm:$0x3]
    %1757 = vrot.lane.b32.xlu0 %v1665, 32
    %v1758 = vpop.permute.xlu0 %1757
    %v1759 = vsel %vm159, %v1758, 0
    %1761 = vmatprep.subr.mxu0 0.0
    %1762 = vmatpush1.msra.mxu0 %v1744
    %1763 = vmatprep.subr.mxu0 0.0
    %1764 = vmatpush1.msra.mxu0 %v1745
    %1765 = vmatprep.subr.mxu0 0.0
    %1766 = vmatpush1.msra.mxu0 %v1746
    %1767 = vmatprep.subr.mxu0 0.0
    %1768 = vmatpush1.msra.mxu0 %v1747
    %1769 = vmatprep.subr.mxu0 0.0
    %1770 = vmatpush1.msra.mxu0 0.0
    %1771 = vmatprep.subr.mxu0 0.0
    %1772 = vmatpush1.msra.mxu0 0.0
    %1773 = vmatprep.subr.mxu0 0.0
    %1774 = vmatpush1.msra.mxu0 0.0
    %1775 = vmatprep.subr.mxu0 0.0
    %1776 = vmatpush1.msra.mxu0 0.0
    %1777 = vmatprep.subr.mxu0 0.0
    %1778 = vmatpush1.msra.mxu0 0.0
    %1779 = vmatprep.subr.mxu0 0.0
    %1780 = vmatpush1.msra.mxu0 0.0
    %1781 = vmatprep.subr.mxu0 0.0
    %1782 = vmatpush1.msra.mxu0 0.0
    %1783 = vmatprep.subr.mxu0 0.0
    %1784 = vmatpush1.msra.mxu0 0.0
    %1785 = vmatprep.subr.mxu0 0.0
    %1786 = vmatpush1.msra.mxu0 0.0
    %1787 = vmatprep.subr.mxu0 0.0
    %1788 = vmatpush1.msra.mxu0 0.0
    %1789 = vmatprep.subr.mxu0 0.0
    %1790 = vmatpush1.msra.mxu0 0.0
    %1791 = vmatprep.subr.mxu0 0.0
    %1792 = vmatpush1.msra.mxu0 0.0
    %1793 = vmatprep.subr.mxu0 0.0
    %1794 = vmatpush1.msra.mxu0 0.0
    %1795 = vmatprep.subr.mxu0 0.0
    %1796 = vmatpush1.msra.mxu0 0.0
    %1797 = vmatprep.subr.mxu0 0.0
    %1798 = vmatpush1.msra.mxu0 0.0
    %1799 = vmatprep.subr.mxu0 0.0
    %1800 = vmatpush1.msra.mxu0 0.0
    %1801 = vmatprep.subr.mxu0 0.0
    %1802 = vmatpush1.msra.mxu0 0.0
    %1803 = vmatprep.subr.mxu0 0.0
    %1804 = vmatpush1.msra.mxu0 0.0
    %1805 = vmatprep.subr.mxu0 0.0
    %1806 = vmatpush1.msra.mxu0 0.0
    %1807 = vmatprep.subr.mxu0 0.0
    %1808 = vmatpush1.msra.mxu0 0.0
    %1809 = vmatprep.subr.mxu0 0.0
    %1810 = vmatpush1.msra.mxu0 0.0
    %1811 = vmatprep.subr.mxu0 0.0
    %1812 = vmatpush1.msra.mxu0 0.0
    %1813 = vmatprep.subr.mxu0 0.0
    %1814 = vmatpush1.msra.mxu0 0.0
    %1815 = vmatprep.subr.mxu0 0.0
    %1816 = vmatpush1.msra.mxu0 0.0
    %1817 = vmatprep.subr.mxu0 0.0
    %1818 = vmatpush1.msra.mxu0 0.0
    %1819 = vmatprep.subr.mxu0 0.0
    %1820 = vmatpush1.msra.mxu0 0.0
    %1821 = vmatprep.subr.mxu0 0.0
    %1822 = vmatpush1.msra.mxu0 0.0
    %1823 = vmatprep.subr.mxu0 0.0
    %1824 = vmatpush1.msra.mxu0 0.0
    %1825 = vmatprep.mubr.f32.mxu0 0.0
    %1826 = vmatmul.mubr.f32.gmra.mrb[0].mxu0 %v1759
    %v1827 = vpop.f32.mrb[0].mxu0
    %v1828 = vadd.f32 0.0, %v1827
    %v1829 = vpop.f32.mrb[0].mxu0
    %1830 = vdwg.mxu0
    %v1831 = vadd.f32 %v1755, %v1828
    %v1832 = vxor.u32 %v1831, 2147483648
    %v1833 = vmul.f32 %v1832, 1.442695
    %v1834 = vpow.pop %v1833
    %v1835 = vadd.f32 %v1834, 1.0
    %v1836 = vrcp.pop %v1835
    %v1837 = vmul.f32 1.0, %v1836
    %v1838 = vmul.f32 %v1837, 2.0
    %v1839 = vsub.f32 %v1838, 1.0
    %v1840 = vmul.f32 %v1837, %v1659
    %1842 = vrot.lane.b32.xlu0 %v1839, 64
    %v1843 = vpop.permute.xlu0 %1842
    %v1845 = vmul.f32 %v1837, %v1843
    %1847 = vrot.lane.b32.xlu0 %v1845, 32
    %v1848 = vpop.permute.xlu0 %1847
    %v1850 = vadd.f32 %v1840, %v1848
    %v1851 = vtanh.pop %v1850
    %1853 = vrot.lane.b32.xlu0 %v1851, 64
    %v1854 = vpop.permute.xlu0 %1853
    %v1856 = vmul.f32 %v1837, %v1854
    %v1857 = vmax.f32 %v1856, 0.0
    %v1859 = vlaneseq
    %v1860 = vshrl.u32 %v1859, 7
    %v1861 = vsub.s32 0, %v1860
    %v1862 = vrot.slane %v1754, %v1861
    %1865 = vrot.lane.b32.xlu0 %v1857, 32
    %v1866 = vpop.permute.xlu0 %1865
    %v1867 = vsel %vm159, %v1866, 0
    %1869 = vmatprep.subr.mxu0 0.0
    %1870 = vmatpush1.msra.mxu0 %v1749
    %1871 = vmatprep.subr.mxu0 0.0
    %1872 = vmatpush1.msra.mxu0 %v1750
    %1873 = vmatprep.subr.mxu0 0.0
    %1874 = vmatpush1.msra.mxu0 %v1751
    %1875 = vmatprep.subr.mxu0 0.0
    %1876 = vmatpush1.msra.mxu0 %v1752
    %1877 = vmatprep.subr.mxu0 0.0
    %1878 = vmatpush1.msra.mxu0 0.0
    %1879 = vmatprep.subr.mxu0 0.0
    %1880 = vmatpush1.msra.mxu0 0.0
    %1881 = vmatprep.subr.mxu0 0.0
    %1882 = vmatpush1.msra.mxu0 0.0
    %1883 = vmatprep.subr.mxu0 0.0
    %1884 = vmatpush1.msra.mxu0 0.0
    %1885 = vmatprep.subr.mxu0 0.0
    %1886 = vmatpush1.msra.mxu0 0.0
    %1887 = vmatprep.subr.mxu0 0.0
    %1888 = vmatpush1.msra.mxu0 0.0
    %1889 = vmatprep.subr.mxu0 0.0
    %1890 = vmatpush1.msra.mxu0 0.0
    %1891 = vmatprep.subr.mxu0 0.0
    %1892 = vmatpush1.msra.mxu0 0.0
    %1893 = vmatprep.subr.mxu0 0.0
    %1894 = vmatpush1.msra.mxu0 0.0
    %1895 = vmatprep.subr.mxu0 0.0
    %1896 = vmatpush1.msra.mxu0 0.0
    %1897 = vmatprep.subr.mxu0 0.0
    %1898 = vmatpush1.msra.mxu0 0.0
    %1899 = vmatprep.subr.mxu0 0.0
    %1900 = vmatpush1.msra.mxu0 0.0
    %1901 = vmatprep.subr.mxu0 0.0
    %1902 = vmatpush1.msra.mxu0 0.0
    %1903 = vmatprep.subr.mxu0 0.0
    %1904 = vmatpush1.msra.mxu0 0.0
    %1905 = vmatprep.subr.mxu0 0.0
    %1906 = vmatpush1.msra.mxu0 0.0
    %1907 = vmatprep.subr.mxu0 0.0
    %1908 = vmatpush1.msra.mxu0 0.0
    %1909 = vmatprep.subr.mxu0 0.0
    %1910 = vmatpush1.msra.mxu0 0.0
    %1911 = vmatprep.subr.mxu0 0.0
    %1912 = vmatpush1.msra.mxu0 0.0
    %1913 = vmatprep.subr.mxu0 0.0
    %1914 = vmatpush1.msra.mxu0 0.0
    %1915 = vmatprep.subr.mxu0 0.0
    %1916 = vmatpush1.msra.mxu0 0.0
    %1917 = vmatprep.subr.mxu0 0.0
    %1918 = vmatpush1.msra.mxu0 0.0
    %1919 = vmatprep.subr.mxu0 0.0
    %1920 = vmatpush1.msra.mxu0 0.0
    %1921 = vmatprep.subr.mxu0 0.0
    %1922 = vmatpush1.msra.mxu0 0.0
    %1923 = vmatprep.subr.mxu0 0.0
    %1924 = vmatpush1.msra.mxu0 0.0
    %1925 = vmatprep.subr.mxu0 0.0
    %1926 = vmatpush1.msra.mxu0 0.0
    %1927 = vmatprep.subr.mxu0 0.0
    %1928 = vmatpush1.msra.mxu0 0.0
    %1929 = vmatprep.subr.mxu0 0.0
    %1930 = vmatpush1.msra.mxu0 0.0
    %1931 = vmatprep.subr.mxu0 0.0
    %1932 = vmatpush1.msra.mxu0 0.0
    %1933 = vmatprep.mubr.f32.mxu0 0.0
    %1934 = vmatmul.mubr.f32.gmra.mrb[0].mxu0 %v1867
    %v1935 = vpop.f32.mrb[0].mxu0
    %v1936 = vadd.f32 %v1862, %v1935
    %v1937 = vpop.f32.mrb[0].mxu0
    %1938 = vdwg.mxu0
    %1939 = vst [vmem:[#allocation2] sm:$0x3] %v1936
    %v1940 = vld [vmem:[%s483] sm:$0x3]
    %1942 = vrot.lane.b32.xlu0 %v1856, 32
    %v1943 = vpop.permute.xlu0 %1942
    %v1944 = vsel %vm159, %v1943, 0
    %1946 = vmatprep.subr.mxu0 0.0
    %1947 = vmatpush1.msra.mxu0 %v1744
    %1948 = vmatprep.subr.mxu0 0.0
    %1949 = vmatpush1.msra.mxu0 %v1745
    %1950 = vmatprep.subr.mxu0 0.0
    %1951 = vmatpush1.msra.mxu0 %v1746
    %1952 = vmatprep.subr.mxu0 0.0
    %1953 = vmatpush1.msra.mxu0 %v1747
    %1954 = vmatprep.subr.mxu0 0.0
    %1955 = vmatpush1.msra.mxu0 0.0
    %1956 = vmatprep.subr.mxu0 0.0
    %1957 = vmatpush1.msra.mxu0 0.0
    %1958 = vmatprep.subr.mxu0 0.0
    %1959 = vmatpush1.msra.mxu0 0.0
    %1960 = vmatprep.subr.mxu0 0.0
    %1961 = vmatpush1.msra.mxu0 0.0
    %1962 = vmatprep.subr.mxu0 0.0
    %1963 = vmatpush1.msra.mxu0 0.0
    %1964 = vmatprep.subr.mxu0 0.0
    %1965 = vmatpush1.msra.mxu0 0.0
    %1966 = vmatprep.subr.mxu0 0.0
    %1967 = vmatpush1.msra.mxu0 0.0
    %1968 = vmatprep.subr.mxu0 0.0
    %1969 = vmatpush1.msra.mxu0 0.0
    %1970 = vmatprep.subr.mxu0 0.0
    %1971 = vmatpush1.msra.mxu0 0.0
    %1972 = vmatprep.subr.mxu0 0.0
    %1973 = vmatpush1.msra.mxu0 0.0
    %1974 = vmatprep.subr.mxu0 0.0
    %1975 = vmatpush1.msra.mxu0 0.0
    %1976 = vmatprep.subr.mxu0 0.0
    %1977 = vmatpush1.msra.mxu0 0.0
    %1978 = vmatprep.subr.mxu0 0.0
    %1979 = vmatpush1.msra.mxu0 0.0
    %1980 = vmatprep.subr.mxu0 0.0
    %1981 = vmatpush1.msra.mxu0 0.0
    %1982 = vmatprep.subr.mxu0 0.0
    %1983 = vmatpush1.msra.mxu0 0.0
    %1984 = vmatprep.subr.mxu0 0.0
    %1985 = vmatpush1.msra.mxu0 0.0
    %1986 = vmatprep.subr.mxu0 0.0
    %1987 = vmatpush1.msra.mxu0 0.0
    %1988 = vmatprep.subr.mxu0 0.0
    %1989 = vmatpush1.msra.mxu0 0.0
    %1990 = vmatprep.subr.mxu0 0.0
    %1991 = vmatpush1.msra.mxu0 0.0
    %1992 = vmatprep.subr.mxu0 0.0
    %1993 = vmatpush1.msra.mxu0 0.0
    %1994 = vmatprep.subr.mxu0 0.0
    %1995 = vmatpush1.msra.mxu0 0.0
    %1996 = vmatprep.subr.mxu0 0.0
    %1997 = vmatpush1.msra.mxu0 0.0
    %1998 = vmatprep.subr.mxu0 0.0
    %1999 = vmatpush1.msra.mxu0 0.0
    %2000 = vmatprep.subr.mxu0 0.0
    %2001 = vmatpush1.msra.mxu0 0.0
    %2002 = vmatprep.subr.mxu0 0.0
    %2003 = vmatpush1.msra.mxu0 0.0
    %2004 = vmatprep.subr.mxu0 0.0
    %2005 = vmatpush1.msra.mxu0 0.0
    %2006 = vmatprep.subr.mxu0 0.0
    %2007 = vmatpush1.msra.mxu0 0.0
    %2008 = vmatprep.subr.mxu0 0.0
    %2009 = vmatpush1.msra.mxu0 0.0
    %2010 = vmatprep.mubr.f32.mxu0 0.0
    %2011 = vmatmul.mubr.f32.gmra.mrb[0].mxu0 %v1944
    %v2012 = vpop.f32.mrb[0].mxu0
    %v2013 = vadd.f32 0.0, %v2012
    %v2014 = vpop.f32.mrb[0].mxu0
    %2015 = vdwg.mxu0
    %v2016 = vadd.f32 %v1940, %v2013
    %v2017 = vxor.u32 %v2016, 2147483648
    %v2018 = vmul.f32 %v2017, 1.442695
    %v2019 = vpow.pop %v2018
    %v2020 = vadd.f32 %v2019, 1.0
    %v2021 = vrcp.pop %v2020
    %v2022 = vmul.f32 1.0, %v2021
    %v2023 = vmul.f32 %v2022, 2.0
    %v2024 = vsub.f32 %v2023, 1.0
    %v2025 = vmul.f32 %v2022, %v1850
    %2027 = vrot.lane.b32.xlu0 %v2024, 64
    %v2028 = vpop.permute.xlu0 %2027
    %v2030 = vmul.f32 %v2022, %v2028
    %2032 = vrot.lane.b32.xlu0 %v2030, 32
    %v2033 = vpop.permute.xlu0 %2032
    %v2035 = vadd.f32 %v2025, %v2033
    %v2036 = vtanh.pop %v2035
    %2038 = vrot.lane.b32.xlu0 %v2036, 64
    %v2039 = vpop.permute.xlu0 %2038
    %v2041 = vmul.f32 %v2022, %v2039
    %v2042 = vmax.f32 %v2041, 0.0
    %2044 = vrot.lane.b32.xlu0 %v2042, 32
    %v2045 = vpop.permute.xlu0 %2044
    %v2046 = vsel %vm159, %v2045, 0
    %2048 = vmatprep.subr.mxu0 0.0
    %2049 = vmatpush1.msra.mxu0 %v1749
    %2050 = vmatprep.subr.mxu0 0.0
    %2051 = vmatpush1.msra.mxu0 %v1750
    %2052 = vmatprep.subr.mxu0 0.0
    %2053 = vmatpush1.msra.mxu0 %v1751
    %2054 = vmatprep.subr.mxu0 0.0
    %2055 = vmatpush1.msra.mxu0 %v1752
    %2056 = vmatprep.subr.mxu0 0.0
    %2057 = vmatpush1.msra.mxu0 0.0
    %2058 = vmatprep.subr.mxu0 0.0
    %2059 = vmatpush1.msra.mxu0 0.0
    %2060 = vmatprep.subr.mxu0 0.0
    %2061 = vmatpush1.msra.mxu0 0.0
    %2062 = vmatprep.subr.mxu0 0.0
    %2063 = vmatpush1.msra.mxu0 0.0
    %2064 = vmatprep.subr.mxu0 0.0
    %2065 = vmatpush1.msra.mxu0 0.0
    %2066 = vmatprep.subr.mxu0 0.0
    %2067 = vmatpush1.msra.mxu0 0.0
    %2068 = vmatprep.subr.mxu0 0.0
    %2069 = vmatpush1.msra.mxu0 0.0
    %2070 = vmatprep.subr.mxu0 0.0
    %2071 = vmatpush1.msra.mxu0 0.0
    %2072 = vmatprep.subr.mxu0 0.0
    %2073 = vmatpush1.msra.mxu0 0.0
    %2074 = vmatprep.subr.mxu0 0.0
    %2075 = vmatpush1.msra.mxu0 0.0
    %2076 = vmatprep.subr.mxu0 0.0
    %2077 = vmatpush1.msra.mxu0 0.0
    %2078 = vmatprep.subr.mxu0 0.0
    %2079 = vmatpush1.msra.mxu0 0.0
    %2080 = vmatprep.subr.mxu0 0.0
    %2081 = vmatpush1.msra.mxu0 0.0
    %2082 = vmatprep.subr.mxu0 0.0
    %2083 = vmatpush1.msra.mxu0 0.0
    %2084 = vmatprep.subr.mxu0 0.0
    %2085 = vmatpush1.msra.mxu0 0.0
    %2086 = vmatprep.subr.mxu0 0.0
    %2087 = vmatpush1.msra.mxu0 0.0
    %2088 = vmatprep.subr.mxu0 0.0
    %2089 = vmatpush1.msra.mxu0 0.0
    %2090 = vmatprep.subr.mxu0 0.0
    %2091 = vmatpush1.msra.mxu0 0.0
    %2092 = vmatprep.subr.mxu0 0.0
    %2093 = vmatpush1.msra.mxu0 0.0
    %2094 = vmatprep.subr.mxu0 0.0
    %2095 = vmatpush1.msra.mxu0 0.0
    %2096 = vmatprep.subr.mxu0 0.0
    %2097 = vmatpush1.msra.mxu0 0.0
    %2098 = vmatprep.subr.mxu0 0.0
    %2099 = vmatpush1.msra.mxu0 0.0
    %2100 = vmatprep.subr.mxu0 0.0
    %2101 = vmatpush1.msra.mxu0 0.0
    %2102 = vmatprep.subr.mxu0 0.0
    %2103 = vmatpush1.msra.mxu0 0.0
    %2104 = vmatprep.subr.mxu0 0.0
    %2105 = vmatpush1.msra.mxu0 0.0
    %2106 = vmatprep.subr.mxu0 0.0
    %2107 = vmatpush1.msra.mxu0 0.0
    %2108 = vmatprep.subr.mxu0 0.0
    %2109 = vmatpush1.msra.mxu0 0.0
    %2110 = vmatprep.subr.mxu0 0.0
    %2111 = vmatpush1.msra.mxu0 0.0
    %2112 = vmatprep.mubr.f32.mxu0 0.0
    %2113 = vmatmul.mubr.f32.gmra.mrb[0].mxu0 %v2046
    %v2114 = vpop.f32.mrb[0].mxu0
    %v2115 = vadd.f32 %v1862, %v2114
    %v2116 = vpop.f32.mrb[0].mxu0
    %2117 = vdwg.mxu0
    %2118 = vst [vmem:[%s483] sm:$0x3] %v2115
    %v2119 = vld [vmem:[%s663] sm:$0x3]
    %2121 = vrot.lane.b32.xlu0 %v2041, 32
    %v2122 = vpop.permute.xlu0 %2121
    %v2123 = vsel %vm159, %v2122, 0
    %2125 = vmatprep.subr.mxu0 0.0
    %2126 = vmatpush1.msra.mxu0 %v1744
    %2127 = vmatprep.subr.mxu0 0.0
    %2128 = vmatpush1.msra.mxu0 %v1745
    %2129 = vmatprep.subr.mxu0 0.0
    %2130 = vmatpush1.msra.mxu0 %v1746
    %2131 = vmatprep.subr.mxu0 0.0
    %2132 = vmatpush1.msra.mxu0 %v1747
    %2133 = vmatprep.subr.mxu0 0.0
    %2134 = vmatpush1.msra.mxu0 0.0
    %2135 = vmatprep.subr.mxu0 0.0
    %2136 = vmatpush1.msra.mxu0 0.0
    %2137 = vmatprep.subr.mxu0 0.0
    %2138 = vmatpush1.msra.mxu0 0.0
    %2139 = vmatprep.subr.mxu0 0.0
    %2140 = vmatpush1.msra.mxu0 0.0
    %2141 = vmatprep.subr.mxu0 0.0
    %2142 = vmatpush1.msra.mxu0 0.0
    %2143 = vmatprep.subr.mxu0 0.0
    %2144 = vmatpush1.msra.mxu0 0.0
    %2145 = vmatprep.subr.mxu0 0.0
    %2146 = vmatpush1.msra.mxu0 0.0
    %2147 = vmatprep.subr.mxu0 0.0
    %2148 = vmatpush1.msra.mxu0 0.0
    %2149 = vmatprep.subr.mxu0 0.0
    %2150 = vmatpush1.msra.mxu0 0.0
    %2151 = vmatprep.subr.mxu0 0.0
    %2152 = vmatpush1.msra.mxu0 0.0
    %2153 = vmatprep.subr.mxu0 0.0
    %2154 = vmatpush1.msra.mxu0 0.0
    %2155 = vmatprep.subr.mxu0 0.0
    %2156 = vmatpush1.msra.mxu0 0.0
    %2157 = vmatprep.subr.mxu0 0.0
    %2158 = vmatpush1.msra.mxu0 0.0
    %2159 = vmatprep.subr.mxu0 0.0
    %2160 = vmatpush1.msra.mxu0 0.0
    %2161 = vmatprep.subr.mxu0 0.0
    %2162 = vmatpush1.msra.mxu0 0.0
    %2163 = vmatprep.subr.mxu0 0.0
    %2164 = vmatpush1.msra.mxu0 0.0
    %2165 = vmatprep.subr.mxu0 0.0
    %2166 = vmatpush1.msra.mxu0 0.0
    %2167 = vmatprep.subr.mxu0 0.0
    %2168 = vmatpush1.msra.mxu0 0.0
    %2169 = vmatprep.subr.mxu0 0.0
    %2170 = vmatpush1.msra.mxu0 0.0
    %2171 = vmatprep.subr.mxu0 0.0
    %2172 = vmatpush1.msra.mxu0 0.0
    %2173 = vmatprep.subr.mxu0 0.0
    %2174 = vmatpush1.msra.mxu0 0.0
    %2175 = vmatprep.subr.mxu0 0.0
    %2176 = vmatpush1.msra.mxu0 0.0
    %2177 = vmatprep.subr.mxu0 0.0
    %2178 = vmatpush1.msra.mxu0 0.0
    %2179 = vmatprep.subr.mxu0 0.0
    %2180 = vmatpush1.msra.mxu0 0.0
    %2181 = vmatprep.subr.mxu0 0.0
    %2182 = vmatpush1.msra.mxu0 0.0
    %2183 = vmatprep.subr.mxu0 0.0
    %2184 = vmatpush1.msra.mxu0 0.0
    %2185 = vmatprep.subr.mxu0 0.0
    %2186 = vmatpush1.msra.mxu0 0.0
    %2187 = vmatprep.subr.mxu0 0.0
    %2188 = vmatpush1.msra.mxu0 0.0
    %2189 = vmatprep.mubr.f32.mxu0 0.0
    %2190 = vmatmul.mubr.f32.gmra.mrb[0].mxu0 %v2123
    %v2191 = vpop.f32.mrb[0].mxu0
    %v2192 = vadd.f32 0.0, %v2191
    %v2193 = vpop.f32.mrb[0].mxu0
    %2194 = vdwg.mxu0
    %v2195 = vadd.f32 %v2119, %v2192
    %v2196 = vxor.u32 %v2195, 2147483648
    %v2197 = vmul.f32 %v2196, 1.442695
    %v2198 = vpow.pop %v2197
    %v2199 = vadd.f32 %v2198, 1.0
    %v2200 = vrcp.pop %v2199
    %v2201 = vmul.f32 1.0, %v2200
    %v2202 = vmul.f32 %v2201, 2.0
    %v2203 = vsub.f32 %v2202, 1.0
    %v2204 = vmul.f32 %v2201, %v2035
    %2206 = vrot.lane.b32.xlu0 %v2203, 64
    %v2207 = vpop.permute.xlu0 %2206
    %v2209 = vmul.f32 %v2201, %v2207
    %2211 = vrot.lane.b32.xlu0 %v2209, 32
    %v2212 = vpop.permute.xlu0 %2211
    %v2214 = vadd.f32 %v2204, %v2212
    %v2215 = vtanh.pop %v2214
    %2217 = vrot.lane.b32.xlu0 %v2215, 64
    %v2218 = vpop.permute.xlu0 %2217
    %v2220 = vmul.f32 %v2201, %v2218
    %v2221 = vmax.f32 %v2220, 0.0
    %2223 = vrot.lane.b32.xlu0 %v2221, 32
    %v2224 = vpop.permute.xlu0 %2223
    %v2225 = vsel %vm159, %v2224, 0
    %2227 = vmatprep.subr.mxu0 0.0
    %2228 = vmatpush1.msra.mxu0 %v1749
    %2229 = vmatprep.subr.mxu0 0.0
    %2230 = vmatpush1.msra.mxu0 %v1750
    %2231 = vmatprep.subr.mxu0 0.0
    %2232 = vmatpush1.msra.mxu0 %v1751
    %2233 = vmatprep.subr.mxu0 0.0
    %2234 = vmatpush1.msra.mxu0 %v1752
    %2235 = vmatprep.subr.mxu0 0.0
    %2236 = vmatpush1.msra.mxu0 0.0
    %2237 = vmatprep.subr.mxu0 0.0
    %2238 = vmatpush1.msra.mxu0 0.0
    %2239 = vmatprep.subr.mxu0 0.0
    %2240 = vmatpush1.msra.mxu0 0.0
    %2241 = vmatprep.subr.mxu0 0.0
    %2242 = vmatpush1.msra.mxu0 0.0
    %2243 = vmatprep.subr.mxu0 0.0
    %2244 = vmatpush1.msra.mxu0 0.0
    %2245 = vmatprep.subr.mxu0 0.0
    %2246 = vmatpush1.msra.mxu0 0.0
    %2247 = vmatprep.subr.mxu0 0.0
    %2248 = vmatpush1.msra.mxu0 0.0
    %2249 = vmatprep.subr.mxu0 0.0
    %2250 = vmatpush1.msra.mxu0 0.0
    %2251 = vmatprep.subr.mxu0 0.0
    %2252 = vmatpush1.msra.mxu0 0.0
    %2253 = vmatprep.subr.mxu0 0.0
    %2254 = vmatpush1.msra.mxu0 0.0
    %2255 = vmatprep.subr.mxu0 0.0
    %2256 = vmatpush1.msra.mxu0 0.0
    %2257 = vmatprep.subr.mxu0 0.0
    %2258 = vmatpush1.msra.mxu0 0.0
    %2259 = vmatprep.subr.mxu0 0.0
    %2260 = vmatpush1.msra.mxu0 0.0
    %2261 = vmatprep.subr.mxu0 0.0
    %2262 = vmatpush1.msra.mxu0 0.0
    %2263 = vmatprep.subr.mxu0 0.0
    %2264 = vmatpush1.msra.mxu0 0.0
    %2265 = vmatprep.subr.mxu0 0.0
    %2266 = vmatpush1.msra.mxu0 0.0
    %2267 = vmatprep.subr.mxu0 0.0
    %2268 = vmatpush1.msra.mxu0 0.0
    %2269 = vmatprep.subr.mxu0 0.0
    %2270 = vmatpush1.msra.mxu0 0.0
    %2271 = vmatprep.subr.mxu0 0.0
    %2272 = vmatpush1.msra.mxu0 0.0
    %2273 = vmatprep.subr.mxu0 0.0
    %2274 = vmatpush1.msra.mxu0 0.0
    %2275 = vmatprep.subr.mxu0 0.0
    %2276 = vmatpush1.msra.mxu0 0.0
    %2277 = vmatprep.subr.mxu0 0.0
    %2278 = vmatpush1.msra.mxu0 0.0
    %2279 = vmatprep.subr.mxu0 0.0
    %2280 = vmatpush1.msra.mxu0 0.0
    %2281 = vmatprep.subr.mxu0 0.0
    %2282 = vmatpush1.msra.mxu0 0.0
    %2283 = vmatprep.subr.mxu0 0.0
    %2284 = vmatpush1.msra.mxu0 0.0
    %2285 = vmatprep.subr.mxu0 0.0
    %2286 = vmatpush1.msra.mxu0 0.0
    %2287 = vmatprep.subr.mxu0 0.0
    %2288 = vmatpush1.msra.mxu0 0.0
    %2289 = vmatprep.subr.mxu0 0.0
    %2290 = vmatpush1.msra.mxu0 0.0
    %2291 = vmatprep.mubr.f32.mxu0 0.0
    %2292 = vmatmul.mubr.f32.gmra.mrb[0].mxu0 %v2225
    %v2293 = vpop.f32.mrb[0].mxu0
    %v2294 = vadd.f32 %v1862, %v2293
    %v2295 = vpop.f32.mrb[0].mxu0
    %2296 = vdwg.mxu0
    %2297 = vst [vmem:[%s663] sm:$0x3] %v2294
    %v2298 = vld [vmem:[%s843] sm:$0x3]
    %2300 = vrot.lane.b32.xlu0 %v2220, 32
    %v2301 = vpop.permute.xlu0 %2300
    %v2302 = vsel %vm159, %v2301, 0
    %2304 = vmatprep.subr.mxu0 0.0
    %2305 = vmatpush1.msra.mxu0 %v1744
    %2306 = vmatprep.subr.mxu0 0.0
    %2307 = vmatpush1.msra.mxu0 %v1745
    %2308 = vmatprep.subr.mxu0 0.0
    %2309 = vmatpush1.msra.mxu0 %v1746
    %2310 = vmatprep.subr.mxu0 0.0
    %2311 = vmatpush1.msra.mxu0 %v1747
    %2312 = vmatprep.subr.mxu0 0.0
    %2313 = vmatpush1.msra.mxu0 0.0
    %2314 = vmatprep.subr.mxu0 0.0
    %2315 = vmatpush1.msra.mxu0 0.0
    %2316 = vmatprep.subr.mxu0 0.0
    %2317 = vmatpush1.msra.mxu0 0.0
    %2318 = vmatprep.subr.mxu0 0.0
    %2319 = vmatpush1.msra.mxu0 0.0
    %2320 = vmatprep.subr.mxu0 0.0
    %2321 = vmatpush1.msra.mxu0 0.0
    %2322 = vmatprep.subr.mxu0 0.0
    %2323 = vmatpush1.msra.mxu0 0.0
    %2324 = vmatprep.subr.mxu0 0.0
    %2325 = vmatpush1.msra.mxu0 0.0
    %2326 = vmatprep.subr.mxu0 0.0
    %2327 = vmatpush1.msra.mxu0 0.0
    %2328 = vmatprep.subr.mxu0 0.0
    %2329 = vmatpush1.msra.mxu0 0.0
    %2330 = vmatprep.subr.mxu0 0.0
    %2331 = vmatpush1.msra.mxu0 0.0
    %2332 = vmatprep.subr.mxu0 0.0
    %2333 = vmatpush1.msra.mxu0 0.0
    %2334 = vmatprep.subr.mxu0 0.0
    %2335 = vmatpush1.msra.mxu0 0.0
    %2336 = vmatprep.subr.mxu0 0.0
    %2337 = vmatpush1.msra.mxu0 0.0
    %2338 = vmatprep.subr.mxu0 0.0
    %2339 = vmatpush1.msra.mxu0 0.0
    %2340 = vmatprep.subr.mxu0 0.0
    %2341 = vmatpush1.msra.mxu0 0.0
    %2342 = vmatprep.subr.mxu0 0.0
    %2343 = vmatpush1.msra.mxu0 0.0
    %2344 = vmatprep.subr.mxu0 0.0
    %2345 = vmatpush1.msra.mxu0 0.0
    %2346 = vmatprep.subr.mxu0 0.0
    %2347 = vmatpush1.msra.mxu0 0.0
    %2348 = vmatprep.subr.mxu0 0.0
    %2349 = vmatpush1.msra.mxu0 0.0
    %2350 = vmatprep.subr.mxu0 0.0
    %2351 = vmatpush1.msra.mxu0 0.0
    %2352 = vmatprep.subr.mxu0 0.0
    %2353 = vmatpush1.msra.mxu0 0.0
    %2354 = vmatprep.subr.mxu0 0.0
    %2355 = vmatpush1.msra.mxu0 0.0
    %2356 = vmatprep.subr.mxu0 0.0
    %2357 = vmatpush1.msra.mxu0 0.0
    %2358 = vmatprep.subr.mxu0 0.0
    %2359 = vmatpush1.msra.mxu0 0.0
    %2360 = vmatprep.subr.mxu0 0.0
    %2361 = vmatpush1.msra.mxu0 0.0
    %2362 = vmatprep.subr.mxu0 0.0
    %2363 = vmatpush1.msra.mxu0 0.0
    %2364 = vmatprep.subr.mxu0 0.0
    %2365 = vmatpush1.msra.mxu0 0.0
    %2366 = vmatprep.subr.mxu0 0.0
    %2367 = vmatpush1.msra.mxu0 0.0
    %2368 = vmatprep.mubr.f32.mxu0 0.0
    %2369 = vmatmul.mubr.f32.gmra.mrb[0].mxu0 %v2302
    %v2370 = vpop.f32.mrb[0].mxu0
    %v2371 = vadd.f32 0.0, %v2370
    %v2372 = vpop.f32.mrb[0].mxu0
    %2373 = vdwg.mxu0
    %v2374 = vadd.f32 %v2298, %v2371
    %v2375 = vxor.u32 %v2374, 2147483648
    %v2376 = vmul.f32 %v2375, 1.442695
    %v2377 = vpow.pop %v2376
    %v2378 = vadd.f32 %v2377, 1.0
    %v2379 = vrcp.pop %v2378
    %v2380 = vmul.f32 1.0, %v2379
    %v2381 = vmul.f32 %v2380, 2.0
    %v2382 = vsub.f32 %v2381, 1.0
    %v2383 = vmul.f32 %v2380, %v2214
    %2385 = vrot.lane.b32.xlu0 %v2382, 64
    %v2386 = vpop.permute.xlu0 %2385
    %v2388 = vmul.f32 %v2380, %v2386
    %2390 = vrot.lane.b32.xlu0 %v2388, 32
    %v2391 = vpop.permute.xlu0 %2390
    %v2393 = vadd.f32 %v2383, %v2391
    %v2394 = vtanh.pop %v2393
    %2396 = vrot.lane.b32.xlu0 %v2394, 64
    %v2397 = vpop.permute.xlu0 %2396
    %v2399 = vmul.f32 %v2380, %v2397
    %v2400 = vmax.f32 %v2399, 0.0
    %2402 = vrot.lane.b32.xlu0 %v2400, 32
    %v2403 = vpop.permute.xlu0 %2402
    %v2404 = vsel %vm159, %v2403, 0
    %2406 = vmatprep.subr.mxu0 0.0
    %2407 = vmatpush1.msra.mxu0 %v1749
    %2408 = vmatprep.subr.mxu0 0.0
    %2409 = vmatpush1.msra.mxu0 %v1750
    %2410 = vmatprep.subr.mxu0 0.0
    %2411 = vmatpush1.msra.mxu0 %v1751
    %2412 = vmatprep.subr.mxu0 0.0
    %2413 = vmatpush1.msra.mxu0 %v1752
    %2414 = vmatprep.subr.mxu0 0.0
    %2415 = vmatpush1.msra.mxu0 0.0
    %2416 = vmatprep.subr.mxu0 0.0
    %2417 = vmatpush1.msra.mxu0 0.0
    %2418 = vmatprep.subr.mxu0 0.0
    %2419 = vmatpush1.msra.mxu0 0.0
    %2420 = vmatprep.subr.mxu0 0.0
    %2421 = vmatpush1.msra.mxu0 0.0
    %2422 = vmatprep.subr.mxu0 0.0
    %2423 = vmatpush1.msra.mxu0 0.0
    %2424 = vmatprep.subr.mxu0 0.0
    %2425 = vmatpush1.msra.mxu0 0.0
    %2426 = vmatprep.subr.mxu0 0.0
    %2427 = vmatpush1.msra.mxu0 0.0
    %2428 = vmatprep.subr.mxu0 0.0
    %2429 = vmatpush1.msra.mxu0 0.0
    %2430 = vmatprep.subr.mxu0 0.0
    %2431 = vmatpush1.msra.mxu0 0.0
    %2432 = vmatprep.subr.mxu0 0.0
    %2433 = vmatpush1.msra.mxu0 0.0
    %2434 = vmatprep.subr.mxu0 0.0
    %2435 = vmatpush1.msra.mxu0 0.0
    %2436 = vmatprep.subr.mxu0 0.0
    %2437 = vmatpush1.msra.mxu0 0.0
    %2438 = vmatprep.subr.mxu0 0.0
    %2439 = vmatpush1.msra.mxu0 0.0
    %2440 = vmatprep.subr.mxu0 0.0
    %2441 = vmatpush1.msra.mxu0 0.0
    %2442 = vmatprep.subr.mxu0 0.0
    %2443 = vmatpush1.msra.mxu0 0.0
    %2444 = vmatprep.subr.mxu0 0.0
    %2445 = vmatpush1.msra.mxu0 0.0
    %2446 = vmatprep.subr.mxu0 0.0
    %2447 = vmatpush1.msra.mxu0 0.0
    %2448 = vmatprep.subr.mxu0 0.0
    %2449 = vmatpush1.msra.mxu0 0.0
    %2450 = vmatprep.subr.mxu0 0.0
    %2451 = vmatpush1.msra.mxu0 0.0
    %2452 = vmatprep.subr.mxu0 0.0
    %2453 = vmatpush1.msra.mxu0 0.0
    %2454 = vmatprep.subr.mxu0 0.0
    %2455 = vmatpush1.msra.mxu0 0.0
    %2456 = vmatprep.subr.mxu0 0.0
    %2457 = vmatpush1.msra.mxu0 0.0
    %2458 = vmatprep.subr.mxu0 0.0
    %2459 = vmatpush1.msra.mxu0 0.0
    %2460 = vmatprep.subr.mxu0 0.0
    %2461 = vmatpush1.msra.mxu0 0.0
    %2462 = vmatprep.subr.mxu0 0.0
    %2463 = vmatpush1.msra.mxu0 0.0
    %2464 = vmatprep.subr.mxu0 0.0
    %2465 = vmatpush1.msra.mxu0 0.0
    %2466 = vmatprep.subr.mxu0 0.0
    %2467 = vmatpush1.msra.mxu0 0.0
    %2468 = vmatprep.subr.mxu0 0.0
    %2469 = vmatpush1.msra.mxu0 0.0
    %2470 = vmatprep.mubr.f32.mxu0 0.0
    %2471 = vmatmul.mubr.f32.gmra.mrb[0].mxu0 %v2404
    %v2472 = vpop.f32.mrb[0].mxu0
    %v2473 = vadd.f32 %v1862, %v2472
    %v2474 = vpop.f32.mrb[0].mxu0
    %2475 = vdwg.mxu0
    %2476 = vst [vmem:[%s843] sm:$0x3] %v2473
    %v2477 = vld [vmem:[%s1023] sm:$0x3]
    %2479 = vrot.lane.b32.xlu0 %v2399, 32
    %v2480 = vpop.permute.xlu0 %2479
    %v2481 = vsel %vm159, %v2480, 0
    %2483 = vmatprep.subr.mxu0 0.0
    %2484 = vmatpush1.msra.mxu0 %v1744
    %2485 = vmatprep.subr.mxu0 0.0
    %2486 = vmatpush1.msra.mxu0 %v1745
    %2487 = vmatprep.subr.mxu0 0.0
    %2488 = vmatpush1.msra.mxu0 %v1746
    %2489 = vmatprep.subr.mxu0 0.0
    %2490 = vmatpush1.msra.mxu0 %v1747
    %2491 = vmatprep.subr.mxu0 0.0
    %2492 = vmatpush1.msra.mxu0 0.0
    %2493 = vmatprep.subr.mxu0 0.0
    %2494 = vmatpush1.msra.mxu0 0.0
    %2495 = vmatprep.subr.mxu0 0.0
    %2496 = vmatpush1.msra.mxu0 0.0
    %2497 = vmatprep.subr.mxu0 0.0
    %2498 = vmatpush1.msra.mxu0 0.0
    %2499 = vmatprep.subr.mxu0 0.0
    %2500 = vmatpush1.msra.mxu0 0.0
    %2501 = vmatprep.subr.mxu0 0.0
    %2502 = vmatpush1.msra.mxu0 0.0
    %2503 = vmatprep.subr.mxu0 0.0
    %2504 = vmatpush1.msra.mxu0 0.0
    %2505 = vmatprep.subr.mxu0 0.0
    %2506 = vmatpush1.msra.mxu0 0.0
    %2507 = vmatprep.subr.mxu0 0.0
    %2508 = vmatpush1.msra.mxu0 0.0
    %2509 = vmatprep.subr.mxu0 0.0
    %2510 = vmatpush1.msra.mxu0 0.0
    %2511 = vmatprep.subr.mxu0 0.0
    %2512 = vmatpush1.msra.mxu0 0.0
    %2513 = vmatprep.subr.mxu0 0.0
    %2514 = vmatpush1.msra.mxu0 0.0
    %2515 = vmatprep.subr.mxu0 0.0
    %2516 = vmatpush1.msra.mxu0 0.0
    %2517 = vmatprep.subr.mxu0 0.0
    %2518 = vmatpush1.msra.mxu0 0.0
    %2519 = vmatprep.subr.mxu0 0.0
    %2520 = vmatpush1.msra.mxu0 0.0
    %2521 = vmatprep.subr.mxu0 0.0
    %2522 = vmatpush1.msra.mxu0 0.0
    %2523 = vmatprep.subr.mxu0 0.0
    %2524 = vmatpush1.msra.mxu0 0.0
    %2525 = vmatprep.subr.mxu0 0.0
    %2526 = vmatpush1.msra.mxu0 0.0
    %2527 = vmatprep.subr.mxu0 0.0
    %2528 = vmatpush1.msra.mxu0 0.0
    %2529 = vmatprep.subr.mxu0 0.0
    %2530 = vmatpush1.msra.mxu0 0.0
    %2531 = vmatprep.subr.mxu0 0.0
    %2532 = vmatpush1.msra.mxu0 0.0
    %2533 = vmatprep.subr.mxu0 0.0
    %2534 = vmatpush1.msra.mxu0 0.0
    %2535 = vmatprep.subr.mxu0 0.0
    %2536 = vmatpush1.msra.mxu0 0.0
    %2537 = vmatprep.subr.mxu0 0.0
    %2538 = vmatpush1.msra.mxu0 0.0
    %2539 = vmatprep.subr.mxu0 0.0
    %2540 = vmatpush1.msra.mxu0 0.0
    %2541 = vmatprep.subr.mxu0 0.0
    %2542 = vmatpush1.msra.mxu0 0.0
    %2543 = vmatprep.subr.mxu0 0.0
    %2544 = vmatpush1.msra.mxu0 0.0
    %2545 = vmatprep.subr.mxu0 0.0
    %2546 = vmatpush1.msra.mxu0 0.0
    %2547 = vmatprep.mubr.f32.mxu0 0.0
    %2548 = vmatmul.mubr.f32.gmra.mrb[0].mxu0 %v2481
    %v2549 = vpop.f32.mrb[0].mxu0
    %v2550 = vadd.f32 0.0, %v2549
    %v2551 = vpop.f32.mrb[0].mxu0
    %2552 = vdwg.mxu0
    %v2553 = vadd.f32 %v2477, %v2550
    %v2554 = vxor.u32 %v2553, 2147483648
    %v2555 = vmul.f32 %v2554, 1.442695
    %v2556 = vpow.pop %v2555
    %v2557 = vadd.f32 %v2556, 1.0
    %v2558 = vrcp.pop %v2557
    %v2559 = vmul.f32 1.0, %v2558
    %v2560 = vmul.f32 %v2559, 2.0
    %v2561 = vsub.f32 %v2560, 1.0
    %v2562 = vmul.f32 %v2559, %v2393
    %2564 = vrot.lane.b32.xlu0 %v2561, 64
    %v2565 = vpop.permute.xlu0 %2564
    %v2567 = vmul.f32 %v2559, %v2565
    %2569 = vrot.lane.b32.xlu0 %v2567, 32
    %v2570 = vpop.permute.xlu0 %2569
    %v2572 = vadd.f32 %v2562, %v2570
    %v2573 = vtanh.pop %v2572
    %2575 = vrot.lane.b32.xlu0 %v2573, 64
    %v2576 = vpop.permute.xlu0 %2575
    %v2578 = vmul.f32 %v2559, %v2576
    %v2579 = vmax.f32 %v2578, 0.0
    %2581 = vrot.lane.b32.xlu0 %v2579, 32
    %v2582 = vpop.permute.xlu0 %2581
    %v2583 = vsel %vm159, %v2582, 0
    %2585 = vmatprep.subr.mxu0 0.0
    %2586 = vmatpush1.msra.mxu0 %v1749
    %2587 = vmatprep.subr.mxu0 0.0
    %2588 = vmatpush1.msra.mxu0 %v1750
    %2589 = vmatprep.subr.mxu0 0.0
    %2590 = vmatpush1.msra.mxu0 %v1751
    %2591 = vmatprep.subr.mxu0 0.0
    %2592 = vmatpush1.msra.mxu0 %v1752
    %2593 = vmatprep.subr.mxu0 0.0
    %2594 = vmatpush1.msra.mxu0 0.0
    %2595 = vmatprep.subr.mxu0 0.0
    %2596 = vmatpush1.msra.mxu0 0.0
    %2597 = vmatprep.subr.mxu0 0.0
    %2598 = vmatpush1.msra.mxu0 0.0
    %2599 = vmatprep.subr.mxu0 0.0
    %2600 = vmatpush1.msra.mxu0 0.0
    %2601 = vmatprep.subr.mxu0 0.0
    %2602 = vmatpush1.msra.mxu0 0.0
    %2603 = vmatprep.subr.mxu0 0.0
    %2604 = vmatpush1.msra.mxu0 0.0
    %2605 = vmatprep.subr.mxu0 0.0
    %2606 = vmatpush1.msra.mxu0 0.0
    %2607 = vmatprep.subr.mxu0 0.0
    %2608 = vmatpush1.msra.mxu0 0.0
    %2609 = vmatprep.subr.mxu0 0.0
    %2610 = vmatpush1.msra.mxu0 0.0
    %2611 = vmatprep.subr.mxu0 0.0
    %2612 = vmatpush1.msra.mxu0 0.0
    %2613 = vmatprep.subr.mxu0 0.0
    %2614 = vmatpush1.msra.mxu0 0.0
    %2615 = vmatprep.subr.mxu0 0.0
    %2616 = vmatpush1.msra.mxu0 0.0
    %2617 = vmatprep.subr.mxu0 0.0
    %2618 = vmatpush1.msra.mxu0 0.0
    %2619 = vmatprep.subr.mxu0 0.0
    %2620 = vmatpush1.msra.mxu0 0.0
    %2621 = vmatprep.subr.mxu0 0.0
    %2622 = vmatpush1.msra.mxu0 0.0
    %2623 = vmatprep.subr.mxu0 0.0
    %2624 = vmatpush1.msra.mxu0 0.0
    %2625 = vmatprep.subr.mxu0 0.0
    %2626 = vmatpush1.msra.mxu0 0.0
    %2627 = vmatprep.subr.mxu0 0.0
    %2628 = vmatpush1.msra.mxu0 0.0
    %2629 = vmatprep.subr.mxu0 0.0
    %2630 = vmatpush1.msra.mxu0 0.0
    %2631 = vmatprep.subr.mxu0 0.0
    %2632 = vmatpush1.msra.mxu0 0.0
    %2633 = vmatprep.subr.mxu0 0.0
    %2634 = vmatpush1.msra.mxu0 0.0
    %2635 = vmatprep.subr.mxu0 0.0
    %2636 = vmatpush1.msra.mxu0 0.0
    %2637 = vmatprep.subr.mxu0 0.0
    %2638 = vmatpush1.msra.mxu0 0.0
    %2639 = vmatprep.subr.mxu0 0.0
    %2640 = vmatpush1.msra.mxu0 0.0
    %2641 = vmatprep.subr.mxu0 0.0
    %2642 = vmatpush1.msra.mxu0 0.0
    %2643 = vmatprep.subr.mxu0 0.0
    %2644 = vmatpush1.msra.mxu0 0.0
    %2645 = vmatprep.subr.mxu0 0.0
    %2646 = vmatpush1.msra.mxu0 0.0
    %2647 = vmatprep.subr.mxu0 0.0
    %2648 = vmatpush1.msra.mxu0 0.0
    %2649 = vmatprep.mubr.f32.mxu0 0.0
    %2650 = vmatmul.mubr.f32.gmra.mrb[0].mxu0 %v2583
    %v2651 = vpop.f32.mrb[0].mxu0
    %v2652 = vadd.f32 %v1862, %v2651
    %v2653 = vpop.f32.mrb[0].mxu0
    %2654 = vdwg.mxu0
    %2655 = vst [vmem:[%s1023] sm:$0x3] %v2652
    %v2656 = vld [vmem:[%s1203] sm:$0x3]
    %2658 = vrot.lane.b32.xlu0 %v2578, 32
    %v2659 = vpop.permute.xlu0 %2658
    %v2660 = vsel %vm159, %v2659, 0
    %2662 = vmatprep.subr.mxu0 0.0
    %2663 = vmatpush1.msra.mxu0 %v1744
    %2664 = vmatprep.subr.mxu0 0.0
    %2665 = vmatpush1.msra.mxu0 %v1745
    %2666 = vmatprep.subr.mxu0 0.0
    %2667 = vmatpush1.msra.mxu0 %v1746
    %2668 = vmatprep.subr.mxu0 0.0
    %2669 = vmatpush1.msra.mxu0 %v1747
    %2670 = vmatprep.subr.mxu0 0.0
    %2671 = vmatpush1.msra.mxu0 0.0
    %2672 = vmatprep.subr.mxu0 0.0
    %2673 = vmatpush1.msra.mxu0 0.0
    %2674 = vmatprep.subr.mxu0 0.0
    %2675 = vmatpush1.msra.mxu0 0.0
    %2676 = vmatprep.subr.mxu0 0.0
    %2677 = vmatpush1.msra.mxu0 0.0
    %2678 = vmatprep.subr.mxu0 0.0
    %2679 = vmatpush1.msra.mxu0 0.0
    %2680 = vmatprep.subr.mxu0 0.0
    %2681 = vmatpush1.msra.mxu0 0.0
    %2682 = vmatprep.subr.mxu0 0.0
    %2683 = vmatpush1.msra.mxu0 0.0
    %2684 = vmatprep.subr.mxu0 0.0
    %2685 = vmatpush1.msra.mxu0 0.0
    %2686 = vmatprep.subr.mxu0 0.0
    %2687 = vmatpush1.msra.mxu0 0.0
    %2688 = vmatprep.subr.mxu0 0.0
    %2689 = vmatpush1.msra.mxu0 0.0
    %2690 = vmatprep.subr.mxu0 0.0
    %2691 = vmatpush1.msra.mxu0 0.0
    %2692 = vmatprep.subr.mxu0 0.0
    %2693 = vmatpush1.msra.mxu0 0.0
    %2694 = vmatprep.subr.mxu0 0.0
    %2695 = vmatpush1.msra.mxu0 0.0
    %2696 = vmatprep.subr.mxu0 0.0
    %2697 = vmatpush1.msra.mxu0 0.0
    %2698 = vmatprep.subr.mxu0 0.0
    %2699 = vmatpush1.msra.mxu0 0.0
    %2700 = vmatprep.subr.mxu0 0.0
    %2701 = vmatpush1.msra.mxu0 0.0
    %2702 = vmatprep.subr.mxu0 0.0
    %2703 = vmatpush1.msra.mxu0 0.0
    %2704 = vmatprep.subr.mxu0 0.0
    %2705 = vmatpush1.msra.mxu0 0.0
    %2706 = vmatprep.subr.mxu0 0.0
    %2707 = vmatpush1.msra.mxu0 0.0
    %2708 = vmatprep.subr.mxu0 0.0
    %2709 = vmatpush1.msra.mxu0 0.0
    %2710 = vmatprep.subr.mxu0 0.0
    %2711 = vmatpush1.msra.mxu0 0.0
    %2712 = vmatprep.subr.mxu0 0.0
    %2713 = vmatpush1.msra.mxu0 0.0
    %2714 = vmatprep.subr.mxu0 0.0
    %2715 = vmatpush1.msra.mxu0 0.0
    %2716 = vmatprep.subr.mxu0 0.0
    %2717 = vmatpush1.msra.mxu0 0.0
    %2718 = vmatprep.subr.mxu0 0.0
    %2719 = vmatpush1.msra.mxu0 0.0
    %2720 = vmatprep.subr.mxu0 0.0
    %2721 = vmatpush1.msra.mxu0 0.0
    %2722 = vmatprep.subr.mxu0 0.0
    %2723 = vmatpush1.msra.mxu0 0.0
    %2724 = vmatprep.subr.mxu0 0.0
    %2725 = vmatpush1.msra.mxu0 0.0
    %2726 = vmatprep.mubr.f32.mxu0 0.0
    %2727 = vmatmul.mubr.f32.gmra.mrb[0].mxu0 %v2660
    %v2728 = vpop.f32.mrb[0].mxu0
    %v2729 = vadd.f32 0.0, %v2728
    %v2730 = vpop.f32.mrb[0].mxu0
    %2731 = vdwg.mxu0
    %v2732 = vadd.f32 %v2656, %v2729
    %v2733 = vxor.u32 %v2732, 2147483648
    %v2734 = vmul.f32 %v2733, 1.442695
    %v2735 = vpow.pop %v2734
    %v2736 = vadd.f32 %v2735, 1.0
    %v2737 = vrcp.pop %v2736
    %v2738 = vmul.f32 1.0, %v2737
    %v2739 = vmul.f32 %v2738, 2.0
    %v2740 = vsub.f32 %v2739, 1.0
    %v2741 = vmul.f32 %v2738, %v2572
    %2743 = vrot.lane.b32.xlu0 %v2740, 64
    %v2744 = vpop.permute.xlu0 %2743
    %v2746 = vmul.f32 %v2738, %v2744
    %2748 = vrot.lane.b32.xlu0 %v2746, 32
    %v2749 = vpop.permute.xlu0 %2748
    %v2751 = vadd.f32 %v2741, %v2749
    %v2752 = vtanh.pop %v2751
    %2754 = vrot.lane.b32.xlu0 %v2752, 64
    %v2755 = vpop.permute.xlu0 %2754
    %v2757 = vmul.f32 %v2738, %v2755
    %v2758 = vmax.f32 %v2757, 0.0
    %2760 = vrot.lane.b32.xlu0 %v2758, 32
    %v2761 = vpop.permute.xlu0 %2760
    %v2762 = vsel %vm159, %v2761, 0
    %2764 = vmatprep.subr.mxu0 0.0
    %2765 = vmatpush1.msra.mxu0 %v1749
    %2766 = vmatprep.subr.mxu0 0.0
    %2767 = vmatpush1.msra.mxu0 %v1750
    %2768 = vmatprep.subr.mxu0 0.0
    %2769 = vmatpush1.msra.mxu0 %v1751
    %2770 = vmatprep.subr.mxu0 0.0
    %2771 = vmatpush1.msra.mxu0 %v1752
    %2772 = vmatprep.subr.mxu0 0.0
    %2773 = vmatpush1.msra.mxu0 0.0
    %2774 = vmatprep.subr.mxu0 0.0
    %2775 = vmatpush1.msra.mxu0 0.0
    %2776 = vmatprep.subr.mxu0 0.0
    %2777 = vmatpush1.msra.mxu0 0.0
    %2778 = vmatprep.subr.mxu0 0.0
    %2779 = vmatpush1.msra.mxu0 0.0
    %2780 = vmatprep.subr.mxu0 0.0
    %2781 = vmatpush1.msra.mxu0 0.0
    %2782 = vmatprep.subr.mxu0 0.0
    %2783 = vmatpush1.msra.mxu0 0.0
    %2784 = vmatprep.subr.mxu0 0.0
    %2785 = vmatpush1.msra.mxu0 0.0
    %2786 = vmatprep.subr.mxu0 0.0
    %2787 = vmatpush1.msra.mxu0 0.0
    %2788 = vmatprep.subr.mxu0 0.0
    %2789 = vmatpush1.msra.mxu0 0.0
    %2790 = vmatprep.subr.mxu0 0.0
    %2791 = vmatpush1.msra.mxu0 0.0
    %2792 = vmatprep.subr.mxu0 0.0
    %2793 = vmatpush1.msra.mxu0 0.0
    %2794 = vmatprep.subr.mxu0 0.0
    %2795 = vmatpush1.msra.mxu0 0.0
    %2796 = vmatprep.subr.mxu0 0.0
    %2797 = vmatpush1.msra.mxu0 0.0
    %2798 = vmatprep.subr.mxu0 0.0
    %2799 = vmatpush1.msra.mxu0 0.0
    %2800 = vmatprep.subr.mxu0 0.0
    %2801 = vmatpush1.msra.mxu0 0.0
    %2802 = vmatprep.subr.mxu0 0.0
    %2803 = vmatpush1.msra.mxu0 0.0
    %2804 = vmatprep.subr.mxu0 0.0
    %2805 = vmatpush1.msra.mxu0 0.0
    %2806 = vmatprep.subr.mxu0 0.0
    %2807 = vmatpush1.msra.mxu0 0.0
    %2808 = vmatprep.subr.mxu0 0.0
    %2809 = vmatpush1.msra.mxu0 0.0
    %2810 = vmatprep.subr.mxu0 0.0
    %2811 = vmatpush1.msra.mxu0 0.0
    %2812 = vmatprep.subr.mxu0 0.0
    %2813 = vmatpush1.msra.mxu0 0.0
    %2814 = vmatprep.subr.mxu0 0.0
    %2815 = vmatpush1.msra.mxu0 0.0
    %2816 = vmatprep.subr.mxu0 0.0
    %2817 = vmatpush1.msra.mxu0 0.0
    %2818 = vmatprep.subr.mxu0 0.0
    %2819 = vmatpush1.msra.mxu0 0.0
    %2820 = vmatprep.subr.mxu0 0.0
    %2821 = vmatpush1.msra.mxu0 0.0
    %2822 = vmatprep.subr.mxu0 0.0
    %2823 = vmatpush1.msra.mxu0 0.0
    %2824 = vmatprep.subr.mxu0 0.0
    %2825 = vmatpush1.msra.mxu0 0.0
    %2826 = vmatprep.subr.mxu0 0.0
    %2827 = vmatpush1.msra.mxu0 0.0
    %2828 = vmatprep.mubr.f32.mxu0 0.0
    %2829 = vmatmul.mubr.f32.gmra.mrb[0].mxu0 %v2762
    %v2830 = vpop.f32.mrb[0].mxu0
    %v2831 = vadd.f32 %v1862, %v2830
    %v2832 = vpop.f32.mrb[0].mxu0
    %2833 = vdwg.mxu0
    %2834 = vst [vmem:[%s1203] sm:$0x3] %v2831
    %v2835 = vld [vmem:[%s1383] sm:$0x3]
    %2837 = vrot.lane.b32.xlu0 %v2757, 32
    %v2838 = vpop.permute.xlu0 %2837
    %v2839 = vsel %vm159, %v2838, 0
    %2841 = vmatprep.subr.mxu0 0.0
    %2842 = vmatpush1.msra.mxu0 %v1744
    %2843 = vmatprep.subr.mxu0 0.0
    %2844 = vmatpush1.msra.mxu0 %v1745
    %2845 = vmatprep.subr.mxu0 0.0
    %2846 = vmatpush1.msra.mxu0 %v1746
    %2847 = vmatprep.subr.mxu0 0.0
    %2848 = vmatpush1.msra.mxu0 %v1747
    %2849 = vmatprep.subr.mxu0 0.0
    %2850 = vmatpush1.msra.mxu0 0.0
    %2851 = vmatprep.subr.mxu0 0.0
    %2852 = vmatpush1.msra.mxu0 0.0
    %2853 = vmatprep.subr.mxu0 0.0
    %2854 = vmatpush1.msra.mxu0 0.0
    %2855 = vmatprep.subr.mxu0 0.0
    %2856 = vmatpush1.msra.mxu0 0.0
    %2857 = vmatprep.subr.mxu0 0.0
    %2858 = vmatpush1.msra.mxu0 0.0
    %2859 = vmatprep.subr.mxu0 0.0
    %2860 = vmatpush1.msra.mxu0 0.0
    %2861 = vmatprep.subr.mxu0 0.0
    %2862 = vmatpush1.msra.mxu0 0.0
    %2863 = vmatprep.subr.mxu0 0.0
    %2864 = vmatpush1.msra.mxu0 0.0
    %2865 = vmatprep.subr.mxu0 0.0
    %2866 = vmatpush1.msra.mxu0 0.0
    %2867 = vmatprep.subr.mxu0 0.0
    %2868 = vmatpush1.msra.mxu0 0.0
    %2869 = vmatprep.subr.mxu0 0.0
    %2870 = vmatpush1.msra.mxu0 0.0
    %2871 = vmatprep.subr.mxu0 0.0
    %2872 = vmatpush1.msra.mxu0 0.0
    %2873 = vmatprep.subr.mxu0 0.0
    %2874 = vmatpush1.msra.mxu0 0.0
    %2875 = vmatprep.subr.mxu0 0.0
    %2876 = vmatpush1.msra.mxu0 0.0
    %2877 = vmatprep.subr.mxu0 0.0
    %2878 = vmatpush1.msra.mxu0 0.0
    %2879 = vmatprep.subr.mxu0 0.0
    %2880 = vmatpush1.msra.mxu0 0.0
    %2881 = vmatprep.subr.mxu0 0.0
    %2882 = vmatpush1.msra.mxu0 0.0
    %2883 = vmatprep.subr.mxu0 0.0
    %2884 = vmatpush1.msra.mxu0 0.0
    %2885 = vmatprep.subr.mxu0 0.0
    %2886 = vmatpush1.msra.mxu0 0.0
    %2887 = vmatprep.subr.mxu0 0.0
    %2888 = vmatpush1.msra.mxu0 0.0
    %2889 = vmatprep.subr.mxu0 0.0
    %2890 = vmatpush1.msra.mxu0 0.0
    %2891 = vmatprep.subr.mxu0 0.0
    %2892 = vmatpush1.msra.mxu0 0.0
    %2893 = vmatprep.subr.mxu0 0.0
    %2894 = vmatpush1.msra.mxu0 0.0
    %2895 = vmatprep.subr.mxu0 0.0
    %2896 = vmatpush1.msra.mxu0 0.0
    %2897 = vmatprep.subr.mxu0 0.0
    %2898 = vmatpush1.msra.mxu0 0.0
    %2899 = vmatprep.subr.mxu0 0.0
    %2900 = vmatpush1.msra.mxu0 0.0
    %2901 = vmatprep.subr.mxu0 0.0
    %2902 = vmatpush1.msra.mxu0 0.0
    %2903 = vmatprep.subr.mxu0 0.0
    %2904 = vmatpush1.msra.mxu0 0.0
    %2905 = vmatprep.mubr.f32.mxu0 0.0
    %2906 = vmatmul.mubr.f32.gmra.mrb[0].mxu0 %v2839
    %v2907 = vpop.f32.mrb[0].mxu0
    %v2908 = vadd.f32 0.0, %v2907
    %v2909 = vpop.f32.mrb[0].mxu0
    %2910 = vdwg.mxu0
    %v2911 = vadd.f32 %v2835, %v2908
    %v2912 = vxor.u32 %v2911, 2147483648
    %v2913 = vmul.f32 %v2912, 1.442695
    %v2914 = vpow.pop %v2913
    %v2915 = vadd.f32 %v2914, 1.0
    %v2916 = vrcp.pop %v2915
    %v2917 = vmul.f32 1.0, %v2916
    %v2918 = vmul.f32 %v2917, 2.0
    %v2919 = vsub.f32 %v2918, 1.0
    %v2920 = vmul.f32 %v2917, %v2751
    %2922 = vrot.lane.b32.xlu0 %v2919, 64
    %v2923 = vpop.permute.xlu0 %2922
    %v2925 = vmul.f32 %v2917, %v2923
    %2927 = vrot.lane.b32.xlu0 %v2925, 32
    %v2928 = vpop.permute.xlu0 %2927
    %v2930 = vadd.f32 %v2920, %v2928
    %v2931 = vtanh.pop %v2930
    %2933 = vrot.lane.b32.xlu0 %v2931, 64
    %v2934 = vpop.permute.xlu0 %2933
    %v2936 = vmul.f32 %v2917, %v2934
    %v2937 = vmax.f32 %v2936, 0.0
    %2939 = vrot.lane.b32.xlu0 %v2937, 32
    %v2940 = vpop.permute.xlu0 %2939
    %v2941 = vsel %vm159, %v2940, 0
    %2943 = vmatprep.subr.mxu0 0.0
    %2944 = vmatpush1.msra.mxu0 %v1749
    %2945 = vmatprep.subr.mxu0 0.0
    %2946 = vmatpush1.msra.mxu0 %v1750
    %2947 = vmatprep.subr.mxu0 0.0
    %2948 = vmatpush1.msra.mxu0 %v1751
    %2949 = vmatprep.subr.mxu0 0.0
    %2950 = vmatpush1.msra.mxu0 %v1752
    %2951 = vmatprep.subr.mxu0 0.0
    %2952 = vmatpush1.msra.mxu0 0.0
    %2953 = vmatprep.subr.mxu0 0.0
    %2954 = vmatpush1.msra.mxu0 0.0
    %2955 = vmatprep.subr.mxu0 0.0
    %2956 = vmatpush1.msra.mxu0 0.0
    %2957 = vmatprep.subr.mxu0 0.0
    %2958 = vmatpush1.msra.mxu0 0.0
    %2959 = vmatprep.subr.mxu0 0.0
    %2960 = vmatpush1.msra.mxu0 0.0
    %2961 = vmatprep.subr.mxu0 0.0
    %2962 = vmatpush1.msra.mxu0 0.0
    %2963 = vmatprep.subr.mxu0 0.0
    %2964 = vmatpush1.msra.mxu0 0.0
    %2965 = vmatprep.subr.mxu0 0.0
    %2966 = vmatpush1.msra.mxu0 0.0
    %2967 = vmatprep.subr.mxu0 0.0
    %2968 = vmatpush1.msra.mxu0 0.0
    %2969 = vmatprep.subr.mxu0 0.0
    %2970 = vmatpush1.msra.mxu0 0.0
    %2971 = vmatprep.subr.mxu0 0.0
    %2972 = vmatpush1.msra.mxu0 0.0
    %2973 = vmatprep.subr.mxu0 0.0
    %2974 = vmatpush1.msra.mxu0 0.0
    %2975 = vmatprep.subr.mxu0 0.0
    %2976 = vmatpush1.msra.mxu0 0.0
    %2977 = vmatprep.subr.mxu0 0.0
    %2978 = vmatpush1.msra.mxu0 0.0
    %2979 = vmatprep.subr.mxu0 0.0
    %2980 = vmatpush1.msra.mxu0 0.0
    %2981 = vmatprep.subr.mxu0 0.0
    %2982 = vmatpush1.msra.mxu0 0.0
    %2983 = vmatprep.subr.mxu0 0.0
    %2984 = vmatpush1.msra.mxu0 0.0
    %2985 = vmatprep.subr.mxu0 0.0
    %2986 = vmatpush1.msra.mxu0 0.0
    %2987 = vmatprep.subr.mxu0 0.0
    %2988 = vmatpush1.msra.mxu0 0.0
    %2989 = vmatprep.subr.mxu0 0.0
    %2990 = vmatpush1.msra.mxu0 0.0
    %2991 = vmatprep.subr.mxu0 0.0
    %2992 = vmatpush1.msra.mxu0 0.0
    %2993 = vmatprep.subr.mxu0 0.0
    %2994 = vmatpush1.msra.mxu0 0.0
    %2995 = vmatprep.subr.mxu0 0.0
    %2996 = vmatpush1.msra.mxu0 0.0
    %2997 = vmatprep.subr.mxu0 0.0
    %2998 = vmatpush1.msra.mxu0 0.0
    %2999 = vmatprep.subr.mxu0 0.0
    %3000 = vmatpush1.msra.mxu0 0.0
    %3001 = vmatprep.subr.mxu0 0.0
    %3002 = vmatpush1.msra.mxu0 0.0
    %3003 = vmatprep.subr.mxu0 0.0
    %3004 = vmatpush1.msra.mxu0 0.0
    %3005 = vmatprep.subr.mxu0 0.0
    %3006 = vmatpush1.msra.mxu0 0.0
    %3007 = vmatprep.mubr.f32.mxu0 0.0
    %3008 = vmatmul.mubr.f32.gmra.mrb[0].mxu0 %v2941
    %v3009 = vpop.f32.mrb[0].mxu0
    %v3010 = vadd.f32 %v1862, %v3009
    %v3011 = vpop.f32.mrb[0].mxu0
    %3012 = vdwg.mxu0
    %3013 = vst [vmem:[%s1383] sm:$0x3] %v3010
    %v3014 = vld [vmem:[%s1563] sm:$0x3]
    %3016 = vrot.lane.b32.xlu0 %v2936, 32
    %v3017 = vpop.permute.xlu0 %3016
    %v3018 = vsel %vm159, %v3017, 0
    %3020 = vmatprep.subr.mxu0 0.0
    %3021 = vmatpush1.msra.mxu0 %v1744
    %3022 = vmatprep.subr.mxu0 0.0
    %3023 = vmatpush1.msra.mxu0 %v1745
    %3024 = vmatprep.subr.mxu0 0.0
    %3025 = vmatpush1.msra.mxu0 %v1746
    %3026 = vmatprep.subr.mxu0 0.0
    %3027 = vmatpush1.msra.mxu0 %v1747
    %3028 = vmatprep.subr.mxu0 0.0
    %3029 = vmatpush1.msra.mxu0 0.0
    %3030 = vmatprep.subr.mxu0 0.0
    %3031 = vmatpush1.msra.mxu0 0.0
    %3032 = vmatprep.subr.mxu0 0.0
    %3033 = vmatpush1.msra.mxu0 0.0
    %3034 = vmatprep.subr.mxu0 0.0
    %3035 = vmatpush1.msra.mxu0 0.0
    %3036 = vmatprep.subr.mxu0 0.0
    %3037 = vmatpush1.msra.mxu0 0.0
    %3038 = vmatprep.subr.mxu0 0.0
    %3039 = vmatpush1.msra.mxu0 0.0
    %3040 = vmatprep.subr.mxu0 0.0
    %3041 = vmatpush1.msra.mxu0 0.0
    %3042 = vmatprep.subr.mxu0 0.0
    %3043 = vmatpush1.msra.mxu0 0.0
    %3044 = vmatprep.subr.mxu0 0.0
    %3045 = vmatpush1.msra.mxu0 0.0
    %3046 = vmatprep.subr.mxu0 0.0
    %3047 = vmatpush1.msra.mxu0 0.0
    %3048 = vmatprep.subr.mxu0 0.0
    %3049 = vmatpush1.msra.mxu0 0.0
    %3050 = vmatprep.subr.mxu0 0.0
    %3051 = vmatpush1.msra.mxu0 0.0
    %3052 = vmatprep.subr.mxu0 0.0
    %3053 = vmatpush1.msra.mxu0 0.0
    %3054 = vmatprep.subr.mxu0 0.0
    %3055 = vmatpush1.msra.mxu0 0.0
    %3056 = vmatprep.subr.mxu0 0.0
    %3057 = vmatpush1.msra.mxu0 0.0
    %3058 = vmatprep.subr.mxu0 0.0
    %3059 = vmatpush1.msra.mxu0 0.0
    %3060 = vmatprep.subr.mxu0 0.0
    %3061 = vmatpush1.msra.mxu0 0.0
    %3062 = vmatprep.subr.mxu0 0.0
    %3063 = vmatpush1.msra.mxu0 0.0
    %3064 = vmatprep.subr.mxu0 0.0
    %3065 = vmatpush1.msra.mxu0 0.0
    %3066 = vmatprep.subr.mxu0 0.0
    %3067 = vmatpush1.msra.mxu0 0.0
    %3068 = vmatprep.subr.mxu0 0.0
    %3069 = vmatpush1.msra.mxu0 0.0
    %3070 = vmatprep.subr.mxu0 0.0
    %3071 = vmatpush1.msra.mxu0 0.0
    %3072 = vmatprep.subr.mxu0 0.0
    %3073 = vmatpush1.msra.mxu0 0.0
    %3074 = vmatprep.subr.mxu0 0.0
    %3075 = vmatpush1.msra.mxu0 0.0
    %3076 = vmatprep.subr.mxu0 0.0
    %3077 = vmatpush1.msra.mxu0 0.0
    %3078 = vmatprep.subr.mxu0 0.0
    %3079 = vmatpush1.msra.mxu0 0.0
    %3080 = vmatprep.subr.mxu0 0.0
    %3081 = vmatpush1.msra.mxu0 0.0
    %3082 = vmatprep.subr.mxu0 0.0
    %3083 = vmatpush1.msra.mxu0 0.0
    %3084 = vmatprep.mubr.f32.mxu0 0.0
    %3085 = vmatmul.mubr.f32.gmra.mrb[0].mxu0 %v3018
    %v3086 = vpop.f32.mrb[0].mxu0
    %v3087 = vadd.f32 0.0, %v3086
    %v3088 = vpop.f32.mrb[0].mxu0
    %3089 = vdwg.mxu0
    %v3090 = vadd.f32 %v3014, %v3087
    %v3091 = vxor.u32 %v3090, 2147483648
    %v3092 = vmul.f32 %v3091, 1.442695
    %v3093 = vpow.pop %v3092
    %v3094 = vadd.f32 %v3093, 1.0
    %v3095 = vrcp.pop %v3094
    %v3096 = vmul.f32 1.0, %v3095
    %v3097 = vmul.f32 %v3096, 2.0
    %v3098 = vsub.f32 %v3097, 1.0
    %v3099 = vmul.f32 %v3096, %v2930
    %3101 = vrot.lane.b32.xlu0 %v3098, 64
    %v3102 = vpop.permute.xlu0 %3101
    %v3104 = vmul.f32 %v3096, %v3102
    %3106 = vrot.lane.b32.xlu0 %v3104, 32
    %v3107 = vpop.permute.xlu0 %3106
    %v3109 = vadd.f32 %v3099, %v3107
    %v3110 = vtanh.pop %v3109
    %3112 = vrot.lane.b32.xlu0 %v3110, 64
    %v3113 = vpop.permute.xlu0 %3112
    %v3115 = vmul.f32 %v3096, %v3113
    %v3116 = vmax.f32 %v3115, 0.0
    %3118 = vrot.lane.b32.xlu0 %v3116, 32
    %v3119 = vpop.permute.xlu0 %3118
    %v3120 = vsel %vm159, %v3119, 0
    %3122 = vmatprep.subr.mxu0 0.0
    %3123 = vmatpush1.msra.mxu0 %v1749
    %3124 = vmatprep.subr.mxu0 0.0
    %3125 = vmatpush1.msra.mxu0 %v1750
    %3126 = vmatprep.subr.mxu0 0.0
    %3127 = vmatpush1.msra.mxu0 %v1751
    %3128 = vmatprep.subr.mxu0 0.0
    %3129 = vmatpush1.msra.mxu0 %v1752
    %3130 = vmatprep.subr.mxu0 0.0
    %3131 = vmatpush1.msra.mxu0 0.0
    %3132 = vmatprep.subr.mxu0 0.0
    %3133 = vmatpush1.msra.mxu0 0.0
    %3134 = vmatprep.subr.mxu0 0.0
    %3135 = vmatpush1.msra.mxu0 0.0
    %3136 = vmatprep.subr.mxu0 0.0
    %3137 = vmatpush1.msra.mxu0 0.0
    %3138 = vmatprep.subr.mxu0 0.0
    %3139 = vmatpush1.msra.mxu0 0.0
    %3140 = vmatprep.subr.mxu0 0.0
    %3141 = vmatpush1.msra.mxu0 0.0
    %3142 = vmatprep.subr.mxu0 0.0
    %3143 = vmatpush1.msra.mxu0 0.0
    %3144 = vmatprep.subr.mxu0 0.0
    %3145 = vmatpush1.msra.mxu0 0.0
    %3146 = vmatprep.subr.mxu0 0.0
    %3147 = vmatpush1.msra.mxu0 0.0
    %3148 = vmatprep.subr.mxu0 0.0
    %3149 = vmatpush1.msra.mxu0 0.0
    %3150 = vmatprep.subr.mxu0 0.0
    %3151 = vmatpush1.msra.mxu0 0.0
    %3152 = vmatprep.subr.mxu0 0.0
    %3153 = vmatpush1.msra.mxu0 0.0
    %3154 = vmatprep.subr.mxu0 0.0
    %3155 = vmatpush1.msra.mxu0 0.0
    %3156 = vmatprep.subr.mxu0 0.0
    %3157 = vmatpush1.msra.mxu0 0.0
    %3158 = vmatprep.subr.mxu0 0.0
    %3159 = vmatpush1.msra.mxu0 0.0
    %3160 = vmatprep.subr.mxu0 0.0
    %3161 = vmatpush1.msra.mxu0 0.0
    %3162 = vmatprep.subr.mxu0 0.0
    %3163 = vmatpush1.msra.mxu0 0.0
    %3164 = vmatprep.subr.mxu0 0.0
    %3165 = vmatpush1.msra.mxu0 0.0
    %3166 = vmatprep.subr.mxu0 0.0
    %3167 = vmatpush1.msra.mxu0 0.0
    %3168 = vmatprep.subr.mxu0 0.0
    %3169 = vmatpush1.msra.mxu0 0.0
    %3170 = vmatprep.subr.mxu0 0.0
    %3171 = vmatpush1.msra.mxu0 0.0
    %3172 = vmatprep.subr.mxu0 0.0
    %3173 = vmatpush1.msra.mxu0 0.0
    %3174 = vmatprep.subr.mxu0 0.0
    %3175 = vmatpush1.msra.mxu0 0.0
    %3176 = vmatprep.subr.mxu0 0.0
    %3177 = vmatpush1.msra.mxu0 0.0
    %3178 = vmatprep.subr.mxu0 0.0
    %3179 = vmatpush1.msra.mxu0 0.0
    %3180 = vmatprep.subr.mxu0 0.0
    %3181 = vmatpush1.msra.mxu0 0.0
    %3182 = vmatprep.subr.mxu0 0.0
    %3183 = vmatpush1.msra.mxu0 0.0
    %3184 = vmatprep.subr.mxu0 0.0
    %3185 = vmatpush1.msra.mxu0 0.0
    %3186 = vmatprep.mubr.f32.mxu0 0.0
    %3187 = vmatmul.mubr.f32.gmra.mrb[0].mxu0 %v3120
    %v3188 = vpop.f32.mrb[0].mxu0
    %v3189 = vadd.f32 %v1862, %v3188
    %v3190 = vpop.f32.mrb[0].mxu0
    %3191 = vdwg.mxu0
    %3192 = vst [vmem:[%s1563] sm:$0x3] %v3189
    %s3193 = scalar_lea.vmem [#allocation8], 64
    %v3194 = vld [vmem:[%s3193] sm:$0xff]
    %v3195 = vld [vmem:[%s3193 + $0x8] sm:$0xff]
    %v3196 = vld [vmem:[%s3193 + $0x10] sm:$0xff]
    %v3197 = vld [vmem:[%s3193 + $0x18] sm:$0xff]
    %s3198 = scalar_lea.vmem [#allocation9], 64
    %v3199 = vld [vmem:[%s3198] sm:$0xff]
    %v3200 = vld [vmem:[%s3198 + $0x8] sm:$0xff]
    %v3201 = vld [vmem:[%s3198 + $0x10] sm:$0xff]
    %v3202 = vld [vmem:[%s3198 + $0x18] sm:$0xff]
    %s3203 = scalar_lea.vmem %s5, 2
    %v3204 = vld [vmem:[%s3203] sm:$0x1]
    %v3205 = vld [vmem:[#allocation2] sm:$0x3]
    %3207 = vrot.lane.b32.xlu0 %v3115, 32
    %v3208 = vpop.permute.xlu0 %3207
    %v3209 = vsel %vm159, %v3208, 0
    %3211 = vmatprep.subr.mxu0 0.0
    %3212 = vmatpush1.msra.mxu0 %v3194
    %3213 = vmatprep.subr.mxu0 0.0
    %3214 = vmatpush1.msra.mxu0 %v3195
    %3215 = vmatprep.subr.mxu0 0.0
    %3216 = vmatpush1.msra.mxu0 %v3196
    %3217 = vmatprep.subr.mxu0 0.0
    %3218 = vmatpush1.msra.mxu0 %v3197
    %3219 = vmatprep.subr.mxu0 0.0
    %3220 = vmatpush1.msra.mxu0 0.0
    %3221 = vmatprep.subr.mxu0 0.0
    %3222 = vmatpush1.msra.mxu0 0.0
    %3223 = vmatprep.subr.mxu0 0.0
    %3224 = vmatpush1.msra.mxu0 0.0
    %3225 = vmatprep.subr.mxu0 0.0
    %3226 = vmatpush1.msra.mxu0 0.0
    %3227 = vmatprep.subr.mxu0 0.0
    %3228 = vmatpush1.msra.mxu0 0.0
    %3229 = vmatprep.subr.mxu0 0.0
    %3230 = vmatpush1.msra.mxu0 0.0
    %3231 = vmatprep.subr.mxu0 0.0
    %3232 = vmatpush1.msra.mxu0 0.0
    %3233 = vmatprep.subr.mxu0 0.0
    %3234 = vmatpush1.msra.mxu0 0.0
    %3235 = vmatprep.subr.mxu0 0.0
    %3236 = vmatpush1.msra.mxu0 0.0
    %3237 = vmatprep.subr.mxu0 0.0
    %3238 = vmatpush1.msra.mxu0 0.0
    %3239 = vmatprep.subr.mxu0 0.0
    %3240 = vmatpush1.msra.mxu0 0.0
    %3241 = vmatprep.subr.mxu0 0.0
    %3242 = vmatpush1.msra.mxu0 0.0
    %3243 = vmatprep.subr.mxu0 0.0
    %3244 = vmatpush1.msra.mxu0 0.0
    %3245 = vmatprep.subr.mxu0 0.0
    %3246 = vmatpush1.msra.mxu0 0.0
    %3247 = vmatprep.subr.mxu0 0.0
    %3248 = vmatpush1.msra.mxu0 0.0
    %3249 = vmatprep.subr.mxu0 0.0
    %3250 = vmatpush1.msra.mxu0 0.0
    %3251 = vmatprep.subr.mxu0 0.0
    %3252 = vmatpush1.msra.mxu0 0.0
    %3253 = vmatprep.subr.mxu0 0.0
    %3254 = vmatpush1.msra.mxu0 0.0
    %3255 = vmatprep.subr.mxu0 0.0
    %3256 = vmatpush1.msra.mxu0 0.0
    %3257 = vmatprep.subr.mxu0 0.0
    %3258 = vmatpush1.msra.mxu0 0.0
    %3259 = vmatprep.subr.mxu0 0.0
    %3260 = vmatpush1.msra.mxu0 0.0
    %3261 = vmatprep.subr.mxu0 0.0
    %3262 = vmatpush1.msra.mxu0 0.0
    %3263 = vmatprep.subr.mxu0 0.0
    %3264 = vmatpush1.msra.mxu0 0.0
    %3265 = vmatprep.subr.mxu0 0.0
    %3266 = vmatpush1.msra.mxu0 0.0
    %3267 = vmatprep.subr.mxu0 0.0
    %3268 = vmatpush1.msra.mxu0 0.0
    %3269 = vmatprep.subr.mxu0 0.0
    %3270 = vmatpush1.msra.mxu0 0.0
    %3271 = vmatprep.subr.mxu0 0.0
    %3272 = vmatpush1.msra.mxu0 0.0
    %3273 = vmatprep.subr.mxu0 0.0
    %3274 = vmatpush1.msra.mxu0 0.0
    %3275 = vmatprep.mubr.f32.mxu0 0.0
    %3276 = vmatmul.mubr.f32.gmra.mrb[0].mxu0 %v3209
    %v3277 = vpop.f32.mrb[0].mxu0
    %v3278 = vadd.f32 0.0, %v3277
    %v3279 = vpop.f32.mrb[0].mxu0
    %3280 = vdwg.mxu0
    %v3281 = vadd.f32 %v3205, %v3278
    %v3282 = vxor.u32 %v3281, 2147483648
    %v3283 = vmul.f32 %v3282, 1.442695
    %v3284 = vpow.pop %v3283
    %v3285 = vadd.f32 %v3284, 1.0
    %v3286 = vrcp.pop %v3285
    %v3287 = vmul.f32 1.0, %v3286
    %v3288 = vmul.f32 %v3287, 2.0
    %v3289 = vsub.f32 %v3288, 1.0
    %v3290 = vmul.f32 %v3287, %v3109
    %3292 = vrot.lane.b32.xlu0 %v3289, 64
    %v3293 = vpop.permute.xlu0 %3292
    %v3295 = vmul.f32 %v3287, %v3293
    %3297 = vrot.lane.b32.xlu0 %v3295, 32
    %v3298 = vpop.permute.xlu0 %3297
    %v3300 = vadd.f32 %v3290, %v3298
    %v3301 = vtanh.pop %v3300
    %3303 = vrot.lane.b32.xlu0 %v3301, 64
    %v3304 = vpop.permute.xlu0 %3303
    %v3306 = vmul.f32 %v3287, %v3304
    %v3307 = vmax.f32 %v3306, 0.0
    %v3309 = vlaneseq
    %v3310 = vshrl.u32 %v3309, 7
    %v3311 = vsub.s32 0, %v3310
    %v3312 = vrot.slane %v3204, %v3311
    %3315 = vrot.lane.b32.xlu0 %v3307, 32
    %v3316 = vpop.permute.xlu0 %3315
    %v3317 = vsel %vm159, %v3316, 0
    %3319 = vmatprep.subr.mxu0 0.0
    %3320 = vmatpush1.msra.mxu0 %v3199
    %3321 = vmatprep.subr.mxu0 0.0
    %3322 = vmatpush1.msra.mxu0 %v3200
    %3323 = vmatprep.subr.mxu0 0.0
    %3324 = vmatpush1.msra.mxu0 %v3201
    %3325 = vmatprep.subr.mxu0 0.0
    %3326 = vmatpush1.msra.mxu0 %v3202
    %3327 = vmatprep.subr.mxu0 0.0
    %3328 = vmatpush1.msra.mxu0 0.0
    %3329 = vmatprep.subr.mxu0 0.0
    %3330 = vmatpush1.msra.mxu0 0.0
    %3331 = vmatprep.subr.mxu0 0.0
    %3332 = vmatpush1.msra.mxu0 0.0
    %3333 = vmatprep.subr.mxu0 0.0
    %3334 = vmatpush1.msra.mxu0 0.0
    %3335 = vmatprep.subr.mxu0 0.0
    %3336 = vmatpush1.msra.mxu0 0.0
    %3337 = vmatprep.subr.mxu0 0.0
    %3338 = vmatpush1.msra.mxu0 0.0
    %3339 = vmatprep.subr.mxu0 0.0
    %3340 = vmatpush1.msra.mxu0 0.0
    %3341 = vmatprep.subr.mxu0 0.0
    %3342 = vmatpush1.msra.mxu0 0.0
    %3343 = vmatprep.subr.mxu0 0.0
    %3344 = vmatpush1.msra.mxu0 0.0
    %3345 = vmatprep.subr.mxu0 0.0
    %3346 = vmatpush1.msra.mxu0 0.0
    %3347 = vmatprep.subr.mxu0 0.0
    %3348 = vmatpush1.msra.mxu0 0.0
    %3349 = vmatprep.subr.mxu0 0.0
    %3350 = vmatpush1.msra.mxu0 0.0
    %3351 = vmatprep.subr.mxu0 0.0
    %3352 = vmatpush1.msra.mxu0 0.0
    %3353 = vmatprep.subr.mxu0 0.0
    %3354 = vmatpush1.msra.mxu0 0.0
    %3355 = vmatprep.subr.mxu0 0.0
    %3356 = vmatpush1.msra.mxu0 0.0
    %3357 = vmatprep.subr.mxu0 0.0
    %3358 = vmatpush1.msra.mxu0 0.0
    %3359 = vmatprep.subr.mxu0 0.0
    %3360 = vmatpush1.msra.mxu0 0.0
    %3361 = vmatprep.subr.mxu0 0.0
    %3362 = vmatpush1.msra.mxu0 0.0
    %3363 = vmatprep.subr.mxu0 0.0
    %3364 = vmatpush1.msra.mxu0 0.0
    %3365 = vmatprep.subr.mxu0 0.0
    %3366 = vmatpush1.msra.mxu0 0.0
    %3367 = vmatprep.subr.mxu0 0.0
    %3368 = vmatpush1.msra.mxu0 0.0
    %3369 = vmatprep.subr.mxu0 0.0
    %3370 = vmatpush1.msra.mxu0 0.0
    %3371 = vmatprep.subr.mxu0 0.0
    %3372 = vmatpush1.msra.mxu0 0.0
    %3373 = vmatprep.subr.mxu0 0.0
    %3374 = vmatpush1.msra.mxu0 0.0
    %3375 = vmatprep.subr.mxu0 0.0
    %3376 = vmatpush1.msra.mxu0 0.0
    %3377 = vmatprep.subr.mxu0 0.0
    %3378 = vmatpush1.msra.mxu0 0.0
    %3379 = vmatprep.subr.mxu0 0.0
    %3380 = vmatpush1.msra.mxu0 0.0
    %3381 = vmatprep.subr.mxu0 0.0
    %3382 = vmatpush1.msra.mxu0 0.0
    %3383 = vmatprep.mubr.f32.mxu0 0.0
    %3384 = vmatmul.mubr.f32.gmra.mrb[0].mxu0 %v3317
    %v3385 = vpop.f32.mrb[0].mxu0
    %v3386 = vadd.f32 %v3312, %v3385
    %v3387 = vpop.f32.mrb[0].mxu0
    %3388 = vdwg.mxu0
    %3389 = vst [vmem:[#allocation2] sm:$0x3] %v3386
    %v3390 = vld [vmem:[%s483] sm:$0x3]
    %3392 = vrot.lane.b32.xlu0 %v3306, 32
    %v3393 = vpop.permute.xlu0 %3392
    %v3394 = vsel %vm159, %v3393, 0
    %3396 = vmatprep.subr.mxu0 0.0
    %3397 = vmatpush1.msra.mxu0 %v3194
    %3398 = vmatprep.subr.mxu0 0.0
    %3399 = vmatpush1.msra.mxu0 %v3195
    %3400 = vmatprep.subr.mxu0 0.0
    %3401 = vmatpush1.msra.mxu0 %v3196
    %3402 = vmatprep.subr.mxu0 0.0
    %3403 = vmatpush1.msra.mxu0 %v3197
    %3404 = vmatprep.subr.mxu0 0.0
    %3405 = vmatpush1.msra.mxu0 0.0
    %3406 = vmatprep.subr.mxu0 0.0
    %3407 = vmatpush1.msra.mxu0 0.0
    %3408 = vmatprep.subr.mxu0 0.0
    %3409 = vmatpush1.msra.mxu0 0.0
    %3410 = vmatprep.subr.mxu0 0.0
    %3411 = vmatpush1.msra.mxu0 0.0
    %3412 = vmatprep.subr.mxu0 0.0
    %3413 = vmatpush1.msra.mxu0 0.0
    %3414 = vmatprep.subr.mxu0 0.0
    %3415 = vmatpush1.msra.mxu0 0.0
    %3416 = vmatprep.subr.mxu0 0.0
    %3417 = vmatpush1.msra.mxu0 0.0
    %3418 = vmatprep.subr.mxu0 0.0
    %3419 = vmatpush1.msra.mxu0 0.0
    %3420 = vmatprep.subr.mxu0 0.0
    %3421 = vmatpush1.msra.mxu0 0.0
    %3422 = vmatprep.subr.mxu0 0.0
    %3423 = vmatpush1.msra.mxu0 0.0
    %3424 = vmatprep.subr.mxu0 0.0
    %3425 = vmatpush1.msra.mxu0 0.0
    %3426 = vmatprep.subr.mxu0 0.0
    %3427 = vmatpush1.msra.mxu0 0.0
    %3428 = vmatprep.subr.mxu0 0.0
    %3429 = vmatpush1.msra.mxu0 0.0
    %3430 = vmatprep.subr.mxu0 0.0
    %3431 = vmatpush1.msra.mxu0 0.0
    %3432 = vmatprep.subr.mxu0 0.0
    %3433 = vmatpush1.msra.mxu0 0.0
    %3434 = vmatprep.subr.mxu0 0.0
    %3435 = vmatpush1.msra.mxu0 0.0
    %3436 = vmatprep.subr.mxu0 0.0
    %3437 = vmatpush1.msra.mxu0 0.0
    %3438 = vmatprep.subr.mxu0 0.0
    %3439 = vmatpush1.msra.mxu0 0.0
    %3440 = vmatprep.subr.mxu0 0.0
    %3441 = vmatpush1.msra.mxu0 0.0
    %3442 = vmatprep.subr.mxu0 0.0
    %3443 = vmatpush1.msra.mxu0 0.0
    %3444 = vmatprep.subr.mxu0 0.0
    %3445 = vmatpush1.msra.mxu0 0.0
    %3446 = vmatprep.subr.mxu0 0.0
    %3447 = vmatpush1.msra.mxu0 0.0
    %3448 = vmatprep.subr.mxu0 0.0
    %3449 = vmatpush1.msra.mxu0 0.0
    %3450 = vmatprep.subr.mxu0 0.0
    %3451 = vmatpush1.msra.mxu0 0.0
    %3452 = vmatprep.subr.mxu0 0.0
    %3453 = vmatpush1.msra.mxu0 0.0
    %3454 = vmatprep.subr.mxu0 0.0
    %3455 = vmatpush1.msra.mxu0 0.0
    %3456 = vmatprep.subr.mxu0 0.0
    %3457 = vmatpush1.msra.mxu0 0.0
    %3458 = vmatprep.subr.mxu0 0.0
    %3459 = vmatpush1.msra.mxu0 0.0
    %3460 = vmatprep.mubr.f32.mxu0 0.0
    %3461 = vmatmul.mubr.f32.gmra.mrb[0].mxu0 %v3394
    %v3462 = vpop.f32.mrb[0].mxu0
    %v3463 = vadd.f32 0.0, %v3462
    %v3464 = vpop.f32.mrb[0].mxu0
    %3465 = vdwg.mxu0
    %v3466 = vadd.f32 %v3390, %v3463
    %v3467 = vxor.u32 %v3466, 2147483648
    %v3468 = vmul.f32 %v3467, 1.442695
    %v3469 = vpow.pop %v3468
    %v3470 = vadd.f32 %v3469, 1.0
    %v3471 = vrcp.pop %v3470
    %v3472 = vmul.f32 1.0, %v3471
    %v3473 = vmul.f32 %v3472, 2.0
    %v3474 = vsub.f32 %v3473, 1.0
    %v3475 = vmul.f32 %v3472, %v3300
    %3477 = vrot.lane.b32.xlu0 %v3474, 64
    %v3478 = vpop.permute.xlu0 %3477
    %v3480 = vmul.f32 %v3472, %v3478
    %3482 = vrot.lane.b32.xlu0 %v3480, 32
    %v3483 = vpop.permute.xlu0 %3482
    %v3485 = vadd.f32 %v3475, %v3483
    %v3486 = vtanh.pop %v3485
    %3488 = vrot.lane.b32.xlu0 %v3486, 64
    %v3489 = vpop.permute.xlu0 %3488
    %v3491 = vmul.f32 %v3472, %v3489
    %v3492 = vmax.f32 %v3491, 0.0
    %3494 = vrot.lane.b32.xlu0 %v3492, 32
    %v3495 = vpop.permute.xlu0 %3494
    %v3496 = vsel %vm159, %v3495, 0
    %3498 = vmatprep.subr.mxu0 0.0
    %3499 = vmatpush1.msra.mxu0 %v3199
    %3500 = vmatprep.subr.mxu0 0.0
    %3501 = vmatpush1.msra.mxu0 %v3200
    %3502 = vmatprep.subr.mxu0 0.0
    %3503 = vmatpush1.msra.mxu0 %v3201
    %3504 = vmatprep.subr.mxu0 0.0
    %3505 = vmatpush1.msra.mxu0 %v3202
    %3506 = vmatprep.subr.mxu0 0.0
    %3507 = vmatpush1.msra.mxu0 0.0
    %3508 = vmatprep.subr.mxu0 0.0
    %3509 = vmatpush1.msra.mxu0 0.0
    %3510 = vmatprep.subr.mxu0 0.0
    %3511 = vmatpush1.msra.mxu0 0.0
    %3512 = vmatprep.subr.mxu0 0.0
    %3513 = vmatpush1.msra.mxu0 0.0
    %3514 = vmatprep.subr.mxu0 0.0
    %3515 = vmatpush1.msra.mxu0 0.0
    %3516 = vmatprep.subr.mxu0 0.0
    %3517 = vmatpush1.msra.mxu0 0.0
    %3518 = vmatprep.subr.mxu0 0.0
    %3519 = vmatpush1.msra.mxu0 0.0
    %3520 = vmatprep.subr.mxu0 0.0
    %3521 = vmatpush1.msra.mxu0 0.0
    %3522 = vmatprep.subr.mxu0 0.0
    %3523 = vmatpush1.msra.mxu0 0.0
    %3524 = vmatprep.subr.mxu0 0.0
    %3525 = vmatpush1.msra.mxu0 0.0
    %3526 = vmatprep.subr.mxu0 0.0
    %3527 = vmatpush1.msra.mxu0 0.0
    %3528 = vmatprep.subr.mxu0 0.0
    %3529 = vmatpush1.msra.mxu0 0.0
    %3530 = vmatprep.subr.mxu0 0.0
    %3531 = vmatpush1.msra.mxu0 0.0
    %3532 = vmatprep.subr.mxu0 0.0
    %3533 = vmatpush1.msra.mxu0 0.0
    %3534 = vmatprep.subr.mxu0 0.0
    %3535 = vmatpush1.msra.mxu0 0.0
    %3536 = vmatprep.subr.mxu0 0.0
    %3537 = vmatpush1.msra.mxu0 0.0
    %3538 = vmatprep.subr.mxu0 0.0
    %3539 = vmatpush1.msra.mxu0 0.0
    %3540 = vmatprep.subr.mxu0 0.0
    %3541 = vmatpush1.msra.mxu0 0.0
    %3542 = vmatprep.subr.mxu0 0.0
    %3543 = vmatpush1.msra.mxu0 0.0
    %3544 = vmatprep.subr.mxu0 0.0
    %3545 = vmatpush1.msra.mxu0 0.0
    %3546 = vmatprep.subr.mxu0 0.0
    %3547 = vmatpush1.msra.mxu0 0.0
    %3548 = vmatprep.subr.mxu0 0.0
    %3549 = vmatpush1.msra.mxu0 0.0
    %3550 = vmatprep.subr.mxu0 0.0
    %3551 = vmatpush1.msra.mxu0 0.0
    %3552 = vmatprep.subr.mxu0 0.0
    %3553 = vmatpush1.msra.mxu0 0.0
    %3554 = vmatprep.subr.mxu0 0.0
    %3555 = vmatpush1.msra.mxu0 0.0
    %3556 = vmatprep.subr.mxu0 0.0
    %3557 = vmatpush1.msra.mxu0 0.0
    %3558 = vmatprep.subr.mxu0 0.0
    %3559 = vmatpush1.msra.mxu0 0.0
    %3560 = vmatprep.subr.mxu0 0.0
    %3561 = vmatpush1.msra.mxu0 0.0
    %3562 = vmatprep.mubr.f32.mxu0 0.0
    %3563 = vmatmul.mubr.f32.gmra.mrb[0].mxu0 %v3496
    %v3564 = vpop.f32.mrb[0].mxu0
    %v3565 = vadd.f32 %v3312, %v3564
    %v3566 = vpop.f32.mrb[0].mxu0
    %3567 = vdwg.mxu0
    %3568 = vst [vmem:[%s483] sm:$0x3] %v3565
    %v3569 = vld [vmem:[%s663] sm:$0x3]
    %3571 = vrot.lane.b32.xlu0 %v3491, 32
    %v3572 = vpop.permute.xlu0 %3571
    %v3573 = vsel %vm159, %v3572, 0
    %3575 = vmatprep.subr.mxu0 0.0
    %3576 = vmatpush1.msra.mxu0 %v3194
    %3577 = vmatprep.subr.mxu0 0.0
    %3578 = vmatpush1.msra.mxu0 %v3195
    %3579 = vmatprep.subr.mxu0 0.0
    %3580 = vmatpush1.msra.mxu0 %v3196
    %3581 = vmatprep.subr.mxu0 0.0
    %3582 = vmatpush1.msra.mxu0 %v3197
    %3583 = vmatprep.subr.mxu0 0.0
    %3584 = vmatpush1.msra.mxu0 0.0
    %3585 = vmatprep.subr.mxu0 0.0
    %3586 = vmatpush1.msra.mxu0 0.0
    %3587 = vmatprep.subr.mxu0 0.0
    %3588 = vmatpush1.msra.mxu0 0.0
    %3589 = vmatprep.subr.mxu0 0.0
    %3590 = vmatpush1.msra.mxu0 0.0
    %3591 = vmatprep.subr.mxu0 0.0
    %3592 = vmatpush1.msra.mxu0 0.0
    %3593 = vmatprep.subr.mxu0 0.0
    %3594 = vmatpush1.msra.mxu0 0.0
    %3595 = vmatprep.subr.mxu0 0.0
    %3596 = vmatpush1.msra.mxu0 0.0
    %3597 = vmatprep.subr.mxu0 0.0
    %3598 = vmatpush1.msra.mxu0 0.0
    %3599 = vmatprep.subr.mxu0 0.0
    %3600 = vmatpush1.msra.mxu0 0.0
    %3601 = vmatprep.subr.mxu0 0.0
    %3602 = vmatpush1.msra.mxu0 0.0
    %3603 = vmatprep.subr.mxu0 0.0
    %3604 = vmatpush1.msra.mxu0 0.0
    %3605 = vmatprep.subr.mxu0 0.0
    %3606 = vmatpush1.msra.mxu0 0.0
    %3607 = vmatprep.subr.mxu0 0.0
    %3608 = vmatpush1.msra.mxu0 0.0
    %3609 = vmatprep.subr.mxu0 0.0
    %3610 = vmatpush1.msra.mxu0 0.0
    %3611 = vmatprep.subr.mxu0 0.0
    %3612 = vmatpush1.msra.mxu0 0.0
    %3613 = vmatprep.subr.mxu0 0.0
    %3614 = vmatpush1.msra.mxu0 0.0
    %3615 = vmatprep.subr.mxu0 0.0
    %3616 = vmatpush1.msra.mxu0 0.0
    %3617 = vmatprep.subr.mxu0 0.0
    %3618 = vmatpush1.msra.mxu0 0.0
    %3619 = vmatprep.subr.mxu0 0.0
    %3620 = vmatpush1.msra.mxu0 0.0
    %3621 = vmatprep.subr.mxu0 0.0
    %3622 = vmatpush1.msra.mxu0 0.0
    %3623 = vmatprep.subr.mxu0 0.0
    %3624 = vmatpush1.msra.mxu0 0.0
    %3625 = vmatprep.subr.mxu0 0.0
    %3626 = vmatpush1.msra.mxu0 0.0
    %3627 = vmatprep.subr.mxu0 0.0
    %3628 = vmatpush1.msra.mxu0 0.0
    %3629 = vmatprep.subr.mxu0 0.0
    %3630 = vmatpush1.msra.mxu0 0.0
    %3631 = vmatprep.subr.mxu0 0.0
    %3632 = vmatpush1.msra.mxu0 0.0
    %3633 = vmatprep.subr.mxu0 0.0
    %3634 = vmatpush1.msra.mxu0 0.0
    %3635 = vmatprep.subr.mxu0 0.0
    %3636 = vmatpush1.msra.mxu0 0.0
    %3637 = vmatprep.subr.mxu0 0.0
    %3638 = vmatpush1.msra.mxu0 0.0
    %3639 = vmatprep.mubr.f32.mxu0 0.0
    %3640 = vmatmul.mubr.f32.gmra.mrb[0].mxu0 %v3573
    %v3641 = vpop.f32.mrb[0].mxu0
    %v3642 = vadd.f32 0.0, %v3641
    %v3643 = vpop.f32.mrb[0].mxu0
    %3644 = vdwg.mxu0
    %v3645 = vadd.f32 %v3569, %v3642
    %v3646 = vxor.u32 %v3645, 2147483648
    %v3647 = vmul.f32 %v3646, 1.442695
    %v3648 = vpow.pop %v3647
    %v3649 = vadd.f32 %v3648, 1.0
    %v3650 = vrcp.pop %v3649
    %v3651 = vmul.f32 1.0, %v3650
    %v3652 = vmul.f32 %v3651, 2.0
    %v3653 = vsub.f32 %v3652, 1.0
    %v3654 = vmul.f32 %v3651, %v3485
    %3656 = vrot.lane.b32.xlu0 %v3653, 64
    %v3657 = vpop.permute.xlu0 %3656
    %v3659 = vmul.f32 %v3651, %v3657
    %3661 = vrot.lane.b32.xlu0 %v3659, 32
    %v3662 = vpop.permute.xlu0 %3661
    %v3664 = vadd.f32 %v3654, %v3662
    %v3665 = vtanh.pop %v3664
    %3667 = vrot.lane.b32.xlu0 %v3665, 64
    %v3668 = vpop.permute.xlu0 %3667
    %v3670 = vmul.f32 %v3651, %v3668
    %v3671 = vmax.f32 %v3670, 0.0
    %3673 = vrot.lane.b32.xlu0 %v3671, 32
    %v3674 = vpop.permute.xlu0 %3673
    %v3675 = vsel %vm159, %v3674, 0
    %3677 = vmatprep.subr.mxu0 0.0
    %3678 = vmatpush1.msra.mxu0 %v3199
    %3679 = vmatprep.subr.mxu0 0.0
    %3680 = vmatpush1.msra.mxu0 %v3200
    %3681 = vmatprep.subr.mxu0 0.0
    %3682 = vmatpush1.msra.mxu0 %v3201
    %3683 = vmatprep.subr.mxu0 0.0
    %3684 = vmatpush1.msra.mxu0 %v3202
    %3685 = vmatprep.subr.mxu0 0.0
    %3686 = vmatpush1.msra.mxu0 0.0
    %3687 = vmatprep.subr.mxu0 0.0
    %3688 = vmatpush1.msra.mxu0 0.0
    %3689 = vmatprep.subr.mxu0 0.0
    %3690 = vmatpush1.msra.mxu0 0.0
    %3691 = vmatprep.subr.mxu0 0.0
    %3692 = vmatpush1.msra.mxu0 0.0
    %3693 = vmatprep.subr.mxu0 0.0
    %3694 = vmatpush1.msra.mxu0 0.0
    %3695 = vmatprep.subr.mxu0 0.0
    %3696 = vmatpush1.msra.mxu0 0.0
    %3697 = vmatprep.subr.mxu0 0.0
    %3698 = vmatpush1.msra.mxu0 0.0
    %3699 = vmatprep.subr.mxu0 0.0
    %3700 = vmatpush1.msra.mxu0 0.0
    %3701 = vmatprep.subr.mxu0 0.0
    %3702 = vmatpush1.msra.mxu0 0.0
    %3703 = vmatprep.subr.mxu0 0.0
    %3704 = vmatpush1.msra.mxu0 0.0
    %3705 = vmatprep.subr.mxu0 0.0
    %3706 = vmatpush1.msra.mxu0 0.0
    %3707 = vmatprep.subr.mxu0 0.0
    %3708 = vmatpush1.msra.mxu0 0.0
    %3709 = vmatprep.subr.mxu0 0.0
    %3710 = vmatpush1.msra.mxu0 0.0
    %3711 = vmatprep.subr.mxu0 0.0
    %3712 = vmatpush1.msra.mxu0 0.0
    %3713 = vmatprep.subr.mxu0 0.0
    %3714 = vmatpush1.msra.mxu0 0.0
    %3715 = vmatprep.subr.mxu0 0.0
    %3716 = vmatpush1.msra.mxu0 0.0
    %3717 = vmatprep.subr.mxu0 0.0
    %3718 = vmatpush1.msra.mxu0 0.0
    %3719 = vmatprep.subr.mxu0 0.0
    %3720 = vmatpush1.msra.mxu0 0.0
    %3721 = vmatprep.subr.mxu0 0.0
    %3722 = vmatpush1.msra.mxu0 0.0
    %3723 = vmatprep.subr.mxu0 0.0
    %3724 = vmatpush1.msra.mxu0 0.0
    %3725 = vmatprep.subr.mxu0 0.0
    %3726 = vmatpush1.msra.mxu0 0.0
    %3727 = vmatprep.subr.mxu0 0.0
    %3728 = vmatpush1.msra.mxu0 0.0
    %3729 = vmatprep.subr.mxu0 0.0
    %3730 = vmatpush1.msra.mxu0 0.0
    %3731 = vmatprep.subr.mxu0 0.0
    %3732 = vmatpush1.msra.mxu0 0.0
    %3733 = vmatprep.subr.mxu0 0.0
    %3734 = vmatpush1.msra.mxu0 0.0
    %3735 = vmatprep.subr.mxu0 0.0
    %3736 = vmatpush1.msra.mxu0 0.0
    %3737 = vmatprep.subr.mxu0 0.0
    %3738 = vmatpush1.msra.mxu0 0.0
    %3739 = vmatprep.subr.mxu0 0.0
    %3740 = vmatpush1.msra.mxu0 0.0
    %3741 = vmatprep.mubr.f32.mxu0 0.0
    %3742 = vmatmul.mubr.f32.gmra.mrb[0].mxu0 %v3675
    %v3743 = vpop.f32.mrb[0].mxu0
    %v3744 = vadd.f32 %v3312, %v3743
    %v3745 = vpop.f32.mrb[0].mxu0
    %3746 = vdwg.mxu0
    %3747 = vst [vmem:[%s663] sm:$0x3] %v3744
    %v3748 = vld [vmem:[%s843] sm:$0x3]
    %3750 = vrot.lane.b32.xlu0 %v3670, 32
    %v3751 = vpop.permute.xlu0 %3750
    %v3752 = vsel %vm159, %v3751, 0
    %3754 = vmatprep.subr.mxu0 0.0
    %3755 = vmatpush1.msra.mxu0 %v3194
    %3756 = vmatprep.subr.mxu0 0.0
    %3757 = vmatpush1.msra.mxu0 %v3195
    %3758 = vmatprep.subr.mxu0 0.0
    %3759 = vmatpush1.msra.mxu0 %v3196
    %3760 = vmatprep.subr.mxu0 0.0
    %3761 = vmatpush1.msra.mxu0 %v3197
    %3762 = vmatprep.subr.mxu0 0.0
    %3763 = vmatpush1.msra.mxu0 0.0
    %3764 = vmatprep.subr.mxu0 0.0
    %3765 = vmatpush1.msra.mxu0 0.0
    %3766 = vmatprep.subr.mxu0 0.0
    %3767 = vmatpush1.msra.mxu0 0.0
    %3768 = vmatprep.subr.mxu0 0.0
    %3769 = vmatpush1.msra.mxu0 0.0
    %3770 = vmatprep.subr.mxu0 0.0
    %3771 = vmatpush1.msra.mxu0 0.0
    %3772 = vmatprep.subr.mxu0 0.0
    %3773 = vmatpush1.msra.mxu0 0.0
    %3774 = vmatprep.subr.mxu0 0.0
    %3775 = vmatpush1.msra.mxu0 0.0
    %3776 = vmatprep.subr.mxu0 0.0
    %3777 = vmatpush1.msra.mxu0 0.0
    %3778 = vmatprep.subr.mxu0 0.0
    %3779 = vmatpush1.msra.mxu0 0.0
    %3780 = vmatprep.subr.mxu0 0.0
    %3781 = vmatpush1.msra.mxu0 0.0
    %3782 = vmatprep.subr.mxu0 0.0
    %3783 = vmatpush1.msra.mxu0 0.0
    %3784 = vmatprep.subr.mxu0 0.0
    %3785 = vmatpush1.msra.mxu0 0.0
    %3786 = vmatprep.subr.mxu0 0.0
    %3787 = vmatpush1.msra.mxu0 0.0
    %3788 = vmatprep.subr.mxu0 0.0
    %3789 = vmatpush1.msra.mxu0 0.0
    %3790 = vmatprep.subr.mxu0 0.0
    %3791 = vmatpush1.msra.mxu0 0.0
    %3792 = vmatprep.subr.mxu0 0.0
    %3793 = vmatpush1.msra.mxu0 0.0
    %3794 = vmatprep.subr.mxu0 0.0
    %3795 = vmatpush1.msra.mxu0 0.0
    %3796 = vmatprep.subr.mxu0 0.0
    %3797 = vmatpush1.msra.mxu0 0.0
    %3798 = vmatprep.subr.mxu0 0.0
    %3799 = vmatpush1.msra.mxu0 0.0
    %3800 = vmatprep.subr.mxu0 0.0
    %3801 = vmatpush1.msra.mxu0 0.0
    %3802 = vmatprep.subr.mxu0 0.0
    %3803 = vmatpush1.msra.mxu0 0.0
    %3804 = vmatprep.subr.mxu0 0.0
    %3805 = vmatpush1.msra.mxu0 0.0
    %3806 = vmatprep.subr.mxu0 0.0
    %3807 = vmatpush1.msra.mxu0 0.0
    %3808 = vmatprep.subr.mxu0 0.0
    %3809 = vmatpush1.msra.mxu0 0.0
    %3810 = vmatprep.subr.mxu0 0.0
    %3811 = vmatpush1.msra.mxu0 0.0
    %3812 = vmatprep.subr.mxu0 0.0
    %3813 = vmatpush1.msra.mxu0 0.0
    %3814 = vmatprep.subr.mxu0 0.0
    %3815 = vmatpush1.msra.mxu0 0.0
    %3816 = vmatprep.subr.mxu0 0.0
    %3817 = vmatpush1.msra.mxu0 0.0
    %3818 = vmatprep.mubr.f32.mxu0 0.0
    %3819 = vmatmul.mubr.f32.gmra.mrb[0].mxu0 %v3752
    %v3820 = vpop.f32.mrb[0].mxu0
    %v3821 = vadd.f32 0.0, %v3820
    %v3822 = vpop.f32.mrb[0].mxu0
    %3823 = vdwg.mxu0
    %v3824 = vadd.f32 %v3748, %v3821
    %v3825 = vxor.u32 %v3824, 2147483648
    %v3826 = vmul.f32 %v3825, 1.442695
    %v3827 = vpow.pop %v3826
    %v3828 = vadd.f32 %v3827, 1.0
    %v3829 = vrcp.pop %v3828
    %v3830 = vmul.f32 1.0, %v3829
    %v3831 = vmul.f32 %v3830, 2.0
    %v3832 = vsub.f32 %v3831, 1.0
    %v3833 = vmul.f32 %v3830, %v3664
    %3835 = vrot.lane.b32.xlu0 %v3832, 64
    %v3836 = vpop.permute.xlu0 %3835
    %v3838 = vmul.f32 %v3830, %v3836
    %3840 = vrot.lane.b32.xlu0 %v3838, 32
    %v3841 = vpop.permute.xlu0 %3840
    %v3843 = vadd.f32 %v3833, %v3841
    %v3844 = vtanh.pop %v3843
    %3846 = vrot.lane.b32.xlu0 %v3844, 64
    %v3847 = vpop.permute.xlu0 %3846
    %v3849 = vmul.f32 %v3830, %v3847
    %v3850 = vmax.f32 %v3849, 0.0
    %3852 = vrot.lane.b32.xlu0 %v3850, 32
    %v3853 = vpop.permute.xlu0 %3852
    %v3854 = vsel %vm159, %v3853, 0
    %3856 = vmatprep.subr.mxu0 0.0
    %3857 = vmatpush1.msra.mxu0 %v3199
    %3858 = vmatprep.subr.mxu0 0.0
    %3859 = vmatpush1.msra.mxu0 %v3200
    %3860 = vmatprep.subr.mxu0 0.0
    %3861 = vmatpush1.msra.mxu0 %v3201
    %3862 = vmatprep.subr.mxu0 0.0
    %3863 = vmatpush1.msra.mxu0 %v3202
    %3864 = vmatprep.subr.mxu0 0.0
    %3865 = vmatpush1.msra.mxu0 0.0
    %3866 = vmatprep.subr.mxu0 0.0
    %3867 = vmatpush1.msra.mxu0 0.0
    %3868 = vmatprep.subr.mxu0 0.0
    %3869 = vmatpush1.msra.mxu0 0.0
    %3870 = vmatprep.subr.mxu0 0.0
    %3871 = vmatpush1.msra.mxu0 0.0
    %3872 = vmatprep.subr.mxu0 0.0
    %3873 = vmatpush1.msra.mxu0 0.0
    %3874 = vmatprep.subr.mxu0 0.0
    %3875 = vmatpush1.msra.mxu0 0.0
    %3876 = vmatprep.subr.mxu0 0.0
    %3877 = vmatpush1.msra.mxu0 0.0
    %3878 = vmatprep.subr.mxu0 0.0
    %3879 = vmatpush1.msra.mxu0 0.0
    %3880 = vmatprep.subr.mxu0 0.0
    %3881 = vmatpush1.msra.mxu0 0.0
    %3882 = vmatprep.subr.mxu0 0.0
    %3883 = vmatpush1.msra.mxu0 0.0
    %3884 = vmatprep.subr.mxu0 0.0
    %3885 = vmatpush1.msra.mxu0 0.0
    %3886 = vmatprep.subr.mxu0 0.0
    %3887 = vmatpush1.msra.mxu0 0.0
    %3888 = vmatprep.subr.mxu0 0.0
    %3889 = vmatpush1.msra.mxu0 0.0
    %3890 = vmatprep.subr.mxu0 0.0
    %3891 = vmatpush1.msra.mxu0 0.0
    %3892 = vmatprep.subr.mxu0 0.0
    %3893 = vmatpush1.msra.mxu0 0.0
    %3894 = vmatprep.subr.mxu0 0.0
    %3895 = vmatpush1.msra.mxu0 0.0
    %3896 = vmatprep.subr.mxu0 0.0
    %3897 = vmatpush1.msra.mxu0 0.0
    %3898 = vmatprep.subr.mxu0 0.0
    %3899 = vmatpush1.msra.mxu0 0.0
    %3900 = vmatprep.subr.mxu0 0.0
    %3901 = vmatpush1.msra.mxu0 0.0
    %3902 = vmatprep.subr.mxu0 0.0
    %3903 = vmatpush1.msra.mxu0 0.0
    %3904 = vmatprep.subr.mxu0 0.0
    %3905 = vmatpush1.msra.mxu0 0.0
    %3906 = vmatprep.subr.mxu0 0.0
    %3907 = vmatpush1.msra.mxu0 0.0
    %3908 = vmatprep.subr.mxu0 0.0
    %3909 = vmatpush1.msra.mxu0 0.0
    %3910 = vmatprep.subr.mxu0 0.0
    %3911 = vmatpush1.msra.mxu0 0.0
    %3912 = vmatprep.subr.mxu0 0.0
    %3913 = vmatpush1.msra.mxu0 0.0
    %3914 = vmatprep.subr.mxu0 0.0
    %3915 = vmatpush1.msra.mxu0 0.0
    %3916 = vmatprep.subr.mxu0 0.0
    %3917 = vmatpush1.msra.mxu0 0.0
    %3918 = vmatprep.subr.mxu0 0.0
    %3919 = vmatpush1.msra.mxu0 0.0
    %3920 = vmatprep.mubr.f32.mxu0 0.0
    %3921 = vmatmul.mubr.f32.gmra.mrb[0].mxu0 %v3854
    %v3922 = vpop.f32.mrb[0].mxu0
    %v3923 = vadd.f32 %v3312, %v3922
    %v3924 = vpop.f32.mrb[0].mxu0
    %3925 = vdwg.mxu0
    %3926 = vst [vmem:[%s843] sm:$0x3] %v3923
    %v3927 = vld [vmem:[%s1023] sm:$0x3]
    %3929 = vrot.lane.b32.xlu0 %v3849, 32
    %v3930 = vpop.permute.xlu0 %3929
    %v3931 = vsel %vm159, %v3930, 0
    %3933 = vmatprep.subr.mxu0 0.0
    %3934 = vmatpush1.msra.mxu0 %v3194
    %3935 = vmatprep.subr.mxu0 0.0
    %3936 = vmatpush1.msra.mxu0 %v3195
    %3937 = vmatprep.subr.mxu0 0.0
    %3938 = vmatpush1.msra.mxu0 %v3196
    %3939 = vmatprep.subr.mxu0 0.0
    %3940 = vmatpush1.msra.mxu0 %v3197
    %3941 = vmatprep.subr.mxu0 0.0
    %3942 = vmatpush1.msra.mxu0 0.0
    %3943 = vmatprep.subr.mxu0 0.0
    %3944 = vmatpush1.msra.mxu0 0.0
    %3945 = vmatprep.subr.mxu0 0.0
    %3946 = vmatpush1.msra.mxu0 0.0
    %3947 = vmatprep.subr.mxu0 0.0
    %3948 = vmatpush1.msra.mxu0 0.0
    %3949 = vmatprep.subr.mxu0 0.0
    %3950 = vmatpush1.msra.mxu0 0.0
    %3951 = vmatprep.subr.mxu0 0.0
    %3952 = vmatpush1.msra.mxu0 0.0
    %3953 = vmatprep.subr.mxu0 0.0
    %3954 = vmatpush1.msra.mxu0 0.0
    %3955 = vmatprep.subr.mxu0 0.0
    %3956 = vmatpush1.msra.mxu0 0.0
    %3957 = vmatprep.subr.mxu0 0.0
    %3958 = vmatpush1.msra.mxu0 0.0
    %3959 = vmatprep.subr.mxu0 0.0
    %3960 = vmatpush1.msra.mxu0 0.0
    %3961 = vmatprep.subr.mxu0 0.0
    %3962 = vmatpush1.msra.mxu0 0.0
    %3963 = vmatprep.subr.mxu0 0.0
    %3964 = vmatpush1.msra.mxu0 0.0
    %3965 = vmatprep.subr.mxu0 0.0
    %3966 = vmatpush1.msra.mxu0 0.0
    %3967 = vmatprep.subr.mxu0 0.0
    %3968 = vmatpush1.msra.mxu0 0.0
    %3969 = vmatprep.subr.mxu0 0.0
    %3970 = vmatpush1.msra.mxu0 0.0
    %3971 = vmatprep.subr.mxu0 0.0
    %3972 = vmatpush1.msra.mxu0 0.0
    %3973 = vmatprep.subr.mxu0 0.0
    %3974 = vmatpush1.msra.mxu0 0.0
    %3975 = vmatprep.subr.mxu0 0.0
    %3976 = vmatpush1.msra.mxu0 0.0
    %3977 = vmatprep.subr.mxu0 0.0
    %3978 = vmatpush1.msra.mxu0 0.0
    %3979 = vmatprep.subr.mxu0 0.0
    %3980 = vmatpush1.msra.mxu0 0.0
    %3981 = vmatprep.subr.mxu0 0.0
    %3982 = vmatpush1.msra.mxu0 0.0
    %3983 = vmatprep.subr.mxu0 0.0
    %3984 = vmatpush1.msra.mxu0 0.0
    %3985 = vmatprep.subr.mxu0 0.0
    %3986 = vmatpush1.msra.mxu0 0.0
    %3987 = vmatprep.subr.mxu0 0.0
    %3988 = vmatpush1.msra.mxu0 0.0
    %3989 = vmatprep.subr.mxu0 0.0
    %3990 = vmatpush1.msra.mxu0 0.0
    %3991 = vmatprep.subr.mxu0 0.0
    %3992 = vmatpush1.msra.mxu0 0.0
    %3993 = vmatprep.subr.mxu0 0.0
    %3994 = vmatpush1.msra.mxu0 0.0
    %3995 = vmatprep.subr.mxu0 0.0
    %3996 = vmatpush1.msra.mxu0 0.0
    %3997 = vmatprep.mubr.f32.mxu0 0.0
    %3998 = vmatmul.mubr.f32.gmra.mrb[0].mxu0 %v3931
    %v3999 = vpop.f32.mrb[0].mxu0
    %v4000 = vadd.f32 0.0, %v3999
    %v4001 = vpop.f32.mrb[0].mxu0
    %4002 = vdwg.mxu0
    %v4003 = vadd.f32 %v3927, %v4000
    %v4004 = vxor.u32 %v4003, 2147483648
    %v4005 = vmul.f32 %v4004, 1.442695
    %v4006 = vpow.pop %v4005
    %v4007 = vadd.f32 %v4006, 1.0
    %v4008 = vrcp.pop %v4007
    %v4009 = vmul.f32 1.0, %v4008
    %v4010 = vmul.f32 %v4009, 2.0
    %v4011 = vsub.f32 %v4010, 1.0
    %v4012 = vmul.f32 %v4009, %v3843
    %4014 = vrot.lane.b32.xlu0 %v4011, 64
    %v4015 = vpop.permute.xlu0 %4014
    %v4017 = vmul.f32 %v4009, %v4015
    %4019 = vrot.lane.b32.xlu0 %v4017, 32
    %v4020 = vpop.permute.xlu0 %4019
    %v4022 = vadd.f32 %v4012, %v4020
    %v4023 = vtanh.pop %v4022
    %4025 = vrot.lane.b32.xlu0 %v4023, 64
    %v4026 = vpop.permute.xlu0 %4025
    %v4028 = vmul.f32 %v4009, %v4026
    %v4029 = vmax.f32 %v4028, 0.0
    %4031 = vrot.lane.b32.xlu0 %v4029, 32
    %v4032 = vpop.permute.xlu0 %4031
    %v4033 = vsel %vm159, %v4032, 0
    %4035 = vmatprep.subr.mxu0 0.0
    %4036 = vmatpush1.msra.mxu0 %v3199
    %4037 = vmatprep.subr.mxu0 0.0
    %4038 = vmatpush1.msra.mxu0 %v3200
    %4039 = vmatprep.subr.mxu0 0.0
    %4040 = vmatpush1.msra.mxu0 %v3201
    %4041 = vmatprep.subr.mxu0 0.0
    %4042 = vmatpush1.msra.mxu0 %v3202
    %4043 = vmatprep.subr.mxu0 0.0
    %4044 = vmatpush1.msra.mxu0 0.0
    %4045 = vmatprep.subr.mxu0 0.0
    %4046 = vmatpush1.msra.mxu0 0.0
    %4047 = vmatprep.subr.mxu0 0.0
    %4048 = vmatpush1.msra.mxu0 0.0
    %4049 = vmatprep.subr.mxu0 0.0
    %4050 = vmatpush1.msra.mxu0 0.0
    %4051 = vmatprep.subr.mxu0 0.0
    %4052 = vmatpush1.msra.mxu0 0.0
    %4053 = vmatprep.subr.mxu0 0.0
    %4054 = vmatpush1.msra.mxu0 0.0
    %4055 = vmatprep.subr.mxu0 0.0
    %4056 = vmatpush1.msra.mxu0 0.0
    %4057 = vmatprep.subr.mxu0 0.0
    %4058 = vmatpush1.msra.mxu0 0.0
    %4059 = vmatprep.subr.mxu0 0.0
    %4060 = vmatpush1.msra.mxu0 0.0
    %4061 = vmatprep.subr.mxu0 0.0
    %4062 = vmatpush1.msra.mxu0 0.0
    %4063 = vmatprep.subr.mxu0 0.0
    %4064 = vmatpush1.msra.mxu0 0.0
    %4065 = vmatprep.subr.mxu0 0.0
    %4066 = vmatpush1.msra.mxu0 0.0
    %4067 = vmatprep.subr.mxu0 0.0
    %4068 = vmatpush1.msra.mxu0 0.0
    %4069 = vmatprep.subr.mxu0 0.0
    %4070 = vmatpush1.msra.mxu0 0.0
    %4071 = vmatprep.subr.mxu0 0.0
    %4072 = vmatpush1.msra.mxu0 0.0
    %4073 = vmatprep.subr.mxu0 0.0
    %4074 = vmatpush1.msra.mxu0 0.0
    %4075 = vmatprep.subr.mxu0 0.0
    %4076 = vmatpush1.msra.mxu0 0.0
    %4077 = vmatprep.subr.mxu0 0.0
    %4078 = vmatpush1.msra.mxu0 0.0
    %4079 = vmatprep.subr.mxu0 0.0
    %4080 = vmatpush1.msra.mxu0 0.0
    %4081 = vmatprep.subr.mxu0 0.0
    %4082 = vmatpush1.msra.mxu0 0.0
    %4083 = vmatprep.subr.mxu0 0.0
    %4084 = vmatpush1.msra.mxu0 0.0
    %4085 = vmatprep.subr.mxu0 0.0
    %4086 = vmatpush1.msra.mxu0 0.0
    %4087 = vmatprep.subr.mxu0 0.0
    %4088 = vmatpush1.msra.mxu0 0.0
    %4089 = vmatprep.subr.mxu0 0.0
    %4090 = vmatpush1.msra.mxu0 0.0
    %4091 = vmatprep.subr.mxu0 0.0
    %4092 = vmatpush1.msra.mxu0 0.0
    %4093 = vmatprep.subr.mxu0 0.0
    %4094 = vmatpush1.msra.mxu0 0.0
    %4095 = vmatprep.subr.mxu0 0.0
    %4096 = vmatpush1.msra.mxu0 0.0
    %4097 = vmatprep.subr.mxu0 0.0
    %4098 = vmatpush1.msra.mxu0 0.0
    %4099 = vmatprep.mubr.f32.mxu0 0.0
    %4100 = vmatmul.mubr.f32.gmra.mrb[0].mxu0 %v4033
    %v4101 = vpop.f32.mrb[0].mxu0
    %v4102 = vadd.f32 %v3312, %v4101
    %v4103 = vpop.f32.mrb[0].mxu0
    %4104 = vdwg.mxu0
    %4105 = vst [vmem:[%s1023] sm:$0x3] %v4102
    %v4106 = vld [vmem:[%s1203] sm:$0x3]
    %4108 = vrot.lane.b32.xlu0 %v4028, 32
    %v4109 = vpop.permute.xlu0 %4108
    %v4110 = vsel %vm159, %v4109, 0
    %4112 = vmatprep.subr.mxu0 0.0
    %4113 = vmatpush1.msra.mxu0 %v3194
    %4114 = vmatprep.subr.mxu0 0.0
    %4115 = vmatpush1.msra.mxu0 %v3195
    %4116 = vmatprep.subr.mxu0 0.0
    %4117 = vmatpush1.msra.mxu0 %v3196
    %4118 = vmatprep.subr.mxu0 0.0
    %4119 = vmatpush1.msra.mxu0 %v3197
    %4120 = vmatprep.subr.mxu0 0.0
    %4121 = vmatpush1.msra.mxu0 0.0
    %4122 = vmatprep.subr.mxu0 0.0
    %4123 = vmatpush1.msra.mxu0 0.0
    %4124 = vmatprep.subr.mxu0 0.0
    %4125 = vmatpush1.msra.mxu0 0.0
    %4126 = vmatprep.subr.mxu0 0.0
    %4127 = vmatpush1.msra.mxu0 0.0
    %4128 = vmatprep.subr.mxu0 0.0
    %4129 = vmatpush1.msra.mxu0 0.0
    %4130 = vmatprep.subr.mxu0 0.0
    %4131 = vmatpush1.msra.mxu0 0.0
    %4132 = vmatprep.subr.mxu0 0.0
    %4133 = vmatpush1.msra.mxu0 0.0
    %4134 = vmatprep.subr.mxu0 0.0
    %4135 = vmatpush1.msra.mxu0 0.0
    %4136 = vmatprep.subr.mxu0 0.0
    %4137 = vmatpush1.msra.mxu0 0.0
    %4138 = vmatprep.subr.mxu0 0.0
    %4139 = vmatpush1.msra.mxu0 0.0
    %4140 = vmatprep.subr.mxu0 0.0
    %4141 = vmatpush1.msra.mxu0 0.0
    %4142 = vmatprep.subr.mxu0 0.0
    %4143 = vmatpush1.msra.mxu0 0.0
    %4144 = vmatprep.subr.mxu0 0.0
    %4145 = vmatpush1.msra.mxu0 0.0
    %4146 = vmatprep.subr.mxu0 0.0
    %4147 = vmatpush1.msra.mxu0 0.0
    %4148 = vmatprep.subr.mxu0 0.0
    %4149 = vmatpush1.msra.mxu0 0.0
    %4150 = vmatprep.subr.mxu0 0.0
    %4151 = vmatpush1.msra.mxu0 0.0
    %4152 = vmatprep.subr.mxu0 0.0
    %4153 = vmatpush1.msra.mxu0 0.0
    %4154 = vmatprep.subr.mxu0 0.0
    %4155 = vmatpush1.msra.mxu0 0.0
    %4156 = vmatprep.subr.mxu0 0.0
    %4157 = vmatpush1.msra.mxu0 0.0
    %4158 = vmatprep.subr.mxu0 0.0
    %4159 = vmatpush1.msra.mxu0 0.0
    %4160 = vmatprep.subr.mxu0 0.0
    %4161 = vmatpush1.msra.mxu0 0.0
    %4162 = vmatprep.subr.mxu0 0.0
    %4163 = vmatpush1.msra.mxu0 0.0
    %4164 = vmatprep.subr.mxu0 0.0
    %4165 = vmatpush1.msra.mxu0 0.0
    %4166 = vmatprep.subr.mxu0 0.0
    %4167 = vmatpush1.msra.mxu0 0.0
    %4168 = vmatprep.subr.mxu0 0.0
    %4169 = vmatpush1.msra.mxu0 0.0
    %4170 = vmatprep.subr.mxu0 0.0
    %4171 = vmatpush1.msra.mxu0 0.0
    %4172 = vmatprep.subr.mxu0 0.0
    %4173 = vmatpush1.msra.mxu0 0.0
    %4174 = vmatprep.subr.mxu0 0.0
    %4175 = vmatpush1.msra.mxu0 0.0
    %4176 = vmatprep.mubr.f32.mxu0 0.0
    %4177 = vmatmul.mubr.f32.gmra.mrb[0].mxu0 %v4110
    %v4178 = vpop.f32.mrb[0].mxu0
    %v4179 = vadd.f32 0.0, %v4178
    %v4180 = vpop.f32.mrb[0].mxu0
    %4181 = vdwg.mxu0
    %v4182 = vadd.f32 %v4106, %v4179
    %v4183 = vxor.u32 %v4182, 2147483648
    %v4184 = vmul.f32 %v4183, 1.442695
    %v4185 = vpow.pop %v4184
    %v4186 = vadd.f32 %v4185, 1.0
    %v4187 = vrcp.pop %v4186
    %v4188 = vmul.f32 1.0, %v4187
    %v4189 = vmul.f32 %v4188, 2.0
    %v4190 = vsub.f32 %v4189, 1.0
    %v4191 = vmul.f32 %v4188, %v4022
    %4193 = vrot.lane.b32.xlu0 %v4190, 64
    %v4194 = vpop.permute.xlu0 %4193
    %v4196 = vmul.f32 %v4188, %v4194
    %4198 = vrot.lane.b32.xlu0 %v4196, 32
    %v4199 = vpop.permute.xlu0 %4198
    %v4201 = vadd.f32 %v4191, %v4199
    %v4202 = vtanh.pop %v4201
    %4204 = vrot.lane.b32.xlu0 %v4202, 64
    %v4205 = vpop.permute.xlu0 %4204
    %v4207 = vmul.f32 %v4188, %v4205
    %v4208 = vmax.f32 %v4207, 0.0
    %4210 = vrot.lane.b32.xlu0 %v4208, 32
    %v4211 = vpop.permute.xlu0 %4210
    %v4212 = vsel %vm159, %v4211, 0
    %4214 = vmatprep.subr.mxu0 0.0
    %4215 = vmatpush1.msra.mxu0 %v3199
    %4216 = vmatprep.subr.mxu0 0.0
    %4217 = vmatpush1.msra.mxu0 %v3200
    %4218 = vmatprep.subr.mxu0 0.0
    %4219 = vmatpush1.msra.mxu0 %v3201
    %4220 = vmatprep.subr.mxu0 0.0
    %4221 = vmatpush1.msra.mxu0 %v3202
    %4222 = vmatprep.subr.mxu0 0.0
    %4223 = vmatpush1.msra.mxu0 0.0
    %4224 = vmatprep.subr.mxu0 0.0
    %4225 = vmatpush1.msra.mxu0 0.0
    %4226 = vmatprep.subr.mxu0 0.0
    %4227 = vmatpush1.msra.mxu0 0.0
    %4228 = vmatprep.subr.mxu0 0.0
    %4229 = vmatpush1.msra.mxu0 0.0
    %4230 = vmatprep.subr.mxu0 0.0
    %4231 = vmatpush1.msra.mxu0 0.0
    %4232 = vmatprep.subr.mxu0 0.0
    %4233 = vmatpush1.msra.mxu0 0.0
    %4234 = vmatprep.subr.mxu0 0.0
    %4235 = vmatpush1.msra.mxu0 0.0
    %4236 = vmatprep.subr.mxu0 0.0
    %4237 = vmatpush1.msra.mxu0 0.0
    %4238 = vmatprep.subr.mxu0 0.0
    %4239 = vmatpush1.msra.mxu0 0.0
    %4240 = vmatprep.subr.mxu0 0.0
    %4241 = vmatpush1.msra.mxu0 0.0
    %4242 = vmatprep.subr.mxu0 0.0
    %4243 = vmatpush1.msra.mxu0 0.0
    %4244 = vmatprep.subr.mxu0 0.0
    %4245 = vmatpush1.msra.mxu0 0.0
    %4246 = vmatprep.subr.mxu0 0.0
    %4247 = vmatpush1.msra.mxu0 0.0
    %4248 = vmatprep.subr.mxu0 0.0
    %4249 = vmatpush1.msra.mxu0 0.0
    %4250 = vmatprep.subr.mxu0 0.0
    %4251 = vmatpush1.msra.mxu0 0.0
    %4252 = vmatprep.subr.mxu0 0.0
    %4253 = vmatpush1.msra.mxu0 0.0
    %4254 = vmatprep.subr.mxu0 0.0
    %4255 = vmatpush1.msra.mxu0 0.0
    %4256 = vmatprep.subr.mxu0 0.0
    %4257 = vmatpush1.msra.mxu0 0.0
    %4258 = vmatprep.subr.mxu0 0.0
    %4259 = vmatpush1.msra.mxu0 0.0
    %4260 = vmatprep.subr.mxu0 0.0
    %4261 = vmatpush1.msra.mxu0 0.0
    %4262 = vmatprep.subr.mxu0 0.0
    %4263 = vmatpush1.msra.mxu0 0.0
    %4264 = vmatprep.subr.mxu0 0.0
    %4265 = vmatpush1.msra.mxu0 0.0
    %4266 = vmatprep.subr.mxu0 0.0
    %4267 = vmatpush1.msra.mxu0 0.0
    %4268 = vmatprep.subr.mxu0 0.0
    %4269 = vmatpush1.msra.mxu0 0.0
    %4270 = vmatprep.subr.mxu0 0.0
    %4271 = vmatpush1.msra.mxu0 0.0
    %4272 = vmatprep.subr.mxu0 0.0
    %4273 = vmatpush1.msra.mxu0 0.0
    %4274 = vmatprep.subr.mxu0 0.0
    %4275 = vmatpush1.msra.mxu0 0.0
    %4276 = vmatprep.subr.mxu0 0.0
    %4277 = vmatpush1.msra.mxu0 0.0
    %4278 = vmatprep.mubr.f32.mxu0 0.0
    %4279 = vmatmul.mubr.f32.gmra.mrb[0].mxu0 %v4212
    %v4280 = vpop.f32.mrb[0].mxu0
    %v4281 = vadd.f32 %v3312, %v4280
    %v4282 = vpop.f32.mrb[0].mxu0
    %4283 = vdwg.mxu0
    %4284 = vst [vmem:[%s1203] sm:$0x3] %v4281
    %v4285 = vld [vmem:[%s1383] sm:$0x3]
    %4287 = vrot.lane.b32.xlu0 %v4207, 32
    %v4288 = vpop.permute.xlu0 %4287
    %v4289 = vsel %vm159, %v4288, 0
    %4291 = vmatprep.subr.mxu0 0.0
    %4292 = vmatpush1.msra.mxu0 %v3194
    %4293 = vmatprep.subr.mxu0 0.0
    %4294 = vmatpush1.msra.mxu0 %v3195
    %4295 = vmatprep.subr.mxu0 0.0
    %4296 = vmatpush1.msra.mxu0 %v3196
    %4297 = vmatprep.subr.mxu0 0.0
    %4298 = vmatpush1.msra.mxu0 %v3197
    %4299 = vmatprep.subr.mxu0 0.0
    %4300 = vmatpush1.msra.mxu0 0.0
    %4301 = vmatprep.subr.mxu0 0.0
    %4302 = vmatpush1.msra.mxu0 0.0
    %4303 = vmatprep.subr.mxu0 0.0
    %4304 = vmatpush1.msra.mxu0 0.0
    %4305 = vmatprep.subr.mxu0 0.0
    %4306 = vmatpush1.msra.mxu0 0.0
    %4307 = vmatprep.subr.mxu0 0.0
    %4308 = vmatpush1.msra.mxu0 0.0
    %4309 = vmatprep.subr.mxu0 0.0
    %4310 = vmatpush1.msra.mxu0 0.0
    %4311 = vmatprep.subr.mxu0 0.0
    %4312 = vmatpush1.msra.mxu0 0.0
    %4313 = vmatprep.subr.mxu0 0.0
    %4314 = vmatpush1.msra.mxu0 0.0
    %4315 = vmatprep.subr.mxu0 0.0
    %4316 = vmatpush1.msra.mxu0 0.0
    %4317 = vmatprep.subr.mxu0 0.0
    %4318 = vmatpush1.msra.mxu0 0.0
    %4319 = vmatprep.subr.mxu0 0.0
    %4320 = vmatpush1.msra.mxu0 0.0
    %4321 = vmatprep.subr.mxu0 0.0
    %4322 = vmatpush1.msra.mxu0 0.0
    %4323 = vmatprep.subr.mxu0 0.0
    %4324 = vmatpush1.msra.mxu0 0.0
    %4325 = vmatprep.subr.mxu0 0.0
    %4326 = vmatpush1.msra.mxu0 0.0
    %4327 = vmatprep.subr.mxu0 0.0
    %4328 = vmatpush1.msra.mxu0 0.0
    %4329 = vmatprep.subr.mxu0 0.0
    %4330 = vmatpush1.msra.mxu0 0.0
    %4331 = vmatprep.subr.mxu0 0.0
    %4332 = vmatpush1.msra.mxu0 0.0
    %4333 = vmatprep.subr.mxu0 0.0
    %4334 = vmatpush1.msra.mxu0 0.0
    %4335 = vmatprep.subr.mxu0 0.0
    %4336 = vmatpush1.msra.mxu0 0.0
    %4337 = vmatprep.subr.mxu0 0.0
    %4338 = vmatpush1.msra.mxu0 0.0
    %4339 = vmatprep.subr.mxu0 0.0
    %4340 = vmatpush1.msra.mxu0 0.0
    %4341 = vmatprep.subr.mxu0 0.0
    %4342 = vmatpush1.msra.mxu0 0.0
    %4343 = vmatprep.subr.mxu0 0.0
    %4344 = vmatpush1.msra.mxu0 0.0
    %4345 = vmatprep.subr.mxu0 0.0
    %4346 = vmatpush1.msra.mxu0 0.0
    %4347 = vmatprep.subr.mxu0 0.0
    %4348 = vmatpush1.msra.mxu0 0.0
    %4349 = vmatprep.subr.mxu0 0.0
    %4350 = vmatpush1.msra.mxu0 0.0
    %4351 = vmatprep.subr.mxu0 0.0
    %4352 = vmatpush1.msra.mxu0 0.0
    %4353 = vmatprep.subr.mxu0 0.0
    %4354 = vmatpush1.msra.mxu0 0.0
    %4355 = vmatprep.mubr.f32.mxu0 0.0
    %4356 = vmatmul.mubr.f32.gmra.mrb[0].mxu0 %v4289
    %v4357 = vpop.f32.mrb[0].mxu0
    %v4358 = vadd.f32 0.0, %v4357
    %v4359 = vpop.f32.mrb[0].mxu0
    %4360 = vdwg.mxu0
    %v4361 = vadd.f32 %v4285, %v4358
    %v4362 = vxor.u32 %v4361, 2147483648
    %v4363 = vmul.f32 %v4362, 1.442695
    %v4364 = vpow.pop %v4363
    %v4365 = vadd.f32 %v4364, 1.0
    %v4366 = vrcp.pop %v4365
    %v4367 = vmul.f32 1.0, %v4366
    %v4368 = vmul.f32 %v4367, 2.0
    %v4369 = vsub.f32 %v4368, 1.0
    %v4370 = vmul.f32 %v4367, %v4201
    %4372 = vrot.lane.b32.xlu0 %v4369, 64
    %v4373 = vpop.permute.xlu0 %4372
    %v4375 = vmul.f32 %v4367, %v4373
    %4377 = vrot.lane.b32.xlu0 %v4375, 32
    %v4378 = vpop.permute.xlu0 %4377
    %v4380 = vadd.f32 %v4370, %v4378
    %v4381 = vtanh.pop %v4380
    %4383 = vrot.lane.b32.xlu0 %v4381, 64
    %v4384 = vpop.permute.xlu0 %4383
    %v4386 = vmul.f32 %v4367, %v4384
    %v4387 = vmax.f32 %v4386, 0.0
    %4389 = vrot.lane.b32.xlu0 %v4387, 32
    %v4390 = vpop.permute.xlu0 %4389
    %v4391 = vsel %vm159, %v4390, 0
    %4393 = vmatprep.subr.mxu0 0.0
    %4394 = vmatpush1.msra.mxu0 %v3199
    %4395 = vmatprep.subr.mxu0 0.0
    %4396 = vmatpush1.msra.mxu0 %v3200
    %4397 = vmatprep.subr.mxu0 0.0
    %4398 = vmatpush1.msra.mxu0 %v3201
    %4399 = vmatprep.subr.mxu0 0.0
    %4400 = vmatpush1.msra.mxu0 %v3202
    %4401 = vmatprep.subr.mxu0 0.0
    %4402 = vmatpush1.msra.mxu0 0.0
    %4403 = vmatprep.subr.mxu0 0.0
    %4404 = vmatpush1.msra.mxu0 0.0
    %4405 = vmatprep.subr.mxu0 0.0
    %4406 = vmatpush1.msra.mxu0 0.0
    %4407 = vmatprep.subr.mxu0 0.0
    %4408 = vmatpush1.msra.mxu0 0.0
    %4409 = vmatprep.subr.mxu0 0.0
    %4410 = vmatpush1.msra.mxu0 0.0
    %4411 = vmatprep.subr.mxu0 0.0
    %4412 = vmatpush1.msra.mxu0 0.0
    %4413 = vmatprep.subr.mxu0 0.0
    %4414 = vmatpush1.msra.mxu0 0.0
    %4415 = vmatprep.subr.mxu0 0.0
    %4416 = vmatpush1.msra.mxu0 0.0
    %4417 = vmatprep.subr.mxu0 0.0
    %4418 = vmatpush1.msra.mxu0 0.0
    %4419 = vmatprep.subr.mxu0 0.0
    %4420 = vmatpush1.msra.mxu0 0.0
    %4421 = vmatprep.subr.mxu0 0.0
    %4422 = vmatpush1.msra.mxu0 0.0
    %4423 = vmatprep.subr.mxu0 0.0
    %4424 = vmatpush1.msra.mxu0 0.0
    %4425 = vmatprep.subr.mxu0 0.0
    %4426 = vmatpush1.msra.mxu0 0.0
    %4427 = vmatprep.subr.mxu0 0.0
    %4428 = vmatpush1.msra.mxu0 0.0
    %4429 = vmatprep.subr.mxu0 0.0
    %4430 = vmatpush1.msra.mxu0 0.0
    %4431 = vmatprep.subr.mxu0 0.0
    %4432 = vmatpush1.msra.mxu0 0.0
    %4433 = vmatprep.subr.mxu0 0.0
    %4434 = vmatpush1.msra.mxu0 0.0
    %4435 = vmatprep.subr.mxu0 0.0
    %4436 = vmatpush1.msra.mxu0 0.0
    %4437 = vmatprep.subr.mxu0 0.0
    %4438 = vmatpush1.msra.mxu0 0.0
    %4439 = vmatprep.subr.mxu0 0.0
    %4440 = vmatpush1.msra.mxu0 0.0
    %4441 = vmatprep.subr.mxu0 0.0
    %4442 = vmatpush1.msra.mxu0 0.0
    %4443 = vmatprep.subr.mxu0 0.0
    %4444 = vmatpush1.msra.mxu0 0.0
    %4445 = vmatprep.subr.mxu0 0.0
    %4446 = vmatpush1.msra.mxu0 0.0
    %4447 = vmatprep.subr.mxu0 0.0
    %4448 = vmatpush1.msra.mxu0 0.0
    %4449 = vmatprep.subr.mxu0 0.0
    %4450 = vmatpush1.msra.mxu0 0.0
    %4451 = vmatprep.subr.mxu0 0.0
    %4452 = vmatpush1.msra.mxu0 0.0
    %4453 = vmatprep.subr.mxu0 0.0
    %4454 = vmatpush1.msra.mxu0 0.0
    %4455 = vmatprep.subr.mxu0 0.0
    %4456 = vmatpush1.msra.mxu0 0.0
    %4457 = vmatprep.mubr.f32.mxu0 0.0
    %4458 = vmatmul.mubr.f32.gmra.mrb[0].mxu0 %v4391
    %v4459 = vpop.f32.mrb[0].mxu0
    %v4460 = vadd.f32 %v3312, %v4459
    %v4461 = vpop.f32.mrb[0].mxu0
    %4462 = vdwg.mxu0
    %4463 = vst [vmem:[%s1383] sm:$0x3] %v4460
    %v4464 = vld [vmem:[%s1563] sm:$0x3]
    %4466 = vrot.lane.b32.xlu0 %v4386, 32
    %v4467 = vpop.permute.xlu0 %4466
    %v4468 = vsel %vm159, %v4467, 0
    %4470 = vmatprep.subr.mxu0 0.0
    %4471 = vmatpush1.msra.mxu0 %v3194
    %4472 = vmatprep.subr.mxu0 0.0
    %4473 = vmatpush1.msra.mxu0 %v3195
    %4474 = vmatprep.subr.mxu0 0.0
    %4475 = vmatpush1.msra.mxu0 %v3196
    %4476 = vmatprep.subr.mxu0 0.0
    %4477 = vmatpush1.msra.mxu0 %v3197
    %4478 = vmatprep.subr.mxu0 0.0
    %4479 = vmatpush1.msra.mxu0 0.0
    %4480 = vmatprep.subr.mxu0 0.0
    %4481 = vmatpush1.msra.mxu0 0.0
    %4482 = vmatprep.subr.mxu0 0.0
    %4483 = vmatpush1.msra.mxu0 0.0
    %4484 = vmatprep.subr.mxu0 0.0
    %4485 = vmatpush1.msra.mxu0 0.0
    %4486 = vmatprep.subr.mxu0 0.0
    %4487 = vmatpush1.msra.mxu0 0.0
    %4488 = vmatprep.subr.mxu0 0.0
    %4489 = vmatpush1.msra.mxu0 0.0
    %4490 = vmatprep.subr.mxu0 0.0
    %4491 = vmatpush1.msra.mxu0 0.0
    %4492 = vmatprep.subr.mxu0 0.0
    %4493 = vmatpush1.msra.mxu0 0.0
    %4494 = vmatprep.subr.mxu0 0.0
    %4495 = vmatpush1.msra.mxu0 0.0
    %4496 = vmatprep.subr.mxu0 0.0
    %4497 = vmatpush1.msra.mxu0 0.0
    %4498 = vmatprep.subr.mxu0 0.0
    %4499 = vmatpush1.msra.mxu0 0.0
    %4500 = vmatprep.subr.mxu0 0.0
    %4501 = vmatpush1.msra.mxu0 0.0
    %4502 = vmatprep.subr.mxu0 0.0
    %4503 = vmatpush1.msra.mxu0 0.0
    %4504 = vmatprep.subr.mxu0 0.0
    %4505 = vmatpush1.msra.mxu0 0.0
    %4506 = vmatprep.subr.mxu0 0.0
    %4507 = vmatpush1.msra.mxu0 0.0
    %4508 = vmatprep.subr.mxu0 0.0
    %4509 = vmatpush1.msra.mxu0 0.0
    %4510 = vmatprep.subr.mxu0 0.0
    %4511 = vmatpush1.msra.mxu0 0.0
    %4512 = vmatprep.subr.mxu0 0.0
    %4513 = vmatpush1.msra.mxu0 0.0
    %4514 = vmatprep.subr.mxu0 0.0
    %4515 = vmatpush1.msra.mxu0 0.0
    %4516 = vmatprep.subr.mxu0 0.0
    %4517 = vmatpush1.msra.mxu0 0.0
    %4518 = vmatprep.subr.mxu0 0.0
    %4519 = vmatpush1.msra.mxu0 0.0
    %4520 = vmatprep.subr.mxu0 0.0
    %4521 = vmatpush1.msra.mxu0 0.0
    %4522 = vmatprep.subr.mxu0 0.0
    %4523 = vmatpush1.msra.mxu0 0.0
    %4524 = vmatprep.subr.mxu0 0.0
    %4525 = vmatpush1.msra.mxu0 0.0
    %4526 = vmatprep.subr.mxu0 0.0
    %4527 = vmatpush1.msra.mxu0 0.0
    %4528 = vmatprep.subr.mxu0 0.0
    %4529 = vmatpush1.msra.mxu0 0.0
    %4530 = vmatprep.subr.mxu0 0.0
    %4531 = vmatpush1.msra.mxu0 0.0
    %4532 = vmatprep.subr.mxu0 0.0
    %4533 = vmatpush1.msra.mxu0 0.0
    %4534 = vmatprep.mubr.f32.mxu0 0.0
    %4535 = vmatmul.mubr.f32.gmra.mrb[0].mxu0 %v4468
    %v4536 = vpop.f32.mrb[0].mxu0
    %v4537 = vadd.f32 0.0, %v4536
    %v4538 = vpop.f32.mrb[0].mxu0
    %4539 = vdwg.mxu0
    %v4540 = vadd.f32 %v4464, %v4537
    %v4541 = vxor.u32 %v4540, 2147483648
    %v4542 = vmul.f32 %v4541, 1.442695
    %v4543 = vpow.pop %v4542
    %v4544 = vadd.f32 %v4543, 1.0
    %v4545 = vrcp.pop %v4544
    %v4546 = vmul.f32 1.0, %v4545
    %v4547 = vmul.f32 %v4546, 2.0
    %v4548 = vsub.f32 %v4547, 1.0
    %v4549 = vmul.f32 %v4546, %v4380
    %4551 = vrot.lane.b32.xlu0 %v4548, 64
    %v4552 = vpop.permute.xlu0 %4551
    %v4554 = vmul.f32 %v4546, %v4552
    %4556 = vrot.lane.b32.xlu0 %v4554, 32
    %v4557 = vpop.permute.xlu0 %4556
    %v4559 = vadd.f32 %v4549, %v4557
    %v4560 = vtanh.pop %v4559
    %4562 = vrot.lane.b32.xlu0 %v4560, 64
    %v4563 = vpop.permute.xlu0 %4562
    %v4565 = vmul.f32 %v4546, %v4563
    %v4566 = vmax.f32 %v4565, 0.0
    %4568 = vrot.lane.b32.xlu0 %v4566, 32
    %v4569 = vpop.permute.xlu0 %4568
    %v4570 = vsel %vm159, %v4569, 0
    %4572 = vmatprep.subr.mxu0 0.0
    %4573 = vmatpush1.msra.mxu0 %v3199
    %4574 = vmatprep.subr.mxu0 0.0
    %4575 = vmatpush1.msra.mxu0 %v3200
    %4576 = vmatprep.subr.mxu0 0.0
    %4577 = vmatpush1.msra.mxu0 %v3201
    %4578 = vmatprep.subr.mxu0 0.0
    %4579 = vmatpush1.msra.mxu0 %v3202
    %4580 = vmatprep.subr.mxu0 0.0
    %4581 = vmatpush1.msra.mxu0 0.0
    %4582 = vmatprep.subr.mxu0 0.0
    %4583 = vmatpush1.msra.mxu0 0.0
    %4584 = vmatprep.subr.mxu0 0.0
    %4585 = vmatpush1.msra.mxu0 0.0
    %4586 = vmatprep.subr.mxu0 0.0
    %4587 = vmatpush1.msra.mxu0 0.0
    %4588 = vmatprep.subr.mxu0 0.0
    %4589 = vmatpush1.msra.mxu0 0.0
    %4590 = vmatprep.subr.mxu0 0.0
    %4591 = vmatpush1.msra.mxu0 0.0
    %4592 = vmatprep.subr.mxu0 0.0
    %4593 = vmatpush1.msra.mxu0 0.0
    %4594 = vmatprep.subr.mxu0 0.0
    %4595 = vmatpush1.msra.mxu0 0.0
    %4596 = vmatprep.subr.mxu0 0.0
    %4597 = vmatpush1.msra.mxu0 0.0
    %4598 = vmatprep.subr.mxu0 0.0
    %4599 = vmatpush1.msra.mxu0 0.0
    %4600 = vmatprep.subr.mxu0 0.0
    %4601 = vmatpush1.msra.mxu0 0.0
    %4602 = vmatprep.subr.mxu0 0.0
    %4603 = vmatpush1.msra.mxu0 0.0
    %4604 = vmatprep.subr.mxu0 0.0
    %4605 = vmatpush1.msra.mxu0 0.0
    %4606 = vmatprep.subr.mxu0 0.0
    %4607 = vmatpush1.msra.mxu0 0.0
    %4608 = vmatprep.subr.mxu0 0.0
    %4609 = vmatpush1.msra.mxu0 0.0
    %4610 = vmatprep.subr.mxu0 0.0
    %4611 = vmatpush1.msra.mxu0 0.0
    %4612 = vmatprep.subr.mxu0 0.0
    %4613 = vmatpush1.msra.mxu0 0.0
    %4614 = vmatprep.subr.mxu0 0.0
    %4615 = vmatpush1.msra.mxu0 0.0
    %4616 = vmatprep.subr.mxu0 0.0
    %4617 = vmatpush1.msra.mxu0 0.0
    %4618 = vmatprep.subr.mxu0 0.0
    %4619 = vmatpush1.msra.mxu0 0.0
    %4620 = vmatprep.subr.mxu0 0.0
    %4621 = vmatpush1.msra.mxu0 0.0
    %4622 = vmatprep.subr.mxu0 0.0
    %4623 = vmatpush1.msra.mxu0 0.0
    %4624 = vmatprep.subr.mxu0 0.0
    %4625 = vmatpush1.msra.mxu0 0.0
    %4626 = vmatprep.subr.mxu0 0.0
    %4627 = vmatpush1.msra.mxu0 0.0
    %4628 = vmatprep.subr.mxu0 0.0
    %4629 = vmatpush1.msra.mxu0 0.0
    %4630 = vmatprep.subr.mxu0 0.0
    %4631 = vmatpush1.msra.mxu0 0.0
    %4632 = vmatprep.subr.mxu0 0.0
    %4633 = vmatpush1.msra.mxu0 0.0
    %4634 = vmatprep.subr.mxu0 0.0
    %4635 = vmatpush1.msra.mxu0 0.0
    %4636 = vmatprep.mubr.f32.mxu0 0.0
    %4637 = vmatmul.mubr.f32.gmra.mrb[0].mxu0 %v4570
    %v4638 = vpop.f32.mrb[0].mxu0
    %v4639 = vadd.f32 %v3312, %v4638
    %v4640 = vpop.f32.mrb[0].mxu0
    %4641 = vdwg.mxu0
    %4642 = vst [vmem:[%s1563] sm:$0x3] %v4639
    %s4643 = scalar_lea.vmem [#allocation8], 96
    %v4644 = vld [vmem:[%s4643] sm:$0xff]
    %v4645 = vld [vmem:[%s4643 + $0x8] sm:$0xff]
    %v4646 = vld [vmem:[%s4643 + $0x10] sm:$0xff]
    %v4647 = vld [vmem:[%s4643 + $0x18] sm:$0xff]
    %s4648 = scalar_lea.vmem [#allocation9], 96
    %v4649 = vld [vmem:[%s4648] sm:$0xff]
    %v4650 = vld [vmem:[%s4648 + $0x8] sm:$0xff]
    %v4651 = vld [vmem:[%s4648 + $0x10] sm:$0xff]
    %v4652 = vld [vmem:[%s4648 + $0x18] sm:$0xff]
    %s4653 = scalar_lea.vmem %s5, 3
    %v4654 = vld [vmem:[%s4653] sm:$0x1]
    %v4655 = vld [vmem:[#allocation2] sm:$0x3]
    %4657 = vrot.lane.b32.xlu0 %v4565, 32
    %v4658 = vpop.permute.xlu0 %4657
    %v4659 = vsel %vm159, %v4658, 0
    %4661 = vmatprep.subr.mxu0 0.0
    %4662 = vmatpush1.msra.mxu0 %v4644
    %4663 = vmatprep.subr.mxu0 0.0
    %4664 = vmatpush1.msra.mxu0 %v4645
    %4665 = vmatprep.subr.mxu0 0.0
    %4666 = vmatpush1.msra.mxu0 %v4646
    %4667 = vmatprep.subr.mxu0 0.0
    %4668 = vmatpush1.msra.mxu0 %v4647
    %4669 = vmatprep.subr.mxu0 0.0
    %4670 = vmatpush1.msra.mxu0 0.0
    %4671 = vmatprep.subr.mxu0 0.0
    %4672 = vmatpush1.msra.mxu0 0.0
    %4673 = vmatprep.subr.mxu0 0.0
    %4674 = vmatpush1.msra.mxu0 0.0
    %4675 = vmatprep.subr.mxu0 0.0
    %4676 = vmatpush1.msra.mxu0 0.0
    %4677 = vmatprep.subr.mxu0 0.0
    %4678 = vmatpush1.msra.mxu0 0.0
    %4679 = vmatprep.subr.mxu0 0.0
    %4680 = vmatpush1.msra.mxu0 0.0
    %4681 = vmatprep.subr.mxu0 0.0
    %4682 = vmatpush1.msra.mxu0 0.0
    %4683 = vmatprep.subr.mxu0 0.0
    %4684 = vmatpush1.msra.mxu0 0.0
    %4685 = vmatprep.subr.mxu0 0.0
    %4686 = vmatpush1.msra.mxu0 0.0
    %4687 = vmatprep.subr.mxu0 0.0
    %4688 = vmatpush1.msra.mxu0 0.0
    %4689 = vmatprep.subr.mxu0 0.0
    %4690 = vmatpush1.msra.mxu0 0.0
    %4691 = vmatprep.subr.mxu0 0.0
    %4692 = vmatpush1.msra.mxu0 0.0
    %4693 = vmatprep.subr.mxu0 0.0
    %4694 = vmatpush1.msra.mxu0 0.0
    %4695 = vmatprep.subr.mxu0 0.0
    %4696 = vmatpush1.msra.mxu0 0.0
    %4697 = vmatprep.subr.mxu0 0.0
    %4698 = vmatpush1.msra.mxu0 0.0
    %4699 = vmatprep.subr.mxu0 0.0
    %4700 = vmatpush1.msra.mxu0 0.0
    %4701 = vmatprep.subr.mxu0 0.0
    %4702 = vmatpush1.msra.mxu0 0.0
    %4703 = vmatprep.subr.mxu0 0.0
    %4704 = vmatpush1.msra.mxu0 0.0
    %4705 = vmatprep.subr.mxu0 0.0
    %4706 = vmatpush1.msra.mxu0 0.0
    %4707 = vmatprep.subr.mxu0 0.0
    %4708 = vmatpush1.msra.mxu0 0.0
    %4709 = vmatprep.subr.mxu0 0.0
    %4710 = vmatpush1.msra.mxu0 0.0
    %4711 = vmatprep.subr.mxu0 0.0
    %4712 = vmatpush1.msra.mxu0 0.0
    %4713 = vmatprep.subr.mxu0 0.0
    %4714 = vmatpush1.msra.mxu0 0.0
    %4715 = vmatprep.subr.mxu0 0.0
    %4716 = vmatpush1.msra.mxu0 0.0
    %4717 = vmatprep.subr.mxu0 0.0
    %4718 = vmatpush1.msra.mxu0 0.0
    %4719 = vmatprep.subr.mxu0 0.0
    %4720 = vmatpush1.msra.mxu0 0.0
    %4721 = vmatprep.subr.mxu0 0.0
    %4722 = vmatpush1.msra.mxu0 0.0
    %4723 = vmatprep.subr.mxu0 0.0
    %4724 = vmatpush1.msra.mxu0 0.0
    %4725 = vmatprep.mubr.f32.mxu0 0.0
    %4726 = vmatmul.mubr.f32.gmra.mrb[0].mxu0 %v4659
    %v4727 = vpop.f32.mrb[0].mxu0
    %v4728 = vadd.f32 0.0, %v4727
    %v4729 = vpop.f32.mrb[0].mxu0
    %4730 = vdwg.mxu0
    %v4731 = vadd.f32 %v4655, %v4728
    %v4732 = vxor.u32 %v4731, 2147483648
    %v4733 = vmul.f32 %v4732, 1.442695
    %v4734 = vpow.pop %v4733
    %v4735 = vadd.f32 %v4734, 1.0
    %v4736 = vrcp.pop %v4735
    %v4737 = vmul.f32 1.0, %v4736
    %v4738 = vmul.f32 %v4737, 2.0
    %v4739 = vsub.f32 %v4738, 1.0
    %v4740 = vmul.f32 %v4737, %v4559
    %4742 = vrot.lane.b32.xlu0 %v4739, 64
    %v4743 = vpop.permute.xlu0 %4742
    %v4745 = vmul.f32 %v4737, %v4743
    %4747 = vrot.lane.b32.xlu0 %v4745, 32
    %v4748 = vpop.permute.xlu0 %4747
    %v4750 = vadd.f32 %v4740, %v4748
    %v4751 = vtanh.pop %v4750
    %4753 = vrot.lane.b32.xlu0 %v4751, 64
    %v4754 = vpop.permute.xlu0 %4753
    %v4756 = vmul.f32 %v4737, %v4754
    %v4757 = vmax.f32 %v4756, 0.0
    %v4759 = vlaneseq
    %v4760 = vshrl.u32 %v4759, 7
    %v4761 = vsub.s32 0, %v4760
    %v4762 = vrot.slane %v4654, %v4761
    %4765 = vrot.lane.b32.xlu0 %v4757, 32
    %v4766 = vpop.permute.xlu0 %4765
    %v4767 = vsel %vm159, %v4766, 0
    %4769 = vmatprep.subr.mxu0 0.0
    %4770 = vmatpush1.msra.mxu0 %v4649
    %4771 = vmatprep.subr.mxu0 0.0
    %4772 = vmatpush1.msra.mxu0 %v4650
    %4773 = vmatprep.subr.mxu0 0.0
    %4774 = vmatpush1.msra.mxu0 %v4651
    %4775 = vmatprep.subr.mxu0 0.0
    %4776 = vmatpush1.msra.mxu0 %v4652
    %4777 = vmatprep.subr.mxu0 0.0
    %4778 = vmatpush1.msra.mxu0 0.0
    %4779 = vmatprep.subr.mxu0 0.0
    %4780 = vmatpush1.msra.mxu0 0.0
    %4781 = vmatprep.subr.mxu0 0.0
    %4782 = vmatpush1.msra.mxu0 0.0
    %4783 = vmatprep.subr.mxu0 0.0
    %4784 = vmatpush1.msra.mxu0 0.0
    %4785 = vmatprep.subr.mxu0 0.0
    %4786 = vmatpush1.msra.mxu0 0.0
    %4787 = vmatprep.subr.mxu0 0.0
    %4788 = vmatpush1.msra.mxu0 0.0
    %4789 = vmatprep.subr.mxu0 0.0
    %4790 = vmatpush1.msra.mxu0 0.0
    %4791 = vmatprep.subr.mxu0 0.0
    %4792 = vmatpush1.msra.mxu0 0.0
    %4793 = vmatprep.subr.mxu0 0.0
    %4794 = vmatpush1.msra.mxu0 0.0
    %4795 = vmatprep.subr.mxu0 0.0
    %4796 = vmatpush1.msra.mxu0 0.0
    %4797 = vmatprep.subr.mxu0 0.0
    %4798 = vmatpush1.msra.mxu0 0.0
    %4799 = vmatprep.subr.mxu0 0.0
    %4800 = vmatpush1.msra.mxu0 0.0
    %4801 = vmatprep.subr.mxu0 0.0
    %4802 = vmatpush1.msra.mxu0 0.0
    %4803 = vmatprep.subr.mxu0 0.0
    %4804 = vmatpush1.msra.mxu0 0.0
    %4805 = vmatprep.subr.mxu0 0.0
    %4806 = vmatpush1.msra.mxu0 0.0
    %4807 = vmatprep.subr.mxu0 0.0
    %4808 = vmatpush1.msra.mxu0 0.0
    %4809 = vmatprep.subr.mxu0 0.0
    %4810 = vmatpush1.msra.mxu0 0.0
    %4811 = vmatprep.subr.mxu0 0.0
    %4812 = vmatpush1.msra.mxu0 0.0
    %4813 = vmatprep.subr.mxu0 0.0
    %4814 = vmatpush1.msra.mxu0 0.0
    %4815 = vmatprep.subr.mxu0 0.0
    %4816 = vmatpush1.msra.mxu0 0.0
    %4817 = vmatprep.subr.mxu0 0.0
    %4818 = vmatpush1.msra.mxu0 0.0
    %4819 = vmatprep.subr.mxu0 0.0
    %4820 = vmatpush1.msra.mxu0 0.0
    %4821 = vmatprep.subr.mxu0 0.0
    %4822 = vmatpush1.msra.mxu0 0.0
    %4823 = vmatprep.subr.mxu0 0.0
    %4824 = vmatpush1.msra.mxu0 0.0
    %4825 = vmatprep.subr.mxu0 0.0
    %4826 = vmatpush1.msra.mxu0 0.0
    %4827 = vmatprep.subr.mxu0 0.0
    %4828 = vmatpush1.msra.mxu0 0.0
    %4829 = vmatprep.subr.mxu0 0.0
    %4830 = vmatpush1.msra.mxu0 0.0
    %4831 = vmatprep.subr.mxu0 0.0
    %4832 = vmatpush1.msra.mxu0 0.0
    %4833 = vmatprep.mubr.f32.mxu0 0.0
    %4834 = vmatmul.mubr.f32.gmra.mrb[0].mxu0 %v4767
    %v4835 = vpop.f32.mrb[0].mxu0
    %v4836 = vadd.f32 %v4762, %v4835
    %v4837 = vpop.f32.mrb[0].mxu0
    %4838 = vdwg.mxu0
    %4839 = vst [vmem:[#allocation2] sm:$0x3] %v4836
    %v4840 = vld [vmem:[%s483] sm:$0x3]
    %4842 = vrot.lane.b32.xlu0 %v4756, 32
    %v4843 = vpop.permute.xlu0 %4842
    %v4844 = vsel %vm159, %v4843, 0
    %4846 = vmatprep.subr.mxu0 0.0
    %4847 = vmatpush1.msra.mxu0 %v4644
    %4848 = vmatprep.subr.mxu0 0.0
    %4849 = vmatpush1.msra.mxu0 %v4645
    %4850 = vmatprep.subr.mxu0 0.0
    %4851 = vmatpush1.msra.mxu0 %v4646
    %4852 = vmatprep.subr.mxu0 0.0
    %4853 = vmatpush1.msra.mxu0 %v4647
    %4854 = vmatprep.subr.mxu0 0.0
    %4855 = vmatpush1.msra.mxu0 0.0
    %4856 = vmatprep.subr.mxu0 0.0
    %4857 = vmatpush1.msra.mxu0 0.0
    %4858 = vmatprep.subr.mxu0 0.0
    %4859 = vmatpush1.msra.mxu0 0.0
    %4860 = vmatprep.subr.mxu0 0.0
    %4861 = vmatpush1.msra.mxu0 0.0
    %4862 = vmatprep.subr.mxu0 0.0
    %4863 = vmatpush1.msra.mxu0 0.0
    %4864 = vmatprep.subr.mxu0 0.0
    %4865 = vmatpush1.msra.mxu0 0.0
    %4866 = vmatprep.subr.mxu0 0.0
    %4867 = vmatpush1.msra.mxu0 0.0
    %4868 = vmatprep.subr.mxu0 0.0
    %4869 = vmatpush1.msra.mxu0 0.0
    %4870 = vmatprep.subr.mxu0 0.0
    %4871 = vmatpush1.msra.mxu0 0.0
    %4872 = vmatprep.subr.mxu0 0.0
    %4873 = vmatpush1.msra.mxu0 0.0
    %4874 = vmatprep.subr.mxu0 0.0
    %4875 = vmatpush1.msra.mxu0 0.0
    %4876 = vmatprep.subr.mxu0 0.0
    %4877 = vmatpush1.msra.mxu0 0.0
    %4878 = vmatprep.subr.mxu0 0.0
    %4879 = vmatpush1.msra.mxu0 0.0
    %4880 = vmatprep.subr.mxu0 0.0
    %4881 = vmatpush1.msra.mxu0 0.0
    %4882 = vmatprep.subr.mxu0 0.0
    %4883 = vmatpush1.msra.mxu0 0.0
    %4884 = vmatprep.subr.mxu0 0.0
    %4885 = vmatpush1.msra.mxu0 0.0
    %4886 = vmatprep.subr.mxu0 0.0
    %4887 = vmatpush1.msra.mxu0 0.0
    %4888 = vmatprep.subr.mxu0 0.0
    %4889 = vmatpush1.msra.mxu0 0.0
    %4890 = vmatprep.subr.mxu0 0.0
    %4891 = vmatpush1.msra.mxu0 0.0
    %4892 = vmatprep.subr.mxu0 0.0
    %4893 = vmatpush1.msra.mxu0 0.0
    %4894 = vmatprep.subr.mxu0 0.0
    %4895 = vmatpush1.msra.mxu0 0.0
    %4896 = vmatprep.subr.mxu0 0.0
    %4897 = vmatpush1.msra.mxu0 0.0
    %4898 = vmatprep.subr.mxu0 0.0
    %4899 = vmatpush1.msra.mxu0 0.0
    %4900 = vmatprep.subr.mxu0 0.0
    %4901 = vmatpush1.msra.mxu0 0.0
    %4902 = vmatprep.subr.mxu0 0.0
    %4903 = vmatpush1.msra.mxu0 0.0
    %4904 = vmatprep.subr.mxu0 0.0
    %4905 = vmatpush1.msra.mxu0 0.0
    %4906 = vmatprep.subr.mxu0 0.0
    %4907 = vmatpush1.msra.mxu0 0.0
    %4908 = vmatprep.subr.mxu0 0.0
    %4909 = vmatpush1.msra.mxu0 0.0
    %4910 = vmatprep.mubr.f32.mxu0 0.0
    %4911 = vmatmul.mubr.f32.gmra.mrb[0].mxu0 %v4844
    %v4912 = vpop.f32.mrb[0].mxu0
    %v4913 = vadd.f32 0.0, %v4912
    %v4914 = vpop.f32.mrb[0].mxu0
    %4915 = vdwg.mxu0
    %v4916 = vadd.f32 %v4840, %v4913
    %v4917 = vxor.u32 %v4916, 2147483648
    %v4918 = vmul.f32 %v4917, 1.442695
    %v4919 = vpow.pop %v4918
    %v4920 = vadd.f32 %v4919, 1.0
    %v4921 = vrcp.pop %v4920
    %v4922 = vmul.f32 1.0, %v4921
    %v4923 = vmul.f32 %v4922, 2.0
    %v4924 = vsub.f32 %v4923, 1.0
    %v4925 = vmul.f32 %v4922, %v4750
    %4927 = vrot.lane.b32.xlu0 %v4924, 64
    %v4928 = vpop.permute.xlu0 %4927
    %v4930 = vmul.f32 %v4922, %v4928
    %4932 = vrot.lane.b32.xlu0 %v4930, 32
    %v4933 = vpop.permute.xlu0 %4932
    %v4935 = vadd.f32 %v4925, %v4933
    %v4936 = vtanh.pop %v4935
    %4938 = vrot.lane.b32.xlu0 %v4936, 64
    %v4939 = vpop.permute.xlu0 %4938
    %v4941 = vmul.f32 %v4922, %v4939
    %v4942 = vmax.f32 %v4941, 0.0
    %4944 = vrot.lane.b32.xlu0 %v4942, 32
    %v4945 = vpop.permute.xlu0 %4944
    %v4946 = vsel %vm159, %v4945, 0
    %4948 = vmatprep.subr.mxu0 0.0
    %4949 = vmatpush1.msra.mxu0 %v4649
    %4950 = vmatprep.subr.mxu0 0.0
    %4951 = vmatpush1.msra.mxu0 %v4650
    %4952 = vmatprep.subr.mxu0 0.0
    %4953 = vmatpush1.msra.mxu0 %v4651
    %4954 = vmatprep.subr.mxu0 0.0
    %4955 = vmatpush1.msra.mxu0 %v4652
    %4956 = vmatprep.subr.mxu0 0.0
    %4957 = vmatpush1.msra.mxu0 0.0
    %4958 = vmatprep.subr.mxu0 0.0
    %4959 = vmatpush1.msra.mxu0 0.0
    %4960 = vmatprep.subr.mxu0 0.0
    %4961 = vmatpush1.msra.mxu0 0.0
    %4962 = vmatprep.subr.mxu0 0.0
    %4963 = vmatpush1.msra.mxu0 0.0
    %4964 = vmatprep.subr.mxu0 0.0
    %4965 = vmatpush1.msra.mxu0 0.0
    %4966 = vmatprep.subr.mxu0 0.0
    %4967 = vmatpush1.msra.mxu0 0.0
    %4968 = vmatprep.subr.mxu0 0.0
    %4969 = vmatpush1.msra.mxu0 0.0
    %4970 = vmatprep.subr.mxu0 0.0
    %4971 = vmatpush1.msra.mxu0 0.0
    %4972 = vmatprep.subr.mxu0 0.0
    %4973 = vmatpush1.msra.mxu0 0.0
    %4974 = vmatprep.subr.mxu0 0.0
    %4975 = vmatpush1.msra.mxu0 0.0
    %4976 = vmatprep.subr.mxu0 0.0
    %4977 = vmatpush1.msra.mxu0 0.0
    %4978 = vmatprep.subr.mxu0 0.0
    %4979 = vmatpush1.msra.mxu0 0.0
    %4980 = vmatprep.subr.mxu0 0.0
    %4981 = vmatpush1.msra.mxu0 0.0
    %4982 = vmatprep.subr.mxu0 0.0
    %4983 = vmatpush1.msra.mxu0 0.0
    %4984 = vmatprep.subr.mxu0 0.0
    %4985 = vmatpush1.msra.mxu0 0.0
    %4986 = vmatprep.subr.mxu0 0.0
    %4987 = vmatpush1.msra.mxu0 0.0
    %4988 = vmatprep.subr.mxu0 0.0
    %4989 = vmatpush1.msra.mxu0 0.0
    %4990 = vmatprep.subr.mxu0 0.0
    %4991 = vmatpush1.msra.mxu0 0.0
    %4992 = vmatprep.subr.mxu0 0.0
    %4993 = vmatpush1.msra.mxu0 0.0
    %4994 = vmatprep.subr.mxu0 0.0
    %4995 = vmatpush1.msra.mxu0 0.0
    %4996 = vmatprep.subr.mxu0 0.0
    %4997 = vmatpush1.msra.mxu0 0.0
    %4998 = vmatprep.subr.mxu0 0.0
    %4999 = vmatpush1.msra.mxu0 0.0
    %5000 = vmatprep.subr.mxu0 0.0
    %5001 = vmatpush1.msra.mxu0 0.0
    %5002 = vmatprep.subr.mxu0 0.0
    %5003 = vmatpush1.msra.mxu0 0.0
    %5004 = vmatprep.subr.mxu0 0.0
    %5005 = vmatpush1.msra.mxu0 0.0
    %5006 = vmatprep.subr.mxu0 0.0
    %5007 = vmatpush1.msra.mxu0 0.0
    %5008 = vmatprep.subr.mxu0 0.0
    %5009 = vmatpush1.msra.mxu0 0.0
    %5010 = vmatprep.subr.mxu0 0.0
    %5011 = vmatpush1.msra.mxu0 0.0
    %5012 = vmatprep.mubr.f32.mxu0 0.0
    %5013 = vmatmul.mubr.f32.gmra.mrb[0].mxu0 %v4946
    %v5014 = vpop.f32.mrb[0].mxu0
    %v5015 = vadd.f32 %v4762, %v5014
    %v5016 = vpop.f32.mrb[0].mxu0
    %5017 = vdwg.mxu0
    %5018 = vst [vmem:[%s483] sm:$0x3] %v5015
    %v5019 = vld [vmem:[%s663] sm:$0x3]
    %5021 = vrot.lane.b32.xlu0 %v4941, 32
    %v5022 = vpop.permute.xlu0 %5021
    %v5023 = vsel %vm159, %v5022, 0
    %5025 = vmatprep.subr.mxu0 0.0
    %5026 = vmatpush1.msra.mxu0 %v4644
    %5027 = vmatprep.subr.mxu0 0.0
    %5028 = vmatpush1.msra.mxu0 %v4645
    %5029 = vmatprep.subr.mxu0 0.0
    %5030 = vmatpush1.msra.mxu0 %v4646
    %5031 = vmatprep.subr.mxu0 0.0
    %5032 = vmatpush1.msra.mxu0 %v4647
    %5033 = vmatprep.subr.mxu0 0.0
    %5034 = vmatpush1.msra.mxu0 0.0
    %5035 = vmatprep.subr.mxu0 0.0
    %5036 = vmatpush1.msra.mxu0 0.0
    %5037 = vmatprep.subr.mxu0 0.0
    %5038 = vmatpush1.msra.mxu0 0.0
    %5039 = vmatprep.subr.mxu0 0.0
    %5040 = vmatpush1.msra.mxu0 0.0
    %5041 = vmatprep.subr.mxu0 0.0
    %5042 = vmatpush1.msra.mxu0 0.0
    %5043 = vmatprep.subr.mxu0 0.0
    %5044 = vmatpush1.msra.mxu0 0.0
    %5045 = vmatprep.subr.mxu0 0.0
    %5046 = vmatpush1.msra.mxu0 0.0
    %5047 = vmatprep.subr.mxu0 0.0
    %5048 = vmatpush1.msra.mxu0 0.0
    %5049 = vmatprep.subr.mxu0 0.0
    %5050 = vmatpush1.msra.mxu0 0.0
    %5051 = vmatprep.subr.mxu0 0.0
    %5052 = vmatpush1.msra.mxu0 0.0
    %5053 = vmatprep.subr.mxu0 0.0
    %5054 = vmatpush1.msra.mxu0 0.0
    %5055 = vmatprep.subr.mxu0 0.0
    %5056 = vmatpush1.msra.mxu0 0.0
    %5057 = vmatprep.subr.mxu0 0.0
    %5058 = vmatpush1.msra.mxu0 0.0
    %5059 = vmatprep.subr.mxu0 0.0
    %5060 = vmatpush1.msra.mxu0 0.0
    %5061 = vmatprep.subr.mxu0 0.0
    %5062 = vmatpush1.msra.mxu0 0.0
    %5063 = vmatprep.subr.mxu0 0.0
    %5064 = vmatpush1.msra.mxu0 0.0
    %5065 = vmatprep.subr.mxu0 0.0
    %5066 = vmatpush1.msra.mxu0 0.0
    %5067 = vmatprep.subr.mxu0 0.0
    %5068 = vmatpush1.msra.mxu0 0.0
    %5069 = vmatprep.subr.mxu0 0.0
    %5070 = vmatpush1.msra.mxu0 0.0
    %5071 = vmatprep.subr.mxu0 0.0
    %5072 = vmatpush1.msra.mxu0 0.0
    %5073 = vmatprep.subr.mxu0 0.0
    %5074 = vmatpush1.msra.mxu0 0.0
    %5075 = vmatprep.subr.mxu0 0.0
    %5076 = vmatpush1.msra.mxu0 0.0
    %5077 = vmatprep.subr.mxu0 0.0
    %5078 = vmatpush1.msra.mxu0 0.0
    %5079 = vmatprep.subr.mxu0 0.0
    %5080 = vmatpush1.msra.mxu0 0.0
    %5081 = vmatprep.subr.mxu0 0.0
    %5082 = vmatpush1.msra.mxu0 0.0
    %5083 = vmatprep.subr.mxu0 0.0
    %5084 = vmatpush1.msra.mxu0 0.0
    %5085 = vmatprep.subr.mxu0 0.0
    %5086 = vmatpush1.msra.mxu0 0.0
    %5087 = vmatprep.subr.mxu0 0.0
    %5088 = vmatpush1.msra.mxu0 0.0
    %5089 = vmatprep.mubr.f32.mxu0 0.0
    %5090 = vmatmul.mubr.f32.gmra.mrb[0].mxu0 %v5023
    %v5091 = vpop.f32.mrb[0].mxu0
    %v5092 = vadd.f32 0.0, %v5091
    %v5093 = vpop.f32.mrb[0].mxu0
    %5094 = vdwg.mxu0
    %v5095 = vadd.f32 %v5019, %v5092
    %v5096 = vxor.u32 %v5095, 2147483648
    %v5097 = vmul.f32 %v5096, 1.442695
    %v5098 = vpow.pop %v5097
    %v5099 = vadd.f32 %v5098, 1.0
    %v5100 = vrcp.pop %v5099
    %v5101 = vmul.f32 1.0, %v5100
    %v5102 = vmul.f32 %v5101, 2.0
    %v5103 = vsub.f32 %v5102, 1.0
    %v5104 = vmul.f32 %v5101, %v4935
    %5106 = vrot.lane.b32.xlu0 %v5103, 64
    %v5107 = vpop.permute.xlu0 %5106
    %v5109 = vmul.f32 %v5101, %v5107
    %5111 = vrot.lane.b32.xlu0 %v5109, 32
    %v5112 = vpop.permute.xlu0 %5111
    %v5114 = vadd.f32 %v5104, %v5112
    %v5115 = vtanh.pop %v5114
    %5117 = vrot.lane.b32.xlu0 %v5115, 64
    %v5118 = vpop.permute.xlu0 %5117
    %v5120 = vmul.f32 %v5101, %v5118
    %v5121 = vmax.f32 %v5120, 0.0
    %5123 = vrot.lane.b32.xlu0 %v5121, 32
    %v5124 = vpop.permute.xlu0 %5123
    %v5125 = vsel %vm159, %v5124, 0
    %5127 = vmatprep.subr.mxu0 0.0
    %5128 = vmatpush1.msra.mxu0 %v4649
    %5129 = vmatprep.subr.mxu0 0.0
    %5130 = vmatpush1.msra.mxu0 %v4650
    %5131 = vmatprep.subr.mxu0 0.0
    %5132 = vmatpush1.msra.mxu0 %v4651
    %5133 = vmatprep.subr.mxu0 0.0
    %5134 = vmatpush1.msra.mxu0 %v4652
    %5135 = vmatprep.subr.mxu0 0.0
    %5136 = vmatpush1.msra.mxu0 0.0
    %5137 = vmatprep.subr.mxu0 0.0
    %5138 = vmatpush1.msra.mxu0 0.0
    %5139 = vmatprep.subr.mxu0 0.0
    %5140 = vmatpush1.msra.mxu0 0.0
    %5141 = vmatprep.subr.mxu0 0.0
    %5142 = vmatpush1.msra.mxu0 0.0
    %5143 = vmatprep.subr.mxu0 0.0
    %5144 = vmatpush1.msra.mxu0 0.0
    %5145 = vmatprep.subr.mxu0 0.0
    %5146 = vmatpush1.msra.mxu0 0.0
    %5147 = vmatprep.subr.mxu0 0.0
    %5148 = vmatpush1.msra.mxu0 0.0
    %5149 = vmatprep.subr.mxu0 0.0
    %5150 = vmatpush1.msra.mxu0 0.0
    %5151 = vmatprep.subr.mxu0 0.0
    %5152 = vmatpush1.msra.mxu0 0.0
    %5153 = vmatprep.subr.mxu0 0.0
    %5154 = vmatpush1.msra.mxu0 0.0
    %5155 = vmatprep.subr.mxu0 0.0
    %5156 = vmatpush1.msra.mxu0 0.0
    %5157 = vmatprep.subr.mxu0 0.0
    %5158 = vmatpush1.msra.mxu0 0.0
    %5159 = vmatprep.subr.mxu0 0.0
    %5160 = vmatpush1.msra.mxu0 0.0
    %5161 = vmatprep.subr.mxu0 0.0
    %5162 = vmatpush1.msra.mxu0 0.0
    %5163 = vmatprep.subr.mxu0 0.0
    %5164 = vmatpush1.msra.mxu0 0.0
    %5165 = vmatprep.subr.mxu0 0.0
    %5166 = vmatpush1.msra.mxu0 0.0
    %5167 = vmatprep.subr.mxu0 0.0
    %5168 = vmatpush1.msra.mxu0 0.0
    %5169 = vmatprep.subr.mxu0 0.0
    %5170 = vmatpush1.msra.mxu0 0.0
    %5171 = vmatprep.subr.mxu0 0.0
    %5172 = vmatpush1.msra.mxu0 0.0
    %5173 = vmatprep.subr.mxu0 0.0
    %5174 = vmatpush1.msra.mxu0 0.0
    %5175 = vmatprep.subr.mxu0 0.0
    %5176 = vmatpush1.msra.mxu0 0.0
    %5177 = vmatprep.subr.mxu0 0.0
    %5178 = vmatpush1.msra.mxu0 0.0
    %5179 = vmatprep.subr.mxu0 0.0
    %5180 = vmatpush1.msra.mxu0 0.0
    %5181 = vmatprep.subr.mxu0 0.0
    %5182 = vmatpush1.msra.mxu0 0.0
    %5183 = vmatprep.subr.mxu0 0.0
    %5184 = vmatpush1.msra.mxu0 0.0
    %5185 = vmatprep.subr.mxu0 0.0
    %5186 = vmatpush1.msra.mxu0 0.0
    %5187 = vmatprep.subr.mxu0 0.0
    %5188 = vmatpush1.msra.mxu0 0.0
    %5189 = vmatprep.subr.mxu0 0.0
    %5190 = vmatpush1.msra.mxu0 0.0
    %5191 = vmatprep.mubr.f32.mxu0 0.0
    %5192 = vmatmul.mubr.f32.gmra.mrb[0].mxu0 %v5125
    %v5193 = vpop.f32.mrb[0].mxu0
    %v5194 = vadd.f32 %v4762, %v5193
    %v5195 = vpop.f32.mrb[0].mxu0
    %5196 = vdwg.mxu0
    %5197 = vst [vmem:[%s663] sm:$0x3] %v5194
    %v5198 = vld [vmem:[%s843] sm:$0x3]
    %5200 = vrot.lane.b32.xlu0 %v5120, 32
    %v5201 = vpop.permute.xlu0 %5200
    %v5202 = vsel %vm159, %v5201, 0
    %5204 = vmatprep.subr.mxu0 0.0
    %5205 = vmatpush1.msra.mxu0 %v4644
    %5206 = vmatprep.subr.mxu0 0.0
    %5207 = vmatpush1.msra.mxu0 %v4645
    %5208 = vmatprep.subr.mxu0 0.0
    %5209 = vmatpush1.msra.mxu0 %v4646
    %5210 = vmatprep.subr.mxu0 0.0
    %5211 = vmatpush1.msra.mxu0 %v4647
    %5212 = vmatprep.subr.mxu0 0.0
    %5213 = vmatpush1.msra.mxu0 0.0
    %5214 = vmatprep.subr.mxu0 0.0
    %5215 = vmatpush1.msra.mxu0 0.0
    %5216 = vmatprep.subr.mxu0 0.0
    %5217 = vmatpush1.msra.mxu0 0.0
    %5218 = vmatprep.subr.mxu0 0.0
    %5219 = vmatpush1.msra.mxu0 0.0
    %5220 = vmatprep.subr.mxu0 0.0
    %5221 = vmatpush1.msra.mxu0 0.0
    %5222 = vmatprep.subr.mxu0 0.0
    %5223 = vmatpush1.msra.mxu0 0.0
    %5224 = vmatprep.subr.mxu0 0.0
    %5225 = vmatpush1.msra.mxu0 0.0
    %5226 = vmatprep.subr.mxu0 0.0
    %5227 = vmatpush1.msra.mxu0 0.0
    %5228 = vmatprep.subr.mxu0 0.0
    %5229 = vmatpush1.msra.mxu0 0.0
    %5230 = vmatprep.subr.mxu0 0.0
    %5231 = vmatpush1.msra.mxu0 0.0
    %5232 = vmatprep.subr.mxu0 0.0
    %5233 = vmatpush1.msra.mxu0 0.0
    %5234 = vmatprep.subr.mxu0 0.0
    %5235 = vmatpush1.msra.mxu0 0.0
    %5236 = vmatprep.subr.mxu0 0.0
    %5237 = vmatpush1.msra.mxu0 0.0
    %5238 = vmatprep.subr.mxu0 0.0
    %5239 = vmatpush1.msra.mxu0 0.0
    %5240 = vmatprep.subr.mxu0 0.0
    %5241 = vmatpush1.msra.mxu0 0.0
    %5242 = vmatprep.subr.mxu0 0.0
    %5243 = vmatpush1.msra.mxu0 0.0
    %5244 = vmatprep.subr.mxu0 0.0
    %5245 = vmatpush1.msra.mxu0 0.0
    %5246 = vmatprep.subr.mxu0 0.0
    %5247 = vmatpush1.msra.mxu0 0.0
    %5248 = vmatprep.subr.mxu0 0.0
    %5249 = vmatpush1.msra.mxu0 0.0
    %5250 = vmatprep.subr.mxu0 0.0
    %5251 = vmatpush1.msra.mxu0 0.0
    %5252 = vmatprep.subr.mxu0 0.0
    %5253 = vmatpush1.msra.mxu0 0.0
    %5254 = vmatprep.subr.mxu0 0.0
    %5255 = vmatpush1.msra.mxu0 0.0
    %5256 = vmatprep.subr.mxu0 0.0
    %5257 = vmatpush1.msra.mxu0 0.0
    %5258 = vmatprep.subr.mxu0 0.0
    %5259 = vmatpush1.msra.mxu0 0.0
    %5260 = vmatprep.subr.mxu0 0.0
    %5261 = vmatpush1.msra.mxu0 0.0
    %5262 = vmatprep.subr.mxu0 0.0
    %5263 = vmatpush1.msra.mxu0 0.0
    %5264 = vmatprep.subr.mxu0 0.0
    %5265 = vmatpush1.msra.mxu0 0.0
    %5266 = vmatprep.subr.mxu0 0.0
    %5267 = vmatpush1.msra.mxu0 0.0
    %5268 = vmatprep.mubr.f32.mxu0 0.0
    %5269 = vmatmul.mubr.f32.gmra.mrb[0].mxu0 %v5202
    %v5270 = vpop.f32.mrb[0].mxu0
    %v5271 = vadd.f32 0.0, %v5270
    %v5272 = vpop.f32.mrb[0].mxu0
    %5273 = vdwg.mxu0
    %v5274 = vadd.f32 %v5198, %v5271
    %v5275 = vxor.u32 %v5274, 2147483648
    %v5276 = vmul.f32 %v5275, 1.442695
    %v5277 = vpow.pop %v5276
    %v5278 = vadd.f32 %v5277, 1.0
    %v5279 = vrcp.pop %v5278
    %v5280 = vmul.f32 1.0, %v5279
    %v5281 = vmul.f32 %v5280, 2.0
    %v5282 = vsub.f32 %v5281, 1.0
    %v5283 = vmul.f32 %v5280, %v5114
    %5285 = vrot.lane.b32.xlu0 %v5282, 64
    %v5286 = vpop.permute.xlu0 %5285
    %v5288 = vmul.f32 %v5280, %v5286
    %5290 = vrot.lane.b32.xlu0 %v5288, 32
    %v5291 = vpop.permute.xlu0 %5290
    %v5293 = vadd.f32 %v5283, %v5291
    %v5294 = vtanh.pop %v5293
    %5296 = vrot.lane.b32.xlu0 %v5294, 64
    %v5297 = vpop.permute.xlu0 %5296
    %v5299 = vmul.f32 %v5280, %v5297
    %v5300 = vmax.f32 %v5299, 0.0
    %5302 = vrot.lane.b32.xlu0 %v5300, 32
    %v5303 = vpop.permute.xlu0 %5302
    %v5304 = vsel %vm159, %v5303, 0
    %5306 = vmatprep.subr.mxu0 0.0
    %5307 = vmatpush1.msra.mxu0 %v4649
    %5308 = vmatprep.subr.mxu0 0.0
    %5309 = vmatpush1.msra.mxu0 %v4650
    %5310 = vmatprep.subr.mxu0 0.0
    %5311 = vmatpush1.msra.mxu0 %v4651
    %5312 = vmatprep.subr.mxu0 0.0
    %5313 = vmatpush1.msra.mxu0 %v4652
    %5314 = vmatprep.subr.mxu0 0.0
    %5315 = vmatpush1.msra.mxu0 0.0
    %5316 = vmatprep.subr.mxu0 0.0
    %5317 = vmatpush1.msra.mxu0 0.0
    %5318 = vmatprep.subr.mxu0 0.0
    %5319 = vmatpush1.msra.mxu0 0.0
    %5320 = vmatprep.subr.mxu0 0.0
    %5321 = vmatpush1.msra.mxu0 0.0
    %5322 = vmatprep.subr.mxu0 0.0
    %5323 = vmatpush1.msra.mxu0 0.0
    %5324 = vmatprep.subr.mxu0 0.0
    %5325 = vmatpush1.msra.mxu0 0.0
    %5326 = vmatprep.subr.mxu0 0.0
    %5327 = vmatpush1.msra.mxu0 0.0
    %5328 = vmatprep.subr.mxu0 0.0
    %5329 = vmatpush1.msra.mxu0 0.0
    %5330 = vmatprep.subr.mxu0 0.0
    %5331 = vmatpush1.msra.mxu0 0.0
    %5332 = vmatprep.subr.mxu0 0.0
    %5333 = vmatpush1.msra.mxu0 0.0
    %5334 = vmatprep.subr.mxu0 0.0
    %5335 = vmatpush1.msra.mxu0 0.0
    %5336 = vmatprep.subr.mxu0 0.0
    %5337 = vmatpush1.msra.mxu0 0.0
    %5338 = vmatprep.subr.mxu0 0.0
    %5339 = vmatpush1.msra.mxu0 0.0
    %5340 = vmatprep.subr.mxu0 0.0
    %5341 = vmatpush1.msra.mxu0 0.0
    %5342 = vmatprep.subr.mxu0 0.0
    %5343 = vmatpush1.msra.mxu0 0.0
    %5344 = vmatprep.subr.mxu0 0.0
    %5345 = vmatpush1.msra.mxu0 0.0
    %5346 = vmatprep.subr.mxu0 0.0
    %5347 = vmatpush1.msra.mxu0 0.0
    %5348 = vmatprep.subr.mxu0 0.0
    %5349 = vmatpush1.msra.mxu0 0.0
    %5350 = vmatprep.subr.mxu0 0.0
    %5351 = vmatpush1.msra.mxu0 0.0
    %5352 = vmatprep.subr.mxu0 0.0
    %5353 = vmatpush1.msra.mxu0 0.0
    %5354 = vmatprep.subr.mxu0 0.0
    %5355 = vmatpush1.msra.mxu0 0.0
    %5356 = vmatprep.subr.mxu0 0.0
    %5357 = vmatpush1.msra.mxu0 0.0
    %5358 = vmatprep.subr.mxu0 0.0
    %5359 = vmatpush1.msra.mxu0 0.0
    %5360 = vmatprep.subr.mxu0 0.0
    %5361 = vmatpush1.msra.mxu0 0.0
    %5362 = vmatprep.subr.mxu0 0.0
    %5363 = vmatpush1.msra.mxu0 0.0
    %5364 = vmatprep.subr.mxu0 0.0
    %5365 = vmatpush1.msra.mxu0 0.0
    %5366 = vmatprep.subr.mxu0 0.0
    %5367 = vmatpush1.msra.mxu0 0.0
    %5368 = vmatprep.subr.mxu0 0.0
    %5369 = vmatpush1.msra.mxu0 0.0
    %5370 = vmatprep.mubr.f32.mxu0 0.0
    %5371 = vmatmul.mubr.f32.gmra.mrb[0].mxu0 %v5304
    %v5372 = vpop.f32.mrb[0].mxu0
    %v5373 = vadd.f32 %v4762, %v5372
    %v5374 = vpop.f32.mrb[0].mxu0
    %5375 = vdwg.mxu0
    %5376 = vst [vmem:[%s843] sm:$0x3] %v5373
    %v5377 = vld [vmem:[%s1023] sm:$0x3]
    %5379 = vrot.lane.b32.xlu0 %v5299, 32
    %v5380 = vpop.permute.xlu0 %5379
    %v5381 = vsel %vm159, %v5380, 0
    %5383 = vmatprep.subr.mxu0 0.0
    %5384 = vmatpush1.msra.mxu0 %v4644
    %5385 = vmatprep.subr.mxu0 0.0
    %5386 = vmatpush1.msra.mxu0 %v4645
    %5387 = vmatprep.subr.mxu0 0.0
    %5388 = vmatpush1.msra.mxu0 %v4646
    %5389 = vmatprep.subr.mxu0 0.0
    %5390 = vmatpush1.msra.mxu0 %v4647
    %5391 = vmatprep.subr.mxu0 0.0
    %5392 = vmatpush1.msra.mxu0 0.0
    %5393 = vmatprep.subr.mxu0 0.0
    %5394 = vmatpush1.msra.mxu0 0.0
    %5395 = vmatprep.subr.mxu0 0.0
    %5396 = vmatpush1.msra.mxu0 0.0
    %5397 = vmatprep.subr.mxu0 0.0
    %5398 = vmatpush1.msra.mxu0 0.0
    %5399 = vmatprep.subr.mxu0 0.0
    %5400 = vmatpush1.msra.mxu0 0.0
    %5401 = vmatprep.subr.mxu0 0.0
    %5402 = vmatpush1.msra.mxu0 0.0
    %5403 = vmatprep.subr.mxu0 0.0
    %5404 = vmatpush1.msra.mxu0 0.0
    %5405 = vmatprep.subr.mxu0 0.0
    %5406 = vmatpush1.msra.mxu0 0.0
    %5407 = vmatprep.subr.mxu0 0.0
    %5408 = vmatpush1.msra.mxu0 0.0
    %5409 = vmatprep.subr.mxu0 0.0
    %5410 = vmatpush1.msra.mxu0 0.0
    %5411 = vmatprep.subr.mxu0 0.0
    %5412 = vmatpush1.msra.mxu0 0.0
    %5413 = vmatprep.subr.mxu0 0.0
    %5414 = vmatpush1.msra.mxu0 0.0
    %5415 = vmatprep.subr.mxu0 0.0
    %5416 = vmatpush1.msra.mxu0 0.0
    %5417 = vmatprep.subr.mxu0 0.0
    %5418 = vmatpush1.msra.mxu0 0.0
    %5419 = vmatprep.subr.mxu0 0.0
    %5420 = vmatpush1.msra.mxu0 0.0
    %5421 = vmatprep.subr.mxu0 0.0
    %5422 = vmatpush1.msra.mxu0 0.0
    %5423 = vmatprep.subr.mxu0 0.0
    %5424 = vmatpush1.msra.mxu0 0.0
    %5425 = vmatprep.subr.mxu0 0.0
    %5426 = vmatpush1.msra.mxu0 0.0
    %5427 = vmatprep.subr.mxu0 0.0
    %5428 = vmatpush1.msra.mxu0 0.0
    %5429 = vmatprep.subr.mxu0 0.0
    %5430 = vmatpush1.msra.mxu0 0.0
    %5431 = vmatprep.subr.mxu0 0.0
    %5432 = vmatpush1.msra.mxu0 0.0
    %5433 = vmatprep.subr.mxu0 0.0
    %5434 = vmatpush1.msra.mxu0 0.0
    %5435 = vmatprep.subr.mxu0 0.0
    %5436 = vmatpush1.msra.mxu0 0.0
    %5437 = vmatprep.subr.mxu0 0.0
    %5438 = vmatpush1.msra.mxu0 0.0
    %5439 = vmatprep.subr.mxu0 0.0
    %5440 = vmatpush1.msra.mxu0 0.0
    %5441 = vmatprep.subr.mxu0 0.0
    %5442 = vmatpush1.msra.mxu0 0.0
    %5443 = vmatprep.subr.mxu0 0.0
    %5444 = vmatpush1.msra.mxu0 0.0
    %5445 = vmatprep.subr.mxu0 0.0
    %5446 = vmatpush1.msra.mxu0 0.0
    %5447 = vmatprep.mubr.f32.mxu0 0.0
    %5448 = vmatmul.mubr.f32.gmra.mrb[0].mxu0 %v5381
    %v5449 = vpop.f32.mrb[0].mxu0
    %v5450 = vadd.f32 0.0, %v5449
    %v5451 = vpop.f32.mrb[0].mxu0
    %5452 = vdwg.mxu0
    %v5453 = vadd.f32 %v5377, %v5450
    %v5454 = vxor.u32 %v5453, 2147483648
    %v5455 = vmul.f32 %v5454, 1.442695
    %v5456 = vpow.pop %v5455
    %v5457 = vadd.f32 %v5456, 1.0
    %v5458 = vrcp.pop %v5457
    %v5459 = vmul.f32 1.0, %v5458
    %v5460 = vmul.f32 %v5459, 2.0
    %v5461 = vsub.f32 %v5460, 1.0
    %v5462 = vmul.f32 %v5459, %v5293
    %5464 = vrot.lane.b32.xlu0 %v5461, 64
    %v5465 = vpop.permute.xlu0 %5464
    %v5467 = vmul.f32 %v5459, %v5465
    %5469 = vrot.lane.b32.xlu0 %v5467, 32
    %v5470 = vpop.permute.xlu0 %5469
    %v5472 = vadd.f32 %v5462, %v5470
    %v5473 = vtanh.pop %v5472
    %5475 = vrot.lane.b32.xlu0 %v5473, 64
    %v5476 = vpop.permute.xlu0 %5475
    %v5478 = vmul.f32 %v5459, %v5476
    %v5479 = vmax.f32 %v5478, 0.0
    %5481 = vrot.lane.b32.xlu0 %v5479, 32
    %v5482 = vpop.permute.xlu0 %5481
    %v5483 = vsel %vm159, %v5482, 0
    %5485 = vmatprep.subr.mxu0 0.0
    %5486 = vmatpush1.msra.mxu0 %v4649
    %5487 = vmatprep.subr.mxu0 0.0
    %5488 = vmatpush1.msra.mxu0 %v4650
    %5489 = vmatprep.subr.mxu0 0.0
    %5490 = vmatpush1.msra.mxu0 %v4651
    %5491 = vmatprep.subr.mxu0 0.0
    %5492 = vmatpush1.msra.mxu0 %v4652
    %5493 = vmatprep.subr.mxu0 0.0
    %5494 = vmatpush1.msra.mxu0 0.0
    %5495 = vmatprep.subr.mxu0 0.0
    %5496 = vmatpush1.msra.mxu0 0.0
    %5497 = vmatprep.subr.mxu0 0.0
    %5498 = vmatpush1.msra.mxu0 0.0
    %5499 = vmatprep.subr.mxu0 0.0
    %5500 = vmatpush1.msra.mxu0 0.0
    %5501 = vmatprep.subr.mxu0 0.0
    %5502 = vmatpush1.msra.mxu0 0.0
    %5503 = vmatprep.subr.mxu0 0.0
    %5504 = vmatpush1.msra.mxu0 0.0
    %5505 = vmatprep.subr.mxu0 0.0
    %5506 = vmatpush1.msra.mxu0 0.0
    %5507 = vmatprep.subr.mxu0 0.0
    %5508 = vmatpush1.msra.mxu0 0.0
    %5509 = vmatprep.subr.mxu0 0.0
    %5510 = vmatpush1.msra.mxu0 0.0
    %5511 = vmatprep.subr.mxu0 0.0
    %5512 = vmatpush1.msra.mxu0 0.0
    %5513 = vmatprep.subr.mxu0 0.0
    %5514 = vmatpush1.msra.mxu0 0.0
    %5515 = vmatprep.subr.mxu0 0.0
    %5516 = vmatpush1.msra.mxu0 0.0
    %5517 = vmatprep.subr.mxu0 0.0
    %5518 = vmatpush1.msra.mxu0 0.0
    %5519 = vmatprep.subr.mxu0 0.0
    %5520 = vmatpush1.msra.mxu0 0.0
    %5521 = vmatprep.subr.mxu0 0.0
    %5522 = vmatpush1.msra.mxu0 0.0
    %5523 = vmatprep.subr.mxu0 0.0
    %5524 = vmatpush1.msra.mxu0 0.0
    %5525 = vmatprep.subr.mxu0 0.0
    %5526 = vmatpush1.msra.mxu0 0.0
    %5527 = vmatprep.subr.mxu0 0.0
    %5528 = vmatpush1.msra.mxu0 0.0
    %5529 = vmatprep.subr.mxu0 0.0
    %5530 = vmatpush1.msra.mxu0 0.0
    %5531 = vmatprep.subr.mxu0 0.0
    %5532 = vmatpush1.msra.mxu0 0.0
    %5533 = vmatprep.subr.mxu0 0.0
    %5534 = vmatpush1.msra.mxu0 0.0
    %5535 = vmatprep.subr.mxu0 0.0
    %5536 = vmatpush1.msra.mxu0 0.0
    %5537 = vmatprep.subr.mxu0 0.0
    %5538 = vmatpush1.msra.mxu0 0.0
    %5539 = vmatprep.subr.mxu0 0.0
    %5540 = vmatpush1.msra.mxu0 0.0
    %5541 = vmatprep.subr.mxu0 0.0
    %5542 = vmatpush1.msra.mxu0 0.0
    %5543 = vmatprep.subr.mxu0 0.0
    %5544 = vmatpush1.msra.mxu0 0.0
    %5545 = vmatprep.subr.mxu0 0.0
    %5546 = vmatpush1.msra.mxu0 0.0
    %5547 = vmatprep.subr.mxu0 0.0
    %5548 = vmatpush1.msra.mxu0 0.0
    %5549 = vmatprep.mubr.f32.mxu0 0.0
    %5550 = vmatmul.mubr.f32.gmra.mrb[0].mxu0 %v5483
    %v5551 = vpop.f32.mrb[0].mxu0
    %v5552 = vadd.f32 %v4762, %v5551
    %v5553 = vpop.f32.mrb[0].mxu0
    %5554 = vdwg.mxu0
    %5555 = vst [vmem:[%s1023] sm:$0x3] %v5552
    %v5556 = vld [vmem:[%s1203] sm:$0x3]
    %5558 = vrot.lane.b32.xlu0 %v5478, 32
    %v5559 = vpop.permute.xlu0 %5558
    %v5560 = vsel %vm159, %v5559, 0
    %5562 = vmatprep.subr.mxu0 0.0
    %5563 = vmatpush1.msra.mxu0 %v4644
    %5564 = vmatprep.subr.mxu0 0.0
    %5565 = vmatpush1.msra.mxu0 %v4645
    %5566 = vmatprep.subr.mxu0 0.0
    %5567 = vmatpush1.msra.mxu0 %v4646
    %5568 = vmatprep.subr.mxu0 0.0
    %5569 = vmatpush1.msra.mxu0 %v4647
    %5570 = vmatprep.subr.mxu0 0.0
    %5571 = vmatpush1.msra.mxu0 0.0
    %5572 = vmatprep.subr.mxu0 0.0
    %5573 = vmatpush1.msra.mxu0 0.0
    %5574 = vmatprep.subr.mxu0 0.0
    %5575 = vmatpush1.msra.mxu0 0.0
    %5576 = vmatprep.subr.mxu0 0.0
    %5577 = vmatpush1.msra.mxu0 0.0
    %5578 = vmatprep.subr.mxu0 0.0
    %5579 = vmatpush1.msra.mxu0 0.0
    %5580 = vmatprep.subr.mxu0 0.0
    %5581 = vmatpush1.msra.mxu0 0.0
    %5582 = vmatprep.subr.mxu0 0.0
    %5583 = vmatpush1.msra.mxu0 0.0
    %5584 = vmatprep.subr.mxu0 0.0
    %5585 = vmatpush1.msra.mxu0 0.0
    %5586 = vmatprep.subr.mxu0 0.0
    %5587 = vmatpush1.msra.mxu0 0.0
    %5588 = vmatprep.subr.mxu0 0.0
    %5589 = vmatpush1.msra.mxu0 0.0
    %5590 = vmatprep.subr.mxu0 0.0
    %5591 = vmatpush1.msra.mxu0 0.0
    %5592 = vmatprep.subr.mxu0 0.0
    %5593 = vmatpush1.msra.mxu0 0.0
    %5594 = vmatprep.subr.mxu0 0.0
    %5595 = vmatpush1.msra.mxu0 0.0
    %5596 = vmatprep.subr.mxu0 0.0
    %5597 = vmatpush1.msra.mxu0 0.0
    %5598 = vmatprep.subr.mxu0 0.0
    %5599 = vmatpush1.msra.mxu0 0.0
    %5600 = vmatprep.subr.mxu0 0.0
    %5601 = vmatpush1.msra.mxu0 0.0
    %5602 = vmatprep.subr.mxu0 0.0
    %5603 = vmatpush1.msra.mxu0 0.0
    %5604 = vmatprep.subr.mxu0 0.0
    %5605 = vmatpush1.msra.mxu0 0.0
    %5606 = vmatprep.subr.mxu0 0.0
    %5607 = vmatpush1.msra.mxu0 0.0
    %5608 = vmatprep.subr.mxu0 0.0
    %5609 = vmatpush1.msra.mxu0 0.0
    %5610 = vmatprep.subr.mxu0 0.0
    %5611 = vmatpush1.msra.mxu0 0.0
    %5612 = vmatprep.subr.mxu0 0.0
    %5613 = vmatpush1.msra.mxu0 0.0
    %5614 = vmatprep.subr.mxu0 0.0
    %5615 = vmatpush1.msra.mxu0 0.0
    %5616 = vmatprep.subr.mxu0 0.0
    %5617 = vmatpush1.msra.mxu0 0.0
    %5618 = vmatprep.subr.mxu0 0.0
    %5619 = vmatpush1.msra.mxu0 0.0
    %5620 = vmatprep.subr.mxu0 0.0
    %5621 = vmatpush1.msra.mxu0 0.0
    %5622 = vmatprep.subr.mxu0 0.0
    %5623 = vmatpush1.msra.mxu0 0.0
    %5624 = vmatprep.subr.mxu0 0.0
    %5625 = vmatpush1.msra.mxu0 0.0
    %5626 = vmatprep.mubr.f32.mxu0 0.0
    %5627 = vmatmul.mubr.f32.gmra.mrb[0].mxu0 %v5560
    %v5628 = vpop.f32.mrb[0].mxu0
    %v5629 = vadd.f32 0.0, %v5628
    %v5630 = vpop.f32.mrb[0].mxu0
    %5631 = vdwg.mxu0
    %v5632 = vadd.f32 %v5556, %v5629
    %v5633 = vxor.u32 %v5632, 2147483648
    %v5634 = vmul.f32 %v5633, 1.442695
    %v5635 = vpow.pop %v5634
    %v5636 = vadd.f32 %v5635, 1.0
    %v5637 = vrcp.pop %v5636
    %v5638 = vmul.f32 1.0, %v5637
    %v5639 = vmul.f32 %v5638, 2.0
    %v5640 = vsub.f32 %v5639, 1.0
    %v5641 = vmul.f32 %v5638, %v5472
    %5643 = vrot.lane.b32.xlu0 %v5640, 64
    %v5644 = vpop.permute.xlu0 %5643
    %v5646 = vmul.f32 %v5638, %v5644
    %5648 = vrot.lane.b32.xlu0 %v5646, 32
    %v5649 = vpop.permute.xlu0 %5648
    %v5651 = vadd.f32 %v5641, %v5649
    %v5652 = vtanh.pop %v5651
    %5654 = vrot.lane.b32.xlu0 %v5652, 64
    %v5655 = vpop.permute.xlu0 %5654
    %v5657 = vmul.f32 %v5638, %v5655
    %v5658 = vmax.f32 %v5657, 0.0
    %5660 = vrot.lane.b32.xlu0 %v5658, 32
    %v5661 = vpop.permute.xlu0 %5660
    %v5662 = vsel %vm159, %v5661, 0
    %5664 = vmatprep.subr.mxu0 0.0
    %5665 = vmatpush1.msra.mxu0 %v4649
    %5666 = vmatprep.subr.mxu0 0.0
    %5667 = vmatpush1.msra.mxu0 %v4650
    %5668 = vmatprep.subr.mxu0 0.0
    %5669 = vmatpush1.msra.mxu0 %v4651
    %5670 = vmatprep.subr.mxu0 0.0
    %5671 = vmatpush1.msra.mxu0 %v4652
    %5672 = vmatprep.subr.mxu0 0.0
    %5673 = vmatpush1.msra.mxu0 0.0
    %5674 = vmatprep.subr.mxu0 0.0
    %5675 = vmatpush1.msra.mxu0 0.0
    %5676 = vmatprep.subr.mxu0 0.0
    %5677 = vmatpush1.msra.mxu0 0.0
    %5678 = vmatprep.subr.mxu0 0.0
    %5679 = vmatpush1.msra.mxu0 0.0
    %5680 = vmatprep.subr.mxu0 0.0
    %5681 = vmatpush1.msra.mxu0 0.0
    %5682 = vmatprep.subr.mxu0 0.0
    %5683 = vmatpush1.msra.mxu0 0.0
    %5684 = vmatprep.subr.mxu0 0.0
    %5685 = vmatpush1.msra.mxu0 0.0
    %5686 = vmatprep.subr.mxu0 0.0
    %5687 = vmatpush1.msra.mxu0 0.0
    %5688 = vmatprep.subr.mxu0 0.0
    %5689 = vmatpush1.msra.mxu0 0.0
    %5690 = vmatprep.subr.mxu0 0.0
    %5691 = vmatpush1.msra.mxu0 0.0
    %5692 = vmatprep.subr.mxu0 0.0
    %5693 = vmatpush1.msra.mxu0 0.0
    %5694 = vmatprep.subr.mxu0 0.0
    %5695 = vmatpush1.msra.mxu0 0.0
    %5696 = vmatprep.subr.mxu0 0.0
    %5697 = vmatpush1.msra.mxu0 0.0
    %5698 = vmatprep.subr.mxu0 0.0
    %5699 = vmatpush1.msra.mxu0 0.0
    %5700 = vmatprep.subr.mxu0 0.0
    %5701 = vmatpush1.msra.mxu0 0.0
    %5702 = vmatprep.subr.mxu0 0.0
    %5703 = vmatpush1.msra.mxu0 0.0
    %5704 = vmatprep.subr.mxu0 0.0
    %5705 = vmatpush1.msra.mxu0 0.0
    %5706 = vmatprep.subr.mxu0 0.0
    %5707 = vmatpush1.msra.mxu0 0.0
    %5708 = vmatprep.subr.mxu0 0.0
    %5709 = vmatpush1.msra.mxu0 0.0
    %5710 = vmatprep.subr.mxu0 0.0
    %5711 = vmatpush1.msra.mxu0 0.0
    %5712 = vmatprep.subr.mxu0 0.0
    %5713 = vmatpush1.msra.mxu0 0.0
    %5714 = vmatprep.subr.mxu0 0.0
    %5715 = vmatpush1.msra.mxu0 0.0
    %5716 = vmatprep.subr.mxu0 0.0
    %5717 = vmatpush1.msra.mxu0 0.0
    %5718 = vmatprep.subr.mxu0 0.0
    %5719 = vmatpush1.msra.mxu0 0.0
    %5720 = vmatprep.subr.mxu0 0.0
    %5721 = vmatpush1.msra.mxu0 0.0
    %5722 = vmatprep.subr.mxu0 0.0
    %5723 = vmatpush1.msra.mxu0 0.0
    %5724 = vmatprep.subr.mxu0 0.0
    %5725 = vmatpush1.msra.mxu0 0.0
    %5726 = vmatprep.subr.mxu0 0.0
    %5727 = vmatpush1.msra.mxu0 0.0
    %5728 = vmatprep.mubr.f32.mxu0 0.0
    %5729 = vmatmul.mubr.f32.gmra.mrb[0].mxu0 %v5662
    %v5730 = vpop.f32.mrb[0].mxu0
    %v5731 = vadd.f32 %v4762, %v5730
    %v5732 = vpop.f32.mrb[0].mxu0
    %5733 = vdwg.mxu0
    %5734 = vst [vmem:[%s1203] sm:$0x3] %v5731
    %v5735 = vld [vmem:[%s1383] sm:$0x3]
    %5737 = vrot.lane.b32.xlu0 %v5657, 32
    %v5738 = vpop.permute.xlu0 %5737
    %v5739 = vsel %vm159, %v5738, 0
    %5741 = vmatprep.subr.mxu0 0.0
    %5742 = vmatpush1.msra.mxu0 %v4644
    %5743 = vmatprep.subr.mxu0 0.0
    %5744 = vmatpush1.msra.mxu0 %v4645
    %5745 = vmatprep.subr.mxu0 0.0
    %5746 = vmatpush1.msra.mxu0 %v4646
    %5747 = vmatprep.subr.mxu0 0.0
    %5748 = vmatpush1.msra.mxu0 %v4647
    %5749 = vmatprep.subr.mxu0 0.0
    %5750 = vmatpush1.msra.mxu0 0.0
    %5751 = vmatprep.subr.mxu0 0.0
    %5752 = vmatpush1.msra.mxu0 0.0
    %5753 = vmatprep.subr.mxu0 0.0
    %5754 = vmatpush1.msra.mxu0 0.0
    %5755 = vmatprep.subr.mxu0 0.0
    %5756 = vmatpush1.msra.mxu0 0.0
    %5757 = vmatprep.subr.mxu0 0.0
    %5758 = vmatpush1.msra.mxu0 0.0
    %5759 = vmatprep.subr.mxu0 0.0
    %5760 = vmatpush1.msra.mxu0 0.0
    %5761 = vmatprep.subr.mxu0 0.0
    %5762 = vmatpush1.msra.mxu0 0.0
    %5763 = vmatprep.subr.mxu0 0.0
    %5764 = vmatpush1.msra.mxu0 0.0
    %5765 = vmatprep.subr.mxu0 0.0
    %5766 = vmatpush1.msra.mxu0 0.0
    %5767 = vmatprep.subr.mxu0 0.0
    %5768 = vmatpush1.msra.mxu0 0.0
    %5769 = vmatprep.subr.mxu0 0.0
    %5770 = vmatpush1.msra.mxu0 0.0
    %5771 = vmatprep.subr.mxu0 0.0
    %5772 = vmatpush1.msra.mxu0 0.0
    %5773 = vmatprep.subr.mxu0 0.0
    %5774 = vmatpush1.msra.mxu0 0.0
    %5775 = vmatprep.subr.mxu0 0.0
    %5776 = vmatpush1.msra.mxu0 0.0
    %5777 = vmatprep.subr.mxu0 0.0
    %5778 = vmatpush1.msra.mxu0 0.0
    %5779 = vmatprep.subr.mxu0 0.0
    %5780 = vmatpush1.msra.mxu0 0.0
    %5781 = vmatprep.subr.mxu0 0.0
    %5782 = vmatpush1.msra.mxu0 0.0
    %5783 = vmatprep.subr.mxu0 0.0
    %5784 = vmatpush1.msra.mxu0 0.0
    %5785 = vmatprep.subr.mxu0 0.0
    %5786 = vmatpush1.msra.mxu0 0.0
    %5787 = vmatprep.subr.mxu0 0.0
    %5788 = vmatpush1.msra.mxu0 0.0
    %5789 = vmatprep.subr.mxu0 0.0
    %5790 = vmatpush1.msra.mxu0 0.0
    %5791 = vmatprep.subr.mxu0 0.0
    %5792 = vmatpush1.msra.mxu0 0.0
    %5793 = vmatprep.subr.mxu0 0.0
    %5794 = vmatpush1.msra.mxu0 0.0
    %5795 = vmatprep.subr.mxu0 0.0
    %5796 = vmatpush1.msra.mxu0 0.0
    %5797 = vmatprep.subr.mxu0 0.0
    %5798 = vmatpush1.msra.mxu0 0.0
    %5799 = vmatprep.subr.mxu0 0.0
    %5800 = vmatpush1.msra.mxu0 0.0
    %5801 = vmatprep.subr.mxu0 0.0
    %5802 = vmatpush1.msra.mxu0 0.0
    %5803 = vmatprep.subr.mxu0 0.0
    %5804 = vmatpush1.msra.mxu0 0.0
    %5805 = vmatprep.mubr.f32.mxu0 0.0
    %5806 = vmatmul.mubr.f32.gmra.mrb[0].mxu0 %v5739
    %v5807 = vpop.f32.mrb[0].mxu0
    %v5808 = vadd.f32 0.0, %v5807
    %v5809 = vpop.f32.mrb[0].mxu0
    %5810 = vdwg.mxu0
    %v5811 = vadd.f32 %v5735, %v5808
    %v5812 = vxor.u32 %v5811, 2147483648
    %v5813 = vmul.f32 %v5812, 1.442695
    %v5814 = vpow.pop %v5813
    %v5815 = vadd.f32 %v5814, 1.0
    %v5816 = vrcp.pop %v5815
    %v5817 = vmul.f32 1.0, %v5816
    %v5818 = vmul.f32 %v5817, 2.0
    %v5819 = vsub.f32 %v5818, 1.0
    %v5820 = vmul.f32 %v5817, %v5651
    %5822 = vrot.lane.b32.xlu0 %v5819, 64
    %v5823 = vpop.permute.xlu0 %5822
    %v5825 = vmul.f32 %v5817, %v5823
    %5827 = vrot.lane.b32.xlu0 %v5825, 32
    %v5828 = vpop.permute.xlu0 %5827
    %v5830 = vadd.f32 %v5820, %v5828
    %v5831 = vtanh.pop %v5830
    %5833 = vrot.lane.b32.xlu0 %v5831, 64
    %v5834 = vpop.permute.xlu0 %5833
    %v5836 = vmul.f32 %v5817, %v5834
    %v5837 = vmax.f32 %v5836, 0.0
    %5839 = vrot.lane.b32.xlu0 %v5837, 32
    %v5840 = vpop.permute.xlu0 %5839
    %v5841 = vsel %vm159, %v5840, 0
    %5843 = vmatprep.subr.mxu0 0.0
    %5844 = vmatpush1.msra.mxu0 %v4649
    %5845 = vmatprep.subr.mxu0 0.0
    %5846 = vmatpush1.msra.mxu0 %v4650
    %5847 = vmatprep.subr.mxu0 0.0
    %5848 = vmatpush1.msra.mxu0 %v4651
    %5849 = vmatprep.subr.mxu0 0.0
    %5850 = vmatpush1.msra.mxu0 %v4652
    %5851 = vmatprep.subr.mxu0 0.0
    %5852 = vmatpush1.msra.mxu0 0.0
    %5853 = vmatprep.subr.mxu0 0.0
    %5854 = vmatpush1.msra.mxu0 0.0
    %5855 = vmatprep.subr.mxu0 0.0
    %5856 = vmatpush1.msra.mxu0 0.0
    %5857 = vmatprep.subr.mxu0 0.0
    %5858 = vmatpush1.msra.mxu0 0.0
    %5859 = vmatprep.subr.mxu0 0.0
    %5860 = vmatpush1.msra.mxu0 0.0
    %5861 = vmatprep.subr.mxu0 0.0
    %5862 = vmatpush1.msra.mxu0 0.0
    %5863 = vmatprep.subr.mxu0 0.0
    %5864 = vmatpush1.msra.mxu0 0.0
    %5865 = vmatprep.subr.mxu0 0.0
    %5866 = vmatpush1.msra.mxu0 0.0
    %5867 = vmatprep.subr.mxu0 0.0
    %5868 = vmatpush1.msra.mxu0 0.0
    %5869 = vmatprep.subr.mxu0 0.0
    %5870 = vmatpush1.msra.mxu0 0.0
    %5871 = vmatprep.subr.mxu0 0.0
    %5872 = vmatpush1.msra.mxu0 0.0
    %5873 = vmatprep.subr.mxu0 0.0
    %5874 = vmatpush1.msra.mxu0 0.0
    %5875 = vmatprep.subr.mxu0 0.0
    %5876 = vmatpush1.msra.mxu0 0.0
    %5877 = vmatprep.subr.mxu0 0.0
    %5878 = vmatpush1.msra.mxu0 0.0
    %5879 = vmatprep.subr.mxu0 0.0
    %5880 = vmatpush1.msra.mxu0 0.0
    %5881 = vmatprep.subr.mxu0 0.0
    %5882 = vmatpush1.msra.mxu0 0.0
    %5883 = vmatprep.subr.mxu0 0.0
    %5884 = vmatpush1.msra.mxu0 0.0
    %5885 = vmatprep.subr.mxu0 0.0
    %5886 = vmatpush1.msra.mxu0 0.0
    %5887 = vmatprep.subr.mxu0 0.0
    %5888 = vmatpush1.msra.mxu0 0.0
    %5889 = vmatprep.subr.mxu0 0.0
    %5890 = vmatpush1.msra.mxu0 0.0
    %5891 = vmatprep.subr.mxu0 0.0
    %5892 = vmatpush1.msra.mxu0 0.0
    %5893 = vmatprep.subr.mxu0 0.0
    %5894 = vmatpush1.msra.mxu0 0.0
    %5895 = vmatprep.subr.mxu0 0.0
    %5896 = vmatpush1.msra.mxu0 0.0
    %5897 = vmatprep.subr.mxu0 0.0
    %5898 = vmatpush1.msra.mxu0 0.0
    %5899 = vmatprep.subr.mxu0 0.0
    %5900 = vmatpush1.msra.mxu0 0.0
    %5901 = vmatprep.subr.mxu0 0.0
    %5902 = vmatpush1.msra.mxu0 0.0
    %5903 = vmatprep.subr.mxu0 0.0
    %5904 = vmatpush1.msra.mxu0 0.0
    %5905 = vmatprep.subr.mxu0 0.0
    %5906 = vmatpush1.msra.mxu0 0.0
    %5907 = vmatprep.mubr.f32.mxu0 0.0
    %5908 = vmatmul.mubr.f32.gmra.mrb[0].mxu0 %v5841
    %v5909 = vpop.f32.mrb[0].mxu0
    %v5910 = vadd.f32 %v4762, %v5909
    %v5911 = vpop.f32.mrb[0].mxu0
    %5912 = vdwg.mxu0
    %5913 = vst [vmem:[%s1383] sm:$0x3] %v5910
    %v5914 = vld [vmem:[%s1563] sm:$0x3]
    %5916 = vrot.lane.b32.xlu0 %v5836, 32
    %v5917 = vpop.permute.xlu0 %5916
    %v5918 = vsel %vm159, %v5917, 0
    %5920 = vmatprep.subr.mxu0 0.0
    %5921 = vmatpush1.msra.mxu0 %v4644
    %5922 = vmatprep.subr.mxu0 0.0
    %5923 = vmatpush1.msra.mxu0 %v4645
    %5924 = vmatprep.subr.mxu0 0.0
    %5925 = vmatpush1.msra.mxu0 %v4646
    %5926 = vmatprep.subr.mxu0 0.0
    %5927 = vmatpush1.msra.mxu0 %v4647
    %5928 = vmatprep.subr.mxu0 0.0
    %5929 = vmatpush1.msra.mxu0 0.0
    %5930 = vmatprep.subr.mxu0 0.0
    %5931 = vmatpush1.msra.mxu0 0.0
    %5932 = vmatprep.subr.mxu0 0.0
    %5933 = vmatpush1.msra.mxu0 0.0
    %5934 = vmatprep.subr.mxu0 0.0
    %5935 = vmatpush1.msra.mxu0 0.0
    %5936 = vmatprep.subr.mxu0 0.0
    %5937 = vmatpush1.msra.mxu0 0.0
    %5938 = vmatprep.subr.mxu0 0.0
    %5939 = vmatpush1.msra.mxu0 0.0
    %5940 = vmatprep.subr.mxu0 0.0
    %5941 = vmatpush1.msra.mxu0 0.0
    %5942 = vmatprep.subr.mxu0 0.0
    %5943 = vmatpush1.msra.mxu0 0.0
    %5944 = vmatprep.subr.mxu0 0.0
    %5945 = vmatpush1.msra.mxu0 0.0
    %5946 = vmatprep.subr.mxu0 0.0
    %5947 = vmatpush1.msra.mxu0 0.0
    %5948 = vmatprep.subr.mxu0 0.0
    %5949 = vmatpush1.msra.mxu0 0.0
    %5950 = vmatprep.subr.mxu0 0.0
    %5951 = vmatpush1.msra.mxu0 0.0
    %5952 = vmatprep.subr.mxu0 0.0
    %5953 = vmatpush1.msra.mxu0 0.0
    %5954 = vmatprep.subr.mxu0 0.0
    %5955 = vmatpush1.msra.mxu0 0.0
    %5956 = vmatprep.subr.mxu0 0.0
    %5957 = vmatpush1.msra.mxu0 0.0
    %5958 = vmatprep.subr.mxu0 0.0
    %5959 = vmatpush1.msra.mxu0 0.0
    %5960 = vmatprep.subr.mxu0 0.0
    %5961 = vmatpush1.msra.mxu0 0.0
    %5962 = vmatprep.subr.mxu0 0.0
    %5963 = vmatpush1.msra.mxu0 0.0
    %5964 = vmatprep.subr.mxu0 0.0
    %5965 = vmatpush1.msra.mxu0 0.0
    %5966 = vmatprep.subr.mxu0 0.0
    %5967 = vmatpush1.msra.mxu0 0.0
    %5968 = vmatprep.subr.mxu0 0.0
    %5969 = vmatpush1.msra.mxu0 0.0
    %5970 = vmatprep.subr.mxu0 0.0
    %5971 = vmatpush1.msra.mxu0 0.0
    %5972 = vmatprep.subr.mxu0 0.0
    %5973 = vmatpush1.msra.mxu0 0.0
    %5974 = vmatprep.subr.mxu0 0.0
    %5975 = vmatpush1.msra.mxu0 0.0
    %5976 = vmatprep.subr.mxu0 0.0
    %5977 = vmatpush1.msra.mxu0 0.0
    %5978 = vmatprep.subr.mxu0 0.0
    %5979 = vmatpush1.msra.mxu0 0.0
    %5980 = vmatprep.subr.mxu0 0.0
    %5981 = vmatpush1.msra.mxu0 0.0
    %5982 = vmatprep.subr.mxu0 0.0
    %5983 = vmatpush1.msra.mxu0 0.0
    %5984 = vmatprep.mubr.f32.mxu0 0.0
    %5985 = vmatmul.mubr.f32.gmra.mrb[0].mxu0 %v5918
    %v5986 = vpop.f32.mrb[0].mxu0
    %v5987 = vadd.f32 0.0, %v5986
    %v5988 = vpop.f32.mrb[0].mxu0
    %5989 = vdwg.mxu0
    %v5990 = vadd.f32 %v5914, %v5987
    %v5991 = vxor.u32 %v5990, 2147483648
    %v5992 = vmul.f32 %v5991, 1.442695
    %v5993 = vpow.pop %v5992
    %v5994 = vadd.f32 %v5993, 1.0
    %v5995 = vrcp.pop %v5994
    %v5996 = vmul.f32 1.0, %v5995
    %v5997 = vmul.f32 %v5996, 2.0
    %v5998 = vsub.f32 %v5997, 1.0
    %v5999 = vmul.f32 %v5996, %v5830
    %6001 = vrot.lane.b32.xlu0 %v5998, 64
    %v6002 = vpop.permute.xlu0 %6001
    %v6004 = vmul.f32 %v5996, %v6002
    %6006 = vrot.lane.b32.xlu0 %v6004, 32
    %v6007 = vpop.permute.xlu0 %6006
    %v6009 = vadd.f32 %v5999, %v6007
    %v6010 = vtanh.pop %v6009
    %6012 = vrot.lane.b32.xlu0 %v6010, 64
    %v6013 = vpop.permute.xlu0 %6012
    %v6015 = vmul.f32 %v5996, %v6013
    %v6016 = vmax.f32 %v6015, 0.0
    %6018 = vrot.lane.b32.xlu0 %v6016, 32
    %v6019 = vpop.permute.xlu0 %6018
    %v6020 = vsel %vm159, %v6019, 0
    %6022 = vmatprep.subr.mxu0 0.0
    %6023 = vmatpush1.msra.mxu0 %v4649
    %6024 = vmatprep.subr.mxu0 0.0
    %6025 = vmatpush1.msra.mxu0 %v4650
    %6026 = vmatprep.subr.mxu0 0.0
    %6027 = vmatpush1.msra.mxu0 %v4651
    %6028 = vmatprep.subr.mxu0 0.0
    %6029 = vmatpush1.msra.mxu0 %v4652
    %6030 = vmatprep.subr.mxu0 0.0
    %6031 = vmatpush1.msra.mxu0 0.0
    %6032 = vmatprep.subr.mxu0 0.0
    %6033 = vmatpush1.msra.mxu0 0.0
    %6034 = vmatprep.subr.mxu0 0.0
    %6035 = vmatpush1.msra.mxu0 0.0
    %6036 = vmatprep.subr.mxu0 0.0
    %6037 = vmatpush1.msra.mxu0 0.0
    %6038 = vmatprep.subr.mxu0 0.0
    %6039 = vmatpush1.msra.mxu0 0.0
    %6040 = vmatprep.subr.mxu0 0.0
    %6041 = vmatpush1.msra.mxu0 0.0
    %6042 = vmatprep.subr.mxu0 0.0
    %6043 = vmatpush1.msra.mxu0 0.0
    %6044 = vmatprep.subr.mxu0 0.0
    %6045 = vmatpush1.msra.mxu0 0.0
    %6046 = vmatprep.subr.mxu0 0.0
    %6047 = vmatpush1.msra.mxu0 0.0
    %6048 = vmatprep.subr.mxu0 0.0
    %6049 = vmatpush1.msra.mxu0 0.0
    %6050 = vmatprep.subr.mxu0 0.0
    %6051 = vmatpush1.msra.mxu0 0.0
    %6052 = vmatprep.subr.mxu0 0.0
    %6053 = vmatpush1.msra.mxu0 0.0
    %6054 = vmatprep.subr.mxu0 0.0
    %6055 = vmatpush1.msra.mxu0 0.0
    %6056 = vmatprep.subr.mxu0 0.0
    %6057 = vmatpush1.msra.mxu0 0.0
    %6058 = vmatprep.subr.mxu0 0.0
    %6059 = vmatpush1.msra.mxu0 0.0
    %6060 = vmatprep.subr.mxu0 0.0
    %6061 = vmatpush1.msra.mxu0 0.0
    %6062 = vmatprep.subr.mxu0 0.0
    %6063 = vmatpush1.msra.mxu0 0.0
    %6064 = vmatprep.subr.mxu0 0.0
    %6065 = vmatpush1.msra.mxu0 0.0
    %6066 = vmatprep.subr.mxu0 0.0
    %6067 = vmatpush1.msra.mxu0 0.0
    %6068 = vmatprep.subr.mxu0 0.0
    %6069 = vmatpush1.msra.mxu0 0.0
    %6070 = vmatprep.subr.mxu0 0.0
    %6071 = vmatpush1.msra.mxu0 0.0
    %6072 = vmatprep.subr.mxu0 0.0
    %6073 = vmatpush1.msra.mxu0 0.0
    %6074 = vmatprep.subr.mxu0 0.0
    %6075 = vmatpush1.msra.mxu0 0.0
    %6076 = vmatprep.subr.mxu0 0.0
    %6077 = vmatpush1.msra.mxu0 0.0
    %6078 = vmatprep.subr.mxu0 0.0
    %6079 = vmatpush1.msra.mxu0 0.0
    %6080 = vmatprep.subr.mxu0 0.0
    %6081 = vmatpush1.msra.mxu0 0.0
    %6082 = vmatprep.subr.mxu0 0.0
    %6083 = vmatpush1.msra.mxu0 0.0
    %6084 = vmatprep.subr.mxu0 0.0
    %6085 = vmatpush1.msra.mxu0 0.0
    %6086 = vmatprep.mubr.f32.mxu0 0.0
    %6087 = vmatmul.mubr.f32.gmra.mrb[0].mxu0 %v6020
    %v6088 = vpop.f32.mrb[0].mxu0
    %v6089 = vadd.f32 %v4762, %v6088
    %v6090 = vpop.f32.mrb[0].mxu0
    %6091 = vdwg.mxu0
    %6092 = vst [vmem:[%s1563] sm:$0x3] %v6089
    %s6093 = scalar_lea.vmem [#allocation8], 128
    %v6094 = vld [vmem:[%s6093] sm:$0xff]
    %v6095 = vld [vmem:[%s6093 + $0x8] sm:$0xff]
    %v6096 = vld [vmem:[%s6093 + $0x10] sm:$0xff]
    %v6097 = vld [vmem:[%s6093 + $0x18] sm:$0xff]
    %v6098 = vld [vmem:[#allocation11] sm:$0xff]
    %v6099 = vld [vmem:[#allocation11 + $0x8] sm:$0xff]
    %v6100 = vld [vmem:[#allocation11 + $0x10] sm:$0xff]
    %v6101 = vld [vmem:[#allocation11 + $0x18] sm:$0xff]
    %v6102 = vld [vmem:[%s7] sm:$0x1]
    %v6103 = vld [vmem:[#allocation2] sm:$0x3]
    %6105 = vrot.lane.b32.xlu0 %v6015, 32
    %v6106 = vpop.permute.xlu0 %6105
    %v6107 = vsel %vm159, %v6106, 0
    %6109 = vmatprep.subr.mxu0 0.0
    %6110 = vmatpush1.msra.mxu0 %v6094
    %6111 = vmatprep.subr.mxu0 0.0
    %6112 = vmatpush1.msra.mxu0 %v6095
    %6113 = vmatprep.subr.mxu0 0.0
    %6114 = vmatpush1.msra.mxu0 %v6096
    %6115 = vmatprep.subr.mxu0 0.0
    %6116 = vmatpush1.msra.mxu0 %v6097
    %6117 = vmatprep.subr.mxu0 0.0
    %6118 = vmatpush1.msra.mxu0 0.0
    %6119 = vmatprep.subr.mxu0 0.0
    %6120 = vmatpush1.msra.mxu0 0.0
    %6121 = vmatprep.subr.mxu0 0.0
    %6122 = vmatpush1.msra.mxu0 0.0
    %6123 = vmatprep.subr.mxu0 0.0
    %6124 = vmatpush1.msra.mxu0 0.0
    %6125 = vmatprep.subr.mxu0 0.0
    %6126 = vmatpush1.msra.mxu0 0.0
    %6127 = vmatprep.subr.mxu0 0.0
    %6128 = vmatpush1.msra.mxu0 0.0
    %6129 = vmatprep.subr.mxu0 0.0
    %6130 = vmatpush1.msra.mxu0 0.0
    %6131 = vmatprep.subr.mxu0 0.0
    %6132 = vmatpush1.msra.mxu0 0.0
    %6133 = vmatprep.subr.mxu0 0.0
    %6134 = vmatpush1.msra.mxu0 0.0
    %6135 = vmatprep.subr.mxu0 0.0
    %6136 = vmatpush1.msra.mxu0 0.0
    %6137 = vmatprep.subr.mxu0 0.0
    %6138 = vmatpush1.msra.mxu0 0.0
    %6139 = vmatprep.subr.mxu0 0.0
    %6140 = vmatpush1.msra.mxu0 0.0
    %6141 = vmatprep.subr.mxu0 0.0
    %6142 = vmatpush1.msra.mxu0 0.0
    %6143 = vmatprep.subr.mxu0 0.0
    %6144 = vmatpush1.msra.mxu0 0.0
    %6145 = vmatprep.subr.mxu0 0.0
    %6146 = vmatpush1.msra.mxu0 0.0
    %6147 = vmatprep.subr.mxu0 0.0
    %6148 = vmatpush1.msra.mxu0 0.0
    %6149 = vmatprep.subr.mxu0 0.0
    %6150 = vmatpush1.msra.mxu0 0.0
    %6151 = vmatprep.subr.mxu0 0.0
    %6152 = vmatpush1.msra.mxu0 0.0
    %6153 = vmatprep.subr.mxu0 0.0
    %6154 = vmatpush1.msra.mxu0 0.0
    %6155 = vmatprep.subr.mxu0 0.0
    %6156 = vmatpush1.msra.mxu0 0.0
    %6157 = vmatprep.subr.mxu0 0.0
    %6158 = vmatpush1.msra.mxu0 0.0
    %6159 = vmatprep.subr.mxu0 0.0
    %6160 = vmatpush1.msra.mxu0 0.0
    %6161 = vmatprep.subr.mxu0 0.0
    %6162 = vmatpush1.msra.mxu0 0.0
    %6163 = vmatprep.subr.mxu0 0.0
    %6164 = vmatpush1.msra.mxu0 0.0
    %6165 = vmatprep.subr.mxu0 0.0
    %6166 = vmatpush1.msra.mxu0 0.0
    %6167 = vmatprep.subr.mxu0 0.0
    %6168 = vmatpush1.msra.mxu0 0.0
    %6169 = vmatprep.subr.mxu0 0.0
    %6170 = vmatpush1.msra.mxu0 0.0
    %6171 = vmatprep.subr.mxu0 0.0
    %6172 = vmatpush1.msra.mxu0 0.0
    %6173 = vmatprep.mubr.f32.mxu0 0.0
    %6174 = vmatmul.mubr.f32.gmra.mrb[0].mxu0 %v6107
    %v6175 = vpop.f32.mrb[0].mxu0
    %v6176 = vadd.f32 0.0, %v6175
    %v6177 = vpop.f32.mrb[0].mxu0
    %6178 = vdwg.mxu0
    %v6179 = vadd.f32 %v6103, %v6176
    %v6180 = vxor.u32 %v6179, 2147483648
    %v6181 = vmul.f32 %v6180, 1.442695
    %v6182 = vpow.pop %v6181
    %v6183 = vadd.f32 %v6182, 1.0
    %v6184 = vrcp.pop %v6183
    %v6185 = vmul.f32 1.0, %v6184
    %v6186 = vmul.f32 %v6185, 2.0
    %v6187 = vsub.f32 %v6186, 1.0
    %v6188 = vmul.f32 %v6185, %v6009
    %6190 = vrot.lane.b32.xlu0 %v6187, 64
    %v6191 = vpop.permute.xlu0 %6190
    %v6193 = vmul.f32 %v6185, %v6191
    %6195 = vrot.lane.b32.xlu0 %v6193, 32
    %v6196 = vpop.permute.xlu0 %6195
    %v6198 = vadd.f32 %v6188, %v6196
    %v6199 = vtanh.pop %v6198
    %6201 = vrot.lane.b32.xlu0 %v6199, 64
    %v6202 = vpop.permute.xlu0 %6201
    %v6204 = vmul.f32 %v6185, %v6202
    %v6205 = vtanh.pop %v6204
    %v6207 = vlaneseq
    %v6208 = vshrl.u32 %v6207, 7
    %v6209 = vsub.s32 0, %v6208
    %v6210 = vrot.slane %v6102, %v6209
    %6213 = vrot.lane.b32.xlu0 %v6205, 32
    %v6214 = vpop.permute.xlu0 %6213
    %v6215 = vsel %vm159, %v6214, 0
    %6217 = vmatprep.subr.mxu0 0.0
    %6218 = vmatpush1.msra.mxu0 %v6098
    %6219 = vmatprep.subr.mxu0 0.0
    %6220 = vmatpush1.msra.mxu0 %v6099
    %6221 = vmatprep.subr.mxu0 0.0
    %6222 = vmatpush1.msra.mxu0 %v6100
    %6223 = vmatprep.subr.mxu0 0.0
    %6224 = vmatpush1.msra.mxu0 %v6101
    %6225 = vmatprep.subr.mxu0 0.0
    %6226 = vmatpush1.msra.mxu0 0.0
    %6227 = vmatprep.subr.mxu0 0.0
    %6228 = vmatpush1.msra.mxu0 0.0
    %6229 = vmatprep.subr.mxu0 0.0
    %6230 = vmatpush1.msra.mxu0 0.0
    %6231 = vmatprep.subr.mxu0 0.0
    %6232 = vmatpush1.msra.mxu0 0.0
    %6233 = vmatprep.subr.mxu0 0.0
    %6234 = vmatpush1.msra.mxu0 0.0
    %6235 = vmatprep.subr.mxu0 0.0
    %6236 = vmatpush1.msra.mxu0 0.0
    %6237 = vmatprep.subr.mxu0 0.0
    %6238 = vmatpush1.msra.mxu0 0.0
    %6239 = vmatprep.subr.mxu0 0.0
    %6240 = vmatpush1.msra.mxu0 0.0
    %6241 = vmatprep.subr.mxu0 0.0
    %6242 = vmatpush1.msra.mxu0 0.0
    %6243 = vmatprep.subr.mxu0 0.0
    %6244 = vmatpush1.msra.mxu0 0.0
    %6245 = vmatprep.subr.mxu0 0.0
    %6246 = vmatpush1.msra.mxu0 0.0
    %6247 = vmatprep.subr.mxu0 0.0
    %6248 = vmatpush1.msra.mxu0 0.0
    %6249 = vmatprep.subr.mxu0 0.0
    %6250 = vmatpush1.msra.mxu0 0.0
    %6251 = vmatprep.subr.mxu0 0.0
    %6252 = vmatpush1.msra.mxu0 0.0
    %6253 = vmatprep.subr.mxu0 0.0
    %6254 = vmatpush1.msra.mxu0 0.0
    %6255 = vmatprep.subr.mxu0 0.0
    %6256 = vmatpush1.msra.mxu0 0.0
    %6257 = vmatprep.subr.mxu0 0.0
    %6258 = vmatpush1.msra.mxu0 0.0
    %6259 = vmatprep.subr.mxu0 0.0
    %6260 = vmatpush1.msra.mxu0 0.0
    %6261 = vmatprep.subr.mxu0 0.0
    %6262 = vmatpush1.msra.mxu0 0.0
    %6263 = vmatprep.subr.mxu0 0.0
    %6264 = vmatpush1.msra.mxu0 0.0
    %6265 = vmatprep.subr.mxu0 0.0
    %6266 = vmatpush1.msra.mxu0 0.0
    %6267 = vmatprep.subr.mxu0 0.0
    %6268 = vmatpush1.msra.mxu0 0.0
    %6269 = vmatprep.subr.mxu0 0.0
    %6270 = vmatpush1.msra.mxu0 0.0
    %6271 = vmatprep.subr.mxu0 0.0
    %6272 = vmatpush1.msra.mxu0 0.0
    %6273 = vmatprep.subr.mxu0 0.0
    %6274 = vmatpush1.msra.mxu0 0.0
    %6275 = vmatprep.subr.mxu0 0.0
    %6276 = vmatpush1.msra.mxu0 0.0
    %6277 = vmatprep.subr.mxu0 0.0
    %6278 = vmatpush1.msra.mxu0 0.0
    %6279 = vmatprep.subr.mxu0 0.0
    %6280 = vmatpush1.msra.mxu0 0.0
    %6281 = vmatprep.mubr.f32.mxu0 0.0
    %6282 = vmatmul.mubr.f32.gmra.mrb[0].mxu0 %v6215
    %v6283 = vpop.f32.mrb[0].mxu0
    %v6284 = vadd.f32 %v6210, %v6283
    %v6285 = vpop.f32.mrb[0].mxu0
    %6286 = vdwg.mxu0
    %vm6287 = vcmask 254976
    %6288 = vst.msk [vmem:[#allocation12] sm:$0x3] %vm6287, %v6284
    %v6289 = vld [vmem:[%s483] sm:$0x3]
    %6291 = vrot.lane.b32.xlu0 %v6204, 32
    %v6292 = vpop.permute.xlu0 %6291
    %v6293 = vsel %vm159, %v6292, 0
    %6295 = vmatprep.subr.mxu0 0.0
    %6296 = vmatpush1.msra.mxu0 %v6094
    %6297 = vmatprep.subr.mxu0 0.0
    %6298 = vmatpush1.msra.mxu0 %v6095
    %6299 = vmatprep.subr.mxu0 0.0
    %6300 = vmatpush1.msra.mxu0 %v6096
    %6301 = vmatprep.subr.mxu0 0.0
    %6302 = vmatpush1.msra.mxu0 %v6097
    %6303 = vmatprep.subr.mxu0 0.0
    %6304 = vmatpush1.msra.mxu0 0.0
    %6305 = vmatprep.subr.mxu0 0.0
    %6306 = vmatpush1.msra.mxu0 0.0
    %6307 = vmatprep.subr.mxu0 0.0
    %6308 = vmatpush1.msra.mxu0 0.0
    %6309 = vmatprep.subr.mxu0 0.0
    %6310 = vmatpush1.msra.mxu0 0.0
    %6311 = vmatprep.subr.mxu0 0.0
    %6312 = vmatpush1.msra.mxu0 0.0
    %6313 = vmatprep.subr.mxu0 0.0
    %6314 = vmatpush1.msra.mxu0 0.0
    %6315 = vmatprep.subr.mxu0 0.0
    %6316 = vmatpush1.msra.mxu0 0.0
    %6317 = vmatprep.subr.mxu0 0.0
    %6318 = vmatpush1.msra.mxu0 0.0
    %6319 = vmatprep.subr.mxu0 0.0
    %6320 = vmatpush1.msra.mxu0 0.0
    %6321 = vmatprep.subr.mxu0 0.0
    %6322 = vmatpush1.msra.mxu0 0.0
    %6323 = vmatprep.subr.mxu0 0.0
    %6324 = vmatpush1.msra.mxu0 0.0
    %6325 = vmatprep.subr.mxu0 0.0
    %6326 = vmatpush1.msra.mxu0 0.0
    %6327 = vmatprep.subr.mxu0 0.0
    %6328 = vmatpush1.msra.mxu0 0.0
    %6329 = vmatprep.subr.mxu0 0.0
    %6330 = vmatpush1.msra.mxu0 0.0
    %6331 = vmatprep.subr.mxu0 0.0
    %6332 = vmatpush1.msra.mxu0 0.0
    %6333 = vmatprep.subr.mxu0 0.0
    %6334 = vmatpush1.msra.mxu0 0.0
    %6335 = vmatprep.subr.mxu0 0.0
    %6336 = vmatpush1.msra.mxu0 0.0
    %6337 = vmatprep.subr.mxu0 0.0
    %6338 = vmatpush1.msra.mxu0 0.0
    %6339 = vmatprep.subr.mxu0 0.0
    %6340 = vmatpush1.msra.mxu0 0.0
    %6341 = vmatprep.subr.mxu0 0.0
    %6342 = vmatpush1.msra.mxu0 0.0
    %6343 = vmatprep.subr.mxu0 0.0
    %6344 = vmatpush1.msra.mxu0 0.0
    %6345 = vmatprep.subr.mxu0 0.0
    %6346 = vmatpush1.msra.mxu0 0.0
    %6347 = vmatprep.subr.mxu0 0.0
    %6348 = vmatpush1.msra.mxu0 0.0
    %6349 = vmatprep.subr.mxu0 0.0
    %6350 = vmatpush1.msra.mxu0 0.0
    %6351 = vmatprep.subr.mxu0 0.0
    %6352 = vmatpush1.msra.mxu0 0.0
    %6353 = vmatprep.subr.mxu0 0.0
    %6354 = vmatpush1.msra.mxu0 0.0
    %6355 = vmatprep.subr.mxu0 0.0
    %6356 = vmatpush1.msra.mxu0 0.0
    %6357 = vmatprep.subr.mxu0 0.0
    %6358 = vmatpush1.msra.mxu0 0.0
    %6359 = vmatprep.mubr.f32.mxu0 0.0
    %6360 = vmatmul.mubr.f32.gmra.mrb[0].mxu0 %v6293
    %v6361 = vpop.f32.mrb[0].mxu0
    %v6362 = vadd.f32 0.0, %v6361
    %v6363 = vpop.f32.mrb[0].mxu0
    %6364 = vdwg.mxu0
    %v6365 = vadd.f32 %v6289, %v6362
    %v6366 = vxor.u32 %v6365, 2147483648
    %v6367 = vmul.f32 %v6366, 1.442695
    %v6368 = vpow.pop %v6367
    %v6369 = vadd.f32 %v6368, 1.0
    %v6370 = vrcp.pop %v6369
    %v6371 = vmul.f32 1.0, %v6370
    %v6372 = vmul.f32 %v6371, 2.0
    %v6373 = vsub.f32 %v6372, 1.0
    %v6374 = vmul.f32 %v6371, %v6198
    %6376 = vrot.lane.b32.xlu0 %v6373, 64
    %v6377 = vpop.permute.xlu0 %6376
    %v6379 = vmul.f32 %v6371, %v6377
    %6381 = vrot.lane.b32.xlu0 %v6379, 32
    %v6382 = vpop.permute.xlu0 %6381
    %v6384 = vadd.f32 %v6374, %v6382
    %v6385 = vtanh.pop %v6384
    %6387 = vrot.lane.b32.xlu0 %v6385, 64
    %v6388 = vpop.permute.xlu0 %6387
    %v6390 = vmul.f32 %v6371, %v6388
    %v6391 = vtanh.pop %v6390
    %6393 = vrot.lane.b32.xlu0 %v6391, 32
    %v6394 = vpop.permute.xlu0 %6393
    %v6395 = vsel %vm159, %v6394, 0
    %6397 = vmatprep.subr.mxu0 0.0
    %6398 = vmatpush1.msra.mxu0 %v6098
    %6399 = vmatprep.subr.mxu0 0.0
    %6400 = vmatpush1.msra.mxu0 %v6099
    %6401 = vmatprep.subr.mxu0 0.0
    %6402 = vmatpush1.msra.mxu0 %v6100
    %6403 = vmatprep.subr.mxu0 0.0
    %6404 = vmatpush1.msra.mxu0 %v6101
    %6405 = vmatprep.subr.mxu0 0.0
    %6406 = vmatpush1.msra.mxu0 0.0
    %6407 = vmatprep.subr.mxu0 0.0
    %6408 = vmatpush1.msra.mxu0 0.0
    %6409 = vmatprep.subr.mxu0 0.0
    %6410 = vmatpush1.msra.mxu0 0.0
    %6411 = vmatprep.subr.mxu0 0.0
    %6412 = vmatpush1.msra.mxu0 0.0
    %6413 = vmatprep.subr.mxu0 0.0
    %6414 = vmatpush1.msra.mxu0 0.0
    %6415 = vmatprep.subr.mxu0 0.0
    %6416 = vmatpush1.msra.mxu0 0.0
    %6417 = vmatprep.subr.mxu0 0.0
    %6418 = vmatpush1.msra.mxu0 0.0
    %6419 = vmatprep.subr.mxu0 0.0
    %6420 = vmatpush1.msra.mxu0 0.0
    %6421 = vmatprep.subr.mxu0 0.0
    %6422 = vmatpush1.msra.mxu0 0.0
    %6423 = vmatprep.subr.mxu0 0.0
    %6424 = vmatpush1.msra.mxu0 0.0
    %6425 = vmatprep.subr.mxu0 0.0
    %6426 = vmatpush1.msra.mxu0 0.0
    %6427 = vmatprep.subr.mxu0 0.0
    %6428 = vmatpush1.msra.mxu0 0.0
    %6429 = vmatprep.subr.mxu0 0.0
    %6430 = vmatpush1.msra.mxu0 0.0
    %6431 = vmatprep.subr.mxu0 0.0
    %6432 = vmatpush1.msra.mxu0 0.0
    %6433 = vmatprep.subr.mxu0 0.0
    %6434 = vmatpush1.msra.mxu0 0.0
    %6435 = vmatprep.subr.mxu0 0.0
    %6436 = vmatpush1.msra.mxu0 0.0
    %6437 = vmatprep.subr.mxu0 0.0
    %6438 = vmatpush1.msra.mxu0 0.0
    %6439 = vmatprep.subr.mxu0 0.0
    %6440 = vmatpush1.msra.mxu0 0.0
    %6441 = vmatprep.subr.mxu0 0.0
    %6442 = vmatpush1.msra.mxu0 0.0
    %6443 = vmatprep.subr.mxu0 0.0
    %6444 = vmatpush1.msra.mxu0 0.0
    %6445 = vmatprep.subr.mxu0 0.0
    %6446 = vmatpush1.msra.mxu0 0.0
    %6447 = vmatprep.subr.mxu0 0.0
    %6448 = vmatpush1.msra.mxu0 0.0
    %6449 = vmatprep.subr.mxu0 0.0
    %6450 = vmatpush1.msra.mxu0 0.0
    %6451 = vmatprep.subr.mxu0 0.0
    %6452 = vmatpush1.msra.mxu0 0.0
    %6453 = vmatprep.subr.mxu0 0.0
    %6454 = vmatpush1.msra.mxu0 0.0
    %6455 = vmatprep.subr.mxu0 0.0
    %6456 = vmatpush1.msra.mxu0 0.0
    %6457 = vmatprep.subr.mxu0 0.0
    %6458 = vmatpush1.msra.mxu0 0.0
    %6459 = vmatprep.subr.mxu0 0.0
    %6460 = vmatpush1.msra.mxu0 0.0
    %6461 = vmatprep.mubr.f32.mxu0 0.0
    %6462 = vmatmul.mubr.f32.gmra.mrb[0].mxu0 %v6395
    %v6463 = vpop.f32.mrb[0].mxu0
    %v6464 = vadd.f32 %v6210, %v6463
    %v6465 = vpop.f32.mrb[0].mxu0
    %6466 = vdwg.mxu0
    %s6467 = scalar_lea.vmem [#allocation12], 2
    %6468 = vst.msk [vmem:[%s6467] sm:$0x3] %vm6287, %v6464
    %v6469 = vld [vmem:[%s663] sm:$0x3]
    %6471 = vrot.lane.b32.xlu0 %v6390, 32
    %v6472 = vpop.permute.xlu0 %6471
    %v6473 = vsel %vm159, %v6472, 0
    %6475 = vmatprep.subr.mxu0 0.0
    %6476 = vmatpush1.msra.mxu0 %v6094
    %6477 = vmatprep.subr.mxu0 0.0
    %6478 = vmatpush1.msra.mxu0 %v6095
    %6479 = vmatprep.subr.mxu0 0.0
    %6480 = vmatpush1.msra.mxu0 %v6096
    %6481 = vmatprep.subr.mxu0 0.0
    %6482 = vmatpush1.msra.mxu0 %v6097
    %6483 = vmatprep.subr.mxu0 0.0
    %6484 = vmatpush1.msra.mxu0 0.0
    %6485 = vmatprep.subr.mxu0 0.0
    %6486 = vmatpush1.msra.mxu0 0.0
    %6487 = vmatprep.subr.mxu0 0.0
    %6488 = vmatpush1.msra.mxu0 0.0
    %6489 = vmatprep.subr.mxu0 0.0
    %6490 = vmatpush1.msra.mxu0 0.0
    %6491 = vmatprep.subr.mxu0 0.0
    %6492 = vmatpush1.msra.mxu0 0.0
    %6493 = vmatprep.subr.mxu0 0.0
    %6494 = vmatpush1.msra.mxu0 0.0
    %6495 = vmatprep.subr.mxu0 0.0
    %6496 = vmatpush1.msra.mxu0 0.0
    %6497 = vmatprep.subr.mxu0 0.0
    %6498 = vmatpush1.msra.mxu0 0.0
    %6499 = vmatprep.subr.mxu0 0.0
    %6500 = vmatpush1.msra.mxu0 0.0
    %6501 = vmatprep.subr.mxu0 0.0
    %6502 = vmatpush1.msra.mxu0 0.0
    %6503 = vmatprep.subr.mxu0 0.0
    %6504 = vmatpush1.msra.mxu0 0.0
    %6505 = vmatprep.subr.mxu0 0.0
    %6506 = vmatpush1.msra.mxu0 0.0
    %6507 = vmatprep.subr.mxu0 0.0
    %6508 = vmatpush1.msra.mxu0 0.0
    %6509 = vmatprep.subr.mxu0 0.0
    %6510 = vmatpush1.msra.mxu0 0.0
    %6511 = vmatprep.subr.mxu0 0.0
    %6512 = vmatpush1.msra.mxu0 0.0
    %6513 = vmatprep.subr.mxu0 0.0
    %6514 = vmatpush1.msra.mxu0 0.0
    %6515 = vmatprep.subr.mxu0 0.0
    %6516 = vmatpush1.msra.mxu0 0.0
    %6517 = vmatprep.subr.mxu0 0.0
    %6518 = vmatpush1.msra.mxu0 0.0
    %6519 = vmatprep.subr.mxu0 0.0
    %6520 = vmatpush1.msra.mxu0 0.0
    %6521 = vmatprep.subr.mxu0 0.0
    %6522 = vmatpush1.msra.mxu0 0.0
    %6523 = vmatprep.subr.mxu0 0.0
    %6524 = vmatpush1.msra.mxu0 0.0
    %6525 = vmatprep.subr.mxu0 0.0
    %6526 = vmatpush1.msra.mxu0 0.0
    %6527 = vmatprep.subr.mxu0 0.0
    %6528 = vmatpush1.msra.mxu0 0.0
    %6529 = vmatprep.subr.mxu0 0.0
    %6530 = vmatpush1.msra.mxu0 0.0
    %6531 = vmatprep.subr.mxu0 0.0
    %6532 = vmatpush1.msra.mxu0 0.0
    %6533 = vmatprep.subr.mxu0 0.0
    %6534 = vmatpush1.msra.mxu0 0.0
    %6535 = vmatprep.subr.mxu0 0.0
    %6536 = vmatpush1.msra.mxu0 0.0
    %6537 = vmatprep.subr.mxu0 0.0
    %6538 = vmatpush1.msra.mxu0 0.0
    %6539 = vmatprep.mubr.f32.mxu0 0.0
    %6540 = vmatmul.mubr.f32.gmra.mrb[0].mxu0 %v6473
    %v6541 = vpop.f32.mrb[0].mxu0
    %v6542 = vadd.f32 0.0, %v6541
    %v6543 = vpop.f32.mrb[0].mxu0
    %6544 = vdwg.mxu0
    %v6545 = vadd.f32 %v6469, %v6542
    %v6546 = vxor.u32 %v6545, 2147483648
    %v6547 = vmul.f32 %v6546, 1.442695
    %v6548 = vpow.pop %v6547
    %v6549 = vadd.f32 %v6548, 1.0
    %v6550 = vrcp.pop %v6549
    %v6551 = vmul.f32 1.0, %v6550
    %v6552 = vmul.f32 %v6551, 2.0
    %v6553 = vsub.f32 %v6552, 1.0
    %v6554 = vmul.f32 %v6551, %v6384
    %6556 = vrot.lane.b32.xlu0 %v6553, 64
    %v6557 = vpop.permute.xlu0 %6556
    %v6559 = vmul.f32 %v6551, %v6557
    %6561 = vrot.lane.b32.xlu0 %v6559, 32
    %v6562 = vpop.permute.xlu0 %6561
    %v6564 = vadd.f32 %v6554, %v6562
    %v6565 = vtanh.pop %v6564
    %6567 = vrot.lane.b32.xlu0 %v6565, 64
    %v6568 = vpop.permute.xlu0 %6567
    %v6570 = vmul.f32 %v6551, %v6568
    %v6571 = vtanh.pop %v6570
    %6573 = vrot.lane.b32.xlu0 %v6571, 32
    %v6574 = vpop.permute.xlu0 %6573
    %v6575 = vsel %vm159, %v6574, 0
    %6577 = vmatprep.subr.mxu0 0.0
    %6578 = vmatpush1.msra.mxu0 %v6098
    %6579 = vmatprep.subr.mxu0 0.0
    %6580 = vmatpush1.msra.mxu0 %v6099
    %6581 = vmatprep.subr.mxu0 0.0
    %6582 = vmatpush1.msra.mxu0 %v6100
    %6583 = vmatprep.subr.mxu0 0.0
    %6584 = vmatpush1.msra.mxu0 %v6101
    %6585 = vmatprep.subr.mxu0 0.0
    %6586 = vmatpush1.msra.mxu0 0.0
    %6587 = vmatprep.subr.mxu0 0.0
    %6588 = vmatpush1.msra.mxu0 0.0
    %6589 = vmatprep.subr.mxu0 0.0
    %6590 = vmatpush1.msra.mxu0 0.0
    %6591 = vmatprep.subr.mxu0 0.0
    %6592 = vmatpush1.msra.mxu0 0.0
    %6593 = vmatprep.subr.mxu0 0.0
    %6594 = vmatpush1.msra.mxu0 0.0
    %6595 = vmatprep.subr.mxu0 0.0
    %6596 = vmatpush1.msra.mxu0 0.0
    %6597 = vmatprep.subr.mxu0 0.0
    %6598 = vmatpush1.msra.mxu0 0.0
    %6599 = vmatprep.subr.mxu0 0.0
    %6600 = vmatpush1.msra.mxu0 0.0
    %6601 = vmatprep.subr.mxu0 0.0
    %6602 = vmatpush1.msra.mxu0 0.0
    %6603 = vmatprep.subr.mxu0 0.0
    %6604 = vmatpush1.msra.mxu0 0.0
    %6605 = vmatprep.subr.mxu0 0.0
    %6606 = vmatpush1.msra.mxu0 0.0
    %6607 = vmatprep.subr.mxu0 0.0
    %6608 = vmatpush1.msra.mxu0 0.0
    %6609 = vmatprep.subr.mxu0 0.0
    %6610 = vmatpush1.msra.mxu0 0.0
    %6611 = vmatprep.subr.mxu0 0.0
    %6612 = vmatpush1.msra.mxu0 0.0
    %6613 = vmatprep.subr.mxu0 0.0
    %6614 = vmatpush1.msra.mxu0 0.0
    %6615 = vmatprep.subr.mxu0 0.0
    %6616 = vmatpush1.msra.mxu0 0.0
    %6617 = vmatprep.subr.mxu0 0.0
    %6618 = vmatpush1.msra.mxu0 0.0
    %6619 = vmatprep.subr.mxu0 0.0
    %6620 = vmatpush1.msra.mxu0 0.0
    %6621 = vmatprep.subr.mxu0 0.0
    %6622 = vmatpush1.msra.mxu0 0.0
    %6623 = vmatprep.subr.mxu0 0.0
    %6624 = vmatpush1.msra.mxu0 0.0
    %6625 = vmatprep.subr.mxu0 0.0
    %6626 = vmatpush1.msra.mxu0 0.0
    %6627 = vmatprep.subr.mxu0 0.0
    %6628 = vmatpush1.msra.mxu0 0.0
    %6629 = vmatprep.subr.mxu0 0.0
    %6630 = vmatpush1.msra.mxu0 0.0
    %6631 = vmatprep.subr.mxu0 0.0
    %6632 = vmatpush1.msra.mxu0 0.0
    %6633 = vmatprep.subr.mxu0 0.0
    %6634 = vmatpush1.msra.mxu0 0.0
    %6635 = vmatprep.subr.mxu0 0.0
    %6636 = vmatpush1.msra.mxu0 0.0
    %6637 = vmatprep.subr.mxu0 0.0
    %6638 = vmatpush1.msra.mxu0 0.0
    %6639 = vmatprep.subr.mxu0 0.0
    %6640 = vmatpush1.msra.mxu0 0.0
    %6641 = vmatprep.mubr.f32.mxu0 0.0
    %6642 = vmatmul.mubr.f32.gmra.mrb[0].mxu0 %v6575
    %v6643 = vpop.f32.mrb[0].mxu0
    %v6644 = vadd.f32 %v6210, %v6643
    %v6645 = vpop.f32.mrb[0].mxu0
    %6646 = vdwg.mxu0
    %s6647 = scalar_lea.vmem [#allocation12], 4
    %6648 = vst.msk [vmem:[%s6647] sm:$0x3] %vm6287, %v6644
    %v6649 = vld [vmem:[%s843] sm:$0x3]
    %6651 = vrot.lane.b32.xlu0 %v6570, 32
    %v6652 = vpop.permute.xlu0 %6651
    %v6653 = vsel %vm159, %v6652, 0
    %6655 = vmatprep.subr.mxu0 0.0
    %6656 = vmatpush1.msra.mxu0 %v6094
    %6657 = vmatprep.subr.mxu0 0.0
    %6658 = vmatpush1.msra.mxu0 %v6095
    %6659 = vmatprep.subr.mxu0 0.0
    %6660 = vmatpush1.msra.mxu0 %v6096
    %6661 = vmatprep.subr.mxu0 0.0
    %6662 = vmatpush1.msra.mxu0 %v6097
    %6663 = vmatprep.subr.mxu0 0.0
    %6664 = vmatpush1.msra.mxu0 0.0
    %6665 = vmatprep.subr.mxu0 0.0
    %6666 = vmatpush1.msra.mxu0 0.0
    %6667 = vmatprep.subr.mxu0 0.0
    %6668 = vmatpush1.msra.mxu0 0.0
    %6669 = vmatprep.subr.mxu0 0.0
    %6670 = vmatpush1.msra.mxu0 0.0
    %6671 = vmatprep.subr.mxu0 0.0
    %6672 = vmatpush1.msra.mxu0 0.0
    %6673 = vmatprep.subr.mxu0 0.0
    %6674 = vmatpush1.msra.mxu0 0.0
    %6675 = vmatprep.subr.mxu0 0.0
    %6676 = vmatpush1.msra.mxu0 0.0
    %6677 = vmatprep.subr.mxu0 0.0
    %6678 = vmatpush1.msra.mxu0 0.0
    %6679 = vmatprep.subr.mxu0 0.0
    %6680 = vmatpush1.msra.mxu0 0.0
    %6681 = vmatprep.subr.mxu0 0.0
    %6682 = vmatpush1.msra.mxu0 0.0
    %6683 = vmatprep.subr.mxu0 0.0
    %6684 = vmatpush1.msra.mxu0 0.0
    %6685 = vmatprep.subr.mxu0 0.0
    %6686 = vmatpush1.msra.mxu0 0.0
    %6687 = vmatprep.subr.mxu0 0.0
    %6688 = vmatpush1.msra.mxu0 0.0
    %6689 = vmatprep.subr.mxu0 0.0
    %6690 = vmatpush1.msra.mxu0 0.0
    %6691 = vmatprep.subr.mxu0 0.0
    %6692 = vmatpush1.msra.mxu0 0.0
    %6693 = vmatprep.subr.mxu0 0.0
    %6694 = vmatpush1.msra.mxu0 0.0
    %6695 = vmatprep.subr.mxu0 0.0
    %6696 = vmatpush1.msra.mxu0 0.0
    %6697 = vmatprep.subr.mxu0 0.0
    %6698 = vmatpush1.msra.mxu0 0.0
    %6699 = vmatprep.subr.mxu0 0.0
    %6700 = vmatpush1.msra.mxu0 0.0
    %6701 = vmatprep.subr.mxu0 0.0
    %6702 = vmatpush1.msra.mxu0 0.0
    %6703 = vmatprep.subr.mxu0 0.0
    %6704 = vmatpush1.msra.mxu0 0.0
    %6705 = vmatprep.subr.mxu0 0.0
    %6706 = vmatpush1.msra.mxu0 0.0
    %6707 = vmatprep.subr.mxu0 0.0
    %6708 = vmatpush1.msra.mxu0 0.0
    %6709 = vmatprep.subr.mxu0 0.0
    %6710 = vmatpush1.msra.mxu0 0.0
    %6711 = vmatprep.subr.mxu0 0.0
    %6712 = vmatpush1.msra.mxu0 0.0
    %6713 = vmatprep.subr.mxu0 0.0
    %6714 = vmatpush1.msra.mxu0 0.0
    %6715 = vmatprep.subr.mxu0 0.0
    %6716 = vmatpush1.msra.mxu0 0.0
    %6717 = vmatprep.subr.mxu0 0.0
    %6718 = vmatpush1.msra.mxu0 0.0
    %6719 = vmatprep.mubr.f32.mxu0 0.0
    %6720 = vmatmul.mubr.f32.gmra.mrb[0].mxu0 %v6653
    %v6721 = vpop.f32.mrb[0].mxu0
    %v6722 = vadd.f32 0.0, %v6721
    %v6723 = vpop.f32.mrb[0].mxu0
    %6724 = vdwg.mxu0
    %v6725 = vadd.f32 %v6649, %v6722
    %v6726 = vxor.u32 %v6725, 2147483648
    %v6727 = vmul.f32 %v6726, 1.442695
    %v6728 = vpow.pop %v6727
    %v6729 = vadd.f32 %v6728, 1.0
    %v6730 = vrcp.pop %v6729
    %v6731 = vmul.f32 1.0, %v6730
    %v6732 = vmul.f32 %v6731, 2.0
    %v6733 = vsub.f32 %v6732, 1.0
    %v6734 = vmul.f32 %v6731, %v6564
    %6736 = vrot.lane.b32.xlu0 %v6733, 64
    %v6737 = vpop.permute.xlu0 %6736
    %v6739 = vmul.f32 %v6731, %v6737
    %6741 = vrot.lane.b32.xlu0 %v6739, 32
    %v6742 = vpop.permute.xlu0 %6741
    %v6744 = vadd.f32 %v6734, %v6742
    %v6745 = vtanh.pop %v6744
    %6747 = vrot.lane.b32.xlu0 %v6745, 64
    %v6748 = vpop.permute.xlu0 %6747
    %v6750 = vmul.f32 %v6731, %v6748
    %v6751 = vtanh.pop %v6750
    %6753 = vrot.lane.b32.xlu0 %v6751, 32
    %v6754 = vpop.permute.xlu0 %6753
    %v6755 = vsel %vm159, %v6754, 0
    %6757 = vmatprep.subr.mxu0 0.0
    %6758 = vmatpush1.msra.mxu0 %v6098
    %6759 = vmatprep.subr.mxu0 0.0
    %6760 = vmatpush1.msra.mxu0 %v6099
    %6761 = vmatprep.subr.mxu0 0.0
    %6762 = vmatpush1.msra.mxu0 %v6100
    %6763 = vmatprep.subr.mxu0 0.0
    %6764 = vmatpush1.msra.mxu0 %v6101
    %6765 = vmatprep.subr.mxu0 0.0
    %6766 = vmatpush1.msra.mxu0 0.0
    %6767 = vmatprep.subr.mxu0 0.0
    %6768 = vmatpush1.msra.mxu0 0.0
    %6769 = vmatprep.subr.mxu0 0.0
    %6770 = vmatpush1.msra.mxu0 0.0
    %6771 = vmatprep.subr.mxu0 0.0
    %6772 = vmatpush1.msra.mxu0 0.0
    %6773 = vmatprep.subr.mxu0 0.0
    %6774 = vmatpush1.msra.mxu0 0.0
    %6775 = vmatprep.subr.mxu0 0.0
    %6776 = vmatpush1.msra.mxu0 0.0
    %6777 = vmatprep.subr.mxu0 0.0
    %6778 = vmatpush1.msra.mxu0 0.0
    %6779 = vmatprep.subr.mxu0 0.0
    %6780 = vmatpush1.msra.mxu0 0.0
    %6781 = vmatprep.subr.mxu0 0.0
    %6782 = vmatpush1.msra.mxu0 0.0
    %6783 = vmatprep.subr.mxu0 0.0
    %6784 = vmatpush1.msra.mxu0 0.0
    %6785 = vmatprep.subr.mxu0 0.0
    %6786 = vmatpush1.msra.mxu0 0.0
    %6787 = vmatprep.subr.mxu0 0.0
    %6788 = vmatpush1.msra.mxu0 0.0
    %6789 = vmatprep.subr.mxu0 0.0
    %6790 = vmatpush1.msra.mxu0 0.0
    %6791 = vmatprep.subr.mxu0 0.0
    %6792 = vmatpush1.msra.mxu0 0.0
    %6793 = vmatprep.subr.mxu0 0.0
    %6794 = vmatpush1.msra.mxu0 0.0
    %6795 = vmatprep.subr.mxu0 0.0
    %6796 = vmatpush1.msra.mxu0 0.0
    %6797 = vmatprep.subr.mxu0 0.0
    %6798 = vmatpush1.msra.mxu0 0.0
    %6799 = vmatprep.subr.mxu0 0.0
    %6800 = vmatpush1.msra.mxu0 0.0
    %6801 = vmatprep.subr.mxu0 0.0
    %6802 = vmatpush1.msra.mxu0 0.0
    %6803 = vmatprep.subr.mxu0 0.0
    %6804 = vmatpush1.msra.mxu0 0.0
    %6805 = vmatprep.subr.mxu0 0.0
    %6806 = vmatpush1.msra.mxu0 0.0
    %6807 = vmatprep.subr.mxu0 0.0
    %6808 = vmatpush1.msra.mxu0 0.0
    %6809 = vmatprep.subr.mxu0 0.0
    %6810 = vmatpush1.msra.mxu0 0.0
    %6811 = vmatprep.subr.mxu0 0.0
    %6812 = vmatpush1.msra.mxu0 0.0
    %6813 = vmatprep.subr.mxu0 0.0
    %6814 = vmatpush1.msra.mxu0 0.0
    %6815 = vmatprep.subr.mxu0 0.0
    %6816 = vmatpush1.msra.mxu0 0.0
    %6817 = vmatprep.subr.mxu0 0.0
    %6818 = vmatpush1.msra.mxu0 0.0
    %6819 = vmatprep.subr.mxu0 0.0
    %6820 = vmatpush1.msra.mxu0 0.0
    %6821 = vmatprep.mubr.f32.mxu0 0.0
    %6822 = vmatmul.mubr.f32.gmra.mrb[0].mxu0 %v6755
    %v6823 = vpop.f32.mrb[0].mxu0
    %v6824 = vadd.f32 %v6210, %v6823
    %v6825 = vpop.f32.mrb[0].mxu0
    %6826 = vdwg.mxu0
    %s6827 = scalar_lea.vmem [#allocation12], 6
    %6828 = vst.msk [vmem:[%s6827] sm:$0x3] %vm6287, %v6824
    %v6829 = vld [vmem:[%s1023] sm:$0x3]
    %6831 = vrot.lane.b32.xlu0 %v6750, 32
    %v6832 = vpop.permute.xlu0 %6831
    %v6833 = vsel %vm159, %v6832, 0
    %6835 = vmatprep.subr.mxu0 0.0
    %6836 = vmatpush1.msra.mxu0 %v6094
    %6837 = vmatprep.subr.mxu0 0.0
    %6838 = vmatpush1.msra.mxu0 %v6095
    %6839 = vmatprep.subr.mxu0 0.0
    %6840 = vmatpush1.msra.mxu0 %v6096
    %6841 = vmatprep.subr.mxu0 0.0
    %6842 = vmatpush1.msra.mxu0 %v6097
    %6843 = vmatprep.subr.mxu0 0.0
    %6844 = vmatpush1.msra.mxu0 0.0
    %6845 = vmatprep.subr.mxu0 0.0
    %6846 = vmatpush1.msra.mxu0 0.0
    %6847 = vmatprep.subr.mxu0 0.0
    %6848 = vmatpush1.msra.mxu0 0.0
    %6849 = vmatprep.subr.mxu0 0.0
    %6850 = vmatpush1.msra.mxu0 0.0
    %6851 = vmatprep.subr.mxu0 0.0
    %6852 = vmatpush1.msra.mxu0 0.0
    %6853 = vmatprep.subr.mxu0 0.0
    %6854 = vmatpush1.msra.mxu0 0.0
    %6855 = vmatprep.subr.mxu0 0.0
    %6856 = vmatpush1.msra.mxu0 0.0
    %6857 = vmatprep.subr.mxu0 0.0
    %6858 = vmatpush1.msra.mxu0 0.0
    %6859 = vmatprep.subr.mxu0 0.0
    %6860 = vmatpush1.msra.mxu0 0.0
    %6861 = vmatprep.subr.mxu0 0.0
    %6862 = vmatpush1.msra.mxu0 0.0
    %6863 = vmatprep.subr.mxu0 0.0
    %6864 = vmatpush1.msra.mxu0 0.0
    %6865 = vmatprep.subr.mxu0 0.0
    %6866 = vmatpush1.msra.mxu0 0.0
    %6867 = vmatprep.subr.mxu0 0.0
    %6868 = vmatpush1.msra.mxu0 0.0
    %6869 = vmatprep.subr.mxu0 0.0
    %6870 = vmatpush1.msra.mxu0 0.0
    %6871 = vmatprep.subr.mxu0 0.0
    %6872 = vmatpush1.msra.mxu0 0.0
    %6873 = vmatprep.subr.mxu0 0.0
    %6874 = vmatpush1.msra.mxu0 0.0
    %6875 = vmatprep.subr.mxu0 0.0
    %6876 = vmatpush1.msra.mxu0 0.0
    %6877 = vmatprep.subr.mxu0 0.0
    %6878 = vmatpush1.msra.mxu0 0.0
    %6879 = vmatprep.subr.mxu0 0.0
    %6880 = vmatpush1.msra.mxu0 0.0
    %6881 = vmatprep.subr.mxu0 0.0
    %6882 = vmatpush1.msra.mxu0 0.0
    %6883 = vmatprep.subr.mxu0 0.0
    %6884 = vmatpush1.msra.mxu0 0.0
    %6885 = vmatprep.subr.mxu0 0.0
    %6886 = vmatpush1.msra.mxu0 0.0
    %6887 = vmatprep.subr.mxu0 0.0
    %6888 = vmatpush1.msra.mxu0 0.0
    %6889 = vmatprep.subr.mxu0 0.0
    %6890 = vmatpush1.msra.mxu0 0.0
    %6891 = vmatprep.subr.mxu0 0.0
    %6892 = vmatpush1.msra.mxu0 0.0
    %6893 = vmatprep.subr.mxu0 0.0
    %6894 = vmatpush1.msra.mxu0 0.0
    %6895 = vmatprep.subr.mxu0 0.0
    %6896 = vmatpush1.msra.mxu0 0.0
    %6897 = vmatprep.subr.mxu0 0.0
    %6898 = vmatpush1.msra.mxu0 0.0
    %6899 = vmatprep.mubr.f32.mxu0 0.0
    %6900 = vmatmul.mubr.f32.gmra.mrb[0].mxu0 %v6833
    %v6901 = vpop.f32.mrb[0].mxu0
    %v6902 = vadd.f32 0.0, %v6901
    %v6903 = vpop.f32.mrb[0].mxu0
    %6904 = vdwg.mxu0
    %v6905 = vadd.f32 %v6829, %v6902
    %v6906 = vxor.u32 %v6905, 2147483648
    %v6907 = vmul.f32 %v6906, 1.442695
    %v6908 = vpow.pop %v6907
    %v6909 = vadd.f32 %v6908, 1.0
    %v6910 = vrcp.pop %v6909
    %v6911 = vmul.f32 1.0, %v6910
    %v6912 = vmul.f32 %v6911, 2.0
    %v6913 = vsub.f32 %v6912, 1.0
    %v6914 = vmul.f32 %v6911, %v6744
    %6916 = vrot.lane.b32.xlu0 %v6913, 64
    %v6917 = vpop.permute.xlu0 %6916
    %v6919 = vmul.f32 %v6911, %v6917
    %6921 = vrot.lane.b32.xlu0 %v6919, 32
    %v6922 = vpop.permute.xlu0 %6921
    %v6924 = vadd.f32 %v6914, %v6922
    %v6925 = vtanh.pop %v6924
    %6927 = vrot.lane.b32.xlu0 %v6925, 64
    %v6928 = vpop.permute.xlu0 %6927
    %v6930 = vmul.f32 %v6911, %v6928
    %v6931 = vtanh.pop %v6930
    %6933 = vrot.lane.b32.xlu0 %v6931, 32
    %v6934 = vpop.permute.xlu0 %6933
    %v6935 = vsel %vm159, %v6934, 0
    %6937 = vmatprep.subr.mxu0 0.0
    %6938 = vmatpush1.msra.mxu0 %v6098
    %6939 = vmatprep.subr.mxu0 0.0
    %6940 = vmatpush1.msra.mxu0 %v6099
    %6941 = vmatprep.subr.mxu0 0.0
    %6942 = vmatpush1.msra.mxu0 %v6100
    %6943 = vmatprep.subr.mxu0 0.0
    %6944 = vmatpush1.msra.mxu0 %v6101
    %6945 = vmatprep.subr.mxu0 0.0
    %6946 = vmatpush1.msra.mxu0 0.0
    %6947 = vmatprep.subr.mxu0 0.0
    %6948 = vmatpush1.msra.mxu0 0.0
    %6949 = vmatprep.subr.mxu0 0.0
    %6950 = vmatpush1.msra.mxu0 0.0
    %6951 = vmatprep.subr.mxu0 0.0
    %6952 = vmatpush1.msra.mxu0 0.0
    %6953 = vmatprep.subr.mxu0 0.0
    %6954 = vmatpush1.msra.mxu0 0.0
    %6955 = vmatprep.subr.mxu0 0.0
    %6956 = vmatpush1.msra.mxu0 0.0
    %6957 = vmatprep.subr.mxu0 0.0
    %6958 = vmatpush1.msra.mxu0 0.0
    %6959 = vmatprep.subr.mxu0 0.0
    %6960 = vmatpush1.msra.mxu0 0.0
    %6961 = vmatprep.subr.mxu0 0.0
    %6962 = vmatpush1.msra.mxu0 0.0
    %6963 = vmatprep.subr.mxu0 0.0
    %6964 = vmatpush1.msra.mxu0 0.0
    %6965 = vmatprep.subr.mxu0 0.0
    %6966 = vmatpush1.msra.mxu0 0.0
    %6967 = vmatprep.subr.mxu0 0.0
    %6968 = vmatpush1.msra.mxu0 0.0
    %6969 = vmatprep.subr.mxu0 0.0
    %6970 = vmatpush1.msra.mxu0 0.0
    %6971 = vmatprep.subr.mxu0 0.0
    %6972 = vmatpush1.msra.mxu0 0.0
    %6973 = vmatprep.subr.mxu0 0.0
    %6974 = vmatpush1.msra.mxu0 0.0
    %6975 = vmatprep.subr.mxu0 0.0
    %6976 = vmatpush1.msra.mxu0 0.0
    %6977 = vmatprep.subr.mxu0 0.0
    %6978 = vmatpush1.msra.mxu0 0.0
    %6979 = vmatprep.subr.mxu0 0.0
    %6980 = vmatpush1.msra.mxu0 0.0
    %6981 = vmatprep.subr.mxu0 0.0
    %6982 = vmatpush1.msra.mxu0 0.0
    %6983 = vmatprep.subr.mxu0 0.0
    %6984 = vmatpush1.msra.mxu0 0.0
    %6985 = vmatprep.subr.mxu0 0.0
    %6986 = vmatpush1.msra.mxu0 0.0
    %6987 = vmatprep.subr.mxu0 0.0
    %6988 = vmatpush1.msra.mxu0 0.0
    %6989 = vmatprep.subr.mxu0 0.0
    %6990 = vmatpush1.msra.mxu0 0.0
    %6991 = vmatprep.subr.mxu0 0.0
    %6992 = vmatpush1.msra.mxu0 0.0
    %6993 = vmatprep.subr.mxu0 0.0
    %6994 = vmatpush1.msra.mxu0 0.0
    %6995 = vmatprep.subr.mxu0 0.0
    %6996 = vmatpush1.msra.mxu0 0.0
    %6997 = vmatprep.subr.mxu0 0.0
    %6998 = vmatpush1.msra.mxu0 0.0
    %6999 = vmatprep.subr.mxu0 0.0
    %7000 = vmatpush1.msra.mxu0 0.0
    %7001 = vmatprep.mubr.f32.mxu0 0.0
    %7002 = vmatmul.mubr.f32.gmra.mrb[0].mxu0 %v6935
    %v7003 = vpop.f32.mrb[0].mxu0
    %v7004 = vadd.f32 %v6210, %v7003
    %v7005 = vpop.f32.mrb[0].mxu0
    %7006 = vdwg.mxu0
    %s7007 = scalar_lea.vmem [#allocation12], 8
    %7008 = vst.msk [vmem:[%s7007] sm:$0x3] %vm6287, %v7004
    %v7009 = vld [vmem:[%s1203] sm:$0x3]
    %7011 = vrot.lane.b32.xlu0 %v6930, 32
    %v7012 = vpop.permute.xlu0 %7011
    %v7013 = vsel %vm159, %v7012, 0
    %7015 = vmatprep.subr.mxu0 0.0
    %7016 = vmatpush1.msra.mxu0 %v6094
    %7017 = vmatprep.subr.mxu0 0.0
    %7018 = vmatpush1.msra.mxu0 %v6095
    %7019 = vmatprep.subr.mxu0 0.0
    %7020 = vmatpush1.msra.mxu0 %v6096
    %7021 = vmatprep.subr.mxu0 0.0
    %7022 = vmatpush1.msra.mxu0 %v6097
    %7023 = vmatprep.subr.mxu0 0.0
    %7024 = vmatpush1.msra.mxu0 0.0
    %7025 = vmatprep.subr.mxu0 0.0
    %7026 = vmatpush1.msra.mxu0 0.0
    %7027 = vmatprep.subr.mxu0 0.0
    %7028 = vmatpush1.msra.mxu0 0.0
    %7029 = vmatprep.subr.mxu0 0.0
    %7030 = vmatpush1.msra.mxu0 0.0
    %7031 = vmatprep.subr.mxu0 0.0
    %7032 = vmatpush1.msra.mxu0 0.0
    %7033 = vmatprep.subr.mxu0 0.0
    %7034 = vmatpush1.msra.mxu0 0.0
    %7035 = vmatprep.subr.mxu0 0.0
    %7036 = vmatpush1.msra.mxu0 0.0
    %7037 = vmatprep.subr.mxu0 0.0
    %7038 = vmatpush1.msra.mxu0 0.0
    %7039 = vmatprep.subr.mxu0 0.0
    %7040 = vmatpush1.msra.mxu0 0.0
    %7041 = vmatprep.subr.mxu0 0.0
    %7042 = vmatpush1.msra.mxu0 0.0
    %7043 = vmatprep.subr.mxu0 0.0
    %7044 = vmatpush1.msra.mxu0 0.0
    %7045 = vmatprep.subr.mxu0 0.0
    %7046 = vmatpush1.msra.mxu0 0.0
    %7047 = vmatprep.subr.mxu0 0.0
    %7048 = vmatpush1.msra.mxu0 0.0
    %7049 = vmatprep.subr.mxu0 0.0
    %7050 = vmatpush1.msra.mxu0 0.0
    %7051 = vmatprep.subr.mxu0 0.0
    %7052 = vmatpush1.msra.mxu0 0.0
    %7053 = vmatprep.subr.mxu0 0.0
    %7054 = vmatpush1.msra.mxu0 0.0
    %7055 = vmatprep.subr.mxu0 0.0
    %7056 = vmatpush1.msra.mxu0 0.0
    %7057 = vmatprep.subr.mxu0 0.0
    %7058 = vmatpush1.msra.mxu0 0.0
    %7059 = vmatprep.subr.mxu0 0.0
    %7060 = vmatpush1.msra.mxu0 0.0
    %7061 = vmatprep.subr.mxu0 0.0
    %7062 = vmatpush1.msra.mxu0 0.0
    %7063 = vmatprep.subr.mxu0 0.0
    %7064 = vmatpush1.msra.mxu0 0.0
    %7065 = vmatprep.subr.mxu0 0.0
    %7066 = vmatpush1.msra.mxu0 0.0
    %7067 = vmatprep.subr.mxu0 0.0
    %7068 = vmatpush1.msra.mxu0 0.0
    %7069 = vmatprep.subr.mxu0 0.0
    %7070 = vmatpush1.msra.mxu0 0.0
    %7071 = vmatprep.subr.mxu0 0.0
    %7072 = vmatpush1.msra.mxu0 0.0
    %7073 = vmatprep.subr.mxu0 0.0
    %7074 = vmatpush1.msra.mxu0 0.0
    %7075 = vmatprep.subr.mxu0 0.0
    %7076 = vmatpush1.msra.mxu0 0.0
    %7077 = vmatprep.subr.mxu0 0.0
    %7078 = vmatpush1.msra.mxu0 0.0
    %7079 = vmatprep.mubr.f32.mxu0 0.0
    %7080 = vmatmul.mubr.f32.gmra.mrb[0].mxu0 %v7013
    %v7081 = vpop.f32.mrb[0].mxu0
    %v7082 = vadd.f32 0.0, %v7081
    %v7083 = vpop.f32.mrb[0].mxu0
    %7084 = vdwg.mxu0
    %v7085 = vadd.f32 %v7009, %v7082
    %v7086 = vxor.u32 %v7085, 2147483648
    %v7087 = vmul.f32 %v7086, 1.442695
    %v7088 = vpow.pop %v7087
    %v7089 = vadd.f32 %v7088, 1.0
    %v7090 = vrcp.pop %v7089
    %v7091 = vmul.f32 1.0, %v7090
    %v7092 = vmul.f32 %v7091, 2.0
    %v7093 = vsub.f32 %v7092, 1.0
    %v7094 = vmul.f32 %v7091, %v6924
    %7096 = vrot.lane.b32.xlu0 %v7093, 64
    %v7097 = vpop.permute.xlu0 %7096
    %v7099 = vmul.f32 %v7091, %v7097
    %7101 = vrot.lane.b32.xlu0 %v7099, 32
    %v7102 = vpop.permute.xlu0 %7101
    %v7104 = vadd.f32 %v7094, %v7102
    %v7105 = vtanh.pop %v7104
    %7107 = vrot.lane.b32.xlu0 %v7105, 64
    %v7108 = vpop.permute.xlu0 %7107
    %v7110 = vmul.f32 %v7091, %v7108
    %v7111 = vtanh.pop %v7110
    %7113 = vrot.lane.b32.xlu0 %v7111, 32
    %v7114 = vpop.permute.xlu0 %7113
    %v7115 = vsel %vm159, %v7114, 0
    %7117 = vmatprep.subr.mxu0 0.0
    %7118 = vmatpush1.msra.mxu0 %v6098
    %7119 = vmatprep.subr.mxu0 0.0
    %7120 = vmatpush1.msra.mxu0 %v6099
    %7121 = vmatprep.subr.mxu0 0.0
    %7122 = vmatpush1.msra.mxu0 %v6100
    %7123 = vmatprep.subr.mxu0 0.0
    %7124 = vmatpush1.msra.mxu0 %v6101
    %7125 = vmatprep.subr.mxu0 0.0
    %7126 = vmatpush1.msra.mxu0 0.0
    %7127 = vmatprep.subr.mxu0 0.0
    %7128 = vmatpush1.msra.mxu0 0.0
    %7129 = vmatprep.subr.mxu0 0.0
    %7130 = vmatpush1.msra.mxu0 0.0
    %7131 = vmatprep.subr.mxu0 0.0
    %7132 = vmatpush1.msra.mxu0 0.0
    %7133 = vmatprep.subr.mxu0 0.0
    %7134 = vmatpush1.msra.mxu0 0.0
    %7135 = vmatprep.subr.mxu0 0.0
    %7136 = vmatpush1.msra.mxu0 0.0
    %7137 = vmatprep.subr.mxu0 0.0
    %7138 = vmatpush1.msra.mxu0 0.0
    %7139 = vmatprep.subr.mxu0 0.0
    %7140 = vmatpush1.msra.mxu0 0.0
    %7141 = vmatprep.subr.mxu0 0.0
    %7142 = vmatpush1.msra.mxu0 0.0
    %7143 = vmatprep.subr.mxu0 0.0
    %7144 = vmatpush1.msra.mxu0 0.0
    %7145 = vmatprep.subr.mxu0 0.0
    %7146 = vmatpush1.msra.mxu0 0.0
    %7147 = vmatprep.subr.mxu0 0.0
    %7148 = vmatpush1.msra.mxu0 0.0
    %7149 = vmatprep.subr.mxu0 0.0
    %7150 = vmatpush1.msra.mxu0 0.0
    %7151 = vmatprep.subr.mxu0 0.0
    %7152 = vmatpush1.msra.mxu0 0.0
    %7153 = vmatprep.subr.mxu0 0.0
    %7154 = vmatpush1.msra.mxu0 0.0
    %7155 = vmatprep.subr.mxu0 0.0
    %7156 = vmatpush1.msra.mxu0 0.0
    %7157 = vmatprep.subr.mxu0 0.0
    %7158 = vmatpush1.msra.mxu0 0.0
    %7159 = vmatprep.subr.mxu0 0.0
    %7160 = vmatpush1.msra.mxu0 0.0
    %7161 = vmatprep.subr.mxu0 0.0
    %7162 = vmatpush1.msra.mxu0 0.0
    %7163 = vmatprep.subr.mxu0 0.0
    %7164 = vmatpush1.msra.mxu0 0.0
    %7165 = vmatprep.subr.mxu0 0.0
    %7166 = vmatpush1.msra.mxu0 0.0
    %7167 = vmatprep.subr.mxu0 0.0
    %7168 = vmatpush1.msra.mxu0 0.0
    %7169 = vmatprep.subr.mxu0 0.0
    %7170 = vmatpush1.msra.mxu0 0.0
    %7171 = vmatprep.subr.mxu0 0.0
    %7172 = vmatpush1.msra.mxu0 0.0
    %7173 = vmatprep.subr.mxu0 0.0
    %7174 = vmatpush1.msra.mxu0 0.0
    %7175 = vmatprep.subr.mxu0 0.0
    %7176 = vmatpush1.msra.mxu0 0.0
    %7177 = vmatprep.subr.mxu0 0.0
    %7178 = vmatpush1.msra.mxu0 0.0
    %7179 = vmatprep.subr.mxu0 0.0
    %7180 = vmatpush1.msra.mxu0 0.0
    %7181 = vmatprep.mubr.f32.mxu0 0.0
    %7182 = vmatmul.mubr.f32.gmra.mrb[0].mxu0 %v7115
    %v7183 = vpop.f32.mrb[0].mxu0
    %v7184 = vadd.f32 %v6210, %v7183
    %v7185 = vpop.f32.mrb[0].mxu0
    %7186 = vdwg.mxu0
    %s7187 = scalar_lea.vmem [#allocation12], 10
    %7188 = vst.msk [vmem:[%s7187] sm:$0x3] %vm6287, %v7184
    %v7189 = vld [vmem:[%s1383] sm:$0x3]
    %7191 = vrot.lane.b32.xlu0 %v7110, 32
    %v7192 = vpop.permute.xlu0 %7191
    %v7193 = vsel %vm159, %v7192, 0
    %7195 = vmatprep.subr.mxu0 0.0
    %7196 = vmatpush1.msra.mxu0 %v6094
    %7197 = vmatprep.subr.mxu0 0.0
    %7198 = vmatpush1.msra.mxu0 %v6095
    %7199 = vmatprep.subr.mxu0 0.0
    %7200 = vmatpush1.msra.mxu0 %v6096
    %7201 = vmatprep.subr.mxu0 0.0
    %7202 = vmatpush1.msra.mxu0 %v6097
    %7203 = vmatprep.subr.mxu0 0.0
    %7204 = vmatpush1.msra.mxu0 0.0
    %7205 = vmatprep.subr.mxu0 0.0
    %7206 = vmatpush1.msra.mxu0 0.0
    %7207 = vmatprep.subr.mxu0 0.0
    %7208 = vmatpush1.msra.mxu0 0.0
    %7209 = vmatprep.subr.mxu0 0.0
    %7210 = vmatpush1.msra.mxu0 0.0
    %7211 = vmatprep.subr.mxu0 0.0
    %7212 = vmatpush1.msra.mxu0 0.0
    %7213 = vmatprep.subr.mxu0 0.0
    %7214 = vmatpush1.msra.mxu0 0.0
    %7215 = vmatprep.subr.mxu0 0.0
    %7216 = vmatpush1.msra.mxu0 0.0
    %7217 = vmatprep.subr.mxu0 0.0
    %7218 = vmatpush1.msra.mxu0 0.0
    %7219 = vmatprep.subr.mxu0 0.0
    %7220 = vmatpush1.msra.mxu0 0.0
    %7221 = vmatprep.subr.mxu0 0.0
    %7222 = vmatpush1.msra.mxu0 0.0
    %7223 = vmatprep.subr.mxu0 0.0
    %7224 = vmatpush1.msra.mxu0 0.0
    %7225 = vmatprep.subr.mxu0 0.0
    %7226 = vmatpush1.msra.mxu0 0.0
    %7227 = vmatprep.subr.mxu0 0.0
    %7228 = vmatpush1.msra.mxu0 0.0
    %7229 = vmatprep.subr.mxu0 0.0
    %7230 = vmatpush1.msra.mxu0 0.0
    %7231 = vmatprep.subr.mxu0 0.0
    %7232 = vmatpush1.msra.mxu0 0.0
    %7233 = vmatprep.subr.mxu0 0.0
    %7234 = vmatpush1.msra.mxu0 0.0
    %7235 = vmatprep.subr.mxu0 0.0
    %7236 = vmatpush1.msra.mxu0 0.0
    %7237 = vmatprep.subr.mxu0 0.0
    %7238 = vmatpush1.msra.mxu0 0.0
    %7239 = vmatprep.subr.mxu0 0.0
    %7240 = vmatpush1.msra.mxu0 0.0
    %7241 = vmatprep.subr.mxu0 0.0
    %7242 = vmatpush1.msra.mxu0 0.0
    %7243 = vmatprep.subr.mxu0 0.0
    %7244 = vmatpush1.msra.mxu0 0.0
    %7245 = vmatprep.subr.mxu0 0.0
    %7246 = vmatpush1.msra.mxu0 0.0
    %7247 = vmatprep.subr.mxu0 0.0
    %7248 = vmatpush1.msra.mxu0 0.0
    %7249 = vmatprep.subr.mxu0 0.0
    %7250 = vmatpush1.msra.mxu0 0.0
    %7251 = vmatprep.subr.mxu0 0.0
    %7252 = vmatpush1.msra.mxu0 0.0
    %7253 = vmatprep.subr.mxu0 0.0
    %7254 = vmatpush1.msra.mxu0 0.0
    %7255 = vmatprep.subr.mxu0 0.0
    %7256 = vmatpush1.msra.mxu0 0.0
    %7257 = vmatprep.subr.mxu0 0.0
    %7258 = vmatpush1.msra.mxu0 0.0
    %7259 = vmatprep.mubr.f32.mxu0 0.0
    %7260 = vmatmul.mubr.f32.gmra.mrb[0].mxu0 %v7193
    %v7261 = vpop.f32.mrb[0].mxu0
    %v7262 = vadd.f32 0.0, %v7261
    %v7263 = vpop.f32.mrb[0].mxu0
    %7264 = vdwg.mxu0
    %v7265 = vadd.f32 %v7189, %v7262
    %v7266 = vxor.u32 %v7265, 2147483648
    %v7267 = vmul.f32 %v7266, 1.442695
    %v7268 = vpow.pop %v7267
    %v7269 = vadd.f32 %v7268, 1.0
    %v7270 = vrcp.pop %v7269
    %v7271 = vmul.f32 1.0, %v7270
    %v7272 = vmul.f32 %v7271, 2.0
    %v7273 = vsub.f32 %v7272, 1.0
    %v7274 = vmul.f32 %v7271, %v7104
    %7276 = vrot.lane.b32.xlu0 %v7273, 64
    %v7277 = vpop.permute.xlu0 %7276
    %v7279 = vmul.f32 %v7271, %v7277
    %7281 = vrot.lane.b32.xlu0 %v7279, 32
    %v7282 = vpop.permute.xlu0 %7281
    %v7284 = vadd.f32 %v7274, %v7282
    %v7285 = vtanh.pop %v7284
    %7287 = vrot.lane.b32.xlu0 %v7285, 64
    %v7288 = vpop.permute.xlu0 %7287
    %v7290 = vmul.f32 %v7271, %v7288
    %v7291 = vtanh.pop %v7290
    %7293 = vrot.lane.b32.xlu0 %v7291, 32
    %v7294 = vpop.permute.xlu0 %7293
    %v7295 = vsel %vm159, %v7294, 0
    %7297 = vmatprep.subr.mxu0 0.0
    %7298 = vmatpush1.msra.mxu0 %v6098
    %7299 = vmatprep.subr.mxu0 0.0
    %7300 = vmatpush1.msra.mxu0 %v6099
    %7301 = vmatprep.subr.mxu0 0.0
    %7302 = vmatpush1.msra.mxu0 %v6100
    %7303 = vmatprep.subr.mxu0 0.0
    %7304 = vmatpush1.msra.mxu0 %v6101
    %7305 = vmatprep.subr.mxu0 0.0
    %7306 = vmatpush1.msra.mxu0 0.0
    %7307 = vmatprep.subr.mxu0 0.0
    %7308 = vmatpush1.msra.mxu0 0.0
    %7309 = vmatprep.subr.mxu0 0.0
    %7310 = vmatpush1.msra.mxu0 0.0
    %7311 = vmatprep.subr.mxu0 0.0
    %7312 = vmatpush1.msra.mxu0 0.0
    %7313 = vmatprep.subr.mxu0 0.0
    %7314 = vmatpush1.msra.mxu0 0.0
    %7315 = vmatprep.subr.mxu0 0.0
    %7316 = vmatpush1.msra.mxu0 0.0
    %7317 = vmatprep.subr.mxu0 0.0
    %7318 = vmatpush1.msra.mxu0 0.0
    %7319 = vmatprep.subr.mxu0 0.0
    %7320 = vmatpush1.msra.mxu0 0.0
    %7321 = vmatprep.subr.mxu0 0.0
    %7322 = vmatpush1.msra.mxu0 0.0
    %7323 = vmatprep.subr.mxu0 0.0
    %7324 = vmatpush1.msra.mxu0 0.0
    %7325 = vmatprep.subr.mxu0 0.0
    %7326 = vmatpush1.msra.mxu0 0.0
    %7327 = vmatprep.subr.mxu0 0.0
    %7328 = vmatpush1.msra.mxu0 0.0
    %7329 = vmatprep.subr.mxu0 0.0
    %7330 = vmatpush1.msra.mxu0 0.0
    %7331 = vmatprep.subr.mxu0 0.0
    %7332 = vmatpush1.msra.mxu0 0.0
    %7333 = vmatprep.subr.mxu0 0.0
    %7334 = vmatpush1.msra.mxu0 0.0
    %7335 = vmatprep.subr.mxu0 0.0
    %7336 = vmatpush1.msra.mxu0 0.0
    %7337 = vmatprep.subr.mxu0 0.0
    %7338 = vmatpush1.msra.mxu0 0.0
    %7339 = vmatprep.subr.mxu0 0.0
    %7340 = vmatpush1.msra.mxu0 0.0
    %7341 = vmatprep.subr.mxu0 0.0
    %7342 = vmatpush1.msra.mxu0 0.0
    %7343 = vmatprep.subr.mxu0 0.0
    %7344 = vmatpush1.msra.mxu0 0.0
    %7345 = vmatprep.subr.mxu0 0.0
    %7346 = vmatpush1.msra.mxu0 0.0
    %7347 = vmatprep.subr.mxu0 0.0
    %7348 = vmatpush1.msra.mxu0 0.0
    %7349 = vmatprep.subr.mxu0 0.0
    %7350 = vmatpush1.msra.mxu0 0.0
    %7351 = vmatprep.subr.mxu0 0.0
    %7352 = vmatpush1.msra.mxu0 0.0
    %7353 = vmatprep.subr.mxu0 0.0
    %7354 = vmatpush1.msra.mxu0 0.0
    %7355 = vmatprep.subr.mxu0 0.0
    %7356 = vmatpush1.msra.mxu0 0.0
    %7357 = vmatprep.subr.mxu0 0.0
    %7358 = vmatpush1.msra.mxu0 0.0
    %7359 = vmatprep.subr.mxu0 0.0
    %7360 = vmatpush1.msra.mxu0 0.0
    %7361 = vmatprep.mubr.f32.mxu0 0.0
    %7362 = vmatmul.mubr.f32.gmra.mrb[0].mxu0 %v7295
    %v7363 = vpop.f32.mrb[0].mxu0
    %v7364 = vadd.f32 %v6210, %v7363
    %v7365 = vpop.f32.mrb[0].mxu0
    %7366 = vdwg.mxu0
    %s7367 = scalar_lea.vmem [#allocation12], 12
    %7368 = vst.msk [vmem:[%s7367] sm:$0x3] %vm6287, %v7364
    %v7369 = vld [vmem:[%s1563] sm:$0x3]
    %7371 = vrot.lane.b32.xlu0 %v7290, 32
    %v7372 = vpop.permute.xlu0 %7371
    %v7373 = vsel %vm159, %v7372, 0
    %7375 = vmatprep.subr.mxu0 0.0
    %7376 = vmatpush1.msra.mxu0 %v6094
    %7377 = vmatprep.subr.mxu0 0.0
    %7378 = vmatpush1.msra.mxu0 %v6095
    %7379 = vmatprep.subr.mxu0 0.0
    %7380 = vmatpush1.msra.mxu0 %v6096
    %7381 = vmatprep.subr.mxu0 0.0
    %7382 = vmatpush1.msra.mxu0 %v6097
    %7383 = vmatprep.subr.mxu0 0.0
    %7384 = vmatpush1.msra.mxu0 0.0
    %7385 = vmatprep.subr.mxu0 0.0
    %7386 = vmatpush1.msra.mxu0 0.0
    %7387 = vmatprep.subr.mxu0 0.0
    %7388 = vmatpush1.msra.mxu0 0.0
    %7389 = vmatprep.subr.mxu0 0.0
    %7390 = vmatpush1.msra.mxu0 0.0
    %7391 = vmatprep.subr.mxu0 0.0
    %7392 = vmatpush1.msra.mxu0 0.0
    %7393 = vmatprep.subr.mxu0 0.0
    %7394 = vmatpush1.msra.mxu0 0.0
    %7395 = vmatprep.subr.mxu0 0.0
    %7396 = vmatpush1.msra.mxu0 0.0
    %7397 = vmatprep.subr.mxu0 0.0
    %7398 = vmatpush1.msra.mxu0 0.0
    %7399 = vmatprep.subr.mxu0 0.0
    %7400 = vmatpush1.msra.mxu0 0.0
    %7401 = vmatprep.subr.mxu0 0.0
    %7402 = vmatpush1.msra.mxu0 0.0
    %7403 = vmatprep.subr.mxu0 0.0
    %7404 = vmatpush1.msra.mxu0 0.0
    %7405 = vmatprep.subr.mxu0 0.0
    %7406 = vmatpush1.msra.mxu0 0.0
    %7407 = vmatprep.subr.mxu0 0.0
    %7408 = vmatpush1.msra.mxu0 0.0
    %7409 = vmatprep.subr.mxu0 0.0
    %7410 = vmatpush1.msra.mxu0 0.0
    %7411 = vmatprep.subr.mxu0 0.0
    %7412 = vmatpush1.msra.mxu0 0.0
    %7413 = vmatprep.subr.mxu0 0.0
    %7414 = vmatpush1.msra.mxu0 0.0
    %7415 = vmatprep.subr.mxu0 0.0
    %7416 = vmatpush1.msra.mxu0 0.0
    %7417 = vmatprep.subr.mxu0 0.0
    %7418 = vmatpush1.msra.mxu0 0.0
    %7419 = vmatprep.subr.mxu0 0.0
    %7420 = vmatpush1.msra.mxu0 0.0
    %7421 = vmatprep.subr.mxu0 0.0
    %7422 = vmatpush1.msra.mxu0 0.0
    %7423 = vmatprep.subr.mxu0 0.0
    %7424 = vmatpush1.msra.mxu0 0.0
    %7425 = vmatprep.subr.mxu0 0.0
    %7426 = vmatpush1.msra.mxu0 0.0
    %7427 = vmatprep.subr.mxu0 0.0
    %7428 = vmatpush1.msra.mxu0 0.0
    %7429 = vmatprep.subr.mxu0 0.0
    %7430 = vmatpush1.msra.mxu0 0.0
    %7431 = vmatprep.subr.mxu0 0.0
    %7432 = vmatpush1.msra.mxu0 0.0
    %7433 = vmatprep.subr.mxu0 0.0
    %7434 = vmatpush1.msra.mxu0 0.0
    %7435 = vmatprep.subr.mxu0 0.0
    %7436 = vmatpush1.msra.mxu0 0.0
    %7437 = vmatprep.subr.mxu0 0.0
    %7438 = vmatpush1.msra.mxu0 0.0
    %7439 = vmatprep.mubr.f32.mxu0 0.0
    %7440 = vmatmul.mubr.f32.gmra.mrb[0].mxu0 %v7373
    %v7441 = vpop.f32.mrb[0].mxu0
    %v7442 = vadd.f32 0.0, %v7441
    %v7443 = vpop.f32.mrb[0].mxu0
    %7444 = vdwg.mxu0
    %v7445 = vadd.f32 %v7369, %v7442
    %v7446 = vxor.u32 %v7445, 2147483648
    %v7447 = vmul.f32 %v7446, 1.442695
    %v7448 = vpow.pop %v7447
    %v7449 = vadd.f32 %v7448, 1.0
    %v7450 = vrcp.pop %v7449
    %v7451 = vmul.f32 1.0, %v7450
    %v7452 = vmul.f32 %v7451, 2.0
    %v7453 = vsub.f32 %v7452, 1.0
    %v7454 = vmul.f32 %v7451, %v7284
    %7456 = vrot.lane.b32.xlu0 %v7453, 64
    %v7457 = vpop.permute.xlu0 %7456
    %v7459 = vmul.f32 %v7451, %v7457
    %7461 = vrot.lane.b32.xlu0 %v7459, 32
    %v7462 = vpop.permute.xlu0 %7461
    %v7464 = vadd.f32 %v7454, %v7462
    %v7465 = vtanh.pop %v7464
    %7467 = vrot.lane.b32.xlu0 %v7465, 64
    %v7468 = vpop.permute.xlu0 %7467
    %v7470 = vmul.f32 %v7451, %v7468
    %v7471 = vtanh.pop %v7470
    %7473 = vrot.lane.b32.xlu0 %v7471, 32
    %v7474 = vpop.permute.xlu0 %7473
    %v7475 = vsel %vm159, %v7474, 0
    %7477 = vmatprep.subr.mxu0 0.0
    %7478 = vmatpush1.msra.mxu0 %v6098
    %7479 = vmatprep.subr.mxu0 0.0
    %7480 = vmatpush1.msra.mxu0 %v6099
    %7481 = vmatprep.subr.mxu0 0.0
    %7482 = vmatpush1.msra.mxu0 %v6100
    %7483 = vmatprep.subr.mxu0 0.0
    %7484 = vmatpush1.msra.mxu0 %v6101
    %7485 = vmatprep.subr.mxu0 0.0
    %7486 = vmatpush1.msra.mxu0 0.0
    %7487 = vmatprep.subr.mxu0 0.0
    %7488 = vmatpush1.msra.mxu0 0.0
    %7489 = vmatprep.subr.mxu0 0.0
    %7490 = vmatpush1.msra.mxu0 0.0
    %7491 = vmatprep.subr.mxu0 0.0
    %7492 = vmatpush1.msra.mxu0 0.0
    %7493 = vmatprep.subr.mxu0 0.0
    %7494 = vmatpush1.msra.mxu0 0.0
    %7495 = vmatprep.subr.mxu0 0.0
    %7496 = vmatpush1.msra.mxu0 0.0
    %7497 = vmatprep.subr.mxu0 0.0
    %7498 = vmatpush1.msra.mxu0 0.0
    %7499 = vmatprep.subr.mxu0 0.0
    %7500 = vmatpush1.msra.mxu0 0.0
    %7501 = vmatprep.subr.mxu0 0.0
    %7502 = vmatpush1.msra.mxu0 0.0
    %7503 = vmatprep.subr.mxu0 0.0
    %7504 = vmatpush1.msra.mxu0 0.0
    %7505 = vmatprep.subr.mxu0 0.0
    %7506 = vmatpush1.msra.mxu0 0.0
    %7507 = vmatprep.subr.mxu0 0.0
    %7508 = vmatpush1.msra.mxu0 0.0
    %7509 = vmatprep.subr.mxu0 0.0
    %7510 = vmatpush1.msra.mxu0 0.0
    %7511 = vmatprep.subr.mxu0 0.0
    %7512 = vmatpush1.msra.mxu0 0.0
    %7513 = vmatprep.subr.mxu0 0.0
    %7514 = vmatpush1.msra.mxu0 0.0
    %7515 = vmatprep.subr.mxu0 0.0
    %7516 = vmatpush1.msra.mxu0 0.0
    %7517 = vmatprep.subr.mxu0 0.0
    %7518 = vmatpush1.msra.mxu0 0.0
    %7519 = vmatprep.subr.mxu0 0.0
    %7520 = vmatpush1.msra.mxu0 0.0
    %7521 = vmatprep.subr.mxu0 0.0
    %7522 = vmatpush1.msra.mxu0 0.0
    %7523 = vmatprep.subr.mxu0 0.0
    %7524 = vmatpush1.msra.mxu0 0.0
    %7525 = vmatprep.subr.mxu0 0.0
    %7526 = vmatpush1.msra.mxu0 0.0
    %7527 = vmatprep.subr.mxu0 0.0
    %7528 = vmatpush1.msra.mxu0 0.0
    %7529 = vmatprep.subr.mxu0 0.0
    %7530 = vmatpush1.msra.mxu0 0.0
    %7531 = vmatprep.subr.mxu0 0.0
    %7532 = vmatpush1.msra.mxu0 0.0
    %7533 = vmatprep.subr.mxu0 0.0
    %7534 = vmatpush1.msra.mxu0 0.0
    %7535 = vmatprep.subr.mxu0 0.0
    %7536 = vmatpush1.msra.mxu0 0.0
    %7537 = vmatprep.subr.mxu0 0.0
    %7538 = vmatpush1.msra.mxu0 0.0
    %7539 = vmatprep.subr.mxu0 0.0
    %7540 = vmatpush1.msra.mxu0 0.0
    %7541 = vmatprep.mubr.f32.mxu0 0.0
    %7542 = vmatmul.mubr.f32.gmra.mrb[0].mxu0 %v7475
    %v7543 = vpop.f32.mrb[0].mxu0
    %v7544 = vadd.f32 %v6210, %v7543
    %v7545 = vpop.f32.mrb[0].mxu0
    %7546 = vdwg.mxu0
    %s7547 = scalar_lea.vmem [#allocation12], 14
    %7548 = vst.msk [vmem:[%s7547] sm:$0x3] %vm6287, %v7544
    // Predicated region
    $region54: #{tpu_custom_call.1} parent=1 // pred_check
      _
    $region55: #{tpu_custom_call.1} parent=1 // pred_check_branch
      %7550 = sbr.rel (0) target = $region57
    $region56: #{tpu_custom_call.1} parent=1 // pred_region
      %s7552 = ssub.s32 256, 256
      %7553 = vsyncadd [#allocation5], %s7552
      %s7554 = sshll.u32 [#allocation12], 4
      %s7555 = int_to_ptr.vmem [resolvable:$true] %s7554
      %7560 = dma.vmem_to_hbm [thread:$0]  %s7555, 256, %s8, [#allocation5], 32, 32, 2
    $region57: #{tpu_custom_call.1} parent=1 // pred_fallthru
      _
    // Predicated region
    $region58: #{tpu_custom_call.1} parent=1 // pred_check
      _
    $region59: #{tpu_custom_call.1} parent=1 // pred_check_branch
      %7562 = sbr.rel (0) target = $region61
    $region60: #{tpu_custom_call.1} parent=1 // pred_region
      %7563 = dma.done [#allocation5], 256
    $region61: #{tpu_custom_call.1} parent=1 // pred_fallthru
      _
    %7564 = vsyncpa [#allocation4], 1
    %7565 = vsyncpa [#allocation7], 1
    %7566 = vsyncpa [#allocation10], 1
    %7567 = vsyncpa [#allocation5], 1

</llo_original>
